<compile_context>
chip_gen: v5e
topology: v5e:2x2
jax: 0.10.0
libtpu: 0.0.40
codegen_flags: <defaults>
</compile_context>

<pallas_src>
import functools
import math

import jax
import jax.numpy as jnp
from jax.experimental import pallas as pl
from jax.experimental.pallas import tpu as pltpu

EPS = 1e-5


# ---------------------------------------------------------------------------
# In-kernel building blocks (jnp values, everything stays in VMEM)
# ---------------------------------------------------------------------------
def _linear(x, w, b, relu=False):
    y = jnp.dot(x, w, preferred_element_type=jnp.float32) + b
    if relu:
        y = jnp.maximum(y, 0.0)
    return y


def _layernorm(x, g, b):
    mean = jnp.mean(x, axis=-1, keepdims=True)
    var = jnp.mean((x - mean) ** 2, axis=-1, keepdims=True)
    return (x - mean) * jax.lax.rsqrt(var + EPS) * g + b


def _attention_heads(q, k, v, wo, bo, B, Sq, Sk, nhead):
    """q:(B*Sq,D), k/v:(B*Sk,D) in batch-major row order. Returns out-proj'd (B*Sq,D)."""
    D = q.shape[-1]
    Dh = D // nhead
    scale = 1.0 / math.sqrt(Dh)
    out = jnp.zeros((B * Sq, D), dtype=jnp.float32)
    for h in range(nhead):                       # unrolled at trace time (nhead=4)
        sl = slice(h * Dh, (h + 1) * Dh)
        qh = (q[:, sl] * scale).reshape(B, Sq, Dh)
        kh = k[:, sl].reshape(B, Sk, Dh)
        vh = v[:, sl].reshape(B, Sk, Dh)
        s = jnp.einsum("bqd,bkd->bqk", qh, kh, preferred_element_type=jnp.float32)
        s = s - jnp.max(s, axis=-1, keepdims=True)
        e = jnp.exp(s)
        probs = e * pl.reciprocal(jnp.sum(e, axis=-1, keepdims=True))
        oh = jnp.einsum("bqk,bkd->bqd", probs, vh, preferred_element_type=jnp.float32)
        # accumulate the output projection per head -> no lane-dim concat needed
        out = out + jnp.dot(oh.reshape(B * Sq, Dh), wo[sl, :],
                            preferred_element_type=jnp.float32)
    return out + bo


def _self_attn(x, prm, B, S, nhead):
    D = x.shape[-1]
    qkv = _linear(x, prm["w_qkv"], prm["b_qkv"])          # fused (D, 3D) projection
    q, k, v = qkv[:, 0:D], qkv[:, D:2 * D], qkv[:, 2 * D:3 * D]
    return _attention_heads(q, k, v, prm["wo"], prm["bo"], B, S, S, nhead)


def _cross_attn(x, mem, prm, B, Sq, Sk, nhead):
    D = x.shape[-1]
    q = _linear(x, prm["wq"], prm["bq"])
    kv = _linear(mem, prm["w_kv"], prm["b_kv"])           # fused (D, 2D) K/V projection
    k, v = kv[:, 0:D], kv[:, D:2 * D]
    return _attention_heads(q, k, v, prm["wo"], prm["bo"], B, Sq, Sk, nhead)


def _encoder_layer(x, lp, B, S, nhead):
    sa = _self_attn(x, lp["self_attn"], B, S, nhead)
    x = _layernorm(x + sa, lp["ln1_g"], lp["ln1_b"])
    h = _linear(x, lp["w1"], lp["b1"], relu=True)
    h = _linear(h, lp["w2"], lp["b2"])
    return _layernorm(x + h, lp["ln2_g"], lp["ln2_b"])


def _decoder_layer(x, mem, lp, B, S_tgt, S_src, nhead):
    sa = _self_attn(x, lp["self_attn"], B, S_tgt, nhead)
    x = _layernorm(x + sa, lp["ln1_g"], lp["ln1_b"])
    ca = _cross_attn(x, mem, lp["cross_attn"], B, S_tgt, S_src, nhead)
    x = _layernorm(x + ca, lp["ln2_g"], lp["ln2_b"])
    h = _linear(x, lp["w1"], lp["b1"], relu=True)
    h = _linear(h, lp["w2"], lp["b2"])
    return _layernorm(x + h, lp["ln3_g"], lp["ln3_b"])


# ---------------------------------------------------------------------------
# The single fused kernel: pos-encoding + layout + encoder + decoder + out Linear
# ---------------------------------------------------------------------------
def _make_kernel(treedef, n_leaves, B, S_src, S_tgt, D, nhead):
    def kernel(*refs):
        src_ref, tgt_ref, pe_ref = refs[0], refs[1], refs[2]
        param_refs = refs[3:3 + n_leaves]
        out_ref = refs[3 + n_leaves]

        prm = jax.tree_util.tree_unflatten(treedef, [r[...] for r in param_refs])

        def load_batch_major(ref):
            # ref holds the natural (S, B, D) tensor as (S, B*D) (free reshape).
            # Batch b = static lane slice; add its positional-encoding row
            # (PyTorch indexes pe by the batch index); stack batches along rows.
            parts = []
            for b in range(B):                   # B small & static -> unrolled
                xb = ref[:, b * D:(b + 1) * D] + pe_ref[b:b + 1, :]
                parts.append(xb)
            return jnp.concatenate(parts, axis=0).astype(jnp.float32)   # (B*S, D)

        # ----- encoder stack -----
        mem = load_batch_major(src_ref)                     # (B*S_src, D)
        for lp in prm["enc_layers"]:
            mem = _encoder_layer(mem, lp, B, S_src, nhead)
        mem = _layernorm(mem, prm["enc_norm_g"], prm["enc_norm_b"])

        # ----- decoder stack -----
        x = load_batch_major(tgt_ref)                       # (B*S_tgt, D)
        for lp in prm["dec_layers"]:
            x = _decoder_layer(x, mem, lp, B, S_tgt, S_src, nhead)
        x = _layernorm(x, prm["dec_norm_g"], prm["dec_norm_b"])

        # ----- final Linear (self.decoder) -----
        y = _linear(x, prm["out_w"], prm["out_b"])          # (B*S_tgt, D)

        # Back to the natural seq-major layout (S_tgt, B*D): one lane concat,
        # single contiguous store; wrapper reshape to (S_tgt, B, D) is free.
        out_ref[...] = jnp.concatenate(
            [y[b * S_tgt:(b + 1) * S_tgt, :] for b in range(B)], axis=1
        ).astype(out_ref.dtype)

    return kernel


def traj_transformer_forward(params, src, tgt, *, nhead):
    if tgt is None:
        # TODO(synk): tgt=None autoregressive path (pred_len = 16*150 sequential
        # full-transformer calls with in-place tgt[i] writes) not implemented.
        raise NotImplementedError("tgt=None autoregressive path not implemented")

    S_src, B, D = src.shape
    S_tgt = tgt.shape[0]
    assert D % nhead == 0

    pe = params["pos_encoding"]                  # (max_len, D); added in-kernel
    assert B <= pe.shape[0]
    net = params["net"]
    flat, treedef = jax.tree_util.tree_flatten(net)
    n_leaves = len(flat)

    # Free, contiguity-preserving reshapes (no transpose, no copy): the kernel
    # does the seq-major <-> batch-major conversion internally via lane slices.
    src2 = src.reshape(S_src, B * D)
    tgt2 = tgt.reshape(S_tgt, B * D)

    kernel = _make_kernel(treedef, n_leaves, B, S_src, S_tgt, D, nhead)

    # --- advisory cost estimate (matmul flops + exp count + HBM traffic) ---
    Ms, Mt = B * S_src, B * S_tgt
    H = nhead
    dff = net["enc_layers"][0]["w1"].shape[1]
    n_enc = len(net["enc_layers"])
    n_dec = len(net["dec_layers"])

    def attn_core(Mq, Sq, Sk):
        return 4 * B * H * Sq * Sk * (D // H) + 2 * Mq * D * D

    enc_fl = 2 * Ms * D * 3 * D + attn_core(Ms, S_src, S_src) + 4 * Ms * D * dff
    dec_fl = (2 * Mt * D * 3 * D + attn_core(Mt, S_tgt, S_tgt)
              + 2 * Mt * D * D + 2 * Ms * D * 2 * D + attn_core(Mt, S_tgt, S_src)
              + 4 * Mt * D * dff)
    flops = int(n_enc * enc_fl + n_dec * dec_fl + 2 * Mt * D * D)
    transcendentals = int(B * H * (n_enc * S_src * S_src
                                   + n_dec * (S_tgt * S_tgt + S_tgt * S_src)))
    bytes_accessed = int(4 * (src2.size + tgt2.size + pe.size + Mt * D
                              + sum(int(x.size) for x in flat)))

    vmem_spec = pl.BlockSpec(memory_space=pltpu.MemorySpace.VMEM)
    out2 = pl.pallas_call(
        kernel,
        out_shape=jax.ShapeDtypeStruct((S_tgt, B * D), src.dtype),
        in_specs=[vmem_spec] * (3 + n_leaves),
        out_specs=vmem_spec,
        compiler_params=pltpu.CompilerParams(vmem_limit_bytes=32 * 1024 * 1024),
        cost_estimate=pl.CostEstimate(flops=flops,
                                      transcendentals=transcendentals,
                                      bytes_accessed=bytes_accessed),
    )(src2, tgt2, pe, *flat)

    # (S_tgt, B*D) -> PyTorch's (S_tgt, B, D) batch_first=False layout (free reshape)
    return out2.reshape(S_tgt, B, D)


# ---------------------------------------------------------------------------
# Deterministic parameter construction (synthetic init, shapes from __init__)
# ---------------------------------------------------------------------------
def make_positional_encoding(d_model, max_len):
    position = jnp.arange(max_len, dtype=jnp.float32)[:, None]
    div_term = jnp.exp(jnp.arange(0, d_model, 2, dtype=jnp.float32)
                       * (-math.log(10000.0) / d_model))
    pe = jnp.zeros((max_len, d_model), dtype=jnp.float32)
    pe = pe.at[:, 0::2].set(jnp.sin(position * div_term))
    pe = pe.at[:, 1::2].set(jnp.cos(position * div_term))
    return pe


def init_params(key, d_model, nhead, n_enc, n_dec, dff, max_len):
    keys = iter(jax.random.split(key, 512))

    def w(shape, scale=0.05):
        return scale * jax.random.normal(next(keys), shape, dtype=jnp.float32)

    row = lambda n: w((1, n))                      # biases stored as (1, N)
    ones = lambda n: jnp.ones((1, n), jnp.float32)
    zeros = lambda n: jnp.zeros((1, n), jnp.float32)

    def self_attn():
        return dict(w_qkv=w((d_model, 3 * d_model)), b_qkv=row(3 * d_model),
                    wo=w((d_model, d_model)), bo=row(d_model))

    def cross_attn():
        return dict(wq=w((d_model, d_model)), bq=row(d_model),
                    w_kv=w((d_model, 2 * d_model)), b_kv=row(2 * d_model),
                    wo=w((d_model, d_model)), bo=row(d_model))

    def enc():
        return dict(self_attn=self_attn(),
                    w1=w((d_model, dff)), b1=row(dff),
                    w2=w((dff, d_model)), b2=row(d_model),
                    ln1_g=ones(d_model), ln1_b=zeros(d_model),
                    ln2_g=ones(d_model), ln2_b=zeros(d_model))

    def dec():
        return dict(self_attn=self_attn(), cross_attn=cross_attn(),
                    w1=w((d_model, dff)), b1=row(dff),
                    w2=w((dff, d_model)), b2=row(d_model),
                    ln1_g=ones(d_model), ln1_b=zeros(d_model),
                    ln2_g=ones(d_model), ln2_b=zeros(d_model),
                    ln3_g=ones(d_model), ln3_b=zeros(d_model))

    net = dict(enc_layers=[enc() for _ in range(n_enc)],
               dec_layers=[dec() for _ in range(n_dec)],
               enc_norm_g=ones(d_model), enc_norm_b=zeros(d_model),
               dec_norm_g=ones(d_model), dec_norm_b=zeros(d_model),
               out_w=w((d_model, d_model)), out_b=row(d_model))

    return dict(pos_encoding=make_positional_encoding(d_model, max_len), net=net)


# ---------------------------------------------------------------------------
if __name__ == "__main__":
    feature_size = 32
    nhead = 4
    num_encoder_layers = 2
    num_decoder_layers = 2
    dim_feedforward = 64
    max_seq_length = 50

    seq_src, seq_tgt, batch = 8, 8, 2

    key = jax.random.PRNGKey(0)
    k_src, k_tgt, k_par = jax.random.split(key, 3)
    src = jax.random.normal(k_src, (seq_src, batch, feature_size), dtype=jnp.float32)
    tgt = jax.random.normal(k_tgt, (seq_tgt, batch, feature_size), dtype=jnp.float32)

    params = init_params(k_par, feature_size, nhead, num_encoder_layers,
                         num_decoder_layers, dim_feedforward, max_seq_length)

    fwd = jax.jit(functools.partial(traj_transformer_forward, nhead=nhead))
    out = fwd(params, src, tgt)
    out = jax.block_until_ready(out)

    assert out.shape == (seq_tgt, batch, feature_size)
    assert jnp.all(jnp.isfinite(out))
    print("KERNEL_OK")
</pallas_src>

<mosaic_0001>
module attributes {stable_mosaic.version = 11 : i64} {
  func.func @kernel(%arg0: memref<8x64xf32, #tpu.memory_space<vmem>>, %arg1: memref<8x64xf32, #tpu.memory_space<vmem>>, %arg2: memref<50x32xf32, #tpu.memory_space<vmem>>, %arg3: memref<1x64xf32, #tpu.memory_space<vmem>>, %arg4: memref<1x32xf32, #tpu.memory_space<vmem>>, %arg5: memref<1x64xf32, #tpu.memory_space<vmem>>, %arg6: memref<1x32xf32, #tpu.memory_space<vmem>>, %arg7: memref<1x32xf32, #tpu.memory_space<vmem>>, %arg8: memref<32x64xf32, #tpu.memory_space<vmem>>, %arg9: memref<32x32xf32, #tpu.memory_space<vmem>>, %arg10: memref<32x32xf32, #tpu.memory_space<vmem>>, %arg11: memref<1x32xf32, #tpu.memory_space<vmem>>, %arg12: memref<1x32xf32, #tpu.memory_space<vmem>>, %arg13: memref<1x32xf32, #tpu.memory_space<vmem>>, %arg14: memref<1x32xf32, #tpu.memory_space<vmem>>, %arg15: memref<1x32xf32, #tpu.memory_space<vmem>>, %arg16: memref<1x32xf32, #tpu.memory_space<vmem>>, %arg17: memref<1x96xf32, #tpu.memory_space<vmem>>, %arg18: memref<1x32xf32, #tpu.memory_space<vmem>>, %arg19: memref<32x96xf32, #tpu.memory_space<vmem>>, %arg20: memref<32x32xf32, #tpu.memory_space<vmem>>, %arg21: memref<32x64xf32, #tpu.memory_space<vmem>>, %arg22: memref<64x32xf32, #tpu.memory_space<vmem>>, %arg23: memref<1x64xf32, #tpu.memory_space<vmem>>, %arg24: memref<1x32xf32, #tpu.memory_space<vmem>>, %arg25: memref<1x64xf32, #tpu.memory_space<vmem>>, %arg26: memref<1x32xf32, #tpu.memory_space<vmem>>, %arg27: memref<1x32xf32, #tpu.memory_space<vmem>>, %arg28: memref<32x64xf32, #tpu.memory_space<vmem>>, %arg29: memref<32x32xf32, #tpu.memory_space<vmem>>, %arg30: memref<32x32xf32, #tpu.memory_space<vmem>>, %arg31: memref<1x32xf32, #tpu.memory_space<vmem>>, %arg32: memref<1x32xf32, #tpu.memory_space<vmem>>, %arg33: memref<1x32xf32, #tpu.memory_space<vmem>>, %arg34: memref<1x32xf32, #tpu.memory_space<vmem>>, %arg35: memref<1x32xf32, #tpu.memory_space<vmem>>, %arg36: memref<1x32xf32, #tpu.memory_space<vmem>>, %arg37: memref<1x96xf32, #tpu.memory_space<vmem>>, %arg38: memref<1x32xf32, #tpu.memory_space<vmem>>, %arg39: memref<32x96xf32, #tpu.memory_space<vmem>>, %arg40: memref<32x32xf32, #tpu.memory_space<vmem>>, %arg41: memref<32x64xf32, #tpu.memory_space<vmem>>, %arg42: memref<64x32xf32, #tpu.memory_space<vmem>>, %arg43: memref<1x32xf32, #tpu.memory_space<vmem>>, %arg44: memref<1x32xf32, #tpu.memory_space<vmem>>, %arg45: memref<1x64xf32, #tpu.memory_space<vmem>>, %arg46: memref<1x32xf32, #tpu.memory_space<vmem>>, %arg47: memref<1x32xf32, #tpu.memory_space<vmem>>, %arg48: memref<1x32xf32, #tpu.memory_space<vmem>>, %arg49: memref<1x32xf32, #tpu.memory_space<vmem>>, %arg50: memref<1x32xf32, #tpu.memory_space<vmem>>, %arg51: memref<1x96xf32, #tpu.memory_space<vmem>>, %arg52: memref<1x32xf32, #tpu.memory_space<vmem>>, %arg53: memref<32x96xf32, #tpu.memory_space<vmem>>, %arg54: memref<32x32xf32, #tpu.memory_space<vmem>>, %arg55: memref<32x64xf32, #tpu.memory_space<vmem>>, %arg56: memref<64x32xf32, #tpu.memory_space<vmem>>, %arg57: memref<1x64xf32, #tpu.memory_space<vmem>>, %arg58: memref<1x32xf32, #tpu.memory_space<vmem>>, %arg59: memref<1x32xf32, #tpu.memory_space<vmem>>, %arg60: memref<1x32xf32, #tpu.memory_space<vmem>>, %arg61: memref<1x32xf32, #tpu.memory_space<vmem>>, %arg62: memref<1x32xf32, #tpu.memory_space<vmem>>, %arg63: memref<1x96xf32, #tpu.memory_space<vmem>>, %arg64: memref<1x32xf32, #tpu.memory_space<vmem>>, %arg65: memref<32x96xf32, #tpu.memory_space<vmem>>, %arg66: memref<32x32xf32, #tpu.memory_space<vmem>>, %arg67: memref<32x64xf32, #tpu.memory_space<vmem>>, %arg68: memref<64x32xf32, #tpu.memory_space<vmem>>, %arg69: memref<1x32xf32, #tpu.memory_space<vmem>>, %arg70: memref<1x32xf32, #tpu.memory_space<vmem>>, %arg71: memref<1x32xf32, #tpu.memory_space<vmem>>, %arg72: memref<32x32xf32, #tpu.memory_space<vmem>>, %arg73: memref<8x64xf32, #tpu.memory_space<vmem>>) attributes {dimension_semantics = [], scalar_prefetch = 0 : i64, scratch_operands = 0 : i64, tpu.core_type = #tpu.core_type<tc>} {
    %c0 = arith.constant 0 : index
    %c0_0 = arith.constant 0 : index
    %0 = vector.load %arg3[%c0, %c0_0] : memref<1x64xf32, #tpu.memory_space<vmem>>, vector<1x64xf32>
    %c0_1 = arith.constant 0 : index
    %c0_2 = arith.constant 0 : index
    %1 = vector.load %arg4[%c0_1, %c0_2] : memref<1x32xf32, #tpu.memory_space<vmem>>, vector<1x32xf32>
    %c0_3 = arith.constant 0 : index
    %c0_4 = arith.constant 0 : index
    %2 = vector.load %arg5[%c0_3, %c0_4] : memref<1x64xf32, #tpu.memory_space<vmem>>, vector<1x64xf32>
    %c0_5 = arith.constant 0 : index
    %c0_6 = arith.constant 0 : index
    %3 = vector.load %arg6[%c0_5, %c0_6] : memref<1x32xf32, #tpu.memory_space<vmem>>, vector<1x32xf32>
    %c0_7 = arith.constant 0 : index
    %c0_8 = arith.constant 0 : index
    %4 = vector.load %arg7[%c0_7, %c0_8] : memref<1x32xf32, #tpu.memory_space<vmem>>, vector<1x32xf32>
    %c0_9 = arith.constant 0 : index
    %c0_10 = arith.constant 0 : index
    %5 = vector.load %arg8[%c0_9, %c0_10] : memref<32x64xf32, #tpu.memory_space<vmem>>, vector<32x64xf32>
    %c0_11 = arith.constant 0 : index
    %c0_12 = arith.constant 0 : index
    %6 = vector.load %arg9[%c0_11, %c0_12] : memref<32x32xf32, #tpu.memory_space<vmem>>, vector<32x32xf32>
    %c0_13 = arith.constant 0 : index
    %c0_14 = arith.constant 0 : index
    %7 = vector.load %arg10[%c0_13, %c0_14] : memref<32x32xf32, #tpu.memory_space<vmem>>, vector<32x32xf32>
    %c0_15 = arith.constant 0 : index
    %c0_16 = arith.constant 0 : index
    %8 = vector.load %arg11[%c0_15, %c0_16] : memref<1x32xf32, #tpu.memory_space<vmem>>, vector<1x32xf32>
    %c0_17 = arith.constant 0 : index
    %c0_18 = arith.constant 0 : index
    %9 = vector.load %arg12[%c0_17, %c0_18] : memref<1x32xf32, #tpu.memory_space<vmem>>, vector<1x32xf32>
    %c0_19 = arith.constant 0 : index
    %c0_20 = arith.constant 0 : index
    %10 = vector.load %arg13[%c0_19, %c0_20] : memref<1x32xf32, #tpu.memory_space<vmem>>, vector<1x32xf32>
    %c0_21 = arith.constant 0 : index
    %c0_22 = arith.constant 0 : index
    %11 = vector.load %arg14[%c0_21, %c0_22] : memref<1x32xf32, #tpu.memory_space<vmem>>, vector<1x32xf32>
    %c0_23 = arith.constant 0 : index
    %c0_24 = arith.constant 0 : index
    %12 = vector.load %arg15[%c0_23, %c0_24] : memref<1x32xf32, #tpu.memory_space<vmem>>, vector<1x32xf32>
    %c0_25 = arith.constant 0 : index
    %c0_26 = arith.constant 0 : index
    %13 = vector.load %arg16[%c0_25, %c0_26] : memref<1x32xf32, #tpu.memory_space<vmem>>, vector<1x32xf32>
    %c0_27 = arith.constant 0 : index
    %c0_28 = arith.constant 0 : index
    %14 = vector.load %arg17[%c0_27, %c0_28] : memref<1x96xf32, #tpu.memory_space<vmem>>, vector<1x96xf32>
    %c0_29 = arith.constant 0 : index
    %c0_30 = arith.constant 0 : index
    %15 = vector.load %arg18[%c0_29, %c0_30] : memref<1x32xf32, #tpu.memory_space<vmem>>, vector<1x32xf32>
    %c0_31 = arith.constant 0 : index
    %c0_32 = arith.constant 0 : index
    %16 = vector.load %arg19[%c0_31, %c0_32] : memref<32x96xf32, #tpu.memory_space<vmem>>, vector<32x96xf32>
    %c0_33 = arith.constant 0 : index
    %c0_34 = arith.constant 0 : index
    %17 = vector.load %arg20[%c0_33, %c0_34] : memref<32x32xf32, #tpu.memory_space<vmem>>, vector<32x32xf32>
    %c0_35 = arith.constant 0 : index
    %c0_36 = arith.constant 0 : index
    %18 = vector.load %arg21[%c0_35, %c0_36] : memref<32x64xf32, #tpu.memory_space<vmem>>, vector<32x64xf32>
    %c0_37 = arith.constant 0 : index
    %c0_38 = arith.constant 0 : index
    %19 = vector.load %arg22[%c0_37, %c0_38] : memref<64x32xf32, #tpu.memory_space<vmem>>, vector<64x32xf32>
    %c0_39 = arith.constant 0 : index
    %c0_40 = arith.constant 0 : index
    %20 = vector.load %arg23[%c0_39, %c0_40] : memref<1x64xf32, #tpu.memory_space<vmem>>, vector<1x64xf32>
    %c0_41 = arith.constant 0 : index
    %c0_42 = arith.constant 0 : index
    %21 = vector.load %arg24[%c0_41, %c0_42] : memref<1x32xf32, #tpu.memory_space<vmem>>, vector<1x32xf32>
    %c0_43 = arith.constant 0 : index
    %c0_44 = arith.constant 0 : index
    %22 = vector.load %arg25[%c0_43, %c0_44] : memref<1x64xf32, #tpu.memory_space<vmem>>, vector<1x64xf32>
    %c0_45 = arith.constant 0 : index
    %c0_46 = arith.constant 0 : index
    %23 = vector.load %arg26[%c0_45, %c0_46] : memref<1x32xf32, #tpu.memory_space<vmem>>, vector<1x32xf32>
    %c0_47 = arith.constant 0 : index
    %c0_48 = arith.constant 0 : index
    %24 = vector.load %arg27[%c0_47, %c0_48] : memref<1x32xf32, #tpu.memory_space<vmem>>, vector<1x32xf32>
    %c0_49 = arith.constant 0 : index
    %c0_50 = arith.constant 0 : index
    %25 = vector.load %arg28[%c0_49, %c0_50] : memref<32x64xf32, #tpu.memory_space<vmem>>, vector<32x64xf32>
    %c0_51 = arith.constant 0 : index
    %c0_52 = arith.constant 0 : index
    %26 = vector.load %arg29[%c0_51, %c0_52] : memref<32x32xf32, #tpu.memory_space<vmem>>, vector<32x32xf32>
    %c0_53 = arith.constant 0 : index
    %c0_54 = arith.constant 0 : index
    %27 = vector.load %arg30[%c0_53, %c0_54] : memref<32x32xf32, #tpu.memory_space<vmem>>, vector<32x32xf32>
    %c0_55 = arith.constant 0 : index
    %c0_56 = arith.constant 0 : index
    %28 = vector.load %arg31[%c0_55, %c0_56] : memref<1x32xf32, #tpu.memory_space<vmem>>, vector<1x32xf32>
    %c0_57 = arith.constant 0 : index
    %c0_58 = arith.constant 0 : index
    %29 = vector.load %arg32[%c0_57, %c0_58] : memref<1x32xf32, #tpu.memory_space<vmem>>, vector<1x32xf32>
    %c0_59 = arith.constant 0 : index
    %c0_60 = arith.constant 0 : index
    %30 = vector.load %arg33[%c0_59, %c0_60] : memref<1x32xf32, #tpu.memory_space<vmem>>, vector<1x32xf32>
    %c0_61 = arith.constant 0 : index
    %c0_62 = arith.constant 0 : index
    %31 = vector.load %arg34[%c0_61, %c0_62] : memref<1x32xf32, #tpu.memory_space<vmem>>, vector<1x32xf32>
    %c0_63 = arith.constant 0 : index
    %c0_64 = arith.constant 0 : index
    %32 = vector.load %arg35[%c0_63, %c0_64] : memref<1x32xf32, #tpu.memory_space<vmem>>, vector<1x32xf32>
    %c0_65 = arith.constant 0 : index
    %c0_66 = arith.constant 0 : index
    %33 = vector.load %arg36[%c0_65, %c0_66] : memref<1x32xf32, #tpu.memory_space<vmem>>, vector<1x32xf32>
    %c0_67 = arith.constant 0 : index
    %c0_68 = arith.constant 0 : index
    %34 = vector.load %arg37[%c0_67, %c0_68] : memref<1x96xf32, #tpu.memory_space<vmem>>, vector<1x96xf32>
    %c0_69 = arith.constant 0 : index
    %c0_70 = arith.constant 0 : index
    %35 = vector.load %arg38[%c0_69, %c0_70] : memref<1x32xf32, #tpu.memory_space<vmem>>, vector<1x32xf32>
    %c0_71 = arith.constant 0 : index
    %c0_72 = arith.constant 0 : index
    %36 = vector.load %arg39[%c0_71, %c0_72] : memref<32x96xf32, #tpu.memory_space<vmem>>, vector<32x96xf32>
    %c0_73 = arith.constant 0 : index
    %c0_74 = arith.constant 0 : index
    %37 = vector.load %arg40[%c0_73, %c0_74] : memref<32x32xf32, #tpu.memory_space<vmem>>, vector<32x32xf32>
    %c0_75 = arith.constant 0 : index
    %c0_76 = arith.constant 0 : index
    %38 = vector.load %arg41[%c0_75, %c0_76] : memref<32x64xf32, #tpu.memory_space<vmem>>, vector<32x64xf32>
    %c0_77 = arith.constant 0 : index
    %c0_78 = arith.constant 0 : index
    %39 = vector.load %arg42[%c0_77, %c0_78] : memref<64x32xf32, #tpu.memory_space<vmem>>, vector<64x32xf32>
    %c0_79 = arith.constant 0 : index
    %c0_80 = arith.constant 0 : index
    %40 = vector.load %arg43[%c0_79, %c0_80] : memref<1x32xf32, #tpu.memory_space<vmem>>, vector<1x32xf32>
    %c0_81 = arith.constant 0 : index
    %c0_82 = arith.constant 0 : index
    %41 = vector.load %arg44[%c0_81, %c0_82] : memref<1x32xf32, #tpu.memory_space<vmem>>, vector<1x32xf32>
    %c0_83 = arith.constant 0 : index
    %c0_84 = arith.constant 0 : index
    %42 = vector.load %arg45[%c0_83, %c0_84] : memref<1x64xf32, #tpu.memory_space<vmem>>, vector<1x64xf32>
    %c0_85 = arith.constant 0 : index
    %c0_86 = arith.constant 0 : index
    %43 = vector.load %arg46[%c0_85, %c0_86] : memref<1x32xf32, #tpu.memory_space<vmem>>, vector<1x32xf32>
    %c0_87 = arith.constant 0 : index
    %c0_88 = arith.constant 0 : index
    %44 = vector.load %arg47[%c0_87, %c0_88] : memref<1x32xf32, #tpu.memory_space<vmem>>, vector<1x32xf32>
    %c0_89 = arith.constant 0 : index
    %c0_90 = arith.constant 0 : index
    %45 = vector.load %arg48[%c0_89, %c0_90] : memref<1x32xf32, #tpu.memory_space<vmem>>, vector<1x32xf32>
    %c0_91 = arith.constant 0 : index
    %c0_92 = arith.constant 0 : index
    %46 = vector.load %arg49[%c0_91, %c0_92] : memref<1x32xf32, #tpu.memory_space<vmem>>, vector<1x32xf32>
    %c0_93 = arith.constant 0 : index
    %c0_94 = arith.constant 0 : index
    %47 = vector.load %arg50[%c0_93, %c0_94] : memref<1x32xf32, #tpu.memory_space<vmem>>, vector<1x32xf32>
    %c0_95 = arith.constant 0 : index
    %c0_96 = arith.constant 0 : index
    %48 = vector.load %arg51[%c0_95, %c0_96] : memref<1x96xf32, #tpu.memory_space<vmem>>, vector<1x96xf32>
    %c0_97 = arith.constant 0 : index
    %c0_98 = arith.constant 0 : index
    %49 = vector.load %arg52[%c0_97, %c0_98] : memref<1x32xf32, #tpu.memory_space<vmem>>, vector<1x32xf32>
    %c0_99 = arith.constant 0 : index
    %c0_100 = arith.constant 0 : index
    %50 = vector.load %arg53[%c0_99, %c0_100] : memref<32x96xf32, #tpu.memory_space<vmem>>, vector<32x96xf32>
    %c0_101 = arith.constant 0 : index
    %c0_102 = arith.constant 0 : index
    %51 = vector.load %arg54[%c0_101, %c0_102] : memref<32x32xf32, #tpu.memory_space<vmem>>, vector<32x32xf32>
    %c0_103 = arith.constant 0 : index
    %c0_104 = arith.constant 0 : index
    %52 = vector.load %arg55[%c0_103, %c0_104] : memref<32x64xf32, #tpu.memory_space<vmem>>, vector<32x64xf32>
    %c0_105 = arith.constant 0 : index
    %c0_106 = arith.constant 0 : index
    %53 = vector.load %arg56[%c0_105, %c0_106] : memref<64x32xf32, #tpu.memory_space<vmem>>, vector<64x32xf32>
    %c0_107 = arith.constant 0 : index
    %c0_108 = arith.constant 0 : index
    %54 = vector.load %arg57[%c0_107, %c0_108] : memref<1x64xf32, #tpu.memory_space<vmem>>, vector<1x64xf32>
    %c0_109 = arith.constant 0 : index
    %c0_110 = arith.constant 0 : index
    %55 = vector.load %arg58[%c0_109, %c0_110] : memref<1x32xf32, #tpu.memory_space<vmem>>, vector<1x32xf32>
    %c0_111 = arith.constant 0 : index
    %c0_112 = arith.constant 0 : index
    %56 = vector.load %arg59[%c0_111, %c0_112] : memref<1x32xf32, #tpu.memory_space<vmem>>, vector<1x32xf32>
    %c0_113 = arith.constant 0 : index
    %c0_114 = arith.constant 0 : index
    %57 = vector.load %arg60[%c0_113, %c0_114] : memref<1x32xf32, #tpu.memory_space<vmem>>, vector<1x32xf32>
    %c0_115 = arith.constant 0 : index
    %c0_116 = arith.constant 0 : index
    %58 = vector.load %arg61[%c0_115, %c0_116] : memref<1x32xf32, #tpu.memory_space<vmem>>, vector<1x32xf32>
    %c0_117 = arith.constant 0 : index
    %c0_118 = arith.constant 0 : index
    %59 = vector.load %arg62[%c0_117, %c0_118] : memref<1x32xf32, #tpu.memory_space<vmem>>, vector<1x32xf32>
    %c0_119 = arith.constant 0 : index
    %c0_120 = arith.constant 0 : index
    %60 = vector.load %arg63[%c0_119, %c0_120] : memref<1x96xf32, #tpu.memory_space<vmem>>, vector<1x96xf32>
    %c0_121 = arith.constant 0 : index
    %c0_122 = arith.constant 0 : index
    %61 = vector.load %arg64[%c0_121, %c0_122] : memref<1x32xf32, #tpu.memory_space<vmem>>, vector<1x32xf32>
    %c0_123 = arith.constant 0 : index
    %c0_124 = arith.constant 0 : index
    %62 = vector.load %arg65[%c0_123, %c0_124] : memref<32x96xf32, #tpu.memory_space<vmem>>, vector<32x96xf32>
    %c0_125 = arith.constant 0 : index
    %c0_126 = arith.constant 0 : index
    %63 = vector.load %arg66[%c0_125, %c0_126] : memref<32x32xf32, #tpu.memory_space<vmem>>, vector<32x32xf32>
    %c0_127 = arith.constant 0 : index
    %c0_128 = arith.constant 0 : index
    %64 = vector.load %arg67[%c0_127, %c0_128] : memref<32x64xf32, #tpu.memory_space<vmem>>, vector<32x64xf32>
    %c0_129 = arith.constant 0 : index
    %c0_130 = arith.constant 0 : index
    %65 = vector.load %arg68[%c0_129, %c0_130] : memref<64x32xf32, #tpu.memory_space<vmem>>, vector<64x32xf32>
    %c0_131 = arith.constant 0 : index
    %c0_132 = arith.constant 0 : index
    %66 = vector.load %arg69[%c0_131, %c0_132] : memref<1x32xf32, #tpu.memory_space<vmem>>, vector<1x32xf32>
    %c0_133 = arith.constant 0 : index
    %c0_134 = arith.constant 0 : index
    %67 = vector.load %arg70[%c0_133, %c0_134] : memref<1x32xf32, #tpu.memory_space<vmem>>, vector<1x32xf32>
    %c0_135 = arith.constant 0 : index
    %c0_136 = arith.constant 0 : index
    %68 = vector.load %arg71[%c0_135, %c0_136] : memref<1x32xf32, #tpu.memory_space<vmem>>, vector<1x32xf32>
    %c0_137 = arith.constant 0 : index
    %c0_138 = arith.constant 0 : index
    %69 = vector.load %arg72[%c0_137, %c0_138] : memref<32x32xf32, #tpu.memory_space<vmem>>, vector<32x32xf32>
    %c0_139 = arith.constant 0 : index
    %c0_140 = arith.constant 0 : index
    %70 = vector.load %arg0[%c0_139, %c0_140] : memref<8x64xf32, #tpu.memory_space<vmem>>, vector<8x32xf32>
    %c0_141 = arith.constant 0 : index
    %c0_142 = arith.constant 0 : index
    %71 = vector.load %arg2[%c0_141, %c0_142] : memref<50x32xf32, #tpu.memory_space<vmem>>, vector<1x32xf32>
    %72 = vector.broadcast %71 : vector<1x32xf32> to vector<8x32xf32>
    %73 = arith.addf %70, %72 : vector<8x32xf32>
    %c0_143 = arith.constant 0 : index
    %c32 = arith.constant 32 : index
    %74 = vector.load %arg0[%c0_143, %c32] : memref<8x64xf32, #tpu.memory_space<vmem>>, vector<8x32xf32>
    %c1 = arith.constant 1 : index
    %c0_144 = arith.constant 0 : index
    %75 = vector.load %arg2[%c1, %c0_144] : memref<50x32xf32, #tpu.memory_space<vmem>>, vector<1x32xf32>
    %76 = vector.broadcast %75 : vector<1x32xf32> to vector<8x32xf32>
    %77 = arith.addf %74, %76 : vector<8x32xf32>
    %78 = tpu.concatenate %73, %77 in 0 : vector<8x32xf32>, vector<8x32xf32> -> vector<16x32xf32>
    %cst = arith.constant dense<0.000000e+00> : vector<16x96xf32>
    %79 = tpu.matmul %78, %50, %cst {dimension_numbers = #tpu.dot_dimension_numbers<[1], [0], [0], [1], [0, 0, 1, 1], [], []>} : vector<16x32xf32>, vector<32x96xf32>, vector<16x96xf32> -> vector<16x96xf32>
    %80 = vector.broadcast %48 : vector<1x96xf32> to vector<16x96xf32>
    %81 = arith.addf %79, %80 : vector<16x96xf32>
    %82 = vector.extract_strided_slice %81 {offsets = [0, 0], sizes = [16, 32], strides = [1, 1]} : vector<16x96xf32> to vector<16x32xf32>
    %83 = vector.extract_strided_slice %81 {offsets = [0, 32], sizes = [16, 32], strides = [1, 1]} : vector<16x96xf32> to vector<16x32xf32>
    %84 = vector.extract_strided_slice %81 {offsets = [0, 64], sizes = [16, 32], strides = [1, 1]} : vector<16x96xf32> to vector<16x32xf32>
    %cst_145 = arith.constant 0.000000e+00 : f32
    %85 = vector.broadcast %cst_145 : f32 to vector<16x32xf32>
    %86 = vector.extract_strided_slice %82 {offsets = [0, 0], sizes = [16, 8], strides = [1, 1]} : vector<16x32xf32> to vector<16x8xf32>
    %cst_146 = arith.constant 0.353553385 : f32
    %87 = vector.broadcast %cst_146 : f32 to vector<16x8xf32>
    %88 = arith.mulf %86, %87 : vector<16x8xf32>
    %89 = vector.shape_cast %88 : vector<16x8xf32> to vector<2x8x8xf32>
    %90 = vector.extract_strided_slice %83 {offsets = [0, 0], sizes = [16, 8], strides = [1, 1]} : vector<16x32xf32> to vector<16x8xf32>
    %91 = vector.shape_cast %90 : vector<16x8xf32> to vector<2x8x8xf32>
    %92 = vector.extract_strided_slice %84 {offsets = [0, 0], sizes = [16, 8], strides = [1, 1]} : vector<16x32xf32> to vector<16x8xf32>
    %93 = vector.shape_cast %92 : vector<16x8xf32> to vector<2x8x8xf32>
    "tpu.trace_start"() <{level = 10 : i32, message = "bqd,bkd->bqk"}> : () -> ()
    %cst_147 = arith.constant dense<0.000000e+00> : vector<2x8x8xf32>
    %94 = tpu.matmul %89, %91, %cst_147 {dimension_numbers = #tpu.dot_dimension_numbers<[2], [2], [1], [1], [0, 0, 0, 1, 1, 1], [0], [0]>} : vector<2x8x8xf32>, vector<2x8x8xf32>, vector<2x8x8xf32> -> vector<2x8x8xf32>
    "tpu.trace_stop"() : () -> ()
    %cst_148 = arith.constant dense<0xFF800000> : vector<2x8xf32>
    %95 = vector.multi_reduction <maximumf>, %94, %cst_148 [2] : vector<2x8x8xf32> to vector<2x8xf32>
    %96 = vector.shape_cast %95 : vector<2x8xf32> to vector<2x8x1xf32>
    %97 = vector.broadcast %96 : vector<2x8x1xf32> to vector<2x8x8xf32>
    %98 = arith.subf %94, %97 : vector<2x8x8xf32>
    %99 = math.exp %98 : vector<2x8x8xf32>
    %cst_149 = arith.constant dense<0.000000e+00> : vector<2x8xf32>
    %100 = vector.multi_reduction <add>, %99, %cst_149 [2] : vector<2x8x8xf32> to vector<2x8xf32>
    %101 = vector.shape_cast %100 : vector<2x8xf32> to vector<2x8x1xf32>
    %102 = tpu.reciprocal %101 : vector<2x8x1xf32> -> vector<2x8x1xf32>
    %103 = vector.broadcast %102 : vector<2x8x1xf32> to vector<2x8x8xf32>
    %104 = arith.mulf %99, %103 : vector<2x8x8xf32>
    "tpu.trace_start"() <{level = 10 : i32, message = "bqk,bkd->bqd"}> : () -> ()
    %cst_150 = arith.constant dense<0.000000e+00> : vector<2x8x8xf32>
    %105 = tpu.matmul %104, %93, %cst_150 {dimension_numbers = #tpu.dot_dimension_numbers<[2], [1], [1], [2], [0, 0, 0, 1, 1, 2], [0], [0]>} : vector<2x8x8xf32>, vector<2x8x8xf32>, vector<2x8x8xf32> -> vector<2x8x8xf32>
    "tpu.trace_stop"() : () -> ()
    %106 = vector.shape_cast %105 : vector<2x8x8xf32> to vector<16x8xf32>
    %107 = vector.extract_strided_slice %51 {offsets = [0, 0], sizes = [8, 32], strides = [1, 1]} : vector<32x32xf32> to vector<8x32xf32>
    %cst_151 = arith.constant dense<0.000000e+00> : vector<16x32xf32>
    %108 = tpu.matmul %106, %107, %cst_151 {dimension_numbers = #tpu.dot_dimension_numbers<[1], [0], [0], [1], [0, 0, 1, 1], [], []>} : vector<16x8xf32>, vector<8x32xf32>, vector<16x32xf32> -> vector<16x32xf32>
    %109 = arith.addf %85, %108 : vector<16x32xf32>
    %110 = vector.extract_strided_slice %82 {offsets = [0, 8], sizes = [16, 8], strides = [1, 1]} : vector<16x32xf32> to vector<16x8xf32>
    %cst_152 = arith.constant 0.353553385 : f32
    %111 = vector.broadcast %cst_152 : f32 to vector<16x8xf32>
    %112 = arith.mulf %110, %111 : vector<16x8xf32>
    %113 = vector.shape_cast %112 : vector<16x8xf32> to vector<2x8x8xf32>
    %114 = vector.extract_strided_slice %83 {offsets = [0, 8], sizes = [16, 8], strides = [1, 1]} : vector<16x32xf32> to vector<16x8xf32>
    %115 = vector.shape_cast %114 : vector<16x8xf32> to vector<2x8x8xf32>
    %116 = vector.extract_strided_slice %84 {offsets = [0, 8], sizes = [16, 8], strides = [1, 1]} : vector<16x32xf32> to vector<16x8xf32>
    %117 = vector.shape_cast %116 : vector<16x8xf32> to vector<2x8x8xf32>
    "tpu.trace_start"() <{level = 10 : i32, message = "bqd,bkd->bqk"}> : () -> ()
    %cst_153 = arith.constant dense<0.000000e+00> : vector<2x8x8xf32>
    %118 = tpu.matmul %113, %115, %cst_153 {dimension_numbers = #tpu.dot_dimension_numbers<[2], [2], [1], [1], [0, 0, 0, 1, 1, 1], [0], [0]>} : vector<2x8x8xf32>, vector<2x8x8xf32>, vector<2x8x8xf32> -> vector<2x8x8xf32>
    "tpu.trace_stop"() : () -> ()
    %cst_154 = arith.constant dense<0xFF800000> : vector<2x8xf32>
    %119 = vector.multi_reduction <maximumf>, %118, %cst_154 [2] : vector<2x8x8xf32> to vector<2x8xf32>
    %120 = vector.shape_cast %119 : vector<2x8xf32> to vector<2x8x1xf32>
    %121 = vector.broadcast %120 : vector<2x8x1xf32> to vector<2x8x8xf32>
    %122 = arith.subf %118, %121 : vector<2x8x8xf32>
    %123 = math.exp %122 : vector<2x8x8xf32>
    %cst_155 = arith.constant dense<0.000000e+00> : vector<2x8xf32>
    %124 = vector.multi_reduction <add>, %123, %cst_155 [2] : vector<2x8x8xf32> to vector<2x8xf32>
    %125 = vector.shape_cast %124 : vector<2x8xf32> to vector<2x8x1xf32>
    %126 = tpu.reciprocal %125 : vector<2x8x1xf32> -> vector<2x8x1xf32>
    %127 = vector.broadcast %126 : vector<2x8x1xf32> to vector<2x8x8xf32>
    %128 = arith.mulf %123, %127 : vector<2x8x8xf32>
    "tpu.trace_start"() <{level = 10 : i32, message = "bqk,bkd->bqd"}> : () -> ()
    %cst_156 = arith.constant dense<0.000000e+00> : vector<2x8x8xf32>
    %129 = tpu.matmul %128, %117, %cst_156 {dimension_numbers = #tpu.dot_dimension_numbers<[2], [1], [1], [2], [0, 0, 0, 1, 1, 2], [0], [0]>} : vector<2x8x8xf32>, vector<2x8x8xf32>, vector<2x8x8xf32> -> vector<2x8x8xf32>
    "tpu.trace_stop"() : () -> ()
    %130 = vector.shape_cast %129 : vector<2x8x8xf32> to vector<16x8xf32>
    %131 = vector.extract_strided_slice %51 {offsets = [8, 0], sizes = [8, 32], strides = [1, 1]} : vector<32x32xf32> to vector<8x32xf32>
    %cst_157 = arith.constant dense<0.000000e+00> : vector<16x32xf32>
    %132 = tpu.matmul %130, %131, %cst_157 {dimension_numbers = #tpu.dot_dimension_numbers<[1], [0], [0], [1], [0, 0, 1, 1], [], []>} : vector<16x8xf32>, vector<8x32xf32>, vector<16x32xf32> -> vector<16x32xf32>
    %133 = arith.addf %109, %132 : vector<16x32xf32>
    %134 = vector.extract_strided_slice %82 {offsets = [0, 16], sizes = [16, 8], strides = [1, 1]} : vector<16x32xf32> to vector<16x8xf32>
    %cst_158 = arith.constant 0.353553385 : f32
    %135 = vector.broadcast %cst_158 : f32 to vector<16x8xf32>
    %136 = arith.mulf %134, %135 : vector<16x8xf32>
    %137 = vector.shape_cast %136 : vector<16x8xf32> to vector<2x8x8xf32>
    %138 = vector.extract_strided_slice %83 {offsets = [0, 16], sizes = [16, 8], strides = [1, 1]} : vector<16x32xf32> to vector<16x8xf32>
    %139 = vector.shape_cast %138 : vector<16x8xf32> to vector<2x8x8xf32>
    %140 = vector.extract_strided_slice %84 {offsets = [0, 16], sizes = [16, 8], strides = [1, 1]} : vector<16x32xf32> to vector<16x8xf32>
    %141 = vector.shape_cast %140 : vector<16x8xf32> to vector<2x8x8xf32>
    "tpu.trace_start"() <{level = 10 : i32, message = "bqd,bkd->bqk"}> : () -> ()
    %cst_159 = arith.constant dense<0.000000e+00> : vector<2x8x8xf32>
    %142 = tpu.matmul %137, %139, %cst_159 {dimension_numbers = #tpu.dot_dimension_numbers<[2], [2], [1], [1], [0, 0, 0, 1, 1, 1], [0], [0]>} : vector<2x8x8xf32>, vector<2x8x8xf32>, vector<2x8x8xf32> -> vector<2x8x8xf32>
    "tpu.trace_stop"() : () -> ()
    %cst_160 = arith.constant dense<0xFF800000> : vector<2x8xf32>
    %143 = vector.multi_reduction <maximumf>, %142, %cst_160 [2] : vector<2x8x8xf32> to vector<2x8xf32>
    %144 = vector.shape_cast %143 : vector<2x8xf32> to vector<2x8x1xf32>
    %145 = vector.broadcast %144 : vector<2x8x1xf32> to vector<2x8x8xf32>
    %146 = arith.subf %142, %145 : vector<2x8x8xf32>
    %147 = math.exp %146 : vector<2x8x8xf32>
    %cst_161 = arith.constant dense<0.000000e+00> : vector<2x8xf32>
    %148 = vector.multi_reduction <add>, %147, %cst_161 [2] : vector<2x8x8xf32> to vector<2x8xf32>
    %149 = vector.shape_cast %148 : vector<2x8xf32> to vector<2x8x1xf32>
    %150 = tpu.reciprocal %149 : vector<2x8x1xf32> -> vector<2x8x1xf32>
    %151 = vector.broadcast %150 : vector<2x8x1xf32> to vector<2x8x8xf32>
    %152 = arith.mulf %147, %151 : vector<2x8x8xf32>
    "tpu.trace_start"() <{level = 10 : i32, message = "bqk,bkd->bqd"}> : () -> ()
    %cst_162 = arith.constant dense<0.000000e+00> : vector<2x8x8xf32>
    %153 = tpu.matmul %152, %141, %cst_162 {dimension_numbers = #tpu.dot_dimension_numbers<[2], [1], [1], [2], [0, 0, 0, 1, 1, 2], [0], [0]>} : vector<2x8x8xf32>, vector<2x8x8xf32>, vector<2x8x8xf32> -> vector<2x8x8xf32>
    "tpu.trace_stop"() : () -> ()
    %154 = vector.shape_cast %153 : vector<2x8x8xf32> to vector<16x8xf32>
    %155 = vector.extract_strided_slice %51 {offsets = [16, 0], sizes = [8, 32], strides = [1, 1]} : vector<32x32xf32> to vector<8x32xf32>
    %cst_163 = arith.constant dense<0.000000e+00> : vector<16x32xf32>
    %156 = tpu.matmul %154, %155, %cst_163 {dimension_numbers = #tpu.dot_dimension_numbers<[1], [0], [0], [1], [0, 0, 1, 1], [], []>} : vector<16x8xf32>, vector<8x32xf32>, vector<16x32xf32> -> vector<16x32xf32>
    %157 = arith.addf %133, %156 : vector<16x32xf32>
    %158 = vector.extract_strided_slice %82 {offsets = [0, 24], sizes = [16, 8], strides = [1, 1]} : vector<16x32xf32> to vector<16x8xf32>
    %cst_164 = arith.constant 0.353553385 : f32
    %159 = vector.broadcast %cst_164 : f32 to vector<16x8xf32>
    %160 = arith.mulf %158, %159 : vector<16x8xf32>
    %161 = vector.shape_cast %160 : vector<16x8xf32> to vector<2x8x8xf32>
    %162 = vector.extract_strided_slice %83 {offsets = [0, 24], sizes = [16, 8], strides = [1, 1]} : vector<16x32xf32> to vector<16x8xf32>
    %163 = vector.shape_cast %162 : vector<16x8xf32> to vector<2x8x8xf32>
    %164 = vector.extract_strided_slice %84 {offsets = [0, 24], sizes = [16, 8], strides = [1, 1]} : vector<16x32xf32> to vector<16x8xf32>
    %165 = vector.shape_cast %164 : vector<16x8xf32> to vector<2x8x8xf32>
    "tpu.trace_start"() <{level = 10 : i32, message = "bqd,bkd->bqk"}> : () -> ()
    %cst_165 = arith.constant dense<0.000000e+00> : vector<2x8x8xf32>
    %166 = tpu.matmul %161, %163, %cst_165 {dimension_numbers = #tpu.dot_dimension_numbers<[2], [2], [1], [1], [0, 0, 0, 1, 1, 1], [0], [0]>} : vector<2x8x8xf32>, vector<2x8x8xf32>, vector<2x8x8xf32> -> vector<2x8x8xf32>
    "tpu.trace_stop"() : () -> ()
    %cst_166 = arith.constant dense<0xFF800000> : vector<2x8xf32>
    %167 = vector.multi_reduction <maximumf>, %166, %cst_166 [2] : vector<2x8x8xf32> to vector<2x8xf32>
    %168 = vector.shape_cast %167 : vector<2x8xf32> to vector<2x8x1xf32>
    %169 = vector.broadcast %168 : vector<2x8x1xf32> to vector<2x8x8xf32>
    %170 = arith.subf %166, %169 : vector<2x8x8xf32>
    %171 = math.exp %170 : vector<2x8x8xf32>
    %cst_167 = arith.constant dense<0.000000e+00> : vector<2x8xf32>
    %172 = vector.multi_reduction <add>, %171, %cst_167 [2] : vector<2x8x8xf32> to vector<2x8xf32>
    %173 = vector.shape_cast %172 : vector<2x8xf32> to vector<2x8x1xf32>
    %174 = tpu.reciprocal %173 : vector<2x8x1xf32> -> vector<2x8x1xf32>
    %175 = vector.broadcast %174 : vector<2x8x1xf32> to vector<2x8x8xf32>
    %176 = arith.mulf %171, %175 : vector<2x8x8xf32>
    "tpu.trace_start"() <{level = 10 : i32, message = "bqk,bkd->bqd"}> : () -> ()
    %cst_168 = arith.constant dense<0.000000e+00> : vector<2x8x8xf32>
    %177 = tpu.matmul %176, %165, %cst_168 {dimension_numbers = #tpu.dot_dimension_numbers<[2], [1], [1], [2], [0, 0, 0, 1, 1, 2], [0], [0]>} : vector<2x8x8xf32>, vector<2x8x8xf32>, vector<2x8x8xf32> -> vector<2x8x8xf32>
    "tpu.trace_stop"() : () -> ()
    %178 = vector.shape_cast %177 : vector<2x8x8xf32> to vector<16x8xf32>
    %179 = vector.extract_strided_slice %51 {offsets = [24, 0], sizes = [8, 32], strides = [1, 1]} : vector<32x32xf32> to vector<8x32xf32>
    %cst_169 = arith.constant dense<0.000000e+00> : vector<16x32xf32>
    %180 = tpu.matmul %178, %179, %cst_169 {dimension_numbers = #tpu.dot_dimension_numbers<[1], [0], [0], [1], [0, 0, 1, 1], [], []>} : vector<16x8xf32>, vector<8x32xf32>, vector<16x32xf32> -> vector<16x32xf32>
    %181 = arith.addf %157, %180 : vector<16x32xf32>
    %182 = vector.broadcast %49 : vector<1x32xf32> to vector<16x32xf32>
    %183 = arith.addf %181, %182 : vector<16x32xf32>
    %184 = arith.addf %78, %183 : vector<16x32xf32>
    %cst_170 = arith.constant dense<0.000000e+00> : vector<16xf32>
    %185 = vector.multi_reduction <add>, %184, %cst_170 [1] : vector<16x32xf32> to vector<16xf32>
    %186 = vector.shape_cast %185 : vector<16xf32> to vector<16x1xf32>
    %cst_171 = arith.constant 3.200000e+01 : f32
    %187 = vector.broadcast %cst_171 : f32 to vector<16x1xf32>
    %188 = arith.divf %186, %187 : vector<16x1xf32>
    %189 = vector.broadcast %188 : vector<16x1xf32> to vector<16x32xf32>
    %190 = arith.subf %184, %189 : vector<16x32xf32>
    %191 = arith.mulf %190, %190 : vector<16x32xf32>
    %cst_172 = arith.constant dense<0.000000e+00> : vector<16xf32>
    %192 = vector.multi_reduction <add>, %191, %cst_172 [1] : vector<16x32xf32> to vector<16xf32>
    %193 = vector.shape_cast %192 : vector<16xf32> to vector<16x1xf32>
    %cst_173 = arith.constant 3.200000e+01 : f32
    %194 = vector.broadcast %cst_173 : f32 to vector<16x1xf32>
    %195 = arith.divf %193, %194 : vector<16x1xf32>
    %196 = vector.broadcast %188 : vector<16x1xf32> to vector<16x32xf32>
    %197 = arith.subf %184, %196 : vector<16x32xf32>
    %cst_174 = arith.constant 9.99999974E-6 : f32
    %198 = vector.broadcast %cst_174 : f32 to vector<16x1xf32>
    %199 = arith.addf %195, %198 : vector<16x1xf32>
    %200 = math.rsqrt %199 : vector<16x1xf32>
    %201 = vector.broadcast %200 : vector<16x1xf32> to vector<16x32xf32>
    %202 = arith.mulf %197, %201 : vector<16x32xf32>
    %203 = vector.broadcast %45 : vector<1x32xf32> to vector<16x32xf32>
    %204 = arith.mulf %202, %203 : vector<16x32xf32>
    %205 = vector.broadcast %44 : vector<1x32xf32> to vector<16x32xf32>
    %206 = arith.addf %204, %205 : vector<16x32xf32>
    %cst_175 = arith.constant dense<0.000000e+00> : vector<16x64xf32>
    %207 = tpu.matmul %206, %52, %cst_175 {dimension_numbers = #tpu.dot_dimension_numbers<[1], [0], [0], [1], [0, 0, 1, 1], [], []>} : vector<16x32xf32>, vector<32x64xf32>, vector<16x64xf32> -> vector<16x64xf32>
    %208 = vector.broadcast %42 : vector<1x64xf32> to vector<16x64xf32>
    %209 = arith.addf %207, %208 : vector<16x64xf32>
    %cst_176 = arith.constant 0.000000e+00 : f32
    %210 = vector.broadcast %cst_176 : f32 to vector<16x64xf32>
    %211 = arith.maximumf %209, %210 : vector<16x64xf32>
    %cst_177 = arith.constant dense<0.000000e+00> : vector<16x32xf32>
    %212 = tpu.matmul %211, %53, %cst_177 {dimension_numbers = #tpu.dot_dimension_numbers<[1], [0], [0], [1], [0, 0, 1, 1], [], []>} : vector<16x64xf32>, vector<64x32xf32>, vector<16x32xf32> -> vector<16x32xf32>
    %213 = vector.broadcast %43 : vector<1x32xf32> to vector<16x32xf32>
    %214 = arith.addf %212, %213 : vector<16x32xf32>
    %215 = arith.addf %206, %214 : vector<16x32xf32>
    %cst_178 = arith.constant dense<0.000000e+00> : vector<16xf32>
    %216 = vector.multi_reduction <add>, %215, %cst_178 [1] : vector<16x32xf32> to vector<16xf32>
    %217 = vector.shape_cast %216 : vector<16xf32> to vector<16x1xf32>
    %cst_179 = arith.constant 3.200000e+01 : f32
    %218 = vector.broadcast %cst_179 : f32 to vector<16x1xf32>
    %219 = arith.divf %217, %218 : vector<16x1xf32>
    %220 = vector.broadcast %219 : vector<16x1xf32> to vector<16x32xf32>
    %221 = arith.subf %215, %220 : vector<16x32xf32>
    %222 = arith.mulf %221, %221 : vector<16x32xf32>
    %cst_180 = arith.constant dense<0.000000e+00> : vector<16xf32>
    %223 = vector.multi_reduction <add>, %222, %cst_180 [1] : vector<16x32xf32> to vector<16xf32>
    %224 = vector.shape_cast %223 : vector<16xf32> to vector<16x1xf32>
    %cst_181 = arith.constant 3.200000e+01 : f32
    %225 = vector.broadcast %cst_181 : f32 to vector<16x1xf32>
    %226 = arith.divf %224, %225 : vector<16x1xf32>
    %227 = vector.broadcast %219 : vector<16x1xf32> to vector<16x32xf32>
    %228 = arith.subf %215, %227 : vector<16x32xf32>
    %cst_182 = arith.constant 9.99999974E-6 : f32
    %229 = vector.broadcast %cst_182 : f32 to vector<16x1xf32>
    %230 = arith.addf %226, %229 : vector<16x1xf32>
    %231 = math.rsqrt %230 : vector<16x1xf32>
    %232 = vector.broadcast %231 : vector<16x1xf32> to vector<16x32xf32>
    %233 = arith.mulf %228, %232 : vector<16x32xf32>
    %234 = vector.broadcast %47 : vector<1x32xf32> to vector<16x32xf32>
    %235 = arith.mulf %233, %234 : vector<16x32xf32>
    %236 = vector.broadcast %46 : vector<1x32xf32> to vector<16x32xf32>
    %237 = arith.addf %235, %236 : vector<16x32xf32>
    %cst_183 = arith.constant dense<0.000000e+00> : vector<16x96xf32>
    %238 = tpu.matmul %237, %62, %cst_183 {dimension_numbers = #tpu.dot_dimension_numbers<[1], [0], [0], [1], [0, 0, 1, 1], [], []>} : vector<16x32xf32>, vector<32x96xf32>, vector<16x96xf32> -> vector<16x96xf32>
    %239 = vector.broadcast %60 : vector<1x96xf32> to vector<16x96xf32>
    %240 = arith.addf %238, %239 : vector<16x96xf32>
    %241 = vector.extract_strided_slice %240 {offsets = [0, 0], sizes = [16, 32], strides = [1, 1]} : vector<16x96xf32> to vector<16x32xf32>
    %242 = vector.extract_strided_slice %240 {offsets = [0, 32], sizes = [16, 32], strides = [1, 1]} : vector<16x96xf32> to vector<16x32xf32>
    %243 = vector.extract_strided_slice %240 {offsets = [0, 64], sizes = [16, 32], strides = [1, 1]} : vector<16x96xf32> to vector<16x32xf32>
    %cst_184 = arith.constant 0.000000e+00 : f32
    %244 = vector.broadcast %cst_184 : f32 to vector<16x32xf32>
    %245 = vector.extract_strided_slice %241 {offsets = [0, 0], sizes = [16, 8], strides = [1, 1]} : vector<16x32xf32> to vector<16x8xf32>
    %cst_185 = arith.constant 0.353553385 : f32
    %246 = vector.broadcast %cst_185 : f32 to vector<16x8xf32>
    %247 = arith.mulf %245, %246 : vector<16x8xf32>
    %248 = vector.shape_cast %247 : vector<16x8xf32> to vector<2x8x8xf32>
    %249 = vector.extract_strided_slice %242 {offsets = [0, 0], sizes = [16, 8], strides = [1, 1]} : vector<16x32xf32> to vector<16x8xf32>
    %250 = vector.shape_cast %249 : vector<16x8xf32> to vector<2x8x8xf32>
    %251 = vector.extract_strided_slice %243 {offsets = [0, 0], sizes = [16, 8], strides = [1, 1]} : vector<16x32xf32> to vector<16x8xf32>
    %252 = vector.shape_cast %251 : vector<16x8xf32> to vector<2x8x8xf32>
    "tpu.trace_start"() <{level = 10 : i32, message = "bqd,bkd->bqk"}> : () -> ()
    %cst_186 = arith.constant dense<0.000000e+00> : vector<2x8x8xf32>
    %253 = tpu.matmul %248, %250, %cst_186 {dimension_numbers = #tpu.dot_dimension_numbers<[2], [2], [1], [1], [0, 0, 0, 1, 1, 1], [0], [0]>} : vector<2x8x8xf32>, vector<2x8x8xf32>, vector<2x8x8xf32> -> vector<2x8x8xf32>
    "tpu.trace_stop"() : () -> ()
    %cst_187 = arith.constant dense<0xFF800000> : vector<2x8xf32>
    %254 = vector.multi_reduction <maximumf>, %253, %cst_187 [2] : vector<2x8x8xf32> to vector<2x8xf32>
    %255 = vector.shape_cast %254 : vector<2x8xf32> to vector<2x8x1xf32>
    %256 = vector.broadcast %255 : vector<2x8x1xf32> to vector<2x8x8xf32>
    %257 = arith.subf %253, %256 : vector<2x8x8xf32>
    %258 = math.exp %257 : vector<2x8x8xf32>
    %cst_188 = arith.constant dense<0.000000e+00> : vector<2x8xf32>
    %259 = vector.multi_reduction <add>, %258, %cst_188 [2] : vector<2x8x8xf32> to vector<2x8xf32>
    %260 = vector.shape_cast %259 : vector<2x8xf32> to vector<2x8x1xf32>
    %261 = tpu.reciprocal %260 : vector<2x8x1xf32> -> vector<2x8x1xf32>
    %262 = vector.broadcast %261 : vector<2x8x1xf32> to vector<2x8x8xf32>
    %263 = arith.mulf %258, %262 : vector<2x8x8xf32>
    "tpu.trace_start"() <{level = 10 : i32, message = "bqk,bkd->bqd"}> : () -> ()
    %cst_189 = arith.constant dense<0.000000e+00> : vector<2x8x8xf32>
    %264 = tpu.matmul %263, %252, %cst_189 {dimension_numbers = #tpu.dot_dimension_numbers<[2], [1], [1], [2], [0, 0, 0, 1, 1, 2], [0], [0]>} : vector<2x8x8xf32>, vector<2x8x8xf32>, vector<2x8x8xf32> -> vector<2x8x8xf32>
    "tpu.trace_stop"() : () -> ()
    %265 = vector.shape_cast %264 : vector<2x8x8xf32> to vector<16x8xf32>
    %266 = vector.extract_strided_slice %63 {offsets = [0, 0], sizes = [8, 32], strides = [1, 1]} : vector<32x32xf32> to vector<8x32xf32>
    %cst_190 = arith.constant dense<0.000000e+00> : vector<16x32xf32>
    %267 = tpu.matmul %265, %266, %cst_190 {dimension_numbers = #tpu.dot_dimension_numbers<[1], [0], [0], [1], [0, 0, 1, 1], [], []>} : vector<16x8xf32>, vector<8x32xf32>, vector<16x32xf32> -> vector<16x32xf32>
    %268 = arith.addf %244, %267 : vector<16x32xf32>
    %269 = vector.extract_strided_slice %241 {offsets = [0, 8], sizes = [16, 8], strides = [1, 1]} : vector<16x32xf32> to vector<16x8xf32>
    %cst_191 = arith.constant 0.353553385 : f32
    %270 = vector.broadcast %cst_191 : f32 to vector<16x8xf32>
    %271 = arith.mulf %269, %270 : vector<16x8xf32>
    %272 = vector.shape_cast %271 : vector<16x8xf32> to vector<2x8x8xf32>
    %273 = vector.extract_strided_slice %242 {offsets = [0, 8], sizes = [16, 8], strides = [1, 1]} : vector<16x32xf32> to vector<16x8xf32>
    %274 = vector.shape_cast %273 : vector<16x8xf32> to vector<2x8x8xf32>
    %275 = vector.extract_strided_slice %243 {offsets = [0, 8], sizes = [16, 8], strides = [1, 1]} : vector<16x32xf32> to vector<16x8xf32>
    %276 = vector.shape_cast %275 : vector<16x8xf32> to vector<2x8x8xf32>
    "tpu.trace_start"() <{level = 10 : i32, message = "bqd,bkd->bqk"}> : () -> ()
    %cst_192 = arith.constant dense<0.000000e+00> : vector<2x8x8xf32>
    %277 = tpu.matmul %272, %274, %cst_192 {dimension_numbers = #tpu.dot_dimension_numbers<[2], [2], [1], [1], [0, 0, 0, 1, 1, 1], [0], [0]>} : vector<2x8x8xf32>, vector<2x8x8xf32>, vector<2x8x8xf32> -> vector<2x8x8xf32>
    "tpu.trace_stop"() : () -> ()
    %cst_193 = arith.constant dense<0xFF800000> : vector<2x8xf32>
    %278 = vector.multi_reduction <maximumf>, %277, %cst_193 [2] : vector<2x8x8xf32> to vector<2x8xf32>
    %279 = vector.shape_cast %278 : vector<2x8xf32> to vector<2x8x1xf32>
    %280 = vector.broadcast %279 : vector<2x8x1xf32> to vector<2x8x8xf32>
    %281 = arith.subf %277, %280 : vector<2x8x8xf32>
    %282 = math.exp %281 : vector<2x8x8xf32>
    %cst_194 = arith.constant dense<0.000000e+00> : vector<2x8xf32>
    %283 = vector.multi_reduction <add>, %282, %cst_194 [2] : vector<2x8x8xf32> to vector<2x8xf32>
    %284 = vector.shape_cast %283 : vector<2x8xf32> to vector<2x8x1xf32>
    %285 = tpu.reciprocal %284 : vector<2x8x1xf32> -> vector<2x8x1xf32>
    %286 = vector.broadcast %285 : vector<2x8x1xf32> to vector<2x8x8xf32>
    %287 = arith.mulf %282, %286 : vector<2x8x8xf32>
    "tpu.trace_start"() <{level = 10 : i32, message = "bqk,bkd->bqd"}> : () -> ()
    %cst_195 = arith.constant dense<0.000000e+00> : vector<2x8x8xf32>
    %288 = tpu.matmul %287, %276, %cst_195 {dimension_numbers = #tpu.dot_dimension_numbers<[2], [1], [1], [2], [0, 0, 0, 1, 1, 2], [0], [0]>} : vector<2x8x8xf32>, vector<2x8x8xf32>, vector<2x8x8xf32> -> vector<2x8x8xf32>
    "tpu.trace_stop"() : () -> ()
    %289 = vector.shape_cast %288 : vector<2x8x8xf32> to vector<16x8xf32>
    %290 = vector.extract_strided_slice %63 {offsets = [8, 0], sizes = [8, 32], strides = [1, 1]} : vector<32x32xf32> to vector<8x32xf32>
    %cst_196 = arith.constant dense<0.000000e+00> : vector<16x32xf32>
    %291 = tpu.matmul %289, %290, %cst_196 {dimension_numbers = #tpu.dot_dimension_numbers<[1], [0], [0], [1], [0, 0, 1, 1], [], []>} : vector<16x8xf32>, vector<8x32xf32>, vector<16x32xf32> -> vector<16x32xf32>
    %292 = arith.addf %268, %291 : vector<16x32xf32>
    %293 = vector.extract_strided_slice %241 {offsets = [0, 16], sizes = [16, 8], strides = [1, 1]} : vector<16x32xf32> to vector<16x8xf32>
    %cst_197 = arith.constant 0.353553385 : f32
    %294 = vector.broadcast %cst_197 : f32 to vector<16x8xf32>
    %295 = arith.mulf %293, %294 : vector<16x8xf32>
    %296 = vector.shape_cast %295 : vector<16x8xf32> to vector<2x8x8xf32>
    %297 = vector.extract_strided_slice %242 {offsets = [0, 16], sizes = [16, 8], strides = [1, 1]} : vector<16x32xf32> to vector<16x8xf32>
    %298 = vector.shape_cast %297 : vector<16x8xf32> to vector<2x8x8xf32>
    %299 = vector.extract_strided_slice %243 {offsets = [0, 16], sizes = [16, 8], strides = [1, 1]} : vector<16x32xf32> to vector<16x8xf32>
    %300 = vector.shape_cast %299 : vector<16x8xf32> to vector<2x8x8xf32>
    "tpu.trace_start"() <{level = 10 : i32, message = "bqd,bkd->bqk"}> : () -> ()
    %cst_198 = arith.constant dense<0.000000e+00> : vector<2x8x8xf32>
    %301 = tpu.matmul %296, %298, %cst_198 {dimension_numbers = #tpu.dot_dimension_numbers<[2], [2], [1], [1], [0, 0, 0, 1, 1, 1], [0], [0]>} : vector<2x8x8xf32>, vector<2x8x8xf32>, vector<2x8x8xf32> -> vector<2x8x8xf32>
    "tpu.trace_stop"() : () -> ()
    %cst_199 = arith.constant dense<0xFF800000> : vector<2x8xf32>
    %302 = vector.multi_reduction <maximumf>, %301, %cst_199 [2] : vector<2x8x8xf32> to vector<2x8xf32>
    %303 = vector.shape_cast %302 : vector<2x8xf32> to vector<2x8x1xf32>
    %304 = vector.broadcast %303 : vector<2x8x1xf32> to vector<2x8x8xf32>
    %305 = arith.subf %301, %304 : vector<2x8x8xf32>
    %306 = math.exp %305 : vector<2x8x8xf32>
    %cst_200 = arith.constant dense<0.000000e+00> : vector<2x8xf32>
    %307 = vector.multi_reduction <add>, %306, %cst_200 [2] : vector<2x8x8xf32> to vector<2x8xf32>
    %308 = vector.shape_cast %307 : vector<2x8xf32> to vector<2x8x1xf32>
    %309 = tpu.reciprocal %308 : vector<2x8x1xf32> -> vector<2x8x1xf32>
    %310 = vector.broadcast %309 : vector<2x8x1xf32> to vector<2x8x8xf32>
    %311 = arith.mulf %306, %310 : vector<2x8x8xf32>
    "tpu.trace_start"() <{level = 10 : i32, message = "bqk,bkd->bqd"}> : () -> ()
    %cst_201 = arith.constant dense<0.000000e+00> : vector<2x8x8xf32>
    %312 = tpu.matmul %311, %300, %cst_201 {dimension_numbers = #tpu.dot_dimension_numbers<[2], [1], [1], [2], [0, 0, 0, 1, 1, 2], [0], [0]>} : vector<2x8x8xf32>, vector<2x8x8xf32>, vector<2x8x8xf32> -> vector<2x8x8xf32>
    "tpu.trace_stop"() : () -> ()
    %313 = vector.shape_cast %312 : vector<2x8x8xf32> to vector<16x8xf32>
    %314 = vector.extract_strided_slice %63 {offsets = [16, 0], sizes = [8, 32], strides = [1, 1]} : vector<32x32xf32> to vector<8x32xf32>
    %cst_202 = arith.constant dense<0.000000e+00> : vector<16x32xf32>
    %315 = tpu.matmul %313, %314, %cst_202 {dimension_numbers = #tpu.dot_dimension_numbers<[1], [0], [0], [1], [0, 0, 1, 1], [], []>} : vector<16x8xf32>, vector<8x32xf32>, vector<16x32xf32> -> vector<16x32xf32>
    %316 = arith.addf %292, %315 : vector<16x32xf32>
    %317 = vector.extract_strided_slice %241 {offsets = [0, 24], sizes = [16, 8], strides = [1, 1]} : vector<16x32xf32> to vector<16x8xf32>
    %cst_203 = arith.constant 0.353553385 : f32
    %318 = vector.broadcast %cst_203 : f32 to vector<16x8xf32>
    %319 = arith.mulf %317, %318 : vector<16x8xf32>
    %320 = vector.shape_cast %319 : vector<16x8xf32> to vector<2x8x8xf32>
    %321 = vector.extract_strided_slice %242 {offsets = [0, 24], sizes = [16, 8], strides = [1, 1]} : vector<16x32xf32> to vector<16x8xf32>
    %322 = vector.shape_cast %321 : vector<16x8xf32> to vector<2x8x8xf32>
    %323 = vector.extract_strided_slice %243 {offsets = [0, 24], sizes = [16, 8], strides = [1, 1]} : vector<16x32xf32> to vector<16x8xf32>
    %324 = vector.shape_cast %323 : vector<16x8xf32> to vector<2x8x8xf32>
    "tpu.trace_start"() <{level = 10 : i32, message = "bqd,bkd->bqk"}> : () -> ()
    %cst_204 = arith.constant dense<0.000000e+00> : vector<2x8x8xf32>
    %325 = tpu.matmul %320, %322, %cst_204 {dimension_numbers = #tpu.dot_dimension_numbers<[2], [2], [1], [1], [0, 0, 0, 1, 1, 1], [0], [0]>} : vector<2x8x8xf32>, vector<2x8x8xf32>, vector<2x8x8xf32> -> vector<2x8x8xf32>
    "tpu.trace_stop"() : () -> ()
    %cst_205 = arith.constant dense<0xFF800000> : vector<2x8xf32>
    %326 = vector.multi_reduction <maximumf>, %325, %cst_205 [2] : vector<2x8x8xf32> to vector<2x8xf32>
    %327 = vector.shape_cast %326 : vector<2x8xf32> to vector<2x8x1xf32>
    %328 = vector.broadcast %327 : vector<2x8x1xf32> to vector<2x8x8xf32>
    %329 = arith.subf %325, %328 : vector<2x8x8xf32>
    %330 = math.exp %329 : vector<2x8x8xf32>
    %cst_206 = arith.constant dense<0.000000e+00> : vector<2x8xf32>
    %331 = vector.multi_reduction <add>, %330, %cst_206 [2] : vector<2x8x8xf32> to vector<2x8xf32>
    %332 = vector.shape_cast %331 : vector<2x8xf32> to vector<2x8x1xf32>
    %333 = tpu.reciprocal %332 : vector<2x8x1xf32> -> vector<2x8x1xf32>
    %334 = vector.broadcast %333 : vector<2x8x1xf32> to vector<2x8x8xf32>
    %335 = arith.mulf %330, %334 : vector<2x8x8xf32>
    "tpu.trace_start"() <{level = 10 : i32, message = "bqk,bkd->bqd"}> : () -> ()
    %cst_207 = arith.constant dense<0.000000e+00> : vector<2x8x8xf32>
    %336 = tpu.matmul %335, %324, %cst_207 {dimension_numbers = #tpu.dot_dimension_numbers<[2], [1], [1], [2], [0, 0, 0, 1, 1, 2], [0], [0]>} : vector<2x8x8xf32>, vector<2x8x8xf32>, vector<2x8x8xf32> -> vector<2x8x8xf32>
    "tpu.trace_stop"() : () -> ()
    %337 = vector.shape_cast %336 : vector<2x8x8xf32> to vector<16x8xf32>
    %338 = vector.extract_strided_slice %63 {offsets = [24, 0], sizes = [8, 32], strides = [1, 1]} : vector<32x32xf32> to vector<8x32xf32>
    %cst_208 = arith.constant dense<0.000000e+00> : vector<16x32xf32>
    %339 = tpu.matmul %337, %338, %cst_208 {dimension_numbers = #tpu.dot_dimension_numbers<[1], [0], [0], [1], [0, 0, 1, 1], [], []>} : vector<16x8xf32>, vector<8x32xf32>, vector<16x32xf32> -> vector<16x32xf32>
    %340 = arith.addf %316, %339 : vector<16x32xf32>
    %341 = vector.broadcast %61 : vector<1x32xf32> to vector<16x32xf32>
    %342 = arith.addf %340, %341 : vector<16x32xf32>
    %343 = arith.addf %237, %342 : vector<16x32xf32>
    %cst_209 = arith.constant dense<0.000000e+00> : vector<16xf32>
    %344 = vector.multi_reduction <add>, %343, %cst_209 [1] : vector<16x32xf32> to vector<16xf32>
    %345 = vector.shape_cast %344 : vector<16xf32> to vector<16x1xf32>
    %cst_210 = arith.constant 3.200000e+01 : f32
    %346 = vector.broadcast %cst_210 : f32 to vector<16x1xf32>
    %347 = arith.divf %345, %346 : vector<16x1xf32>
    %348 = vector.broadcast %347 : vector<16x1xf32> to vector<16x32xf32>
    %349 = arith.subf %343, %348 : vector<16x32xf32>
    %350 = arith.mulf %349, %349 : vector<16x32xf32>
    %cst_211 = arith.constant dense<0.000000e+00> : vector<16xf32>
    %351 = vector.multi_reduction <add>, %350, %cst_211 [1] : vector<16x32xf32> to vector<16xf32>
    %352 = vector.shape_cast %351 : vector<16xf32> to vector<16x1xf32>
    %cst_212 = arith.constant 3.200000e+01 : f32
    %353 = vector.broadcast %cst_212 : f32 to vector<16x1xf32>
    %354 = arith.divf %352, %353 : vector<16x1xf32>
    %355 = vector.broadcast %347 : vector<16x1xf32> to vector<16x32xf32>
    %356 = arith.subf %343, %355 : vector<16x32xf32>
    %cst_213 = arith.constant 9.99999974E-6 : f32
    %357 = vector.broadcast %cst_213 : f32 to vector<16x1xf32>
    %358 = arith.addf %354, %357 : vector<16x1xf32>
    %359 = math.rsqrt %358 : vector<16x1xf32>
    %360 = vector.broadcast %359 : vector<16x1xf32> to vector<16x32xf32>
    %361 = arith.mulf %356, %360 : vector<16x32xf32>
    %362 = vector.broadcast %57 : vector<1x32xf32> to vector<16x32xf32>
    %363 = arith.mulf %361, %362 : vector<16x32xf32>
    %364 = vector.broadcast %56 : vector<1x32xf32> to vector<16x32xf32>
    %365 = arith.addf %363, %364 : vector<16x32xf32>
    %cst_214 = arith.constant dense<0.000000e+00> : vector<16x64xf32>
    %366 = tpu.matmul %365, %64, %cst_214 {dimension_numbers = #tpu.dot_dimension_numbers<[1], [0], [0], [1], [0, 0, 1, 1], [], []>} : vector<16x32xf32>, vector<32x64xf32>, vector<16x64xf32> -> vector<16x64xf32>
    %367 = vector.broadcast %54 : vector<1x64xf32> to vector<16x64xf32>
    %368 = arith.addf %366, %367 : vector<16x64xf32>
    %cst_215 = arith.constant 0.000000e+00 : f32
    %369 = vector.broadcast %cst_215 : f32 to vector<16x64xf32>
    %370 = arith.maximumf %368, %369 : vector<16x64xf32>
    %cst_216 = arith.constant dense<0.000000e+00> : vector<16x32xf32>
    %371 = tpu.matmul %370, %65, %cst_216 {dimension_numbers = #tpu.dot_dimension_numbers<[1], [0], [0], [1], [0, 0, 1, 1], [], []>} : vector<16x64xf32>, vector<64x32xf32>, vector<16x32xf32> -> vector<16x32xf32>
    %372 = vector.broadcast %55 : vector<1x32xf32> to vector<16x32xf32>
    %373 = arith.addf %371, %372 : vector<16x32xf32>
    %374 = arith.addf %365, %373 : vector<16x32xf32>
    %cst_217 = arith.constant dense<0.000000e+00> : vector<16xf32>
    %375 = vector.multi_reduction <add>, %374, %cst_217 [1] : vector<16x32xf32> to vector<16xf32>
    %376 = vector.shape_cast %375 : vector<16xf32> to vector<16x1xf32>
    %cst_218 = arith.constant 3.200000e+01 : f32
    %377 = vector.broadcast %cst_218 : f32 to vector<16x1xf32>
    %378 = arith.divf %376, %377 : vector<16x1xf32>
    %379 = vector.broadcast %378 : vector<16x1xf32> to vector<16x32xf32>
    %380 = arith.subf %374, %379 : vector<16x32xf32>
    %381 = arith.mulf %380, %380 : vector<16x32xf32>
    %cst_219 = arith.constant dense<0.000000e+00> : vector<16xf32>
    %382 = vector.multi_reduction <add>, %381, %cst_219 [1] : vector<16x32xf32> to vector<16xf32>
    %383 = vector.shape_cast %382 : vector<16xf32> to vector<16x1xf32>
    %cst_220 = arith.constant 3.200000e+01 : f32
    %384 = vector.broadcast %cst_220 : f32 to vector<16x1xf32>
    %385 = arith.divf %383, %384 : vector<16x1xf32>
    %386 = vector.broadcast %378 : vector<16x1xf32> to vector<16x32xf32>
    %387 = arith.subf %374, %386 : vector<16x32xf32>
    %cst_221 = arith.constant 9.99999974E-6 : f32
    %388 = vector.broadcast %cst_221 : f32 to vector<16x1xf32>
    %389 = arith.addf %385, %388 : vector<16x1xf32>
    %390 = math.rsqrt %389 : vector<16x1xf32>
    %391 = vector.broadcast %390 : vector<16x1xf32> to vector<16x32xf32>
    %392 = arith.mulf %387, %391 : vector<16x32xf32>
    %393 = vector.broadcast %59 : vector<1x32xf32> to vector<16x32xf32>
    %394 = arith.mulf %392, %393 : vector<16x32xf32>
    %395 = vector.broadcast %58 : vector<1x32xf32> to vector<16x32xf32>
    %396 = arith.addf %394, %395 : vector<16x32xf32>
    %cst_222 = arith.constant dense<0.000000e+00> : vector<16xf32>
    %397 = vector.multi_reduction <add>, %396, %cst_222 [1] : vector<16x32xf32> to vector<16xf32>
    %398 = vector.shape_cast %397 : vector<16xf32> to vector<16x1xf32>
    %cst_223 = arith.constant 3.200000e+01 : f32
    %399 = vector.broadcast %cst_223 : f32 to vector<16x1xf32>
    %400 = arith.divf %398, %399 : vector<16x1xf32>
    %401 = vector.broadcast %400 : vector<16x1xf32> to vector<16x32xf32>
    %402 = arith.subf %396, %401 : vector<16x32xf32>
    %403 = arith.mulf %402, %402 : vector<16x32xf32>
    %cst_224 = arith.constant dense<0.000000e+00> : vector<16xf32>
    %404 = vector.multi_reduction <add>, %403, %cst_224 [1] : vector<16x32xf32> to vector<16xf32>
    %405 = vector.shape_cast %404 : vector<16xf32> to vector<16x1xf32>
    %cst_225 = arith.constant 3.200000e+01 : f32
    %406 = vector.broadcast %cst_225 : f32 to vector<16x1xf32>
    %407 = arith.divf %405, %406 : vector<16x1xf32>
    %408 = vector.broadcast %400 : vector<16x1xf32> to vector<16x32xf32>
    %409 = arith.subf %396, %408 : vector<16x32xf32>
    %cst_226 = arith.constant 9.99999974E-6 : f32
    %410 = vector.broadcast %cst_226 : f32 to vector<16x1xf32>
    %411 = arith.addf %407, %410 : vector<16x1xf32>
    %412 = math.rsqrt %411 : vector<16x1xf32>
    %413 = vector.broadcast %412 : vector<16x1xf32> to vector<16x32xf32>
    %414 = arith.mulf %409, %413 : vector<16x32xf32>
    %415 = vector.broadcast %67 : vector<1x32xf32> to vector<16x32xf32>
    %416 = arith.mulf %414, %415 : vector<16x32xf32>
    %417 = vector.broadcast %66 : vector<1x32xf32> to vector<16x32xf32>
    %418 = arith.addf %416, %417 : vector<16x32xf32>
    %c0_227 = arith.constant 0 : index
    %c0_228 = arith.constant 0 : index
    %419 = vector.load %arg1[%c0_227, %c0_228] : memref<8x64xf32, #tpu.memory_space<vmem>>, vector<8x32xf32>
    %c0_229 = arith.constant 0 : index
    %c0_230 = arith.constant 0 : index
    %420 = vector.load %arg2[%c0_229, %c0_230] : memref<50x32xf32, #tpu.memory_space<vmem>>, vector<1x32xf32>
    %421 = vector.broadcast %420 : vector<1x32xf32> to vector<8x32xf32>
    %422 = arith.addf %419, %421 : vector<8x32xf32>
    %c0_231 = arith.constant 0 : index
    %c32_232 = arith.constant 32 : index
    %423 = vector.load %arg1[%c0_231, %c32_232] : memref<8x64xf32, #tpu.memory_space<vmem>>, vector<8x32xf32>
    %c1_233 = arith.constant 1 : index
    %c0_234 = arith.constant 0 : index
    %424 = vector.load %arg2[%c1_233, %c0_234] : memref<50x32xf32, #tpu.memory_space<vmem>>, vector<1x32xf32>
    %425 = vector.broadcast %424 : vector<1x32xf32> to vector<8x32xf32>
    %426 = arith.addf %423, %425 : vector<8x32xf32>
    %427 = tpu.concatenate %422, %426 in 0 : vector<8x32xf32>, vector<8x32xf32> -> vector<16x32xf32>
    %cst_235 = arith.constant dense<0.000000e+00> : vector<16x96xf32>
    %428 = tpu.matmul %427, %16, %cst_235 {dimension_numbers = #tpu.dot_dimension_numbers<[1], [0], [0], [1], [0, 0, 1, 1], [], []>} : vector<16x32xf32>, vector<32x96xf32>, vector<16x96xf32> -> vector<16x96xf32>
    %429 = vector.broadcast %14 : vector<1x96xf32> to vector<16x96xf32>
    %430 = arith.addf %428, %429 : vector<16x96xf32>
    %431 = vector.extract_strided_slice %430 {offsets = [0, 0], sizes = [16, 32], strides = [1, 1]} : vector<16x96xf32> to vector<16x32xf32>
    %432 = vector.extract_strided_slice %430 {offsets = [0, 32], sizes = [16, 32], strides = [1, 1]} : vector<16x96xf32> to vector<16x32xf32>
    %433 = vector.extract_strided_slice %430 {offsets = [0, 64], sizes = [16, 32], strides = [1, 1]} : vector<16x96xf32> to vector<16x32xf32>
    %cst_236 = arith.constant 0.000000e+00 : f32
    %434 = vector.broadcast %cst_236 : f32 to vector<16x32xf32>
    %435 = vector.extract_strided_slice %431 {offsets = [0, 0], sizes = [16, 8], strides = [1, 1]} : vector<16x32xf32> to vector<16x8xf32>
    %cst_237 = arith.constant 0.353553385 : f32
    %436 = vector.broadcast %cst_237 : f32 to vector<16x8xf32>
    %437 = arith.mulf %435, %436 : vector<16x8xf32>
    %438 = vector.shape_cast %437 : vector<16x8xf32> to vector<2x8x8xf32>
    %439 = vector.extract_strided_slice %432 {offsets = [0, 0], sizes = [16, 8], strides = [1, 1]} : vector<16x32xf32> to vector<16x8xf32>
    %440 = vector.shape_cast %439 : vector<16x8xf32> to vector<2x8x8xf32>
    %441 = vector.extract_strided_slice %433 {offsets = [0, 0], sizes = [16, 8], strides = [1, 1]} : vector<16x32xf32> to vector<16x8xf32>
    %442 = vector.shape_cast %441 : vector<16x8xf32> to vector<2x8x8xf32>
    "tpu.trace_start"() <{level = 10 : i32, message = "bqd,bkd->bqk"}> : () -> ()
    %cst_238 = arith.constant dense<0.000000e+00> : vector<2x8x8xf32>
    %443 = tpu.matmul %438, %440, %cst_238 {dimension_numbers = #tpu.dot_dimension_numbers<[2], [2], [1], [1], [0, 0, 0, 1, 1, 1], [0], [0]>} : vector<2x8x8xf32>, vector<2x8x8xf32>, vector<2x8x8xf32> -> vector<2x8x8xf32>
    "tpu.trace_stop"() : () -> ()
    %cst_239 = arith.constant dense<0xFF800000> : vector<2x8xf32>
    %444 = vector.multi_reduction <maximumf>, %443, %cst_239 [2] : vector<2x8x8xf32> to vector<2x8xf32>
    %445 = vector.shape_cast %444 : vector<2x8xf32> to vector<2x8x1xf32>
    %446 = vector.broadcast %445 : vector<2x8x1xf32> to vector<2x8x8xf32>
    %447 = arith.subf %443, %446 : vector<2x8x8xf32>
    %448 = math.exp %447 : vector<2x8x8xf32>
    %cst_240 = arith.constant dense<0.000000e+00> : vector<2x8xf32>
    %449 = vector.multi_reduction <add>, %448, %cst_240 [2] : vector<2x8x8xf32> to vector<2x8xf32>
    %450 = vector.shape_cast %449 : vector<2x8xf32> to vector<2x8x1xf32>
    %451 = tpu.reciprocal %450 : vector<2x8x1xf32> -> vector<2x8x1xf32>
    %452 = vector.broadcast %451 : vector<2x8x1xf32> to vector<2x8x8xf32>
    %453 = arith.mulf %448, %452 : vector<2x8x8xf32>
    "tpu.trace_start"() <{level = 10 : i32, message = "bqk,bkd->bqd"}> : () -> ()
    %cst_241 = arith.constant dense<0.000000e+00> : vector<2x8x8xf32>
    %454 = tpu.matmul %453, %442, %cst_241 {dimension_numbers = #tpu.dot_dimension_numbers<[2], [1], [1], [2], [0, 0, 0, 1, 1, 2], [0], [0]>} : vector<2x8x8xf32>, vector<2x8x8xf32>, vector<2x8x8xf32> -> vector<2x8x8xf32>
    "tpu.trace_stop"() : () -> ()
    %455 = vector.shape_cast %454 : vector<2x8x8xf32> to vector<16x8xf32>
    %456 = vector.extract_strided_slice %17 {offsets = [0, 0], sizes = [8, 32], strides = [1, 1]} : vector<32x32xf32> to vector<8x32xf32>
    %cst_242 = arith.constant dense<0.000000e+00> : vector<16x32xf32>
    %457 = tpu.matmul %455, %456, %cst_242 {dimension_numbers = #tpu.dot_dimension_numbers<[1], [0], [0], [1], [0, 0, 1, 1], [], []>} : vector<16x8xf32>, vector<8x32xf32>, vector<16x32xf32> -> vector<16x32xf32>
    %458 = arith.addf %434, %457 : vector<16x32xf32>
    %459 = vector.extract_strided_slice %431 {offsets = [0, 8], sizes = [16, 8], strides = [1, 1]} : vector<16x32xf32> to vector<16x8xf32>
    %cst_243 = arith.constant 0.353553385 : f32
    %460 = vector.broadcast %cst_243 : f32 to vector<16x8xf32>
    %461 = arith.mulf %459, %460 : vector<16x8xf32>
    %462 = vector.shape_cast %461 : vector<16x8xf32> to vector<2x8x8xf32>
    %463 = vector.extract_strided_slice %432 {offsets = [0, 8], sizes = [16, 8], strides = [1, 1]} : vector<16x32xf32> to vector<16x8xf32>
    %464 = vector.shape_cast %463 : vector<16x8xf32> to vector<2x8x8xf32>
    %465 = vector.extract_strided_slice %433 {offsets = [0, 8], sizes = [16, 8], strides = [1, 1]} : vector<16x32xf32> to vector<16x8xf32>
    %466 = vector.shape_cast %465 : vector<16x8xf32> to vector<2x8x8xf32>
    "tpu.trace_start"() <{level = 10 : i32, message = "bqd,bkd->bqk"}> : () -> ()
    %cst_244 = arith.constant dense<0.000000e+00> : vector<2x8x8xf32>
    %467 = tpu.matmul %462, %464, %cst_244 {dimension_numbers = #tpu.dot_dimension_numbers<[2], [2], [1], [1], [0, 0, 0, 1, 1, 1], [0], [0]>} : vector<2x8x8xf32>, vector<2x8x8xf32>, vector<2x8x8xf32> -> vector<2x8x8xf32>
    "tpu.trace_stop"() : () -> ()
    %cst_245 = arith.constant dense<0xFF800000> : vector<2x8xf32>
    %468 = vector.multi_reduction <maximumf>, %467, %cst_245 [2] : vector<2x8x8xf32> to vector<2x8xf32>
    %469 = vector.shape_cast %468 : vector<2x8xf32> to vector<2x8x1xf32>
    %470 = vector.broadcast %469 : vector<2x8x1xf32> to vector<2x8x8xf32>
    %471 = arith.subf %467, %470 : vector<2x8x8xf32>
    %472 = math.exp %471 : vector<2x8x8xf32>
    %cst_246 = arith.constant dense<0.000000e+00> : vector<2x8xf32>
    %473 = vector.multi_reduction <add>, %472, %cst_246 [2] : vector<2x8x8xf32> to vector<2x8xf32>
    %474 = vector.shape_cast %473 : vector<2x8xf32> to vector<2x8x1xf32>
    %475 = tpu.reciprocal %474 : vector<2x8x1xf32> -> vector<2x8x1xf32>
    %476 = vector.broadcast %475 : vector<2x8x1xf32> to vector<2x8x8xf32>
    %477 = arith.mulf %472, %476 : vector<2x8x8xf32>
    "tpu.trace_start"() <{level = 10 : i32, message = "bqk,bkd->bqd"}> : () -> ()
    %cst_247 = arith.constant dense<0.000000e+00> : vector<2x8x8xf32>
    %478 = tpu.matmul %477, %466, %cst_247 {dimension_numbers = #tpu.dot_dimension_numbers<[2], [1], [1], [2], [0, 0, 0, 1, 1, 2], [0], [0]>} : vector<2x8x8xf32>, vector<2x8x8xf32>, vector<2x8x8xf32> -> vector<2x8x8xf32>
    "tpu.trace_stop"() : () -> ()
    %479 = vector.shape_cast %478 : vector<2x8x8xf32> to vector<16x8xf32>
    %480 = vector.extract_strided_slice %17 {offsets = [8, 0], sizes = [8, 32], strides = [1, 1]} : vector<32x32xf32> to vector<8x32xf32>
    %cst_248 = arith.constant dense<0.000000e+00> : vector<16x32xf32>
    %481 = tpu.matmul %479, %480, %cst_248 {dimension_numbers = #tpu.dot_dimension_numbers<[1], [0], [0], [1], [0, 0, 1, 1], [], []>} : vector<16x8xf32>, vector<8x32xf32>, vector<16x32xf32> -> vector<16x32xf32>
    %482 = arith.addf %458, %481 : vector<16x32xf32>
    %483 = vector.extract_strided_slice %431 {offsets = [0, 16], sizes = [16, 8], strides = [1, 1]} : vector<16x32xf32> to vector<16x8xf32>
    %cst_249 = arith.constant 0.353553385 : f32
    %484 = vector.broadcast %cst_249 : f32 to vector<16x8xf32>
    %485 = arith.mulf %483, %484 : vector<16x8xf32>
    %486 = vector.shape_cast %485 : vector<16x8xf32> to vector<2x8x8xf32>
    %487 = vector.extract_strided_slice %432 {offsets = [0, 16], sizes = [16, 8], strides = [1, 1]} : vector<16x32xf32> to vector<16x8xf32>
    %488 = vector.shape_cast %487 : vector<16x8xf32> to vector<2x8x8xf32>
    %489 = vector.extract_strided_slice %433 {offsets = [0, 16], sizes = [16, 8], strides = [1, 1]} : vector<16x32xf32> to vector<16x8xf32>
    %490 = vector.shape_cast %489 : vector<16x8xf32> to vector<2x8x8xf32>
    "tpu.trace_start"() <{level = 10 : i32, message = "bqd,bkd->bqk"}> : () -> ()
    %cst_250 = arith.constant dense<0.000000e+00> : vector<2x8x8xf32>
    %491 = tpu.matmul %486, %488, %cst_250 {dimension_numbers = #tpu.dot_dimension_numbers<[2], [2], [1], [1], [0, 0, 0, 1, 1, 1], [0], [0]>} : vector<2x8x8xf32>, vector<2x8x8xf32>, vector<2x8x8xf32> -> vector<2x8x8xf32>
    "tpu.trace_stop"() : () -> ()
    %cst_251 = arith.constant dense<0xFF800000> : vector<2x8xf32>
    %492 = vector.multi_reduction <maximumf>, %491, %cst_251 [2] : vector<2x8x8xf32> to vector<2x8xf32>
    %493 = vector.shape_cast %492 : vector<2x8xf32> to vector<2x8x1xf32>
    %494 = vector.broadcast %493 : vector<2x8x1xf32> to vector<2x8x8xf32>
    %495 = arith.subf %491, %494 : vector<2x8x8xf32>
    %496 = math.exp %495 : vector<2x8x8xf32>
    %cst_252 = arith.constant dense<0.000000e+00> : vector<2x8xf32>
    %497 = vector.multi_reduction <add>, %496, %cst_252 [2] : vector<2x8x8xf32> to vector<2x8xf32>
    %498 = vector.shape_cast %497 : vector<2x8xf32> to vector<2x8x1xf32>
    %499 = tpu.reciprocal %498 : vector<2x8x1xf32> -> vector<2x8x1xf32>
    %500 = vector.broadcast %499 : vector<2x8x1xf32> to vector<2x8x8xf32>
    %501 = arith.mulf %496, %500 : vector<2x8x8xf32>
    "tpu.trace_start"() <{level = 10 : i32, message = "bqk,bkd->bqd"}> : () -> ()
    %cst_253 = arith.constant dense<0.000000e+00> : vector<2x8x8xf32>
    %502 = tpu.matmul %501, %490, %cst_253 {dimension_numbers = #tpu.dot_dimension_numbers<[2], [1], [1], [2], [0, 0, 0, 1, 1, 2], [0], [0]>} : vector<2x8x8xf32>, vector<2x8x8xf32>, vector<2x8x8xf32> -> vector<2x8x8xf32>
    "tpu.trace_stop"() : () -> ()
    %503 = vector.shape_cast %502 : vector<2x8x8xf32> to vector<16x8xf32>
    %504 = vector.extract_strided_slice %17 {offsets = [16, 0], sizes = [8, 32], strides = [1, 1]} : vector<32x32xf32> to vector<8x32xf32>
    %cst_254 = arith.constant dense<0.000000e+00> : vector<16x32xf32>
    %505 = tpu.matmul %503, %504, %cst_254 {dimension_numbers = #tpu.dot_dimension_numbers<[1], [0], [0], [1], [0, 0, 1, 1], [], []>} : vector<16x8xf32>, vector<8x32xf32>, vector<16x32xf32> -> vector<16x32xf32>
    %506 = arith.addf %482, %505 : vector<16x32xf32>
    %507 = vector.extract_strided_slice %431 {offsets = [0, 24], sizes = [16, 8], strides = [1, 1]} : vector<16x32xf32> to vector<16x8xf32>
    %cst_255 = arith.constant 0.353553385 : f32
    %508 = vector.broadcast %cst_255 : f32 to vector<16x8xf32>
    %509 = arith.mulf %507, %508 : vector<16x8xf32>
    %510 = vector.shape_cast %509 : vector<16x8xf32> to vector<2x8x8xf32>
    %511 = vector.extract_strided_slice %432 {offsets = [0, 24], sizes = [16, 8], strides = [1, 1]} : vector<16x32xf32> to vector<16x8xf32>
    %512 = vector.shape_cast %511 : vector<16x8xf32> to vector<2x8x8xf32>
    %513 = vector.extract_strided_slice %433 {offsets = [0, 24], sizes = [16, 8], strides = [1, 1]} : vector<16x32xf32> to vector<16x8xf32>
    %514 = vector.shape_cast %513 : vector<16x8xf32> to vector<2x8x8xf32>
    "tpu.trace_start"() <{level = 10 : i32, message = "bqd,bkd->bqk"}> : () -> ()
    %cst_256 = arith.constant dense<0.000000e+00> : vector<2x8x8xf32>
    %515 = tpu.matmul %510, %512, %cst_256 {dimension_numbers = #tpu.dot_dimension_numbers<[2], [2], [1], [1], [0, 0, 0, 1, 1, 1], [0], [0]>} : vector<2x8x8xf32>, vector<2x8x8xf32>, vector<2x8x8xf32> -> vector<2x8x8xf32>
    "tpu.trace_stop"() : () -> ()
    %cst_257 = arith.constant dense<0xFF800000> : vector<2x8xf32>
    %516 = vector.multi_reduction <maximumf>, %515, %cst_257 [2] : vector<2x8x8xf32> to vector<2x8xf32>
    %517 = vector.shape_cast %516 : vector<2x8xf32> to vector<2x8x1xf32>
    %518 = vector.broadcast %517 : vector<2x8x1xf32> to vector<2x8x8xf32>
    %519 = arith.subf %515, %518 : vector<2x8x8xf32>
    %520 = math.exp %519 : vector<2x8x8xf32>
    %cst_258 = arith.constant dense<0.000000e+00> : vector<2x8xf32>
    %521 = vector.multi_reduction <add>, %520, %cst_258 [2] : vector<2x8x8xf32> to vector<2x8xf32>
    %522 = vector.shape_cast %521 : vector<2x8xf32> to vector<2x8x1xf32>
    %523 = tpu.reciprocal %522 : vector<2x8x1xf32> -> vector<2x8x1xf32>
    %524 = vector.broadcast %523 : vector<2x8x1xf32> to vector<2x8x8xf32>
    %525 = arith.mulf %520, %524 : vector<2x8x8xf32>
    "tpu.trace_start"() <{level = 10 : i32, message = "bqk,bkd->bqd"}> : () -> ()
    %cst_259 = arith.constant dense<0.000000e+00> : vector<2x8x8xf32>
    %526 = tpu.matmul %525, %514, %cst_259 {dimension_numbers = #tpu.dot_dimension_numbers<[2], [1], [1], [2], [0, 0, 0, 1, 1, 2], [0], [0]>} : vector<2x8x8xf32>, vector<2x8x8xf32>, vector<2x8x8xf32> -> vector<2x8x8xf32>
    "tpu.trace_stop"() : () -> ()
    %527 = vector.shape_cast %526 : vector<2x8x8xf32> to vector<16x8xf32>
    %528 = vector.extract_strided_slice %17 {offsets = [24, 0], sizes = [8, 32], strides = [1, 1]} : vector<32x32xf32> to vector<8x32xf32>
    %cst_260 = arith.constant dense<0.000000e+00> : vector<16x32xf32>
    %529 = tpu.matmul %527, %528, %cst_260 {dimension_numbers = #tpu.dot_dimension_numbers<[1], [0], [0], [1], [0, 0, 1, 1], [], []>} : vector<16x8xf32>, vector<8x32xf32>, vector<16x32xf32> -> vector<16x32xf32>
    %530 = arith.addf %506, %529 : vector<16x32xf32>
    %531 = vector.broadcast %15 : vector<1x32xf32> to vector<16x32xf32>
    %532 = arith.addf %530, %531 : vector<16x32xf32>
    %533 = arith.addf %427, %532 : vector<16x32xf32>
    %cst_261 = arith.constant dense<0.000000e+00> : vector<16xf32>
    %534 = vector.multi_reduction <add>, %533, %cst_261 [1] : vector<16x32xf32> to vector<16xf32>
    %535 = vector.shape_cast %534 : vector<16xf32> to vector<16x1xf32>
    %cst_262 = arith.constant 3.200000e+01 : f32
    %536 = vector.broadcast %cst_262 : f32 to vector<16x1xf32>
    %537 = arith.divf %535, %536 : vector<16x1xf32>
    %538 = vector.broadcast %537 : vector<16x1xf32> to vector<16x32xf32>
    %539 = arith.subf %533, %538 : vector<16x32xf32>
    %540 = arith.mulf %539, %539 : vector<16x32xf32>
    %cst_263 = arith.constant dense<0.000000e+00> : vector<16xf32>
    %541 = vector.multi_reduction <add>, %540, %cst_263 [1] : vector<16x32xf32> to vector<16xf32>
    %542 = vector.shape_cast %541 : vector<16xf32> to vector<16x1xf32>
    %cst_264 = arith.constant 3.200000e+01 : f32
    %543 = vector.broadcast %cst_264 : f32 to vector<16x1xf32>
    %544 = arith.divf %542, %543 : vector<16x1xf32>
    %545 = vector.broadcast %537 : vector<16x1xf32> to vector<16x32xf32>
    %546 = arith.subf %533, %545 : vector<16x32xf32>
    %cst_265 = arith.constant 9.99999974E-6 : f32
    %547 = vector.broadcast %cst_265 : f32 to vector<16x1xf32>
    %548 = arith.addf %544, %547 : vector<16x1xf32>
    %549 = math.rsqrt %548 : vector<16x1xf32>
    %550 = vector.broadcast %549 : vector<16x1xf32> to vector<16x32xf32>
    %551 = arith.mulf %546, %550 : vector<16x32xf32>
    %552 = vector.broadcast %9 : vector<1x32xf32> to vector<16x32xf32>
    %553 = arith.mulf %551, %552 : vector<16x32xf32>
    %554 = vector.broadcast %8 : vector<1x32xf32> to vector<16x32xf32>
    %555 = arith.addf %553, %554 : vector<16x32xf32>
    %cst_266 = arith.constant dense<0.000000e+00> : vector<16x32xf32>
    %556 = tpu.matmul %555, %7, %cst_266 {dimension_numbers = #tpu.dot_dimension_numbers<[1], [0], [0], [1], [0, 0, 1, 1], [], []>} : vector<16x32xf32>, vector<32x32xf32>, vector<16x32xf32> -> vector<16x32xf32>
    %557 = vector.broadcast %4 : vector<1x32xf32> to vector<16x32xf32>
    %558 = arith.addf %556, %557 : vector<16x32xf32>
    %cst_267 = arith.constant dense<0.000000e+00> : vector<16x64xf32>
    %559 = tpu.matmul %418, %5, %cst_267 {dimension_numbers = #tpu.dot_dimension_numbers<[1], [0], [0], [1], [0, 0, 1, 1], [], []>} : vector<16x32xf32>, vector<32x64xf32>, vector<16x64xf32> -> vector<16x64xf32>
    %560 = vector.broadcast %2 : vector<1x64xf32> to vector<16x64xf32>
    %561 = arith.addf %559, %560 : vector<16x64xf32>
    %562 = vector.extract_strided_slice %561 {offsets = [0, 0], sizes = [16, 32], strides = [1, 1]} : vector<16x64xf32> to vector<16x32xf32>
    %563 = vector.extract_strided_slice %561 {offsets = [0, 32], sizes = [16, 32], strides = [1, 1]} : vector<16x64xf32> to vector<16x32xf32>
    %cst_268 = arith.constant 0.000000e+00 : f32
    %564 = vector.broadcast %cst_268 : f32 to vector<16x32xf32>
    %565 = vector.extract_strided_slice %558 {offsets = [0, 0], sizes = [16, 8], strides = [1, 1]} : vector<16x32xf32> to vector<16x8xf32>
    %cst_269 = arith.constant 0.353553385 : f32
    %566 = vector.broadcast %cst_269 : f32 to vector<16x8xf32>
    %567 = arith.mulf %565, %566 : vector<16x8xf32>
    %568 = vector.shape_cast %567 : vector<16x8xf32> to vector<2x8x8xf32>
    %569 = vector.extract_strided_slice %562 {offsets = [0, 0], sizes = [16, 8], strides = [1, 1]} : vector<16x32xf32> to vector<16x8xf32>
    %570 = vector.shape_cast %569 : vector<16x8xf32> to vector<2x8x8xf32>
    %571 = vector.extract_strided_slice %563 {offsets = [0, 0], sizes = [16, 8], strides = [1, 1]} : vector<16x32xf32> to vector<16x8xf32>
    %572 = vector.shape_cast %571 : vector<16x8xf32> to vector<2x8x8xf32>
    "tpu.trace_start"() <{level = 10 : i32, message = "bqd,bkd->bqk"}> : () -> ()
    %cst_270 = arith.constant dense<0.000000e+00> : vector<2x8x8xf32>
    %573 = tpu.matmul %568, %570, %cst_270 {dimension_numbers = #tpu.dot_dimension_numbers<[2], [2], [1], [1], [0, 0, 0, 1, 1, 1], [0], [0]>} : vector<2x8x8xf32>, vector<2x8x8xf32>, vector<2x8x8xf32> -> vector<2x8x8xf32>
    "tpu.trace_stop"() : () -> ()
    %cst_271 = arith.constant dense<0xFF800000> : vector<2x8xf32>
    %574 = vector.multi_reduction <maximumf>, %573, %cst_271 [2] : vector<2x8x8xf32> to vector<2x8xf32>
    %575 = vector.shape_cast %574 : vector<2x8xf32> to vector<2x8x1xf32>
    %576 = vector.broadcast %575 : vector<2x8x1xf32> to vector<2x8x8xf32>
    %577 = arith.subf %573, %576 : vector<2x8x8xf32>
    %578 = math.exp %577 : vector<2x8x8xf32>
    %cst_272 = arith.constant dense<0.000000e+00> : vector<2x8xf32>
    %579 = vector.multi_reduction <add>, %578, %cst_272 [2] : vector<2x8x8xf32> to vector<2x8xf32>
    %580 = vector.shape_cast %579 : vector<2x8xf32> to vector<2x8x1xf32>
    %581 = tpu.reciprocal %580 : vector<2x8x1xf32> -> vector<2x8x1xf32>
    %582 = vector.broadcast %581 : vector<2x8x1xf32> to vector<2x8x8xf32>
    %583 = arith.mulf %578, %582 : vector<2x8x8xf32>
    "tpu.trace_start"() <{level = 10 : i32, message = "bqk,bkd->bqd"}> : () -> ()
    %cst_273 = arith.constant dense<0.000000e+00> : vector<2x8x8xf32>
    %584 = tpu.matmul %583, %572, %cst_273 {dimension_numbers = #tpu.dot_dimension_numbers<[2], [1], [1], [2], [0, 0, 0, 1, 1, 2], [0], [0]>} : vector<2x8x8xf32>, vector<2x8x8xf32>, vector<2x8x8xf32> -> vector<2x8x8xf32>
    "tpu.trace_stop"() : () -> ()
    %585 = vector.shape_cast %584 : vector<2x8x8xf32> to vector<16x8xf32>
    %586 = vector.extract_strided_slice %6 {offsets = [0, 0], sizes = [8, 32], strides = [1, 1]} : vector<32x32xf32> to vector<8x32xf32>
    %cst_274 = arith.constant dense<0.000000e+00> : vector<16x32xf32>
    %587 = tpu.matmul %585, %586, %cst_274 {dimension_numbers = #tpu.dot_dimension_numbers<[1], [0], [0], [1], [0, 0, 1, 1], [], []>} : vector<16x8xf32>, vector<8x32xf32>, vector<16x32xf32> -> vector<16x32xf32>
    %588 = arith.addf %564, %587 : vector<16x32xf32>
    %589 = vector.extract_strided_slice %558 {offsets = [0, 8], sizes = [16, 8], strides = [1, 1]} : vector<16x32xf32> to vector<16x8xf32>
    %cst_275 = arith.constant 0.353553385 : f32
    %590 = vector.broadcast %cst_275 : f32 to vector<16x8xf32>
    %591 = arith.mulf %589, %590 : vector<16x8xf32>
    %592 = vector.shape_cast %591 : vector<16x8xf32> to vector<2x8x8xf32>
    %593 = vector.extract_strided_slice %562 {offsets = [0, 8], sizes = [16, 8], strides = [1, 1]} : vector<16x32xf32> to vector<16x8xf32>
    %594 = vector.shape_cast %593 : vector<16x8xf32> to vector<2x8x8xf32>
    %595 = vector.extract_strided_slice %563 {offsets = [0, 8], sizes = [16, 8], strides = [1, 1]} : vector<16x32xf32> to vector<16x8xf32>
    %596 = vector.shape_cast %595 : vector<16x8xf32> to vector<2x8x8xf32>
    "tpu.trace_start"() <{level = 10 : i32, message = "bqd,bkd->bqk"}> : () -> ()
    %cst_276 = arith.constant dense<0.000000e+00> : vector<2x8x8xf32>
    %597 = tpu.matmul %592, %594, %cst_276 {dimension_numbers = #tpu.dot_dimension_numbers<[2], [2], [1], [1], [0, 0, 0, 1, 1, 1], [0], [0]>} : vector<2x8x8xf32>, vector<2x8x8xf32>, vector<2x8x8xf32> -> vector<2x8x8xf32>
    "tpu.trace_stop"() : () -> ()
    %cst_277 = arith.constant dense<0xFF800000> : vector<2x8xf32>
    %598 = vector.multi_reduction <maximumf>, %597, %cst_277 [2] : vector<2x8x8xf32> to vector<2x8xf32>
    %599 = vector.shape_cast %598 : vector<2x8xf32> to vector<2x8x1xf32>
    %600 = vector.broadcast %599 : vector<2x8x1xf32> to vector<2x8x8xf32>
    %601 = arith.subf %597, %600 : vector<2x8x8xf32>
    %602 = math.exp %601 : vector<2x8x8xf32>
    %cst_278 = arith.constant dense<0.000000e+00> : vector<2x8xf32>
    %603 = vector.multi_reduction <add>, %602, %cst_278 [2] : vector<2x8x8xf32> to vector<2x8xf32>
    %604 = vector.shape_cast %603 : vector<2x8xf32> to vector<2x8x1xf32>
    %605 = tpu.reciprocal %604 : vector<2x8x1xf32> -> vector<2x8x1xf32>
    %606 = vector.broadcast %605 : vector<2x8x1xf32> to vector<2x8x8xf32>
    %607 = arith.mulf %602, %606 : vector<2x8x8xf32>
    "tpu.trace_start"() <{level = 10 : i32, message = "bqk,bkd->bqd"}> : () -> ()
    %cst_279 = arith.constant dense<0.000000e+00> : vector<2x8x8xf32>
    %608 = tpu.matmul %607, %596, %cst_279 {dimension_numbers = #tpu.dot_dimension_numbers<[2], [1], [1], [2], [0, 0, 0, 1, 1, 2], [0], [0]>} : vector<2x8x8xf32>, vector<2x8x8xf32>, vector<2x8x8xf32> -> vector<2x8x8xf32>
    "tpu.trace_stop"() : () -> ()
    %609 = vector.shape_cast %608 : vector<2x8x8xf32> to vector<16x8xf32>
    %610 = vector.extract_strided_slice %6 {offsets = [8, 0], sizes = [8, 32], strides = [1, 1]} : vector<32x32xf32> to vector<8x32xf32>
    %cst_280 = arith.constant dense<0.000000e+00> : vector<16x32xf32>
    %611 = tpu.matmul %609, %610, %cst_280 {dimension_numbers = #tpu.dot_dimension_numbers<[1], [0], [0], [1], [0, 0, 1, 1], [], []>} : vector<16x8xf32>, vector<8x32xf32>, vector<16x32xf32> -> vector<16x32xf32>
    %612 = arith.addf %588, %611 : vector<16x32xf32>
    %613 = vector.extract_strided_slice %558 {offsets = [0, 16], sizes = [16, 8], strides = [1, 1]} : vector<16x32xf32> to vector<16x8xf32>
    %cst_281 = arith.constant 0.353553385 : f32
    %614 = vector.broadcast %cst_281 : f32 to vector<16x8xf32>
    %615 = arith.mulf %613, %614 : vector<16x8xf32>
    %616 = vector.shape_cast %615 : vector<16x8xf32> to vector<2x8x8xf32>
    %617 = vector.extract_strided_slice %562 {offsets = [0, 16], sizes = [16, 8], strides = [1, 1]} : vector<16x32xf32> to vector<16x8xf32>
    %618 = vector.shape_cast %617 : vector<16x8xf32> to vector<2x8x8xf32>
    %619 = vector.extract_strided_slice %563 {offsets = [0, 16], sizes = [16, 8], strides = [1, 1]} : vector<16x32xf32> to vector<16x8xf32>
    %620 = vector.shape_cast %619 : vector<16x8xf32> to vector<2x8x8xf32>
    "tpu.trace_start"() <{level = 10 : i32, message = "bqd,bkd->bqk"}> : () -> ()
    %cst_282 = arith.constant dense<0.000000e+00> : vector<2x8x8xf32>
    %621 = tpu.matmul %616, %618, %cst_282 {dimension_numbers = #tpu.dot_dimension_numbers<[2], [2], [1], [1], [0, 0, 0, 1, 1, 1], [0], [0]>} : vector<2x8x8xf32>, vector<2x8x8xf32>, vector<2x8x8xf32> -> vector<2x8x8xf32>
    "tpu.trace_stop"() : () -> ()
    %cst_283 = arith.constant dense<0xFF800000> : vector<2x8xf32>
    %622 = vector.multi_reduction <maximumf>, %621, %cst_283 [2] : vector<2x8x8xf32> to vector<2x8xf32>
    %623 = vector.shape_cast %622 : vector<2x8xf32> to vector<2x8x1xf32>
    %624 = vector.broadcast %623 : vector<2x8x1xf32> to vector<2x8x8xf32>
    %625 = arith.subf %621, %624 : vector<2x8x8xf32>
    %626 = math.exp %625 : vector<2x8x8xf32>
    %cst_284 = arith.constant dense<0.000000e+00> : vector<2x8xf32>
    %627 = vector.multi_reduction <add>, %626, %cst_284 [2] : vector<2x8x8xf32> to vector<2x8xf32>
    %628 = vector.shape_cast %627 : vector<2x8xf32> to vector<2x8x1xf32>
    %629 = tpu.reciprocal %628 : vector<2x8x1xf32> -> vector<2x8x1xf32>
    %630 = vector.broadcast %629 : vector<2x8x1xf32> to vector<2x8x8xf32>
    %631 = arith.mulf %626, %630 : vector<2x8x8xf32>
    "tpu.trace_start"() <{level = 10 : i32, message = "bqk,bkd->bqd"}> : () -> ()
    %cst_285 = arith.constant dense<0.000000e+00> : vector<2x8x8xf32>
    %632 = tpu.matmul %631, %620, %cst_285 {dimension_numbers = #tpu.dot_dimension_numbers<[2], [1], [1], [2], [0, 0, 0, 1, 1, 2], [0], [0]>} : vector<2x8x8xf32>, vector<2x8x8xf32>, vector<2x8x8xf32> -> vector<2x8x8xf32>
    "tpu.trace_stop"() : () -> ()
    %633 = vector.shape_cast %632 : vector<2x8x8xf32> to vector<16x8xf32>
    %634 = vector.extract_strided_slice %6 {offsets = [16, 0], sizes = [8, 32], strides = [1, 1]} : vector<32x32xf32> to vector<8x32xf32>
    %cst_286 = arith.constant dense<0.000000e+00> : vector<16x32xf32>
    %635 = tpu.matmul %633, %634, %cst_286 {dimension_numbers = #tpu.dot_dimension_numbers<[1], [0], [0], [1], [0, 0, 1, 1], [], []>} : vector<16x8xf32>, vector<8x32xf32>, vector<16x32xf32> -> vector<16x32xf32>
    %636 = arith.addf %612, %635 : vector<16x32xf32>
    %637 = vector.extract_strided_slice %558 {offsets = [0, 24], sizes = [16, 8], strides = [1, 1]} : vector<16x32xf32> to vector<16x8xf32>
    %cst_287 = arith.constant 0.353553385 : f32
    %638 = vector.broadcast %cst_287 : f32 to vector<16x8xf32>
    %639 = arith.mulf %637, %638 : vector<16x8xf32>
    %640 = vector.shape_cast %639 : vector<16x8xf32> to vector<2x8x8xf32>
    %641 = vector.extract_strided_slice %562 {offsets = [0, 24], sizes = [16, 8], strides = [1, 1]} : vector<16x32xf32> to vector<16x8xf32>
    %642 = vector.shape_cast %641 : vector<16x8xf32> to vector<2x8x8xf32>
    %643 = vector.extract_strided_slice %563 {offsets = [0, 24], sizes = [16, 8], strides = [1, 1]} : vector<16x32xf32> to vector<16x8xf32>
    %644 = vector.shape_cast %643 : vector<16x8xf32> to vector<2x8x8xf32>
    "tpu.trace_start"() <{level = 10 : i32, message = "bqd,bkd->bqk"}> : () -> ()
    %cst_288 = arith.constant dense<0.000000e+00> : vector<2x8x8xf32>
    %645 = tpu.matmul %640, %642, %cst_288 {dimension_numbers = #tpu.dot_dimension_numbers<[2], [2], [1], [1], [0, 0, 0, 1, 1, 1], [0], [0]>} : vector<2x8x8xf32>, vector<2x8x8xf32>, vector<2x8x8xf32> -> vector<2x8x8xf32>
    "tpu.trace_stop"() : () -> ()
    %cst_289 = arith.constant dense<0xFF800000> : vector<2x8xf32>
    %646 = vector.multi_reduction <maximumf>, %645, %cst_289 [2] : vector<2x8x8xf32> to vector<2x8xf32>
    %647 = vector.shape_cast %646 : vector<2x8xf32> to vector<2x8x1xf32>
    %648 = vector.broadcast %647 : vector<2x8x1xf32> to vector<2x8x8xf32>
    %649 = arith.subf %645, %648 : vector<2x8x8xf32>
    %650 = math.exp %649 : vector<2x8x8xf32>
    %cst_290 = arith.constant dense<0.000000e+00> : vector<2x8xf32>
    %651 = vector.multi_reduction <add>, %650, %cst_290 [2] : vector<2x8x8xf32> to vector<2x8xf32>
    %652 = vector.shape_cast %651 : vector<2x8xf32> to vector<2x8x1xf32>
    %653 = tpu.reciprocal %652 : vector<2x8x1xf32> -> vector<2x8x1xf32>
    %654 = vector.broadcast %653 : vector<2x8x1xf32> to vector<2x8x8xf32>
    %655 = arith.mulf %650, %654 : vector<2x8x8xf32>
    "tpu.trace_start"() <{level = 10 : i32, message = "bqk,bkd->bqd"}> : () -> ()
    %cst_291 = arith.constant dense<0.000000e+00> : vector<2x8x8xf32>
    %656 = tpu.matmul %655, %644, %cst_291 {dimension_numbers = #tpu.dot_dimension_numbers<[2], [1], [1], [2], [0, 0, 0, 1, 1, 2], [0], [0]>} : vector<2x8x8xf32>, vector<2x8x8xf32>, vector<2x8x8xf32> -> vector<2x8x8xf32>
    "tpu.trace_stop"() : () -> ()
    %657 = vector.shape_cast %656 : vector<2x8x8xf32> to vector<16x8xf32>
    %658 = vector.extract_strided_slice %6 {offsets = [24, 0], sizes = [8, 32], strides = [1, 1]} : vector<32x32xf32> to vector<8x32xf32>
    %cst_292 = arith.constant dense<0.000000e+00> : vector<16x32xf32>
    %659 = tpu.matmul %657, %658, %cst_292 {dimension_numbers = #tpu.dot_dimension_numbers<[1], [0], [0], [1], [0, 0, 1, 1], [], []>} : vector<16x8xf32>, vector<8x32xf32>, vector<16x32xf32> -> vector<16x32xf32>
    %660 = arith.addf %636, %659 : vector<16x32xf32>
    %661 = vector.broadcast %3 : vector<1x32xf32> to vector<16x32xf32>
    %662 = arith.addf %660, %661 : vector<16x32xf32>
    %663 = arith.addf %555, %662 : vector<16x32xf32>
    %cst_293 = arith.constant dense<0.000000e+00> : vector<16xf32>
    %664 = vector.multi_reduction <add>, %663, %cst_293 [1] : vector<16x32xf32> to vector<16xf32>
    %665 = vector.shape_cast %664 : vector<16xf32> to vector<16x1xf32>
    %cst_294 = arith.constant 3.200000e+01 : f32
    %666 = vector.broadcast %cst_294 : f32 to vector<16x1xf32>
    %667 = arith.divf %665, %666 : vector<16x1xf32>
    %668 = vector.broadcast %667 : vector<16x1xf32> to vector<16x32xf32>
    %669 = arith.subf %663, %668 : vector<16x32xf32>
    %670 = arith.mulf %669, %669 : vector<16x32xf32>
    %cst_295 = arith.constant dense<0.000000e+00> : vector<16xf32>
    %671 = vector.multi_reduction <add>, %670, %cst_295 [1] : vector<16x32xf32> to vector<16xf32>
    %672 = vector.shape_cast %671 : vector<16xf32> to vector<16x1xf32>
    %cst_296 = arith.constant 3.200000e+01 : f32
    %673 = vector.broadcast %cst_296 : f32 to vector<16x1xf32>
    %674 = arith.divf %672, %673 : vector<16x1xf32>
    %675 = vector.broadcast %667 : vector<16x1xf32> to vector<16x32xf32>
    %676 = arith.subf %663, %675 : vector<16x32xf32>
    %cst_297 = arith.constant 9.99999974E-6 : f32
    %677 = vector.broadcast %cst_297 : f32 to vector<16x1xf32>
    %678 = arith.addf %674, %677 : vector<16x1xf32>
    %679 = math.rsqrt %678 : vector<16x1xf32>
    %680 = vector.broadcast %679 : vector<16x1xf32> to vector<16x32xf32>
    %681 = arith.mulf %676, %680 : vector<16x32xf32>
    %682 = vector.broadcast %11 : vector<1x32xf32> to vector<16x32xf32>
    %683 = arith.mulf %681, %682 : vector<16x32xf32>
    %684 = vector.broadcast %10 : vector<1x32xf32> to vector<16x32xf32>
    %685 = arith.addf %683, %684 : vector<16x32xf32>
    %cst_298 = arith.constant dense<0.000000e+00> : vector<16x64xf32>
    %686 = tpu.matmul %685, %18, %cst_298 {dimension_numbers = #tpu.dot_dimension_numbers<[1], [0], [0], [1], [0, 0, 1, 1], [], []>} : vector<16x32xf32>, vector<32x64xf32>, vector<16x64xf32> -> vector<16x64xf32>
    %687 = vector.broadcast %0 : vector<1x64xf32> to vector<16x64xf32>
    %688 = arith.addf %686, %687 : vector<16x64xf32>
    %cst_299 = arith.constant 0.000000e+00 : f32
    %689 = vector.broadcast %cst_299 : f32 to vector<16x64xf32>
    %690 = arith.maximumf %688, %689 : vector<16x64xf32>
    %cst_300 = arith.constant dense<0.000000e+00> : vector<16x32xf32>
    %691 = tpu.matmul %690, %19, %cst_300 {dimension_numbers = #tpu.dot_dimension_numbers<[1], [0], [0], [1], [0, 0, 1, 1], [], []>} : vector<16x64xf32>, vector<64x32xf32>, vector<16x32xf32> -> vector<16x32xf32>
    %692 = vector.broadcast %1 : vector<1x32xf32> to vector<16x32xf32>
    %693 = arith.addf %691, %692 : vector<16x32xf32>
    %694 = arith.addf %685, %693 : vector<16x32xf32>
    %cst_301 = arith.constant dense<0.000000e+00> : vector<16xf32>
    %695 = vector.multi_reduction <add>, %694, %cst_301 [1] : vector<16x32xf32> to vector<16xf32>
    %696 = vector.shape_cast %695 : vector<16xf32> to vector<16x1xf32>
    %cst_302 = arith.constant 3.200000e+01 : f32
    %697 = vector.broadcast %cst_302 : f32 to vector<16x1xf32>
    %698 = arith.divf %696, %697 : vector<16x1xf32>
    %699 = vector.broadcast %698 : vector<16x1xf32> to vector<16x32xf32>
    %700 = arith.subf %694, %699 : vector<16x32xf32>
    %701 = arith.mulf %700, %700 : vector<16x32xf32>
    %cst_303 = arith.constant dense<0.000000e+00> : vector<16xf32>
    %702 = vector.multi_reduction <add>, %701, %cst_303 [1] : vector<16x32xf32> to vector<16xf32>
    %703 = vector.shape_cast %702 : vector<16xf32> to vector<16x1xf32>
    %cst_304 = arith.constant 3.200000e+01 : f32
    %704 = vector.broadcast %cst_304 : f32 to vector<16x1xf32>
    %705 = arith.divf %703, %704 : vector<16x1xf32>
    %706 = vector.broadcast %698 : vector<16x1xf32> to vector<16x32xf32>
    %707 = arith.subf %694, %706 : vector<16x32xf32>
    %cst_305 = arith.constant 9.99999974E-6 : f32
    %708 = vector.broadcast %cst_305 : f32 to vector<16x1xf32>
    %709 = arith.addf %705, %708 : vector<16x1xf32>
    %710 = math.rsqrt %709 : vector<16x1xf32>
    %711 = vector.broadcast %710 : vector<16x1xf32> to vector<16x32xf32>
    %712 = arith.mulf %707, %711 : vector<16x32xf32>
    %713 = vector.broadcast %13 : vector<1x32xf32> to vector<16x32xf32>
    %714 = arith.mulf %712, %713 : vector<16x32xf32>
    %715 = vector.broadcast %12 : vector<1x32xf32> to vector<16x32xf32>
    %716 = arith.addf %714, %715 : vector<16x32xf32>
    %cst_306 = arith.constant dense<0.000000e+00> : vector<16x96xf32>
    %717 = tpu.matmul %716, %36, %cst_306 {dimension_numbers = #tpu.dot_dimension_numbers<[1], [0], [0], [1], [0, 0, 1, 1], [], []>} : vector<16x32xf32>, vector<32x96xf32>, vector<16x96xf32> -> vector<16x96xf32>
    %718 = vector.broadcast %34 : vector<1x96xf32> to vector<16x96xf32>
    %719 = arith.addf %717, %718 : vector<16x96xf32>
    %720 = vector.extract_strided_slice %719 {offsets = [0, 0], sizes = [16, 32], strides = [1, 1]} : vector<16x96xf32> to vector<16x32xf32>
    %721 = vector.extract_strided_slice %719 {offsets = [0, 32], sizes = [16, 32], strides = [1, 1]} : vector<16x96xf32> to vector<16x32xf32>
    %722 = vector.extract_strided_slice %719 {offsets = [0, 64], sizes = [16, 32], strides = [1, 1]} : vector<16x96xf32> to vector<16x32xf32>
    %cst_307 = arith.constant 0.000000e+00 : f32
    %723 = vector.broadcast %cst_307 : f32 to vector<16x32xf32>
    %724 = vector.extract_strided_slice %720 {offsets = [0, 0], sizes = [16, 8], strides = [1, 1]} : vector<16x32xf32> to vector<16x8xf32>
    %cst_308 = arith.constant 0.353553385 : f32
    %725 = vector.broadcast %cst_308 : f32 to vector<16x8xf32>
    %726 = arith.mulf %724, %725 : vector<16x8xf32>
    %727 = vector.shape_cast %726 : vector<16x8xf32> to vector<2x8x8xf32>
    %728 = vector.extract_strided_slice %721 {offsets = [0, 0], sizes = [16, 8], strides = [1, 1]} : vector<16x32xf32> to vector<16x8xf32>
    %729 = vector.shape_cast %728 : vector<16x8xf32> to vector<2x8x8xf32>
    %730 = vector.extract_strided_slice %722 {offsets = [0, 0], sizes = [16, 8], strides = [1, 1]} : vector<16x32xf32> to vector<16x8xf32>
    %731 = vector.shape_cast %730 : vector<16x8xf32> to vector<2x8x8xf32>
    "tpu.trace_start"() <{level = 10 : i32, message = "bqd,bkd->bqk"}> : () -> ()
    %cst_309 = arith.constant dense<0.000000e+00> : vector<2x8x8xf32>
    %732 = tpu.matmul %727, %729, %cst_309 {dimension_numbers = #tpu.dot_dimension_numbers<[2], [2], [1], [1], [0, 0, 0, 1, 1, 1], [0], [0]>} : vector<2x8x8xf32>, vector<2x8x8xf32>, vector<2x8x8xf32> -> vector<2x8x8xf32>
    "tpu.trace_stop"() : () -> ()
    %cst_310 = arith.constant dense<0xFF800000> : vector<2x8xf32>
    %733 = vector.multi_reduction <maximumf>, %732, %cst_310 [2] : vector<2x8x8xf32> to vector<2x8xf32>
    %734 = vector.shape_cast %733 : vector<2x8xf32> to vector<2x8x1xf32>
    %735 = vector.broadcast %734 : vector<2x8x1xf32> to vector<2x8x8xf32>
    %736 = arith.subf %732, %735 : vector<2x8x8xf32>
    %737 = math.exp %736 : vector<2x8x8xf32>
    %cst_311 = arith.constant dense<0.000000e+00> : vector<2x8xf32>
    %738 = vector.multi_reduction <add>, %737, %cst_311 [2] : vector<2x8x8xf32> to vector<2x8xf32>
    %739 = vector.shape_cast %738 : vector<2x8xf32> to vector<2x8x1xf32>
    %740 = tpu.reciprocal %739 : vector<2x8x1xf32> -> vector<2x8x1xf32>
    %741 = vector.broadcast %740 : vector<2x8x1xf32> to vector<2x8x8xf32>
    %742 = arith.mulf %737, %741 : vector<2x8x8xf32>
    "tpu.trace_start"() <{level = 10 : i32, message = "bqk,bkd->bqd"}> : () -> ()
    %cst_312 = arith.constant dense<0.000000e+00> : vector<2x8x8xf32>
    %743 = tpu.matmul %742, %731, %cst_312 {dimension_numbers = #tpu.dot_dimension_numbers<[2], [1], [1], [2], [0, 0, 0, 1, 1, 2], [0], [0]>} : vector<2x8x8xf32>, vector<2x8x8xf32>, vector<2x8x8xf32> -> vector<2x8x8xf32>
    "tpu.trace_stop"() : () -> ()
    %744 = vector.shape_cast %743 : vector<2x8x8xf32> to vector<16x8xf32>
    %745 = vector.extract_strided_slice %37 {offsets = [0, 0], sizes = [8, 32], strides = [1, 1]} : vector<32x32xf32> to vector<8x32xf32>
    %cst_313 = arith.constant dense<0.000000e+00> : vector<16x32xf32>
    %746 = tpu.matmul %744, %745, %cst_313 {dimension_numbers = #tpu.dot_dimension_numbers<[1], [0], [0], [1], [0, 0, 1, 1], [], []>} : vector<16x8xf32>, vector<8x32xf32>, vector<16x32xf32> -> vector<16x32xf32>
    %747 = arith.addf %723, %746 : vector<16x32xf32>
    %748 = vector.extract_strided_slice %720 {offsets = [0, 8], sizes = [16, 8], strides = [1, 1]} : vector<16x32xf32> to vector<16x8xf32>
    %cst_314 = arith.constant 0.353553385 : f32
    %749 = vector.broadcast %cst_314 : f32 to vector<16x8xf32>
    %750 = arith.mulf %748, %749 : vector<16x8xf32>
    %751 = vector.shape_cast %750 : vector<16x8xf32> to vector<2x8x8xf32>
    %752 = vector.extract_strided_slice %721 {offsets = [0, 8], sizes = [16, 8], strides = [1, 1]} : vector<16x32xf32> to vector<16x8xf32>
    %753 = vector.shape_cast %752 : vector<16x8xf32> to vector<2x8x8xf32>
    %754 = vector.extract_strided_slice %722 {offsets = [0, 8], sizes = [16, 8], strides = [1, 1]} : vector<16x32xf32> to vector<16x8xf32>
    %755 = vector.shape_cast %754 : vector<16x8xf32> to vector<2x8x8xf32>
    "tpu.trace_start"() <{level = 10 : i32, message = "bqd,bkd->bqk"}> : () -> ()
    %cst_315 = arith.constant dense<0.000000e+00> : vector<2x8x8xf32>
    %756 = tpu.matmul %751, %753, %cst_315 {dimension_numbers = #tpu.dot_dimension_numbers<[2], [2], [1], [1], [0, 0, 0, 1, 1, 1], [0], [0]>} : vector<2x8x8xf32>, vector<2x8x8xf32>, vector<2x8x8xf32> -> vector<2x8x8xf32>
    "tpu.trace_stop"() : () -> ()
    %cst_316 = arith.constant dense<0xFF800000> : vector<2x8xf32>
    %757 = vector.multi_reduction <maximumf>, %756, %cst_316 [2] : vector<2x8x8xf32> to vector<2x8xf32>
    %758 = vector.shape_cast %757 : vector<2x8xf32> to vector<2x8x1xf32>
    %759 = vector.broadcast %758 : vector<2x8x1xf32> to vector<2x8x8xf32>
    %760 = arith.subf %756, %759 : vector<2x8x8xf32>
    %761 = math.exp %760 : vector<2x8x8xf32>
    %cst_317 = arith.constant dense<0.000000e+00> : vector<2x8xf32>
    %762 = vector.multi_reduction <add>, %761, %cst_317 [2] : vector<2x8x8xf32> to vector<2x8xf32>
    %763 = vector.shape_cast %762 : vector<2x8xf32> to vector<2x8x1xf32>
    %764 = tpu.reciprocal %763 : vector<2x8x1xf32> -> vector<2x8x1xf32>
    %765 = vector.broadcast %764 : vector<2x8x1xf32> to vector<2x8x8xf32>
    %766 = arith.mulf %761, %765 : vector<2x8x8xf32>
    "tpu.trace_start"() <{level = 10 : i32, message = "bqk,bkd->bqd"}> : () -> ()
    %cst_318 = arith.constant dense<0.000000e+00> : vector<2x8x8xf32>
    %767 = tpu.matmul %766, %755, %cst_318 {dimension_numbers = #tpu.dot_dimension_numbers<[2], [1], [1], [2], [0, 0, 0, 1, 1, 2], [0], [0]>} : vector<2x8x8xf32>, vector<2x8x8xf32>, vector<2x8x8xf32> -> vector<2x8x8xf32>
    "tpu.trace_stop"() : () -> ()
    %768 = vector.shape_cast %767 : vector<2x8x8xf32> to vector<16x8xf32>
    %769 = vector.extract_strided_slice %37 {offsets = [8, 0], sizes = [8, 32], strides = [1, 1]} : vector<32x32xf32> to vector<8x32xf32>
    %cst_319 = arith.constant dense<0.000000e+00> : vector<16x32xf32>
    %770 = tpu.matmul %768, %769, %cst_319 {dimension_numbers = #tpu.dot_dimension_numbers<[1], [0], [0], [1], [0, 0, 1, 1], [], []>} : vector<16x8xf32>, vector<8x32xf32>, vector<16x32xf32> -> vector<16x32xf32>
    %771 = arith.addf %747, %770 : vector<16x32xf32>
    %772 = vector.extract_strided_slice %720 {offsets = [0, 16], sizes = [16, 8], strides = [1, 1]} : vector<16x32xf32> to vector<16x8xf32>
    %cst_320 = arith.constant 0.353553385 : f32
    %773 = vector.broadcast %cst_320 : f32 to vector<16x8xf32>
    %774 = arith.mulf %772, %773 : vector<16x8xf32>
    %775 = vector.shape_cast %774 : vector<16x8xf32> to vector<2x8x8xf32>
    %776 = vector.extract_strided_slice %721 {offsets = [0, 16], sizes = [16, 8], strides = [1, 1]} : vector<16x32xf32> to vector<16x8xf32>
    %777 = vector.shape_cast %776 : vector<16x8xf32> to vector<2x8x8xf32>
    %778 = vector.extract_strided_slice %722 {offsets = [0, 16], sizes = [16, 8], strides = [1, 1]} : vector<16x32xf32> to vector<16x8xf32>
    %779 = vector.shape_cast %778 : vector<16x8xf32> to vector<2x8x8xf32>
    "tpu.trace_start"() <{level = 10 : i32, message = "bqd,bkd->bqk"}> : () -> ()
    %cst_321 = arith.constant dense<0.000000e+00> : vector<2x8x8xf32>
    %780 = tpu.matmul %775, %777, %cst_321 {dimension_numbers = #tpu.dot_dimension_numbers<[2], [2], [1], [1], [0, 0, 0, 1, 1, 1], [0], [0]>} : vector<2x8x8xf32>, vector<2x8x8xf32>, vector<2x8x8xf32> -> vector<2x8x8xf32>
    "tpu.trace_stop"() : () -> ()
    %cst_322 = arith.constant dense<0xFF800000> : vector<2x8xf32>
    %781 = vector.multi_reduction <maximumf>, %780, %cst_322 [2] : vector<2x8x8xf32> to vector<2x8xf32>
    %782 = vector.shape_cast %781 : vector<2x8xf32> to vector<2x8x1xf32>
    %783 = vector.broadcast %782 : vector<2x8x1xf32> to vector<2x8x8xf32>
    %784 = arith.subf %780, %783 : vector<2x8x8xf32>
    %785 = math.exp %784 : vector<2x8x8xf32>
    %cst_323 = arith.constant dense<0.000000e+00> : vector<2x8xf32>
    %786 = vector.multi_reduction <add>, %785, %cst_323 [2] : vector<2x8x8xf32> to vector<2x8xf32>
    %787 = vector.shape_cast %786 : vector<2x8xf32> to vector<2x8x1xf32>
    %788 = tpu.reciprocal %787 : vector<2x8x1xf32> -> vector<2x8x1xf32>
    %789 = vector.broadcast %788 : vector<2x8x1xf32> to vector<2x8x8xf32>
    %790 = arith.mulf %785, %789 : vector<2x8x8xf32>
    "tpu.trace_start"() <{level = 10 : i32, message = "bqk,bkd->bqd"}> : () -> ()
    %cst_324 = arith.constant dense<0.000000e+00> : vector<2x8x8xf32>
    %791 = tpu.matmul %790, %779, %cst_324 {dimension_numbers = #tpu.dot_dimension_numbers<[2], [1], [1], [2], [0, 0, 0, 1, 1, 2], [0], [0]>} : vector<2x8x8xf32>, vector<2x8x8xf32>, vector<2x8x8xf32> -> vector<2x8x8xf32>
    "tpu.trace_stop"() : () -> ()
    %792 = vector.shape_cast %791 : vector<2x8x8xf32> to vector<16x8xf32>
    %793 = vector.extract_strided_slice %37 {offsets = [16, 0], sizes = [8, 32], strides = [1, 1]} : vector<32x32xf32> to vector<8x32xf32>
    %cst_325 = arith.constant dense<0.000000e+00> : vector<16x32xf32>
    %794 = tpu.matmul %792, %793, %cst_325 {dimension_numbers = #tpu.dot_dimension_numbers<[1], [0], [0], [1], [0, 0, 1, 1], [], []>} : vector<16x8xf32>, vector<8x32xf32>, vector<16x32xf32> -> vector<16x32xf32>
    %795 = arith.addf %771, %794 : vector<16x32xf32>
    %796 = vector.extract_strided_slice %720 {offsets = [0, 24], sizes = [16, 8], strides = [1, 1]} : vector<16x32xf32> to vector<16x8xf32>
    %cst_326 = arith.constant 0.353553385 : f32
    %797 = vector.broadcast %cst_326 : f32 to vector<16x8xf32>
    %798 = arith.mulf %796, %797 : vector<16x8xf32>
    %799 = vector.shape_cast %798 : vector<16x8xf32> to vector<2x8x8xf32>
    %800 = vector.extract_strided_slice %721 {offsets = [0, 24], sizes = [16, 8], strides = [1, 1]} : vector<16x32xf32> to vector<16x8xf32>
    %801 = vector.shape_cast %800 : vector<16x8xf32> to vector<2x8x8xf32>
    %802 = vector.extract_strided_slice %722 {offsets = [0, 24], sizes = [16, 8], strides = [1, 1]} : vector<16x32xf32> to vector<16x8xf32>
    %803 = vector.shape_cast %802 : vector<16x8xf32> to vector<2x8x8xf32>
    "tpu.trace_start"() <{level = 10 : i32, message = "bqd,bkd->bqk"}> : () -> ()
    %cst_327 = arith.constant dense<0.000000e+00> : vector<2x8x8xf32>
    %804 = tpu.matmul %799, %801, %cst_327 {dimension_numbers = #tpu.dot_dimension_numbers<[2], [2], [1], [1], [0, 0, 0, 1, 1, 1], [0], [0]>} : vector<2x8x8xf32>, vector<2x8x8xf32>, vector<2x8x8xf32> -> vector<2x8x8xf32>
    "tpu.trace_stop"() : () -> ()
    %cst_328 = arith.constant dense<0xFF800000> : vector<2x8xf32>
    %805 = vector.multi_reduction <maximumf>, %804, %cst_328 [2] : vector<2x8x8xf32> to vector<2x8xf32>
    %806 = vector.shape_cast %805 : vector<2x8xf32> to vector<2x8x1xf32>
    %807 = vector.broadcast %806 : vector<2x8x1xf32> to vector<2x8x8xf32>
    %808 = arith.subf %804, %807 : vector<2x8x8xf32>
    %809 = math.exp %808 : vector<2x8x8xf32>
    %cst_329 = arith.constant dense<0.000000e+00> : vector<2x8xf32>
    %810 = vector.multi_reduction <add>, %809, %cst_329 [2] : vector<2x8x8xf32> to vector<2x8xf32>
    %811 = vector.shape_cast %810 : vector<2x8xf32> to vector<2x8x1xf32>
    %812 = tpu.reciprocal %811 : vector<2x8x1xf32> -> vector<2x8x1xf32>
    %813 = vector.broadcast %812 : vector<2x8x1xf32> to vector<2x8x8xf32>
    %814 = arith.mulf %809, %813 : vector<2x8x8xf32>
    "tpu.trace_start"() <{level = 10 : i32, message = "bqk,bkd->bqd"}> : () -> ()
    %cst_330 = arith.constant dense<0.000000e+00> : vector<2x8x8xf32>
    %815 = tpu.matmul %814, %803, %cst_330 {dimension_numbers = #tpu.dot_dimension_numbers<[2], [1], [1], [2], [0, 0, 0, 1, 1, 2], [0], [0]>} : vector<2x8x8xf32>, vector<2x8x8xf32>, vector<2x8x8xf32> -> vector<2x8x8xf32>
    "tpu.trace_stop"() : () -> ()
    %816 = vector.shape_cast %815 : vector<2x8x8xf32> to vector<16x8xf32>
    %817 = vector.extract_strided_slice %37 {offsets = [24, 0], sizes = [8, 32], strides = [1, 1]} : vector<32x32xf32> to vector<8x32xf32>
    %cst_331 = arith.constant dense<0.000000e+00> : vector<16x32xf32>
    %818 = tpu.matmul %816, %817, %cst_331 {dimension_numbers = #tpu.dot_dimension_numbers<[1], [0], [0], [1], [0, 0, 1, 1], [], []>} : vector<16x8xf32>, vector<8x32xf32>, vector<16x32xf32> -> vector<16x32xf32>
    %819 = arith.addf %795, %818 : vector<16x32xf32>
    %820 = vector.broadcast %35 : vector<1x32xf32> to vector<16x32xf32>
    %821 = arith.addf %819, %820 : vector<16x32xf32>
    %822 = arith.addf %716, %821 : vector<16x32xf32>
    %cst_332 = arith.constant dense<0.000000e+00> : vector<16xf32>
    %823 = vector.multi_reduction <add>, %822, %cst_332 [1] : vector<16x32xf32> to vector<16xf32>
    %824 = vector.shape_cast %823 : vector<16xf32> to vector<16x1xf32>
    %cst_333 = arith.constant 3.200000e+01 : f32
    %825 = vector.broadcast %cst_333 : f32 to vector<16x1xf32>
    %826 = arith.divf %824, %825 : vector<16x1xf32>
    %827 = vector.broadcast %826 : vector<16x1xf32> to vector<16x32xf32>
    %828 = arith.subf %822, %827 : vector<16x32xf32>
    %829 = arith.mulf %828, %828 : vector<16x32xf32>
    %cst_334 = arith.constant dense<0.000000e+00> : vector<16xf32>
    %830 = vector.multi_reduction <add>, %829, %cst_334 [1] : vector<16x32xf32> to vector<16xf32>
    %831 = vector.shape_cast %830 : vector<16xf32> to vector<16x1xf32>
    %cst_335 = arith.constant 3.200000e+01 : f32
    %832 = vector.broadcast %cst_335 : f32 to vector<16x1xf32>
    %833 = arith.divf %831, %832 : vector<16x1xf32>
    %834 = vector.broadcast %826 : vector<16x1xf32> to vector<16x32xf32>
    %835 = arith.subf %822, %834 : vector<16x32xf32>
    %cst_336 = arith.constant 9.99999974E-6 : f32
    %836 = vector.broadcast %cst_336 : f32 to vector<16x1xf32>
    %837 = arith.addf %833, %836 : vector<16x1xf32>
    %838 = math.rsqrt %837 : vector<16x1xf32>
    %839 = vector.broadcast %838 : vector<16x1xf32> to vector<16x32xf32>
    %840 = arith.mulf %835, %839 : vector<16x32xf32>
    %841 = vector.broadcast %29 : vector<1x32xf32> to vector<16x32xf32>
    %842 = arith.mulf %840, %841 : vector<16x32xf32>
    %843 = vector.broadcast %28 : vector<1x32xf32> to vector<16x32xf32>
    %844 = arith.addf %842, %843 : vector<16x32xf32>
    %cst_337 = arith.constant dense<0.000000e+00> : vector<16x32xf32>
    %845 = tpu.matmul %844, %27, %cst_337 {dimension_numbers = #tpu.dot_dimension_numbers<[1], [0], [0], [1], [0, 0, 1, 1], [], []>} : vector<16x32xf32>, vector<32x32xf32>, vector<16x32xf32> -> vector<16x32xf32>
    %846 = vector.broadcast %24 : vector<1x32xf32> to vector<16x32xf32>
    %847 = arith.addf %845, %846 : vector<16x32xf32>
    %cst_338 = arith.constant dense<0.000000e+00> : vector<16x64xf32>
    %848 = tpu.matmul %418, %25, %cst_338 {dimension_numbers = #tpu.dot_dimension_numbers<[1], [0], [0], [1], [0, 0, 1, 1], [], []>} : vector<16x32xf32>, vector<32x64xf32>, vector<16x64xf32> -> vector<16x64xf32>
    %849 = vector.broadcast %22 : vector<1x64xf32> to vector<16x64xf32>
    %850 = arith.addf %848, %849 : vector<16x64xf32>
    %851 = vector.extract_strided_slice %850 {offsets = [0, 0], sizes = [16, 32], strides = [1, 1]} : vector<16x64xf32> to vector<16x32xf32>
    %852 = vector.extract_strided_slice %850 {offsets = [0, 32], sizes = [16, 32], strides = [1, 1]} : vector<16x64xf32> to vector<16x32xf32>
    %cst_339 = arith.constant 0.000000e+00 : f32
    %853 = vector.broadcast %cst_339 : f32 to vector<16x32xf32>
    %854 = vector.extract_strided_slice %847 {offsets = [0, 0], sizes = [16, 8], strides = [1, 1]} : vector<16x32xf32> to vector<16x8xf32>
    %cst_340 = arith.constant 0.353553385 : f32
    %855 = vector.broadcast %cst_340 : f32 to vector<16x8xf32>
    %856 = arith.mulf %854, %855 : vector<16x8xf32>
    %857 = vector.shape_cast %856 : vector<16x8xf32> to vector<2x8x8xf32>
    %858 = vector.extract_strided_slice %851 {offsets = [0, 0], sizes = [16, 8], strides = [1, 1]} : vector<16x32xf32> to vector<16x8xf32>
    %859 = vector.shape_cast %858 : vector<16x8xf32> to vector<2x8x8xf32>
    %860 = vector.extract_strided_slice %852 {offsets = [0, 0], sizes = [16, 8], strides = [1, 1]} : vector<16x32xf32> to vector<16x8xf32>
    %861 = vector.shape_cast %860 : vector<16x8xf32> to vector<2x8x8xf32>
    "tpu.trace_start"() <{level = 10 : i32, message = "bqd,bkd->bqk"}> : () -> ()
    %cst_341 = arith.constant dense<0.000000e+00> : vector<2x8x8xf32>
    %862 = tpu.matmul %857, %859, %cst_341 {dimension_numbers = #tpu.dot_dimension_numbers<[2], [2], [1], [1], [0, 0, 0, 1, 1, 1], [0], [0]>} : vector<2x8x8xf32>, vector<2x8x8xf32>, vector<2x8x8xf32> -> vector<2x8x8xf32>
    "tpu.trace_stop"() : () -> ()
    %cst_342 = arith.constant dense<0xFF800000> : vector<2x8xf32>
    %863 = vector.multi_reduction <maximumf>, %862, %cst_342 [2] : vector<2x8x8xf32> to vector<2x8xf32>
    %864 = vector.shape_cast %863 : vector<2x8xf32> to vector<2x8x1xf32>
    %865 = vector.broadcast %864 : vector<2x8x1xf32> to vector<2x8x8xf32>
    %866 = arith.subf %862, %865 : vector<2x8x8xf32>
    %867 = math.exp %866 : vector<2x8x8xf32>
    %cst_343 = arith.constant dense<0.000000e+00> : vector<2x8xf32>
    %868 = vector.multi_reduction <add>, %867, %cst_343 [2] : vector<2x8x8xf32> to vector<2x8xf32>
    %869 = vector.shape_cast %868 : vector<2x8xf32> to vector<2x8x1xf32>
    %870 = tpu.reciprocal %869 : vector<2x8x1xf32> -> vector<2x8x1xf32>
    %871 = vector.broadcast %870 : vector<2x8x1xf32> to vector<2x8x8xf32>
    %872 = arith.mulf %867, %871 : vector<2x8x8xf32>
    "tpu.trace_start"() <{level = 10 : i32, message = "bqk,bkd->bqd"}> : () -> ()
    %cst_344 = arith.constant dense<0.000000e+00> : vector<2x8x8xf32>
    %873 = tpu.matmul %872, %861, %cst_344 {dimension_numbers = #tpu.dot_dimension_numbers<[2], [1], [1], [2], [0, 0, 0, 1, 1, 2], [0], [0]>} : vector<2x8x8xf32>, vector<2x8x8xf32>, vector<2x8x8xf32> -> vector<2x8x8xf32>
    "tpu.trace_stop"() : () -> ()
    %874 = vector.shape_cast %873 : vector<2x8x8xf32> to vector<16x8xf32>
    %875 = vector.extract_strided_slice %26 {offsets = [0, 0], sizes = [8, 32], strides = [1, 1]} : vector<32x32xf32> to vector<8x32xf32>
    %cst_345 = arith.constant dense<0.000000e+00> : vector<16x32xf32>
    %876 = tpu.matmul %874, %875, %cst_345 {dimension_numbers = #tpu.dot_dimension_numbers<[1], [0], [0], [1], [0, 0, 1, 1], [], []>} : vector<16x8xf32>, vector<8x32xf32>, vector<16x32xf32> -> vector<16x32xf32>
    %877 = arith.addf %853, %876 : vector<16x32xf32>
    %878 = vector.extract_strided_slice %847 {offsets = [0, 8], sizes = [16, 8], strides = [1, 1]} : vector<16x32xf32> to vector<16x8xf32>
    %cst_346 = arith.constant 0.353553385 : f32
    %879 = vector.broadcast %cst_346 : f32 to vector<16x8xf32>
    %880 = arith.mulf %878, %879 : vector<16x8xf32>
    %881 = vector.shape_cast %880 : vector<16x8xf32> to vector<2x8x8xf32>
    %882 = vector.extract_strided_slice %851 {offsets = [0, 8], sizes = [16, 8], strides = [1, 1]} : vector<16x32xf32> to vector<16x8xf32>
    %883 = vector.shape_cast %882 : vector<16x8xf32> to vector<2x8x8xf32>
    %884 = vector.extract_strided_slice %852 {offsets = [0, 8], sizes = [16, 8], strides = [1, 1]} : vector<16x32xf32> to vector<16x8xf32>
    %885 = vector.shape_cast %884 : vector<16x8xf32> to vector<2x8x8xf32>
    "tpu.trace_start"() <{level = 10 : i32, message = "bqd,bkd->bqk"}> : () -> ()
    %cst_347 = arith.constant dense<0.000000e+00> : vector<2x8x8xf32>
    %886 = tpu.matmul %881, %883, %cst_347 {dimension_numbers = #tpu.dot_dimension_numbers<[2], [2], [1], [1], [0, 0, 0, 1, 1, 1], [0], [0]>} : vector<2x8x8xf32>, vector<2x8x8xf32>, vector<2x8x8xf32> -> vector<2x8x8xf32>
    "tpu.trace_stop"() : () -> ()
    %cst_348 = arith.constant dense<0xFF800000> : vector<2x8xf32>
    %887 = vector.multi_reduction <maximumf>, %886, %cst_348 [2] : vector<2x8x8xf32> to vector<2x8xf32>
    %888 = vector.shape_cast %887 : vector<2x8xf32> to vector<2x8x1xf32>
    %889 = vector.broadcast %888 : vector<2x8x1xf32> to vector<2x8x8xf32>
    %890 = arith.subf %886, %889 : vector<2x8x8xf32>
    %891 = math.exp %890 : vector<2x8x8xf32>
    %cst_349 = arith.constant dense<0.000000e+00> : vector<2x8xf32>
    %892 = vector.multi_reduction <add>, %891, %cst_349 [2] : vector<2x8x8xf32> to vector<2x8xf32>
    %893 = vector.shape_cast %892 : vector<2x8xf32> to vector<2x8x1xf32>
    %894 = tpu.reciprocal %893 : vector<2x8x1xf32> -> vector<2x8x1xf32>
    %895 = vector.broadcast %894 : vector<2x8x1xf32> to vector<2x8x8xf32>
    %896 = arith.mulf %891, %895 : vector<2x8x8xf32>
    "tpu.trace_start"() <{level = 10 : i32, message = "bqk,bkd->bqd"}> : () -> ()
    %cst_350 = arith.constant dense<0.000000e+00> : vector<2x8x8xf32>
    %897 = tpu.matmul %896, %885, %cst_350 {dimension_numbers = #tpu.dot_dimension_numbers<[2], [1], [1], [2], [0, 0, 0, 1, 1, 2], [0], [0]>} : vector<2x8x8xf32>, vector<2x8x8xf32>, vector<2x8x8xf32> -> vector<2x8x8xf32>
    "tpu.trace_stop"() : () -> ()
    %898 = vector.shape_cast %897 : vector<2x8x8xf32> to vector<16x8xf32>
    %899 = vector.extract_strided_slice %26 {offsets = [8, 0], sizes = [8, 32], strides = [1, 1]} : vector<32x32xf32> to vector<8x32xf32>
    %cst_351 = arith.constant dense<0.000000e+00> : vector<16x32xf32>
    %900 = tpu.matmul %898, %899, %cst_351 {dimension_numbers = #tpu.dot_dimension_numbers<[1], [0], [0], [1], [0, 0, 1, 1], [], []>} : vector<16x8xf32>, vector<8x32xf32>, vector<16x32xf32> -> vector<16x32xf32>
    %901 = arith.addf %877, %900 : vector<16x32xf32>
    %902 = vector.extract_strided_slice %847 {offsets = [0, 16], sizes = [16, 8], strides = [1, 1]} : vector<16x32xf32> to vector<16x8xf32>
    %cst_352 = arith.constant 0.353553385 : f32
    %903 = vector.broadcast %cst_352 : f32 to vector<16x8xf32>
    %904 = arith.mulf %902, %903 : vector<16x8xf32>
    %905 = vector.shape_cast %904 : vector<16x8xf32> to vector<2x8x8xf32>
    %906 = vector.extract_strided_slice %851 {offsets = [0, 16], sizes = [16, 8], strides = [1, 1]} : vector<16x32xf32> to vector<16x8xf32>
    %907 = vector.shape_cast %906 : vector<16x8xf32> to vector<2x8x8xf32>
    %908 = vector.extract_strided_slice %852 {offsets = [0, 16], sizes = [16, 8], strides = [1, 1]} : vector<16x32xf32> to vector<16x8xf32>
    %909 = vector.shape_cast %908 : vector<16x8xf32> to vector<2x8x8xf32>
    "tpu.trace_start"() <{level = 10 : i32, message = "bqd,bkd->bqk"}> : () -> ()
    %cst_353 = arith.constant dense<0.000000e+00> : vector<2x8x8xf32>
    %910 = tpu.matmul %905, %907, %cst_353 {dimension_numbers = #tpu.dot_dimension_numbers<[2], [2], [1], [1], [0, 0, 0, 1, 1, 1], [0], [0]>} : vector<2x8x8xf32>, vector<2x8x8xf32>, vector<2x8x8xf32> -> vector<2x8x8xf32>
    "tpu.trace_stop"() : () -> ()
    %cst_354 = arith.constant dense<0xFF800000> : vector<2x8xf32>
    %911 = vector.multi_reduction <maximumf>, %910, %cst_354 [2] : vector<2x8x8xf32> to vector<2x8xf32>
    %912 = vector.shape_cast %911 : vector<2x8xf32> to vector<2x8x1xf32>
    %913 = vector.broadcast %912 : vector<2x8x1xf32> to vector<2x8x8xf32>
    %914 = arith.subf %910, %913 : vector<2x8x8xf32>
    %915 = math.exp %914 : vector<2x8x8xf32>
    %cst_355 = arith.constant dense<0.000000e+00> : vector<2x8xf32>
    %916 = vector.multi_reduction <add>, %915, %cst_355 [2] : vector<2x8x8xf32> to vector<2x8xf32>
    %917 = vector.shape_cast %916 : vector<2x8xf32> to vector<2x8x1xf32>
    %918 = tpu.reciprocal %917 : vector<2x8x1xf32> -> vector<2x8x1xf32>
    %919 = vector.broadcast %918 : vector<2x8x1xf32> to vector<2x8x8xf32>
    %920 = arith.mulf %915, %919 : vector<2x8x8xf32>
    "tpu.trace_start"() <{level = 10 : i32, message = "bqk,bkd->bqd"}> : () -> ()
    %cst_356 = arith.constant dense<0.000000e+00> : vector<2x8x8xf32>
    %921 = tpu.matmul %920, %909, %cst_356 {dimension_numbers = #tpu.dot_dimension_numbers<[2], [1], [1], [2], [0, 0, 0, 1, 1, 2], [0], [0]>} : vector<2x8x8xf32>, vector<2x8x8xf32>, vector<2x8x8xf32> -> vector<2x8x8xf32>
    "tpu.trace_stop"() : () -> ()
    %922 = vector.shape_cast %921 : vector<2x8x8xf32> to vector<16x8xf32>
    %923 = vector.extract_strided_slice %26 {offsets = [16, 0], sizes = [8, 32], strides = [1, 1]} : vector<32x32xf32> to vector<8x32xf32>
    %cst_357 = arith.constant dense<0.000000e+00> : vector<16x32xf32>
    %924 = tpu.matmul %922, %923, %cst_357 {dimension_numbers = #tpu.dot_dimension_numbers<[1], [0], [0], [1], [0, 0, 1, 1], [], []>} : vector<16x8xf32>, vector<8x32xf32>, vector<16x32xf32> -> vector<16x32xf32>
    %925 = arith.addf %901, %924 : vector<16x32xf32>
    %926 = vector.extract_strided_slice %847 {offsets = [0, 24], sizes = [16, 8], strides = [1, 1]} : vector<16x32xf32> to vector<16x8xf32>
    %cst_358 = arith.constant 0.353553385 : f32
    %927 = vector.broadcast %cst_358 : f32 to vector<16x8xf32>
    %928 = arith.mulf %926, %927 : vector<16x8xf32>
    %929 = vector.shape_cast %928 : vector<16x8xf32> to vector<2x8x8xf32>
    %930 = vector.extract_strided_slice %851 {offsets = [0, 24], sizes = [16, 8], strides = [1, 1]} : vector<16x32xf32> to vector<16x8xf32>
    %931 = vector.shape_cast %930 : vector<16x8xf32> to vector<2x8x8xf32>
    %932 = vector.extract_strided_slice %852 {offsets = [0, 24], sizes = [16, 8], strides = [1, 1]} : vector<16x32xf32> to vector<16x8xf32>
    %933 = vector.shape_cast %932 : vector<16x8xf32> to vector<2x8x8xf32>
    "tpu.trace_start"() <{level = 10 : i32, message = "bqd,bkd->bqk"}> : () -> ()
    %cst_359 = arith.constant dense<0.000000e+00> : vector<2x8x8xf32>
    %934 = tpu.matmul %929, %931, %cst_359 {dimension_numbers = #tpu.dot_dimension_numbers<[2], [2], [1], [1], [0, 0, 0, 1, 1, 1], [0], [0]>} : vector<2x8x8xf32>, vector<2x8x8xf32>, vector<2x8x8xf32> -> vector<2x8x8xf32>
    "tpu.trace_stop"() : () -> ()
    %cst_360 = arith.constant dense<0xFF800000> : vector<2x8xf32>
    %935 = vector.multi_reduction <maximumf>, %934, %cst_360 [2] : vector<2x8x8xf32> to vector<2x8xf32>
    %936 = vector.shape_cast %935 : vector<2x8xf32> to vector<2x8x1xf32>
    %937 = vector.broadcast %936 : vector<2x8x1xf32> to vector<2x8x8xf32>
    %938 = arith.subf %934, %937 : vector<2x8x8xf32>
    %939 = math.exp %938 : vector<2x8x8xf32>
    %cst_361 = arith.constant dense<0.000000e+00> : vector<2x8xf32>
    %940 = vector.multi_reduction <add>, %939, %cst_361 [2] : vector<2x8x8xf32> to vector<2x8xf32>
    %941 = vector.shape_cast %940 : vector<2x8xf32> to vector<2x8x1xf32>
    %942 = tpu.reciprocal %941 : vector<2x8x1xf32> -> vector<2x8x1xf32>
    %943 = vector.broadcast %942 : vector<2x8x1xf32> to vector<2x8x8xf32>
    %944 = arith.mulf %939, %943 : vector<2x8x8xf32>
    "tpu.trace_start"() <{level = 10 : i32, message = "bqk,bkd->bqd"}> : () -> ()
    %cst_362 = arith.constant dense<0.000000e+00> : vector<2x8x8xf32>
    %945 = tpu.matmul %944, %933, %cst_362 {dimension_numbers = #tpu.dot_dimension_numbers<[2], [1], [1], [2], [0, 0, 0, 1, 1, 2], [0], [0]>} : vector<2x8x8xf32>, vector<2x8x8xf32>, vector<2x8x8xf32> -> vector<2x8x8xf32>
    "tpu.trace_stop"() : () -> ()
    %946 = vector.shape_cast %945 : vector<2x8x8xf32> to vector<16x8xf32>
    %947 = vector.extract_strided_slice %26 {offsets = [24, 0], sizes = [8, 32], strides = [1, 1]} : vector<32x32xf32> to vector<8x32xf32>
    %cst_363 = arith.constant dense<0.000000e+00> : vector<16x32xf32>
    %948 = tpu.matmul %946, %947, %cst_363 {dimension_numbers = #tpu.dot_dimension_numbers<[1], [0], [0], [1], [0, 0, 1, 1], [], []>} : vector<16x8xf32>, vector<8x32xf32>, vector<16x32xf32> -> vector<16x32xf32>
    %949 = arith.addf %925, %948 : vector<16x32xf32>
    %950 = vector.broadcast %23 : vector<1x32xf32> to vector<16x32xf32>
    %951 = arith.addf %949, %950 : vector<16x32xf32>
    %952 = arith.addf %844, %951 : vector<16x32xf32>
    %cst_364 = arith.constant dense<0.000000e+00> : vector<16xf32>
    %953 = vector.multi_reduction <add>, %952, %cst_364 [1] : vector<16x32xf32> to vector<16xf32>
    %954 = vector.shape_cast %953 : vector<16xf32> to vector<16x1xf32>
    %cst_365 = arith.constant 3.200000e+01 : f32
    %955 = vector.broadcast %cst_365 : f32 to vector<16x1xf32>
    %956 = arith.divf %954, %955 : vector<16x1xf32>
    %957 = vector.broadcast %956 : vector<16x1xf32> to vector<16x32xf32>
    %958 = arith.subf %952, %957 : vector<16x32xf32>
    %959 = arith.mulf %958, %958 : vector<16x32xf32>
    %cst_366 = arith.constant dense<0.000000e+00> : vector<16xf32>
    %960 = vector.multi_reduction <add>, %959, %cst_366 [1] : vector<16x32xf32> to vector<16xf32>
    %961 = vector.shape_cast %960 : vector<16xf32> to vector<16x1xf32>
    %cst_367 = arith.constant 3.200000e+01 : f32
    %962 = vector.broadcast %cst_367 : f32 to vector<16x1xf32>
    %963 = arith.divf %961, %962 : vector<16x1xf32>
    %964 = vector.broadcast %956 : vector<16x1xf32> to vector<16x32xf32>
    %965 = arith.subf %952, %964 : vector<16x32xf32>
    %cst_368 = arith.constant 9.99999974E-6 : f32
    %966 = vector.broadcast %cst_368 : f32 to vector<16x1xf32>
    %967 = arith.addf %963, %966 : vector<16x1xf32>
    %968 = math.rsqrt %967 : vector<16x1xf32>
    %969 = vector.broadcast %968 : vector<16x1xf32> to vector<16x32xf32>
    %970 = arith.mulf %965, %969 : vector<16x32xf32>
    %971 = vector.broadcast %31 : vector<1x32xf32> to vector<16x32xf32>
    %972 = arith.mulf %970, %971 : vector<16x32xf32>
    %973 = vector.broadcast %30 : vector<1x32xf32> to vector<16x32xf32>
    %974 = arith.addf %972, %973 : vector<16x32xf32>
    %cst_369 = arith.constant dense<0.000000e+00> : vector<16x64xf32>
    %975 = tpu.matmul %974, %38, %cst_369 {dimension_numbers = #tpu.dot_dimension_numbers<[1], [0], [0], [1], [0, 0, 1, 1], [], []>} : vector<16x32xf32>, vector<32x64xf32>, vector<16x64xf32> -> vector<16x64xf32>
    %976 = vector.broadcast %20 : vector<1x64xf32> to vector<16x64xf32>
    %977 = arith.addf %975, %976 : vector<16x64xf32>
    %cst_370 = arith.constant 0.000000e+00 : f32
    %978 = vector.broadcast %cst_370 : f32 to vector<16x64xf32>
    %979 = arith.maximumf %977, %978 : vector<16x64xf32>
    %cst_371 = arith.constant dense<0.000000e+00> : vector<16x32xf32>
    %980 = tpu.matmul %979, %39, %cst_371 {dimension_numbers = #tpu.dot_dimension_numbers<[1], [0], [0], [1], [0, 0, 1, 1], [], []>} : vector<16x64xf32>, vector<64x32xf32>, vector<16x32xf32> -> vector<16x32xf32>
    %981 = vector.broadcast %21 : vector<1x32xf32> to vector<16x32xf32>
    %982 = arith.addf %980, %981 : vector<16x32xf32>
    %983 = arith.addf %974, %982 : vector<16x32xf32>
    %cst_372 = arith.constant dense<0.000000e+00> : vector<16xf32>
    %984 = vector.multi_reduction <add>, %983, %cst_372 [1] : vector<16x32xf32> to vector<16xf32>
    %985 = vector.shape_cast %984 : vector<16xf32> to vector<16x1xf32>
    %cst_373 = arith.constant 3.200000e+01 : f32
    %986 = vector.broadcast %cst_373 : f32 to vector<16x1xf32>
    %987 = arith.divf %985, %986 : vector<16x1xf32>
    %988 = vector.broadcast %987 : vector<16x1xf32> to vector<16x32xf32>
    %989 = arith.subf %983, %988 : vector<16x32xf32>
    %990 = arith.mulf %989, %989 : vector<16x32xf32>
    %cst_374 = arith.constant dense<0.000000e+00> : vector<16xf32>
    %991 = vector.multi_reduction <add>, %990, %cst_374 [1] : vector<16x32xf32> to vector<16xf32>
    %992 = vector.shape_cast %991 : vector<16xf32> to vector<16x1xf32>
    %cst_375 = arith.constant 3.200000e+01 : f32
    %993 = vector.broadcast %cst_375 : f32 to vector<16x1xf32>
    %994 = arith.divf %992, %993 : vector<16x1xf32>
    %995 = vector.broadcast %987 : vector<16x1xf32> to vector<16x32xf32>
    %996 = arith.subf %983, %995 : vector<16x32xf32>
    %cst_376 = arith.constant 9.99999974E-6 : f32
    %997 = vector.broadcast %cst_376 : f32 to vector<16x1xf32>
    %998 = arith.addf %994, %997 : vector<16x1xf32>
    %999 = math.rsqrt %998 : vector<16x1xf32>
    %1000 = vector.broadcast %999 : vector<16x1xf32> to vector<16x32xf32>
    %1001 = arith.mulf %996, %1000 : vector<16x32xf32>
    %1002 = vector.broadcast %33 : vector<1x32xf32> to vector<16x32xf32>
    %1003 = arith.mulf %1001, %1002 : vector<16x32xf32>
    %1004 = vector.broadcast %32 : vector<1x32xf32> to vector<16x32xf32>
    %1005 = arith.addf %1003, %1004 : vector<16x32xf32>
    %cst_377 = arith.constant dense<0.000000e+00> : vector<16xf32>
    %1006 = vector.multi_reduction <add>, %1005, %cst_377 [1] : vector<16x32xf32> to vector<16xf32>
    %1007 = vector.shape_cast %1006 : vector<16xf32> to vector<16x1xf32>
    %cst_378 = arith.constant 3.200000e+01 : f32
    %1008 = vector.broadcast %cst_378 : f32 to vector<16x1xf32>
    %1009 = arith.divf %1007, %1008 : vector<16x1xf32>
    %1010 = vector.broadcast %1009 : vector<16x1xf32> to vector<16x32xf32>
    %1011 = arith.subf %1005, %1010 : vector<16x32xf32>
    %1012 = arith.mulf %1011, %1011 : vector<16x32xf32>
    %cst_379 = arith.constant dense<0.000000e+00> : vector<16xf32>
    %1013 = vector.multi_reduction <add>, %1012, %cst_379 [1] : vector<16x32xf32> to vector<16xf32>
    %1014 = vector.shape_cast %1013 : vector<16xf32> to vector<16x1xf32>
    %cst_380 = arith.constant 3.200000e+01 : f32
    %1015 = vector.broadcast %cst_380 : f32 to vector<16x1xf32>
    %1016 = arith.divf %1014, %1015 : vector<16x1xf32>
    %1017 = vector.broadcast %1009 : vector<16x1xf32> to vector<16x32xf32>
    %1018 = arith.subf %1005, %1017 : vector<16x32xf32>
    %cst_381 = arith.constant 9.99999974E-6 : f32
    %1019 = vector.broadcast %cst_381 : f32 to vector<16x1xf32>
    %1020 = arith.addf %1016, %1019 : vector<16x1xf32>
    %1021 = math.rsqrt %1020 : vector<16x1xf32>
    %1022 = vector.broadcast %1021 : vector<16x1xf32> to vector<16x32xf32>
    %1023 = arith.mulf %1018, %1022 : vector<16x32xf32>
    %1024 = vector.broadcast %41 : vector<1x32xf32> to vector<16x32xf32>
    %1025 = arith.mulf %1023, %1024 : vector<16x32xf32>
    %1026 = vector.broadcast %40 : vector<1x32xf32> to vector<16x32xf32>
    %1027 = arith.addf %1025, %1026 : vector<16x32xf32>
    %cst_382 = arith.constant dense<0.000000e+00> : vector<16x32xf32>
    %1028 = tpu.matmul %1027, %69, %cst_382 {dimension_numbers = #tpu.dot_dimension_numbers<[1], [0], [0], [1], [0, 0, 1, 1], [], []>} : vector<16x32xf32>, vector<32x32xf32>, vector<16x32xf32> -> vector<16x32xf32>
    %1029 = vector.broadcast %68 : vector<1x32xf32> to vector<16x32xf32>
    %1030 = arith.addf %1028, %1029 : vector<16x32xf32>
    %1031 = vector.extract_strided_slice %1030 {offsets = [0, 0], sizes = [8, 32], strides = [1, 1]} : vector<16x32xf32> to vector<8x32xf32>
    %1032 = vector.extract_strided_slice %1030 {offsets = [8, 0], sizes = [8, 32], strides = [1, 1]} : vector<16x32xf32> to vector<8x32xf32>
    %1033 = tpu.concatenate %1031, %1032 in 1 : vector<8x32xf32>, vector<8x32xf32> -> vector<8x64xf32>
    %c0_383 = arith.constant 0 : index
    %c0_384 = arith.constant 0 : index
    %1034 = vector.load %arg73[%c0_383, %c0_384] : memref<8x64xf32, #tpu.memory_space<vmem>>, vector<8x64xf32>
    tpu.vector_store %arg73[%c0_383, %c0_384], %1033 {strides = array<i32>} : memref<8x64xf32, #tpu.memory_space<vmem>>, vector<8x64xf32>,
    return
  }
}

</mosaic_0001>

<llo_original>
// kernel: traj_transformer_forward.1
$region0: #{traj_transformer_forward.1}
  #allocation0 [shape = 'u32[]', space=smem, size = 0x4, offset = 0x4, fixed_abs, tag = 'smem constant byte address 0x4 - core index']
  #allocation1 [shape = 'u32[72,128]{1,0:T(1,128)}', space=vmem, size = 0x9000, scoped, tag = 'internal scratch']
  %s0 = inlined_call_operand.smem [shape: u32[74], index: -1, kind: input, shape index: {}]
  %s1 = sld [smem:[%s0]]
  %s2 = scalar_lea.smem %s0, 1
  %s3 = sld [smem:[%s2]]
  %s4 = scalar_lea.smem %s0, 2
  %s5 = sld [smem:[%s4]]
  %s6 = scalar_lea.smem %s0, 3
  %s7 = sld [smem:[%s6]]
  %s8 = scalar_lea.smem %s0, 4
  %s9 = sld [smem:[%s8]]
  %s10 = scalar_lea.smem %s0, 5
  %s11 = sld [smem:[%s10]]
  %s12 = scalar_lea.smem %s0, 6
  %s13 = sld [smem:[%s12]]
  %s14 = scalar_lea.smem %s0, 7
  %s15 = sld [smem:[%s14]]
  %s16 = scalar_lea.smem %s0, 8
  %s17 = sld [smem:[%s16]]
  %s18 = scalar_lea.smem %s0, 9
  %s19 = sld [smem:[%s18]]
  %s20 = scalar_lea.smem %s0, 10
  %s21 = sld [smem:[%s20]]
  %s22 = scalar_lea.smem %s0, 11
  %s23 = sld [smem:[%s22]]
  %s24 = scalar_lea.smem %s0, 12
  %s25 = sld [smem:[%s24]]
  %s26 = scalar_lea.smem %s0, 13
  %s27 = sld [smem:[%s26]]
  %s28 = scalar_lea.smem %s0, 14
  %s29 = sld [smem:[%s28]]
  %s30 = scalar_lea.smem %s0, 15
  %s31 = sld [smem:[%s30]]
  %s32 = scalar_lea.smem %s0, 16
  %s33 = sld [smem:[%s32]]
  %s34 = scalar_lea.smem %s0, 17
  %s35 = sld [smem:[%s34]]
  %s36 = scalar_lea.smem %s0, 18
  %s37 = sld [smem:[%s36]]
  %s38 = scalar_lea.smem %s0, 19
  %s39 = sld [smem:[%s38]]
  %s40 = scalar_lea.smem %s0, 20
  %s41 = sld [smem:[%s40]]
  %s42 = scalar_lea.smem %s0, 21
  %s43 = sld [smem:[%s42]]
  %s44 = scalar_lea.smem %s0, 22
  %s45 = sld [smem:[%s44]]
  %s46 = scalar_lea.smem %s0, 23
  %s47 = sld [smem:[%s46]]
  %s48 = scalar_lea.smem %s0, 24
  %s49 = sld [smem:[%s48]]
  %s50 = scalar_lea.smem %s0, 25
  %s51 = sld [smem:[%s50]]
  %s52 = scalar_lea.smem %s0, 26
  %s53 = sld [smem:[%s52]]
  %s54 = scalar_lea.smem %s0, 27
  %s55 = sld [smem:[%s54]]
  %s56 = scalar_lea.smem %s0, 28
  %s57 = sld [smem:[%s56]]
  %s58 = scalar_lea.smem %s0, 29
  %s59 = sld [smem:[%s58]]
  %s60 = scalar_lea.smem %s0, 30
  %s61 = sld [smem:[%s60]]
  %s62 = scalar_lea.smem %s0, 31
  %s63 = sld [smem:[%s62]]
  %s64 = scalar_lea.smem %s0, 32
  %s65 = sld [smem:[%s64]]
  %s66 = scalar_lea.smem %s0, 33
  %s67 = sld [smem:[%s66]]
  %s68 = scalar_lea.smem %s0, 34
  %s69 = sld [smem:[%s68]]
  %s70 = scalar_lea.smem %s0, 35
  %s71 = sld [smem:[%s70]]
  %s72 = scalar_lea.smem %s0, 36
  %s73 = sld [smem:[%s72]]
  %s74 = scalar_lea.smem %s0, 37
  %s75 = sld [smem:[%s74]]
  %s76 = scalar_lea.smem %s0, 38
  %s77 = sld [smem:[%s76]]
  %s78 = scalar_lea.smem %s0, 39
  %s79 = sld [smem:[%s78]]
  %s80 = scalar_lea.smem %s0, 40
  %s81 = sld [smem:[%s80]]
  %s82 = scalar_lea.smem %s0, 41
  %s83 = sld [smem:[%s82]]
  %s84 = scalar_lea.smem %s0, 42
  %s85 = sld [smem:[%s84]]
  %s86 = scalar_lea.smem %s0, 43
  %s87 = sld [smem:[%s86]]
  %s88 = scalar_lea.smem %s0, 44
  %s89 = sld [smem:[%s88]]
  %s90 = scalar_lea.smem %s0, 45
  %s91 = sld [smem:[%s90]]
  %s92 = scalar_lea.smem %s0, 46
  %s93 = sld [smem:[%s92]]
  %s94 = scalar_lea.smem %s0, 47
  %s95 = sld [smem:[%s94]]
  %s96 = scalar_lea.smem %s0, 48
  %s97 = sld [smem:[%s96]]
  %s98 = scalar_lea.smem %s0, 49
  %s99 = sld [smem:[%s98]]
  %s100 = scalar_lea.smem %s0, 50
  %s101 = sld [smem:[%s100]]
  %s102 = scalar_lea.smem %s0, 51
  %s103 = sld [smem:[%s102]]
  %s104 = scalar_lea.smem %s0, 52
  %s105 = sld [smem:[%s104]]
  %s106 = scalar_lea.smem %s0, 53
  %s107 = sld [smem:[%s106]]
  %s108 = scalar_lea.smem %s0, 54
  %s109 = sld [smem:[%s108]]
  %s110 = scalar_lea.smem %s0, 55
  %s111 = sld [smem:[%s110]]
  %s112 = scalar_lea.smem %s0, 56
  %s113 = sld [smem:[%s112]]
  %s114 = scalar_lea.smem %s0, 57
  %s115 = sld [smem:[%s114]]
  %s116 = scalar_lea.smem %s0, 58
  %s117 = sld [smem:[%s116]]
  %s118 = scalar_lea.smem %s0, 59
  %s119 = sld [smem:[%s118]]
  %s120 = scalar_lea.smem %s0, 60
  %s121 = sld [smem:[%s120]]
  %s122 = scalar_lea.smem %s0, 61
  %s123 = sld [smem:[%s122]]
  %s124 = scalar_lea.smem %s0, 62
  %s125 = sld [smem:[%s124]]
  %s126 = scalar_lea.smem %s0, 63
  %s127 = sld [smem:[%s126]]
  %s128 = scalar_lea.smem %s0, 64
  %s129 = sld [smem:[%s128]]
  %s130 = scalar_lea.smem %s0, 65
  %s131 = sld [smem:[%s130]]
  %s132 = scalar_lea.smem %s0, 66
  %s133 = sld [smem:[%s132]]
  %s134 = scalar_lea.smem %s0, 67
  %s135 = sld [smem:[%s134]]
  %s136 = scalar_lea.smem %s0, 68
  %s137 = sld [smem:[%s136]]
  %s138 = scalar_lea.smem %s0, 69
  %s139 = sld [smem:[%s138]]
  %s140 = scalar_lea.smem %s0, 70
  %s141 = sld [smem:[%s140]]
  %s142 = scalar_lea.smem %s0, 71
  %s143 = sld [smem:[%s142]]
  %s144 = scalar_lea.smem %s0, 72
  %s145 = sld [smem:[%s144]]
  %s146 = scalar_lea.smem %s0, 73
  %s147 = sld [smem:[%s146]]
  %s148 = sld [smem:[#allocation0]]
  $region478: #{traj_transformer_forward.1} parent=0
    _
  %s150 = ssub.s32 1, %s148
  %s151 = scalar_select 0, %s150, %s148
  $region1: #{traj_transformer_forward.1} parent=0
    #allocation2 [shape = 'u8[512]{0}', space=vmem, size = 0x400, scoped, tag = 'input window, operand 5, single buffered']
    #allocation3 [shape = 's32[1]{0}', space=sflag, size = 0x4, scoped, tag = 'scoped memory for traj_transformer_forward.1']
    #allocation4 [shape = 'u8[512]{0}', space=vmem, size = 0x400, scoped, tag = 'input window, operand 6, single buffered']
    #allocation5 [shape = 's32[1]{0}', space=sflag, size = 0x4, scoped, tag = 'scoped memory for traj_transformer_forward.1']
    #allocation6 [shape = 'u8[512]{0}', space=vmem, size = 0x400, scoped, tag = 'input window, operand 7, single buffered']
    #allocation7 [shape = 'u8[512]{0}', space=vmem, size = 0x400, scoped, tag = 'input window, operand 11, single buffered']
    #allocation8 [shape = 's32[1]{0}', space=sflag, size = 0x4, scoped, tag = 'scoped memory for traj_transformer_forward.1']
    #allocation9 [shape = 'u8[512]{0}', space=vmem, size = 0x400, scoped, tag = 'input window, operand 12, single buffered']
    #allocation10 [shape = 'u8[512]{0}', space=vmem, size = 0x400, scoped, tag = 'input window, operand 13, single buffered']
    #allocation11 [shape = 's32[1]{0}', space=sflag, size = 0x4, scoped, tag = 'scoped memory for traj_transformer_forward.1']
    #allocation12 [shape = 'u8[512]{0}', space=vmem, size = 0x400, scoped, tag = 'input window, operand 14, single buffered']
    #allocation13 [shape = 'u8[512]{0}', space=vmem, size = 0x400, scoped, tag = 'input window, operand 15, single buffered']
    #allocation14 [shape = 's32[1]{0}', space=sflag, size = 0x4, scoped, tag = 'scoped memory for traj_transformer_forward.1']
    #allocation15 [shape = 'u8[512]{0}', space=vmem, size = 0x400, scoped, tag = 'input window, operand 16, single buffered']
    #allocation16 [shape = 'u8[512]{0}', space=vmem, size = 0x400, scoped, tag = 'input window, operand 17, single buffered']
    #allocation17 [shape = 's32[1]{0}', space=sflag, size = 0x4, scoped, tag = 'scoped memory for traj_transformer_forward.1']
    #allocation18 [shape = 'u8[512]{0}', space=vmem, size = 0x400, scoped, tag = 'input window, operand 18, single buffered']
    #allocation19 [shape = 'u8[512]{0}', space=vmem, size = 0x400, scoped, tag = 'input window, operand 23, single buffered']
    #allocation20 [shape = 's32[1]{0}', space=sflag, size = 0x4, scoped, tag = 'scoped memory for traj_transformer_forward.1']
    #allocation21 [shape = 'u8[512]{0}', space=vmem, size = 0x400, scoped, tag = 'input window, operand 24, single buffered']
    #allocation22 [shape = 'u8[512]{0}', space=vmem, size = 0x400, scoped, tag = 'input window, operand 25, single buffered']
    #allocation23 [shape = 's32[1]{0}', space=sflag, size = 0x4, scoped, tag = 'scoped memory for traj_transformer_forward.1']
    #allocation24 [shape = 'u8[512]{0}', space=vmem, size = 0x400, scoped, tag = 'input window, operand 26, single buffered']
    #allocation25 [shape = 'u8[512]{0}', space=vmem, size = 0x400, scoped, tag = 'input window, operand 27, single buffered']
    #allocation26 [shape = 's32[1]{0}', space=sflag, size = 0x4, scoped, tag = 'scoped memory for traj_transformer_forward.1']
    #allocation27 [shape = 'u8[512]{0}', space=vmem, size = 0x400, scoped, tag = 'input window, operand 31, single buffered']
    #allocation28 [shape = 'u8[512]{0}', space=vmem, size = 0x400, scoped, tag = 'input window, operand 32, single buffered']
    #allocation29 [shape = 's32[1]{0}', space=sflag, size = 0x4, scoped, tag = 'scoped memory for traj_transformer_forward.1']
    #allocation30 [shape = 'u8[512]{0}', space=vmem, size = 0x400, scoped, tag = 'input window, operand 35, single buffered']
    #allocation31 [shape = 'u8[512]{0}', space=vmem, size = 0x400, scoped, tag = 'input window, operand 36, single buffered']
    #allocation32 [shape = 's32[1]{0}', space=sflag, size = 0x4, scoped, tag = 'scoped memory for traj_transformer_forward.1']
    #allocation33 [shape = 'u8[512]{0}', space=vmem, size = 0x400, scoped, tag = 'input window, operand 37, single buffered']
    #allocation34 [shape = 'u8[512]{0}', space=vmem, size = 0x400, scoped, tag = 'input window, operand 38, single buffered']
    #allocation35 [shape = 's32[1]{0}', space=sflag, size = 0x4, scoped, tag = 'scoped memory for traj_transformer_forward.1']
    #allocation36 [shape = 'u8[512]{0}', space=vmem, size = 0x400, scoped, tag = 'input window, operand 43, single buffered']
    #allocation37 [shape = 'u8[512]{0}', space=vmem, size = 0x400, scoped, tag = 'input window, operand 44, single buffered']
    #allocation38 [shape = 's32[1]{0}', space=sflag, size = 0x4, scoped, tag = 'scoped memory for traj_transformer_forward.1']
    #allocation39 [shape = 'u8[512]{0}', space=vmem, size = 0x400, scoped, tag = 'input window, operand 45, single buffered']
    #allocation40 [shape = 'u8[512]{0}', space=vmem, size = 0x400, scoped, tag = 'input window, operand 46, single buffered']
    #allocation41 [shape = 's32[1]{0}', space=sflag, size = 0x4, scoped, tag = 'scoped memory for traj_transformer_forward.1']
    #allocation42 [shape = 'u8[512]{0}', space=vmem, size = 0x400, scoped, tag = 'input window, operand 47, single buffered']
    #allocation43 [shape = 'u8[512]{0}', space=vmem, size = 0x400, scoped, tag = 'input window, operand 48, single buffered']
    #allocation44 [shape = 's32[1]{0}', space=sflag, size = 0x4, scoped, tag = 'scoped memory for traj_transformer_forward.1']
    #allocation45 [shape = 'u8[512]{0}', space=vmem, size = 0x400, scoped, tag = 'input window, operand 49, single buffered']
    #allocation46 [shape = 'u8[512]{0}', space=vmem, size = 0x400, scoped, tag = 'input window, operand 50, single buffered']
    #allocation47 [shape = 's32[1]{0}', space=sflag, size = 0x4, scoped, tag = 'scoped memory for traj_transformer_forward.1']
    #allocation48 [shape = 'u8[512]{0}', space=vmem, size = 0x400, scoped, tag = 'input window, operand 51, single buffered']
    #allocation49 [shape = 'u8[512]{0}', space=vmem, size = 0x400, scoped, tag = 'input window, operand 52, single buffered']
    #allocation50 [shape = 's32[1]{0}', space=sflag, size = 0x4, scoped, tag = 'scoped memory for traj_transformer_forward.1']
    #allocation51 [shape = 'u8[512]{0}', space=vmem, size = 0x400, scoped, tag = 'input window, operand 57, single buffered']
    #allocation52 [shape = 'u8[512]{0}', space=vmem, size = 0x400, scoped, tag = 'input window, operand 58, single buffered']
    #allocation53 [shape = 's32[1]{0}', space=sflag, size = 0x4, scoped, tag = 'scoped memory for traj_transformer_forward.1']
    #allocation54 [shape = 'u8[512]{0}', space=vmem, size = 0x400, scoped, tag = 'input window, operand 59, single buffered']
    #allocation55 [shape = 'u8[512]{0}', space=vmem, size = 0x400, scoped, tag = 'input window, operand 60, single buffered']
    #allocation56 [shape = 's32[1]{0}', space=sflag, size = 0x4, scoped, tag = 'scoped memory for traj_transformer_forward.1']
    #allocation57 [shape = 'u8[512]{0}', space=vmem, size = 0x400, scoped, tag = 'input window, operand 61, single buffered']
    #allocation58 [shape = 'u8[512]{0}', space=vmem, size = 0x400, scoped, tag = 'input window, operand 62, single buffered']
    #allocation59 [shape = 's32[1]{0}', space=sflag, size = 0x4, scoped, tag = 'scoped memory for traj_transformer_forward.1']
    #allocation60 [shape = 'u8[512]{0}', space=vmem, size = 0x400, scoped, tag = 'input window, operand 63, single buffered']
    #allocation61 [shape = 'u8[512]{0}', space=vmem, size = 0x400, scoped, tag = 'input window, operand 64, single buffered']
    #allocation62 [shape = 's32[1]{0}', space=sflag, size = 0x4, scoped, tag = 'scoped memory for traj_transformer_forward.1']
    #allocation63 [shape = 'u8[512]{0}', space=vmem, size = 0x400, scoped, tag = 'input window, operand 69, single buffered']
    #allocation64 [shape = 'u8[512]{0}', space=vmem, size = 0x400, scoped, tag = 'input window, operand 70, single buffered']
    #allocation65 [shape = 's32[1]{0}', space=sflag, size = 0x4, scoped, tag = 'scoped memory for traj_transformer_forward.1']
    #allocation66 [shape = 'u8[512]{0}', space=vmem, size = 0x400, scoped, tag = 'input window, operand 71, single buffered']
    #allocation67 [shape = 'u8[16384]{0}', space=vmem, size = 0x4000, scoped, tag = 'input window, operand 72, single buffered']
    #allocation68 [shape = 's32[1]{0}', space=sflag, size = 0x4, scoped, tag = 'scoped memory for traj_transformer_forward.1']
    %152 = vsyncpa [#allocation3], 0
    %153 = vsyncpa [#allocation5], 0
    %154 = vsyncpa [#allocation8], 0
    %155 = vsyncpa [#allocation11], 0
    %156 = vsyncpa [#allocation14], 0
    %157 = vsyncpa [#allocation17], 0
    %158 = vsyncpa [#allocation20], 0
    %159 = vsyncpa [#allocation23], 0
    %160 = vsyncpa [#allocation26], 0
    %161 = vsyncpa [#allocation29], 0
    %162 = vsyncpa [#allocation32], 0
    %163 = vsyncpa [#allocation35], 0
    %164 = vsyncpa [#allocation38], 0
    %165 = vsyncpa [#allocation41], 0
    %166 = vsyncpa [#allocation44], 0
    %167 = vsyncpa [#allocation47], 0
    %168 = vsyncpa [#allocation50], 0
    %169 = vsyncpa [#allocation53], 0
    %170 = vsyncpa [#allocation56], 0
    %171 = vsyncpa [#allocation59], 0
    %172 = vsyncpa [#allocation62], 0
    %173 = vsyncpa [#allocation65], 0
    %174 = vsyncpa [#allocation68], 0
    // Predicated region
    $region2: #{traj_transformer_forward.1} parent=1 // pred_check
      _
    $region3: #{traj_transformer_forward.1} parent=1 // pred_check_branch
      %176 = sbr.rel (0) target = $region5
    $region4: #{traj_transformer_forward.1} parent=1 // pred_region
      _
    $region5: #{traj_transformer_forward.1} parent=1 // pred_fallthru
      _
    // Predicated region
    $region6: #{traj_transformer_forward.1} parent=1 // pred_check
      _
    $region7: #{traj_transformer_forward.1} parent=1 // pred_check_branch
      %178 = sbr.rel (0) target = $region9
    $region8: #{traj_transformer_forward.1} parent=1 // pred_region
      _
    $region9: #{traj_transformer_forward.1} parent=1 // pred_fallthru
      _
    // Predicated region
    $region10: #{traj_transformer_forward.1} parent=1 // pred_check
      _
    $region11: #{traj_transformer_forward.1} parent=1 // pred_check_branch
      %180 = sbr.rel (0) target = $region13
    $region12: #{traj_transformer_forward.1} parent=1 // pred_region
      _
    $region13: #{traj_transformer_forward.1} parent=1 // pred_fallthru
      _
    // Predicated region
    $region14: #{traj_transformer_forward.1} parent=1 // pred_check
      _
    $region15: #{traj_transformer_forward.1} parent=1 // pred_check_branch
      %182 = sbr.rel (0) target = $region17
    $region16: #{traj_transformer_forward.1} parent=1 // pred_region
      _
    $region17: #{traj_transformer_forward.1} parent=1 // pred_fallthru
      _
    // Predicated region
    $region18: #{traj_transformer_forward.1} parent=1 // pred_check
      _
    $region19: #{traj_transformer_forward.1} parent=1 // pred_check_branch
      %184 = sbr.rel (0) target = $region21
    $region20: #{traj_transformer_forward.1} parent=1 // pred_region
      _
    $region21: #{traj_transformer_forward.1} parent=1 // pred_fallthru
      _
    // Predicated region
    $region22: #{traj_transformer_forward.1} parent=1 // pred_check
      _
    $region23: #{traj_transformer_forward.1} parent=1 // pred_check_branch
      %186 = sbr.rel (0) target = $region25
    $region24: #{traj_transformer_forward.1} parent=1 // pred_region
      %188 = vsyncadd [#allocation3], 0
      %s190 = sshll.u32 %s11, 4
      %s191 = int_to_ptr.hbm [resolvable:$true] %s190
      %s192 = sshll.u32 [#allocation2], 4
      %s193 = int_to_ptr.vmem [resolvable:$true] %s192
      %195 = dma.hbm_to_vmem [thread:$0]  %s191, 16, %s193, [#allocation3]
    $region25: #{traj_transformer_forward.1} parent=1 // pred_fallthru
      _
    // Predicated region
    $region26: #{traj_transformer_forward.1} parent=1 // pred_check
      _
    $region27: #{traj_transformer_forward.1} parent=1 // pred_check_branch
      %197 = sbr.rel (0) target = $region29
    $region28: #{traj_transformer_forward.1} parent=1 // pred_region
      %199 = vsyncadd [#allocation5], 0
      %s201 = sshll.u32 %s13, 4
      %s202 = int_to_ptr.hbm [resolvable:$true] %s201
      %s203 = sshll.u32 [#allocation4], 4
      %s204 = int_to_ptr.vmem [resolvable:$true] %s203
      %206 = dma.hbm_to_vmem [thread:$0]  %s202, 16, %s204, [#allocation5]
    $region29: #{traj_transformer_forward.1} parent=1 // pred_fallthru
      _
    // Predicated region
    $region30: #{traj_transformer_forward.1} parent=1 // pred_check
      _
    $region31: #{traj_transformer_forward.1} parent=1 // pred_check_branch
      %208 = sbr.rel (0) target = $region33
    $region32: #{traj_transformer_forward.1} parent=1 // pred_region
      %210 = vsyncadd [#allocation5], 0
      %s212 = sshll.u32 %s15, 4
      %s213 = int_to_ptr.hbm [resolvable:$true] %s212
      %s214 = sshll.u32 [#allocation6], 4
      %s215 = int_to_ptr.vmem [resolvable:$true] %s214
      %217 = dma.hbm_to_vmem [thread:$0]  %s213, 16, %s215, [#allocation5]
    $region33: #{traj_transformer_forward.1} parent=1 // pred_fallthru
      _
    // Predicated region
    $region34: #{traj_transformer_forward.1} parent=1 // pred_check
      _
    $region35: #{traj_transformer_forward.1} parent=1 // pred_check_branch
      %219 = sbr.rel (0) target = $region37
    $region36: #{traj_transformer_forward.1} parent=1 // pred_region
      _
    $region37: #{traj_transformer_forward.1} parent=1 // pred_fallthru
      _
    // Predicated region
    $region38: #{traj_transformer_forward.1} parent=1 // pred_check
      _
    $region39: #{traj_transformer_forward.1} parent=1 // pred_check_branch
      %221 = sbr.rel (0) target = $region41
    $region40: #{traj_transformer_forward.1} parent=1 // pred_region
      _
    $region41: #{traj_transformer_forward.1} parent=1 // pred_fallthru
      _
    // Predicated region
    $region42: #{traj_transformer_forward.1} parent=1 // pred_check
      _
    $region43: #{traj_transformer_forward.1} parent=1 // pred_check_branch
      %223 = sbr.rel (0) target = $region45
    $region44: #{traj_transformer_forward.1} parent=1 // pred_region
      _
    $region45: #{traj_transformer_forward.1} parent=1 // pred_fallthru
      _
    // Predicated region
    $region46: #{traj_transformer_forward.1} parent=1 // pred_check
      _
    $region47: #{traj_transformer_forward.1} parent=1 // pred_check_branch
      %225 = sbr.rel (0) target = $region49
    $region48: #{traj_transformer_forward.1} parent=1 // pred_region
      %227 = vsyncadd [#allocation8], 0
      %s229 = sshll.u32 %s23, 4
      %s230 = int_to_ptr.hbm [resolvable:$true] %s229
      %s231 = sshll.u32 [#allocation7], 4
      %s232 = int_to_ptr.vmem [resolvable:$true] %s231
      %234 = dma.hbm_to_vmem [thread:$0]  %s230, 16, %s232, [#allocation8]
    $region49: #{traj_transformer_forward.1} parent=1 // pred_fallthru
      _
    // Predicated region
    $region50: #{traj_transformer_forward.1} parent=1 // pred_check
      _
    $region51: #{traj_transformer_forward.1} parent=1 // pred_check_branch
      %236 = sbr.rel (0) target = $region53
    $region52: #{traj_transformer_forward.1} parent=1 // pred_region
      %238 = vsyncadd [#allocation8], 0
      %s240 = sshll.u32 %s25, 4
      %s241 = int_to_ptr.hbm [resolvable:$true] %s240
      %s242 = sshll.u32 [#allocation9], 4
      %s243 = int_to_ptr.vmem [resolvable:$true] %s242
      %245 = dma.hbm_to_vmem [thread:$0]  %s241, 16, %s243, [#allocation8]
    $region53: #{traj_transformer_forward.1} parent=1 // pred_fallthru
      _
    // Predicated region
    $region54: #{traj_transformer_forward.1} parent=1 // pred_check
      _
    $region55: #{traj_transformer_forward.1} parent=1 // pred_check_branch
      %247 = sbr.rel (0) target = $region57
    $region56: #{traj_transformer_forward.1} parent=1 // pred_region
      %249 = vsyncadd [#allocation11], 0
      %s251 = sshll.u32 %s27, 4
      %s252 = int_to_ptr.hbm [resolvable:$true] %s251
      %s253 = sshll.u32 [#allocation10], 4
      %s254 = int_to_ptr.vmem [resolvable:$true] %s253
      %256 = dma.hbm_to_vmem [thread:$0]  %s252, 16, %s254, [#allocation11]
    $region57: #{traj_transformer_forward.1} parent=1 // pred_fallthru
      _
    // Predicated region
    $region58: #{traj_transformer_forward.1} parent=1 // pred_check
      _
    $region59: #{traj_transformer_forward.1} parent=1 // pred_check_branch
      %258 = sbr.rel (0) target = $region61
    $region60: #{traj_transformer_forward.1} parent=1 // pred_region
      %260 = vsyncadd [#allocation11], 0
      %s262 = sshll.u32 %s29, 4
      %s263 = int_to_ptr.hbm [resolvable:$true] %s262
      %s264 = sshll.u32 [#allocation12], 4
      %s265 = int_to_ptr.vmem [resolvable:$true] %s264
      %267 = dma.hbm_to_vmem [thread:$0]  %s263, 16, %s265, [#allocation11]
    $region61: #{traj_transformer_forward.1} parent=1 // pred_fallthru
      _
    // Predicated region
    $region62: #{traj_transformer_forward.1} parent=1 // pred_check
      _
    $region63: #{traj_transformer_forward.1} parent=1 // pred_check_branch
      %269 = sbr.rel (0) target = $region65
    $region64: #{traj_transformer_forward.1} parent=1 // pred_region
      %271 = vsyncadd [#allocation14], 0
      %s273 = sshll.u32 %s31, 4
      %s274 = int_to_ptr.hbm [resolvable:$true] %s273
      %s275 = sshll.u32 [#allocation13], 4
      %s276 = int_to_ptr.vmem [resolvable:$true] %s275
      %278 = dma.hbm_to_vmem [thread:$0]  %s274, 16, %s276, [#allocation14]
    $region65: #{traj_transformer_forward.1} parent=1 // pred_fallthru
      _
    // Predicated region
    $region66: #{traj_transformer_forward.1} parent=1 // pred_check
      _
    $region67: #{traj_transformer_forward.1} parent=1 // pred_check_branch
      %280 = sbr.rel (0) target = $region69
    $region68: #{traj_transformer_forward.1} parent=1 // pred_region
      %282 = vsyncadd [#allocation14], 0
      %s284 = sshll.u32 %s33, 4
      %s285 = int_to_ptr.hbm [resolvable:$true] %s284
      %s286 = sshll.u32 [#allocation15], 4
      %s287 = int_to_ptr.vmem [resolvable:$true] %s286
      %289 = dma.hbm_to_vmem [thread:$0]  %s285, 16, %s287, [#allocation14]
    $region69: #{traj_transformer_forward.1} parent=1 // pred_fallthru
      _
    // Predicated region
    $region70: #{traj_transformer_forward.1} parent=1 // pred_check
      _
    $region71: #{traj_transformer_forward.1} parent=1 // pred_check_branch
      %291 = sbr.rel (0) target = $region73
    $region72: #{traj_transformer_forward.1} parent=1 // pred_region
      %293 = vsyncadd [#allocation17], 0
      %s295 = sshll.u32 %s35, 4
      %s296 = int_to_ptr.hbm [resolvable:$true] %s295
      %s297 = sshll.u32 [#allocation16], 4
      %s298 = int_to_ptr.vmem [resolvable:$true] %s297
      %300 = dma.hbm_to_vmem [thread:$0]  %s296, 16, %s298, [#allocation17]
    $region73: #{traj_transformer_forward.1} parent=1 // pred_fallthru
      _
    // Predicated region
    $region74: #{traj_transformer_forward.1} parent=1 // pred_check
      _
    $region75: #{traj_transformer_forward.1} parent=1 // pred_check_branch
      %302 = sbr.rel (0) target = $region77
    $region76: #{traj_transformer_forward.1} parent=1 // pred_region
      %304 = vsyncadd [#allocation17], 0
      %s306 = sshll.u32 %s37, 4
      %s307 = int_to_ptr.hbm [resolvable:$true] %s306
      %s308 = sshll.u32 [#allocation18], 4
      %s309 = int_to_ptr.vmem [resolvable:$true] %s308
      %311 = dma.hbm_to_vmem [thread:$0]  %s307, 16, %s309, [#allocation17]
    $region77: #{traj_transformer_forward.1} parent=1 // pred_fallthru
      _
    // Predicated region
    $region78: #{traj_transformer_forward.1} parent=1 // pred_check
      _
    $region79: #{traj_transformer_forward.1} parent=1 // pred_check_branch
      %313 = sbr.rel (0) target = $region81
    $region80: #{traj_transformer_forward.1} parent=1 // pred_region
      _
    $region81: #{traj_transformer_forward.1} parent=1 // pred_fallthru
      _
    // Predicated region
    $region82: #{traj_transformer_forward.1} parent=1 // pred_check
      _
    $region83: #{traj_transformer_forward.1} parent=1 // pred_check_branch
      %315 = sbr.rel (0) target = $region85
    $region84: #{traj_transformer_forward.1} parent=1 // pred_region
      _
    $region85: #{traj_transformer_forward.1} parent=1 // pred_fallthru
      _
    // Predicated region
    $region86: #{traj_transformer_forward.1} parent=1 // pred_check
      _
    $region87: #{traj_transformer_forward.1} parent=1 // pred_check_branch
      %317 = sbr.rel (0) target = $region89
    $region88: #{traj_transformer_forward.1} parent=1 // pred_region
      _
    $region89: #{traj_transformer_forward.1} parent=1 // pred_fallthru
      _
    // Predicated region
    $region90: #{traj_transformer_forward.1} parent=1 // pred_check
      _
    $region91: #{traj_transformer_forward.1} parent=1 // pred_check_branch
      %319 = sbr.rel (0) target = $region93
    $region92: #{traj_transformer_forward.1} parent=1 // pred_region
      _
    $region93: #{traj_transformer_forward.1} parent=1 // pred_fallthru
      _
    // Predicated region
    $region94: #{traj_transformer_forward.1} parent=1 // pred_check
      _
    $region95: #{traj_transformer_forward.1} parent=1 // pred_check_branch
      %321 = sbr.rel (0) target = $region97
    $region96: #{traj_transformer_forward.1} parent=1 // pred_region
      %323 = vsyncadd [#allocation20], 0
      %s325 = sshll.u32 %s47, 4
      %s326 = int_to_ptr.hbm [resolvable:$true] %s325
      %s327 = sshll.u32 [#allocation19], 4
      %s328 = int_to_ptr.vmem [resolvable:$true] %s327
      %330 = dma.hbm_to_vmem [thread:$0]  %s326, 16, %s328, [#allocation20]
    $region97: #{traj_transformer_forward.1} parent=1 // pred_fallthru
      _
    // Predicated region
    $region98: #{traj_transformer_forward.1} parent=1 // pred_check
      _
    $region99: #{traj_transformer_forward.1} parent=1 // pred_check_branch
      %332 = sbr.rel (0) target = $region101
    $region100: #{traj_transformer_forward.1} parent=1 // pred_region
      %334 = vsyncadd [#allocation20], 0
      %s336 = sshll.u32 %s49, 4
      %s337 = int_to_ptr.hbm [resolvable:$true] %s336
      %s338 = sshll.u32 [#allocation21], 4
      %s339 = int_to_ptr.vmem [resolvable:$true] %s338
      %341 = dma.hbm_to_vmem [thread:$0]  %s337, 16, %s339, [#allocation20]
    $region101: #{traj_transformer_forward.1} parent=1 // pred_fallthru
      _
    // Predicated region
    $region102: #{traj_transformer_forward.1} parent=1 // pred_check
      _
    $region103: #{traj_transformer_forward.1} parent=1 // pred_check_branch
      %343 = sbr.rel (0) target = $region105
    $region104: #{traj_transformer_forward.1} parent=1 // pred_region
      %345 = vsyncadd [#allocation23], 0
      %s347 = sshll.u32 %s51, 4
      %s348 = int_to_ptr.hbm [resolvable:$true] %s347
      %s349 = sshll.u32 [#allocation22], 4
      %s350 = int_to_ptr.vmem [resolvable:$true] %s349
      %352 = dma.hbm_to_vmem [thread:$0]  %s348, 16, %s350, [#allocation23]
    $region105: #{traj_transformer_forward.1} parent=1 // pred_fallthru
      _
    // Predicated region
    $region106: #{traj_transformer_forward.1} parent=1 // pred_check
      _
    $region107: #{traj_transformer_forward.1} parent=1 // pred_check_branch
      %354 = sbr.rel (0) target = $region109
    $region108: #{traj_transformer_forward.1} parent=1 // pred_region
      %356 = vsyncadd [#allocation23], 0
      %s358 = sshll.u32 %s53, 4
      %s359 = int_to_ptr.hbm [resolvable:$true] %s358
      %s360 = sshll.u32 [#allocation24], 4
      %s361 = int_to_ptr.vmem [resolvable:$true] %s360
      %363 = dma.hbm_to_vmem [thread:$0]  %s359, 16, %s361, [#allocation23]
    $region109: #{traj_transformer_forward.1} parent=1 // pred_fallthru
      _
    // Predicated region
    $region110: #{traj_transformer_forward.1} parent=1 // pred_check
      _
    $region111: #{traj_transformer_forward.1} parent=1 // pred_check_branch
      %365 = sbr.rel (0) target = $region113
    $region112: #{traj_transformer_forward.1} parent=1 // pred_region
      %367 = vsyncadd [#allocation26], 0
      %s369 = sshll.u32 %s55, 4
      %s370 = int_to_ptr.hbm [resolvable:$true] %s369
      %s371 = sshll.u32 [#allocation25], 4
      %s372 = int_to_ptr.vmem [resolvable:$true] %s371
      %374 = dma.hbm_to_vmem [thread:$0]  %s370, 16, %s372, [#allocation26]
    $region113: #{traj_transformer_forward.1} parent=1 // pred_fallthru
      _
    // Predicated region
    $region114: #{traj_transformer_forward.1} parent=1 // pred_check
      _
    $region115: #{traj_transformer_forward.1} parent=1 // pred_check_branch
      %376 = sbr.rel (0) target = $region117
    $region116: #{traj_transformer_forward.1} parent=1 // pred_region
      _
    $region117: #{traj_transformer_forward.1} parent=1 // pred_fallthru
      _
    // Predicated region
    $region118: #{traj_transformer_forward.1} parent=1 // pred_check
      _
    $region119: #{traj_transformer_forward.1} parent=1 // pred_check_branch
      %378 = sbr.rel (0) target = $region121
    $region120: #{traj_transformer_forward.1} parent=1 // pred_region
      _
    $region121: #{traj_transformer_forward.1} parent=1 // pred_fallthru
      _
    // Predicated region
    $region122: #{traj_transformer_forward.1} parent=1 // pred_check
      _
    $region123: #{traj_transformer_forward.1} parent=1 // pred_check_branch
      %380 = sbr.rel (0) target = $region125
    $region124: #{traj_transformer_forward.1} parent=1 // pred_region
      _
    $region125: #{traj_transformer_forward.1} parent=1 // pred_fallthru
      _
    // Predicated region
    $region126: #{traj_transformer_forward.1} parent=1 // pred_check
      _
    $region127: #{traj_transformer_forward.1} parent=1 // pred_check_branch
      %382 = sbr.rel (0) target = $region129
    $region128: #{traj_transformer_forward.1} parent=1 // pred_region
      %384 = vsyncadd [#allocation26], 0
      %s386 = sshll.u32 %s63, 4
      %s387 = int_to_ptr.hbm [resolvable:$true] %s386
      %s388 = sshll.u32 [#allocation27], 4
      %s389 = int_to_ptr.vmem [resolvable:$true] %s388
      %391 = dma.hbm_to_vmem [thread:$0]  %s387, 16, %s389, [#allocation26]
    $region129: #{traj_transformer_forward.1} parent=1 // pred_fallthru
      _
    // Predicated region
    $region130: #{traj_transformer_forward.1} parent=1 // pred_check
      _
    $region131: #{traj_transformer_forward.1} parent=1 // pred_check_branch
      %393 = sbr.rel (0) target = $region133
    $region132: #{traj_transformer_forward.1} parent=1 // pred_region
      %395 = vsyncadd [#allocation29], 0
      %s397 = sshll.u32 %s65, 4
      %s398 = int_to_ptr.hbm [resolvable:$true] %s397
      %s399 = sshll.u32 [#allocation28], 4
      %s400 = int_to_ptr.vmem [resolvable:$true] %s399
      %402 = dma.hbm_to_vmem [thread:$0]  %s398, 16, %s400, [#allocation29]
    $region133: #{traj_transformer_forward.1} parent=1 // pred_fallthru
      _
    // Predicated region
    $region134: #{traj_transformer_forward.1} parent=1 // pred_check
      _
    $region135: #{traj_transformer_forward.1} parent=1 // pred_check_branch
      %404 = sbr.rel (0) target = $region137
    $region136: #{traj_transformer_forward.1} parent=1 // pred_region
      _
    $region137: #{traj_transformer_forward.1} parent=1 // pred_fallthru
      _
    // Predicated region
    $region138: #{traj_transformer_forward.1} parent=1 // pred_check
      _
    $region139: #{traj_transformer_forward.1} parent=1 // pred_check_branch
      %406 = sbr.rel (0) target = $region141
    $region140: #{traj_transformer_forward.1} parent=1 // pred_region
      _
    $region141: #{traj_transformer_forward.1} parent=1 // pred_fallthru
      _
    // Predicated region
    $region142: #{traj_transformer_forward.1} parent=1 // pred_check
      _
    $region143: #{traj_transformer_forward.1} parent=1 // pred_check_branch
      %408 = sbr.rel (0) target = $region145
    $region144: #{traj_transformer_forward.1} parent=1 // pred_region
      %410 = vsyncadd [#allocation29], 0
      %s412 = sshll.u32 %s71, 4
      %s413 = int_to_ptr.hbm [resolvable:$true] %s412
      %s414 = sshll.u32 [#allocation30], 4
      %s415 = int_to_ptr.vmem [resolvable:$true] %s414
      %417 = dma.hbm_to_vmem [thread:$0]  %s413, 16, %s415, [#allocation29]
    $region145: #{traj_transformer_forward.1} parent=1 // pred_fallthru
      _
    // Predicated region
    $region146: #{traj_transformer_forward.1} parent=1 // pred_check
      _
    $region147: #{traj_transformer_forward.1} parent=1 // pred_check_branch
      %419 = sbr.rel (0) target = $region149
    $region148: #{traj_transformer_forward.1} parent=1 // pred_region
      %421 = vsyncadd [#allocation32], 0
      %s423 = sshll.u32 %s73, 4
      %s424 = int_to_ptr.hbm [resolvable:$true] %s423
      %s425 = sshll.u32 [#allocation31], 4
      %s426 = int_to_ptr.vmem [resolvable:$true] %s425
      %428 = dma.hbm_to_vmem [thread:$0]  %s424, 16, %s426, [#allocation32]
    $region149: #{traj_transformer_forward.1} parent=1 // pred_fallthru
      _
    // Predicated region
    $region150: #{traj_transformer_forward.1} parent=1 // pred_check
      _
    $region151: #{traj_transformer_forward.1} parent=1 // pred_check_branch
      %430 = sbr.rel (0) target = $region153
    $region152: #{traj_transformer_forward.1} parent=1 // pred_region
      %432 = vsyncadd [#allocation32], 0
      %s434 = sshll.u32 %s75, 4
      %s435 = int_to_ptr.hbm [resolvable:$true] %s434
      %s436 = sshll.u32 [#allocation33], 4
      %s437 = int_to_ptr.vmem [resolvable:$true] %s436
      %439 = dma.hbm_to_vmem [thread:$0]  %s435, 16, %s437, [#allocation32]
    $region153: #{traj_transformer_forward.1} parent=1 // pred_fallthru
      _
    // Predicated region
    $region154: #{traj_transformer_forward.1} parent=1 // pred_check
      _
    $region155: #{traj_transformer_forward.1} parent=1 // pred_check_branch
      %441 = sbr.rel (0) target = $region157
    $region156: #{traj_transformer_forward.1} parent=1 // pred_region
      %443 = vsyncadd [#allocation35], 0
      %s445 = sshll.u32 %s77, 4
      %s446 = int_to_ptr.hbm [resolvable:$true] %s445
      %s447 = sshll.u32 [#allocation34], 4
      %s448 = int_to_ptr.vmem [resolvable:$true] %s447
      %450 = dma.hbm_to_vmem [thread:$0]  %s446, 16, %s448, [#allocation35]
    $region157: #{traj_transformer_forward.1} parent=1 // pred_fallthru
      _
    // Predicated region
    $region158: #{traj_transformer_forward.1} parent=1 // pred_check
      _
    $region159: #{traj_transformer_forward.1} parent=1 // pred_check_branch
      %452 = sbr.rel (0) target = $region161
    $region160: #{traj_transformer_forward.1} parent=1 // pred_region
      _
    $region161: #{traj_transformer_forward.1} parent=1 // pred_fallthru
      _
    // Predicated region
    $region162: #{traj_transformer_forward.1} parent=1 // pred_check
      _
    $region163: #{traj_transformer_forward.1} parent=1 // pred_check_branch
      %454 = sbr.rel (0) target = $region165
    $region164: #{traj_transformer_forward.1} parent=1 // pred_region
      _
    $region165: #{traj_transformer_forward.1} parent=1 // pred_fallthru
      _
    // Predicated region
    $region166: #{traj_transformer_forward.1} parent=1 // pred_check
      _
    $region167: #{traj_transformer_forward.1} parent=1 // pred_check_branch
      %456 = sbr.rel (0) target = $region169
    $region168: #{traj_transformer_forward.1} parent=1 // pred_region
      _
    $region169: #{traj_transformer_forward.1} parent=1 // pred_fallthru
      _
    // Predicated region
    $region170: #{traj_transformer_forward.1} parent=1 // pred_check
      _
    $region171: #{traj_transformer_forward.1} parent=1 // pred_check_branch
      %458 = sbr.rel (0) target = $region173
    $region172: #{traj_transformer_forward.1} parent=1 // pred_region
      _
    $region173: #{traj_transformer_forward.1} parent=1 // pred_fallthru
      _
    // Predicated region
    $region174: #{traj_transformer_forward.1} parent=1 // pred_check
      _
    $region175: #{traj_transformer_forward.1} parent=1 // pred_check_branch
      %460 = sbr.rel (0) target = $region177
    $region176: #{traj_transformer_forward.1} parent=1 // pred_region
      %462 = vsyncadd [#allocation35], 0
      %s464 = sshll.u32 %s87, 4
      %s465 = int_to_ptr.hbm [resolvable:$true] %s464
      %s466 = sshll.u32 [#allocation36], 4
      %s467 = int_to_ptr.vmem [resolvable:$true] %s466
      %469 = dma.hbm_to_vmem [thread:$0]  %s465, 16, %s467, [#allocation35]
    $region177: #{traj_transformer_forward.1} parent=1 // pred_fallthru
      _
    // Predicated region
    $region178: #{traj_transformer_forward.1} parent=1 // pred_check
      _
    $region179: #{traj_transformer_forward.1} parent=1 // pred_check_branch
      %471 = sbr.rel (0) target = $region181
    $region180: #{traj_transformer_forward.1} parent=1 // pred_region
      %473 = vsyncadd [#allocation38], 0
      %s475 = sshll.u32 %s89, 4
      %s476 = int_to_ptr.hbm [resolvable:$true] %s475
      %s477 = sshll.u32 [#allocation37], 4
      %s478 = int_to_ptr.vmem [resolvable:$true] %s477
      %480 = dma.hbm_to_vmem [thread:$0]  %s476, 16, %s478, [#allocation38]
    $region181: #{traj_transformer_forward.1} parent=1 // pred_fallthru
      _
    // Predicated region
    $region182: #{traj_transformer_forward.1} parent=1 // pred_check
      _
    $region183: #{traj_transformer_forward.1} parent=1 // pred_check_branch
      %482 = sbr.rel (0) target = $region185
    $region184: #{traj_transformer_forward.1} parent=1 // pred_region
      %484 = vsyncadd [#allocation38], 0
      %s486 = sshll.u32 %s91, 4
      %s487 = int_to_ptr.hbm [resolvable:$true] %s486
      %s488 = sshll.u32 [#allocation39], 4
      %s489 = int_to_ptr.vmem [resolvable:$true] %s488
      %491 = dma.hbm_to_vmem [thread:$0]  %s487, 16, %s489, [#allocation38]
    $region185: #{traj_transformer_forward.1} parent=1 // pred_fallthru
      _
    // Predicated region
    $region186: #{traj_transformer_forward.1} parent=1 // pred_check
      _
    $region187: #{traj_transformer_forward.1} parent=1 // pred_check_branch
      %493 = sbr.rel (0) target = $region189
    $region188: #{traj_transformer_forward.1} parent=1 // pred_region
      %495 = vsyncadd [#allocation41], 0
      %s497 = sshll.u32 %s93, 4
      %s498 = int_to_ptr.hbm [resolvable:$true] %s497
      %s499 = sshll.u32 [#allocation40], 4
      %s500 = int_to_ptr.vmem [resolvable:$true] %s499
      %502 = dma.hbm_to_vmem [thread:$0]  %s498, 16, %s500, [#allocation41]
    $region189: #{traj_transformer_forward.1} parent=1 // pred_fallthru
      _
    // Predicated region
    $region190: #{traj_transformer_forward.1} parent=1 // pred_check
      _
    $region191: #{traj_transformer_forward.1} parent=1 // pred_check_branch
      %504 = sbr.rel (0) target = $region193
    $region192: #{traj_transformer_forward.1} parent=1 // pred_region
      %506 = vsyncadd [#allocation41], 0
      %s508 = sshll.u32 %s95, 4
      %s509 = int_to_ptr.hbm [resolvable:$true] %s508
      %s510 = sshll.u32 [#allocation42], 4
      %s511 = int_to_ptr.vmem [resolvable:$true] %s510
      %513 = dma.hbm_to_vmem [thread:$0]  %s509, 16, %s511, [#allocation41]
    $region193: #{traj_transformer_forward.1} parent=1 // pred_fallthru
      _
    // Predicated region
    $region194: #{traj_transformer_forward.1} parent=1 // pred_check
      _
    $region195: #{traj_transformer_forward.1} parent=1 // pred_check_branch
      %515 = sbr.rel (0) target = $region197
    $region196: #{traj_transformer_forward.1} parent=1 // pred_region
      %517 = vsyncadd [#allocation44], 0
      %s519 = sshll.u32 %s97, 4
      %s520 = int_to_ptr.hbm [resolvable:$true] %s519
      %s521 = sshll.u32 [#allocation43], 4
      %s522 = int_to_ptr.vmem [resolvable:$true] %s521
      %524 = dma.hbm_to_vmem [thread:$0]  %s520, 16, %s522, [#allocation44]
    $region197: #{traj_transformer_forward.1} parent=1 // pred_fallthru
      _
    // Predicated region
    $region198: #{traj_transformer_forward.1} parent=1 // pred_check
      _
    $region199: #{traj_transformer_forward.1} parent=1 // pred_check_branch
      %526 = sbr.rel (0) target = $region201
    $region200: #{traj_transformer_forward.1} parent=1 // pred_region
      %528 = vsyncadd [#allocation44], 0
      %s530 = sshll.u32 %s99, 4
      %s531 = int_to_ptr.hbm [resolvable:$true] %s530
      %s532 = sshll.u32 [#allocation45], 4
      %s533 = int_to_ptr.vmem [resolvable:$true] %s532
      %535 = dma.hbm_to_vmem [thread:$0]  %s531, 16, %s533, [#allocation44]
    $region201: #{traj_transformer_forward.1} parent=1 // pred_fallthru
      _
    // Predicated region
    $region202: #{traj_transformer_forward.1} parent=1 // pred_check
      _
    $region203: #{traj_transformer_forward.1} parent=1 // pred_check_branch
      %537 = sbr.rel (0) target = $region205
    $region204: #{traj_transformer_forward.1} parent=1 // pred_region
      %539 = vsyncadd [#allocation47], 0
      %s541 = sshll.u32 %s101, 4
      %s542 = int_to_ptr.hbm [resolvable:$true] %s541
      %s543 = sshll.u32 [#allocation46], 4
      %s544 = int_to_ptr.vmem [resolvable:$true] %s543
      %546 = dma.hbm_to_vmem [thread:$0]  %s542, 16, %s544, [#allocation47]
    $region205: #{traj_transformer_forward.1} parent=1 // pred_fallthru
      _
    // Predicated region
    $region206: #{traj_transformer_forward.1} parent=1 // pred_check
      _
    $region207: #{traj_transformer_forward.1} parent=1 // pred_check_branch
      %548 = sbr.rel (0) target = $region209
    $region208: #{traj_transformer_forward.1} parent=1 // pred_region
      %550 = vsyncadd [#allocation47], 0
      %s552 = sshll.u32 %s103, 4
      %s553 = int_to_ptr.hbm [resolvable:$true] %s552
      %s554 = sshll.u32 [#allocation48], 4
      %s555 = int_to_ptr.vmem [resolvable:$true] %s554
      %557 = dma.hbm_to_vmem [thread:$0]  %s553, 16, %s555, [#allocation47]
    $region209: #{traj_transformer_forward.1} parent=1 // pred_fallthru
      _
    // Predicated region
    $region210: #{traj_transformer_forward.1} parent=1 // pred_check
      _
    $region211: #{traj_transformer_forward.1} parent=1 // pred_check_branch
      %559 = sbr.rel (0) target = $region213
    $region212: #{traj_transformer_forward.1} parent=1 // pred_region
      %561 = vsyncadd [#allocation50], 0
      %s563 = sshll.u32 %s105, 4
      %s564 = int_to_ptr.hbm [resolvable:$true] %s563
      %s565 = sshll.u32 [#allocation49], 4
      %s566 = int_to_ptr.vmem [resolvable:$true] %s565
      %568 = dma.hbm_to_vmem [thread:$0]  %s564, 16, %s566, [#allocation50]
    $region213: #{traj_transformer_forward.1} parent=1 // pred_fallthru
      _
    // Predicated region
    $region214: #{traj_transformer_forward.1} parent=1 // pred_check
      _
    $region215: #{traj_transformer_forward.1} parent=1 // pred_check_branch
      %570 = sbr.rel (0) target = $region217
    $region216: #{traj_transformer_forward.1} parent=1 // pred_region
      _
    $region217: #{traj_transformer_forward.1} parent=1 // pred_fallthru
      _
    // Predicated region
    $region218: #{traj_transformer_forward.1} parent=1 // pred_check
      _
    $region219: #{traj_transformer_forward.1} parent=1 // pred_check_branch
      %572 = sbr.rel (0) target = $region221
    $region220: #{traj_transformer_forward.1} parent=1 // pred_region
      _
    $region221: #{traj_transformer_forward.1} parent=1 // pred_fallthru
      _
    // Predicated region
    $region222: #{traj_transformer_forward.1} parent=1 // pred_check
      _
    $region223: #{traj_transformer_forward.1} parent=1 // pred_check_branch
      %574 = sbr.rel (0) target = $region225
    $region224: #{traj_transformer_forward.1} parent=1 // pred_region
      _
    $region225: #{traj_transformer_forward.1} parent=1 // pred_fallthru
      _
    // Predicated region
    $region226: #{traj_transformer_forward.1} parent=1 // pred_check
      _
    $region227: #{traj_transformer_forward.1} parent=1 // pred_check_branch
      %576 = sbr.rel (0) target = $region229
    $region228: #{traj_transformer_forward.1} parent=1 // pred_region
      _
    $region229: #{traj_transformer_forward.1} parent=1 // pred_fallthru
      _
    // Predicated region
    $region230: #{traj_transformer_forward.1} parent=1 // pred_check
      _
    $region231: #{traj_transformer_forward.1} parent=1 // pred_check_branch
      %578 = sbr.rel (0) target = $region233
    $region232: #{traj_transformer_forward.1} parent=1 // pred_region
      %580 = vsyncadd [#allocation50], 0
      %s582 = sshll.u32 %s115, 4
      %s583 = int_to_ptr.hbm [resolvable:$true] %s582
      %s584 = sshll.u32 [#allocation51], 4
      %s585 = int_to_ptr.vmem [resolvable:$true] %s584
      %587 = dma.hbm_to_vmem [thread:$0]  %s583, 16, %s585, [#allocation50]
    $region233: #{traj_transformer_forward.1} parent=1 // pred_fallthru
      _
    // Predicated region
    $region234: #{traj_transformer_forward.1} parent=1 // pred_check
      _
    $region235: #{traj_transformer_forward.1} parent=1 // pred_check_branch
      %589 = sbr.rel (0) target = $region237
    $region236: #{traj_transformer_forward.1} parent=1 // pred_region
      %591 = vsyncadd [#allocation53], 0
      %s593 = sshll.u32 %s117, 4
      %s594 = int_to_ptr.hbm [resolvable:$true] %s593
      %s595 = sshll.u32 [#allocation52], 4
      %s596 = int_to_ptr.vmem [resolvable:$true] %s595
      %598 = dma.hbm_to_vmem [thread:$0]  %s594, 16, %s596, [#allocation53]
    $region237: #{traj_transformer_forward.1} parent=1 // pred_fallthru
      _
    // Predicated region
    $region238: #{traj_transformer_forward.1} parent=1 // pred_check
      _
    $region239: #{traj_transformer_forward.1} parent=1 // pred_check_branch
      %600 = sbr.rel (0) target = $region241
    $region240: #{traj_transformer_forward.1} parent=1 // pred_region
      %602 = vsyncadd [#allocation53], 0
      %s604 = sshll.u32 %s119, 4
      %s605 = int_to_ptr.hbm [resolvable:$true] %s604
      %s606 = sshll.u32 [#allocation54], 4
      %s607 = int_to_ptr.vmem [resolvable:$true] %s606
      %609 = dma.hbm_to_vmem [thread:$0]  %s605, 16, %s607, [#allocation53]
    $region241: #{traj_transformer_forward.1} parent=1 // pred_fallthru
      _
    // Predicated region
    $region242: #{traj_transformer_forward.1} parent=1 // pred_check
      _
    $region243: #{traj_transformer_forward.1} parent=1 // pred_check_branch
      %611 = sbr.rel (0) target = $region245
    $region244: #{traj_transformer_forward.1} parent=1 // pred_region
      %613 = vsyncadd [#allocation56], 0
      %s615 = sshll.u32 %s121, 4
      %s616 = int_to_ptr.hbm [resolvable:$true] %s615
      %s617 = sshll.u32 [#allocation55], 4
      %s618 = int_to_ptr.vmem [resolvable:$true] %s617
      %620 = dma.hbm_to_vmem [thread:$0]  %s616, 16, %s618, [#allocation56]
    $region245: #{traj_transformer_forward.1} parent=1 // pred_fallthru
      _
    // Predicated region
    $region246: #{traj_transformer_forward.1} parent=1 // pred_check
      _
    $region247: #{traj_transformer_forward.1} parent=1 // pred_check_branch
      %622 = sbr.rel (0) target = $region249
    $region248: #{traj_transformer_forward.1} parent=1 // pred_region
      %624 = vsyncadd [#allocation56], 0
      %s626 = sshll.u32 %s123, 4
      %s627 = int_to_ptr.hbm [resolvable:$true] %s626
      %s628 = sshll.u32 [#allocation57], 4
      %s629 = int_to_ptr.vmem [resolvable:$true] %s628
      %631 = dma.hbm_to_vmem [thread:$0]  %s627, 16, %s629, [#allocation56]
    $region249: #{traj_transformer_forward.1} parent=1 // pred_fallthru
      _
    // Predicated region
    $region250: #{traj_transformer_forward.1} parent=1 // pred_check
      _
    $region251: #{traj_transformer_forward.1} parent=1 // pred_check_branch
      %633 = sbr.rel (0) target = $region253
    $region252: #{traj_transformer_forward.1} parent=1 // pred_region
      %635 = vsyncadd [#allocation59], 0
      %s637 = sshll.u32 %s125, 4
      %s638 = int_to_ptr.hbm [resolvable:$true] %s637
      %s639 = sshll.u32 [#allocation58], 4
      %s640 = int_to_ptr.vmem [resolvable:$true] %s639
      %642 = dma.hbm_to_vmem [thread:$0]  %s638, 16, %s640, [#allocation59]
    $region253: #{traj_transformer_forward.1} parent=1 // pred_fallthru
      _
    // Predicated region
    $region254: #{traj_transformer_forward.1} parent=1 // pred_check
      _
    $region255: #{traj_transformer_forward.1} parent=1 // pred_check_branch
      %644 = sbr.rel (0) target = $region257
    $region256: #{traj_transformer_forward.1} parent=1 // pred_region
      %646 = vsyncadd [#allocation59], 0
      %s648 = sshll.u32 %s127, 4
      %s649 = int_to_ptr.hbm [resolvable:$true] %s648
      %s650 = sshll.u32 [#allocation60], 4
      %s651 = int_to_ptr.vmem [resolvable:$true] %s650
      %653 = dma.hbm_to_vmem [thread:$0]  %s649, 16, %s651, [#allocation59]
    $region257: #{traj_transformer_forward.1} parent=1 // pred_fallthru
      _
    // Predicated region
    $region258: #{traj_transformer_forward.1} parent=1 // pred_check
      _
    $region259: #{traj_transformer_forward.1} parent=1 // pred_check_branch
      %655 = sbr.rel (0) target = $region261
    $region260: #{traj_transformer_forward.1} parent=1 // pred_region
      %657 = vsyncadd [#allocation62], 0
      %s659 = sshll.u32 %s129, 4
      %s660 = int_to_ptr.hbm [resolvable:$true] %s659
      %s661 = sshll.u32 [#allocation61], 4
      %s662 = int_to_ptr.vmem [resolvable:$true] %s661
      %664 = dma.hbm_to_vmem [thread:$0]  %s660, 16, %s662, [#allocation62]
    $region261: #{traj_transformer_forward.1} parent=1 // pred_fallthru
      _
    // Predicated region
    $region262: #{traj_transformer_forward.1} parent=1 // pred_check
      _
    $region263: #{traj_transformer_forward.1} parent=1 // pred_check_branch
      %666 = sbr.rel (0) target = $region265
    $region264: #{traj_transformer_forward.1} parent=1 // pred_region
      _
    $region265: #{traj_transformer_forward.1} parent=1 // pred_fallthru
      _
    // Predicated region
    $region266: #{traj_transformer_forward.1} parent=1 // pred_check
      _
    $region267: #{traj_transformer_forward.1} parent=1 // pred_check_branch
      %668 = sbr.rel (0) target = $region269
    $region268: #{traj_transformer_forward.1} parent=1 // pred_region
      _
    $region269: #{traj_transformer_forward.1} parent=1 // pred_fallthru
      _
    // Predicated region
    $region270: #{traj_transformer_forward.1} parent=1 // pred_check
      _
    $region271: #{traj_transformer_forward.1} parent=1 // pred_check_branch
      %670 = sbr.rel (0) target = $region273
    $region272: #{traj_transformer_forward.1} parent=1 // pred_region
      _
    $region273: #{traj_transformer_forward.1} parent=1 // pred_fallthru
      _
    // Predicated region
    $region274: #{traj_transformer_forward.1} parent=1 // pred_check
      _
    $region275: #{traj_transformer_forward.1} parent=1 // pred_check_branch
      %672 = sbr.rel (0) target = $region277
    $region276: #{traj_transformer_forward.1} parent=1 // pred_region
      _
    $region277: #{traj_transformer_forward.1} parent=1 // pred_fallthru
      _
    // Predicated region
    $region278: #{traj_transformer_forward.1} parent=1 // pred_check
      _
    $region279: #{traj_transformer_forward.1} parent=1 // pred_check_branch
      %674 = sbr.rel (0) target = $region281
    $region280: #{traj_transformer_forward.1} parent=1 // pred_region
      %676 = vsyncadd [#allocation62], 0
      %s678 = sshll.u32 %s139, 4
      %s679 = int_to_ptr.hbm [resolvable:$true] %s678
      %s680 = sshll.u32 [#allocation63], 4
      %s681 = int_to_ptr.vmem [resolvable:$true] %s680
      %683 = dma.hbm_to_vmem [thread:$0]  %s679, 16, %s681, [#allocation62]
    $region281: #{traj_transformer_forward.1} parent=1 // pred_fallthru
      _
    // Predicated region
    $region282: #{traj_transformer_forward.1} parent=1 // pred_check
      _
    $region283: #{traj_transformer_forward.1} parent=1 // pred_check_branch
      %685 = sbr.rel (0) target = $region285
    $region284: #{traj_transformer_forward.1} parent=1 // pred_region
      %687 = vsyncadd [#allocation65], 0
      %s689 = sshll.u32 %s141, 4
      %s690 = int_to_ptr.hbm [resolvable:$true] %s689
      %s691 = sshll.u32 [#allocation64], 4
      %s692 = int_to_ptr.vmem [resolvable:$true] %s691
      %694 = dma.hbm_to_vmem [thread:$0]  %s690, 16, %s692, [#allocation65]
    $region285: #{traj_transformer_forward.1} parent=1 // pred_fallthru
      _
    // Predicated region
    $region286: #{traj_transformer_forward.1} parent=1 // pred_check
      _
    $region287: #{traj_transformer_forward.1} parent=1 // pred_check_branch
      %696 = sbr.rel (0) target = $region289
    $region288: #{traj_transformer_forward.1} parent=1 // pred_region
      %698 = vsyncadd [#allocation65], 0
      %s700 = sshll.u32 %s143, 4
      %s701 = int_to_ptr.hbm [resolvable:$true] %s700
      %s702 = sshll.u32 [#allocation66], 4
      %s703 = int_to_ptr.vmem [resolvable:$true] %s702
      %705 = dma.hbm_to_vmem [thread:$0]  %s701, 16, %s703, [#allocation65]
    $region289: #{traj_transformer_forward.1} parent=1 // pred_fallthru
      _
    // Predicated region
    $region290: #{traj_transformer_forward.1} parent=1 // pred_check
      _
    $region291: #{traj_transformer_forward.1} parent=1 // pred_check_branch
      %707 = sbr.rel (0) target = $region293
    $region292: #{traj_transformer_forward.1} parent=1 // pred_region
      %709 = vsyncadd [#allocation68], 0
      %s710 = sshll.u32 %s145, 4
      %s711 = int_to_ptr.hbm [resolvable:$true] %s710
      %s712 = sshll.u32 [#allocation67], 4
      %s713 = int_to_ptr.vmem [resolvable:$true] %s712
      %718 = dma.hbm_to_vmem [thread:$0]  %s711, 512, %s713, [#allocation68], 128, 128, 8
    $region293: #{traj_transformer_forward.1} parent=1 // pred_fallthru
      _
    // Predicated region
    $region294: #{traj_transformer_forward.1} parent=1 // pred_check
      _
    $region295: #{traj_transformer_forward.1} parent=1 // pred_check_branch
      %720 = sbr.rel (0) target = $region297
    $region296: #{traj_transformer_forward.1} parent=1 // pred_region
      %722 = dma.done [#allocation3], 16
    $region297: #{traj_transformer_forward.1} parent=1 // pred_fallthru
      _
    // Predicated region
    $region298: #{traj_transformer_forward.1} parent=1 // pred_check
      _
    $region299: #{traj_transformer_forward.1} parent=1 // pred_check_branch
      %724 = sbr.rel (0) target = $region301
    $region300: #{traj_transformer_forward.1} parent=1 // pred_region
      %726 = dma.done [#allocation5], 16
    $region301: #{traj_transformer_forward.1} parent=1 // pred_fallthru
      _
    // Predicated region
    $region302: #{traj_transformer_forward.1} parent=1 // pred_check
      _
    $region303: #{traj_transformer_forward.1} parent=1 // pred_check_branch
      %728 = sbr.rel (0) target = $region305
    $region304: #{traj_transformer_forward.1} parent=1 // pred_region
      %730 = dma.done [#allocation5], 16
    $region305: #{traj_transformer_forward.1} parent=1 // pred_fallthru
      _
    // Predicated region
    $region306: #{traj_transformer_forward.1} parent=1 // pred_check
      _
    $region307: #{traj_transformer_forward.1} parent=1 // pred_check_branch
      %732 = sbr.rel (0) target = $region309
    $region308: #{traj_transformer_forward.1} parent=1 // pred_region
      %734 = dma.done [#allocation8], 16
    $region309: #{traj_transformer_forward.1} parent=1 // pred_fallthru
      _
    // Predicated region
    $region310: #{traj_transformer_forward.1} parent=1 // pred_check
      _
    $region311: #{traj_transformer_forward.1} parent=1 // pred_check_branch
      %736 = sbr.rel (0) target = $region313
    $region312: #{traj_transformer_forward.1} parent=1 // pred_region
      %738 = dma.done [#allocation8], 16
    $region313: #{traj_transformer_forward.1} parent=1 // pred_fallthru
      _
    // Predicated region
    $region314: #{traj_transformer_forward.1} parent=1 // pred_check
      _
    $region315: #{traj_transformer_forward.1} parent=1 // pred_check_branch
      %740 = sbr.rel (0) target = $region317
    $region316: #{traj_transformer_forward.1} parent=1 // pred_region
      %742 = dma.done [#allocation11], 16
    $region317: #{traj_transformer_forward.1} parent=1 // pred_fallthru
      _
    // Predicated region
    $region318: #{traj_transformer_forward.1} parent=1 // pred_check
      _
    $region319: #{traj_transformer_forward.1} parent=1 // pred_check_branch
      %744 = sbr.rel (0) target = $region321
    $region320: #{traj_transformer_forward.1} parent=1 // pred_region
      %746 = dma.done [#allocation11], 16
    $region321: #{traj_transformer_forward.1} parent=1 // pred_fallthru
      _
    // Predicated region
    $region322: #{traj_transformer_forward.1} parent=1 // pred_check
      _
    $region323: #{traj_transformer_forward.1} parent=1 // pred_check_branch
      %748 = sbr.rel (0) target = $region325
    $region324: #{traj_transformer_forward.1} parent=1 // pred_region
      %750 = dma.done [#allocation14], 16
    $region325: #{traj_transformer_forward.1} parent=1 // pred_fallthru
      _
    // Predicated region
    $region326: #{traj_transformer_forward.1} parent=1 // pred_check
      _
    $region327: #{traj_transformer_forward.1} parent=1 // pred_check_branch
      %752 = sbr.rel (0) target = $region329
    $region328: #{traj_transformer_forward.1} parent=1 // pred_region
      %754 = dma.done [#allocation14], 16
    $region329: #{traj_transformer_forward.1} parent=1 // pred_fallthru
      _
    // Predicated region
    $region330: #{traj_transformer_forward.1} parent=1 // pred_check
      _
    $region331: #{traj_transformer_forward.1} parent=1 // pred_check_branch
      %756 = sbr.rel (0) target = $region333
    $region332: #{traj_transformer_forward.1} parent=1 // pred_region
      %758 = dma.done [#allocation17], 16
    $region333: #{traj_transformer_forward.1} parent=1 // pred_fallthru
      _
    // Predicated region
    $region334: #{traj_transformer_forward.1} parent=1 // pred_check
      _
    $region335: #{traj_transformer_forward.1} parent=1 // pred_check_branch
      %760 = sbr.rel (0) target = $region337
    $region336: #{traj_transformer_forward.1} parent=1 // pred_region
      %762 = dma.done [#allocation17], 16
    $region337: #{traj_transformer_forward.1} parent=1 // pred_fallthru
      _
    // Predicated region
    $region338: #{traj_transformer_forward.1} parent=1 // pred_check
      _
    $region339: #{traj_transformer_forward.1} parent=1 // pred_check_branch
      %764 = sbr.rel (0) target = $region341
    $region340: #{traj_transformer_forward.1} parent=1 // pred_region
      %766 = dma.done [#allocation20], 16
    $region341: #{traj_transformer_forward.1} parent=1 // pred_fallthru
      _
    // Predicated region
    $region342: #{traj_transformer_forward.1} parent=1 // pred_check
      _
    $region343: #{traj_transformer_forward.1} parent=1 // pred_check_branch
      %768 = sbr.rel (0) target = $region345
    $region344: #{traj_transformer_forward.1} parent=1 // pred_region
      %770 = dma.done [#allocation20], 16
    $region345: #{traj_transformer_forward.1} parent=1 // pred_fallthru
      _
    // Predicated region
    $region346: #{traj_transformer_forward.1} parent=1 // pred_check
      _
    $region347: #{traj_transformer_forward.1} parent=1 // pred_check_branch
      %772 = sbr.rel (0) target = $region349
    $region348: #{traj_transformer_forward.1} parent=1 // pred_region
      %774 = dma.done [#allocation23], 16
    $region349: #{traj_transformer_forward.1} parent=1 // pred_fallthru
      _
    // Predicated region
    $region350: #{traj_transformer_forward.1} parent=1 // pred_check
      _
    $region351: #{traj_transformer_forward.1} parent=1 // pred_check_branch
      %776 = sbr.rel (0) target = $region353
    $region352: #{traj_transformer_forward.1} parent=1 // pred_region
      %778 = dma.done [#allocation23], 16
    $region353: #{traj_transformer_forward.1} parent=1 // pred_fallthru
      _
    // Predicated region
    $region354: #{traj_transformer_forward.1} parent=1 // pred_check
      _
    $region355: #{traj_transformer_forward.1} parent=1 // pred_check_branch
      %780 = sbr.rel (0) target = $region357
    $region356: #{traj_transformer_forward.1} parent=1 // pred_region
      %782 = dma.done [#allocation26], 16
    $region357: #{traj_transformer_forward.1} parent=1 // pred_fallthru
      _
    // Predicated region
    $region358: #{traj_transformer_forward.1} parent=1 // pred_check
      _
    $region359: #{traj_transformer_forward.1} parent=1 // pred_check_branch
      %784 = sbr.rel (0) target = $region361
    $region360: #{traj_transformer_forward.1} parent=1 // pred_region
      %786 = dma.done [#allocation26], 16
    $region361: #{traj_transformer_forward.1} parent=1 // pred_fallthru
      _
    // Predicated region
    $region362: #{traj_transformer_forward.1} parent=1 // pred_check
      _
    $region363: #{traj_transformer_forward.1} parent=1 // pred_check_branch
      %788 = sbr.rel (0) target = $region365
    $region364: #{traj_transformer_forward.1} parent=1 // pred_region
      %790 = dma.done [#allocation29], 16
    $region365: #{traj_transformer_forward.1} parent=1 // pred_fallthru
      _
    // Predicated region
    $region366: #{traj_transformer_forward.1} parent=1 // pred_check
      _
    $region367: #{traj_transformer_forward.1} parent=1 // pred_check_branch
      %792 = sbr.rel (0) target = $region369
    $region368: #{traj_transformer_forward.1} parent=1 // pred_region
      %794 = dma.done [#allocation29], 16
    $region369: #{traj_transformer_forward.1} parent=1 // pred_fallthru
      _
    // Predicated region
    $region370: #{traj_transformer_forward.1} parent=1 // pred_check
      _
    $region371: #{traj_transformer_forward.1} parent=1 // pred_check_branch
      %796 = sbr.rel (0) target = $region373
    $region372: #{traj_transformer_forward.1} parent=1 // pred_region
      %798 = dma.done [#allocation32], 16
    $region373: #{traj_transformer_forward.1} parent=1 // pred_fallthru
      _
    // Predicated region
    $region374: #{traj_transformer_forward.1} parent=1 // pred_check
      _
    $region375: #{traj_transformer_forward.1} parent=1 // pred_check_branch
      %800 = sbr.rel (0) target = $region377
    $region376: #{traj_transformer_forward.1} parent=1 // pred_region
      %802 = dma.done [#allocation32], 16
    $region377: #{traj_transformer_forward.1} parent=1 // pred_fallthru
      _
    // Predicated region
    $region378: #{traj_transformer_forward.1} parent=1 // pred_check
      _
    $region379: #{traj_transformer_forward.1} parent=1 // pred_check_branch
      %804 = sbr.rel (0) target = $region381
    $region380: #{traj_transformer_forward.1} parent=1 // pred_region
      %806 = dma.done [#allocation35], 16
    $region381: #{traj_transformer_forward.1} parent=1 // pred_fallthru
      _
    // Predicated region
    $region382: #{traj_transformer_forward.1} parent=1 // pred_check
      _
    $region383: #{traj_transformer_forward.1} parent=1 // pred_check_branch
      %808 = sbr.rel (0) target = $region385
    $region384: #{traj_transformer_forward.1} parent=1 // pred_region
      %810 = dma.done [#allocation35], 16
    $region385: #{traj_transformer_forward.1} parent=1 // pred_fallthru
      _
    // Predicated region
    $region386: #{traj_transformer_forward.1} parent=1 // pred_check
      _
    $region387: #{traj_transformer_forward.1} parent=1 // pred_check_branch
      %812 = sbr.rel (0) target = $region389
    $region388: #{traj_transformer_forward.1} parent=1 // pred_region
      %814 = dma.done [#allocation38], 16
    $region389: #{traj_transformer_forward.1} parent=1 // pred_fallthru
      _
    // Predicated region
    $region390: #{traj_transformer_forward.1} parent=1 // pred_check
      _
    $region391: #{traj_transformer_forward.1} parent=1 // pred_check_branch
      %816 = sbr.rel (0) target = $region393
    $region392: #{traj_transformer_forward.1} parent=1 // pred_region
      %818 = dma.done [#allocation38], 16
    $region393: #{traj_transformer_forward.1} parent=1 // pred_fallthru
      _
    // Predicated region
    $region394: #{traj_transformer_forward.1} parent=1 // pred_check
      _
    $region395: #{traj_transformer_forward.1} parent=1 // pred_check_branch
      %820 = sbr.rel (0) target = $region397
    $region396: #{traj_transformer_forward.1} parent=1 // pred_region
      %822 = dma.done [#allocation41], 16
    $region397: #{traj_transformer_forward.1} parent=1 // pred_fallthru
      _
    // Predicated region
    $region398: #{traj_transformer_forward.1} parent=1 // pred_check
      _
    $region399: #{traj_transformer_forward.1} parent=1 // pred_check_branch
      %824 = sbr.rel (0) target = $region401
    $region400: #{traj_transformer_forward.1} parent=1 // pred_region
      %826 = dma.done [#allocation41], 16
    $region401: #{traj_transformer_forward.1} parent=1 // pred_fallthru
      _
    // Predicated region
    $region402: #{traj_transformer_forward.1} parent=1 // pred_check
      _
    $region403: #{traj_transformer_forward.1} parent=1 // pred_check_branch
      %828 = sbr.rel (0) target = $region405
    $region404: #{traj_transformer_forward.1} parent=1 // pred_region
      %830 = dma.done [#allocation44], 16
    $region405: #{traj_transformer_forward.1} parent=1 // pred_fallthru
      _
    // Predicated region
    $region406: #{traj_transformer_forward.1} parent=1 // pred_check
      _
    $region407: #{traj_transformer_forward.1} parent=1 // pred_check_branch
      %832 = sbr.rel (0) target = $region409
    $region408: #{traj_transformer_forward.1} parent=1 // pred_region
      %834 = dma.done [#allocation44], 16
    $region409: #{traj_transformer_forward.1} parent=1 // pred_fallthru
      _
    // Predicated region
    $region410: #{traj_transformer_forward.1} parent=1 // pred_check
      _
    $region411: #{traj_transformer_forward.1} parent=1 // pred_check_branch
      %836 = sbr.rel (0) target = $region413
    $region412: #{traj_transformer_forward.1} parent=1 // pred_region
      %838 = dma.done [#allocation47], 16
    $region413: #{traj_transformer_forward.1} parent=1 // pred_fallthru
      _
    // Predicated region
    $region414: #{traj_transformer_forward.1} parent=1 // pred_check
      _
    $region415: #{traj_transformer_forward.1} parent=1 // pred_check_branch
      %840 = sbr.rel (0) target = $region417
    $region416: #{traj_transformer_forward.1} parent=1 // pred_region
      %842 = dma.done [#allocation47], 16
    $region417: #{traj_transformer_forward.1} parent=1 // pred_fallthru
      _
    // Predicated region
    $region418: #{traj_transformer_forward.1} parent=1 // pred_check
      _
    $region419: #{traj_transformer_forward.1} parent=1 // pred_check_branch
      %844 = sbr.rel (0) target = $region421
    $region420: #{traj_transformer_forward.1} parent=1 // pred_region
      %846 = dma.done [#allocation50], 16
    $region421: #{traj_transformer_forward.1} parent=1 // pred_fallthru
      _
    // Predicated region
    $region422: #{traj_transformer_forward.1} parent=1 // pred_check
      _
    $region423: #{traj_transformer_forward.1} parent=1 // pred_check_branch
      %848 = sbr.rel (0) target = $region425
    $region424: #{traj_transformer_forward.1} parent=1 // pred_region
      %850 = dma.done [#allocation50], 16
    $region425: #{traj_transformer_forward.1} parent=1 // pred_fallthru
      _
    // Predicated region
    $region426: #{traj_transformer_forward.1} parent=1 // pred_check
      _
    $region427: #{traj_transformer_forward.1} parent=1 // pred_check_branch
      %852 = sbr.rel (0) target = $region429
    $region428: #{traj_transformer_forward.1} parent=1 // pred_region
      %854 = dma.done [#allocation53], 16
    $region429: #{traj_transformer_forward.1} parent=1 // pred_fallthru
      _
    // Predicated region
    $region430: #{traj_transformer_forward.1} parent=1 // pred_check
      _
    $region431: #{traj_transformer_forward.1} parent=1 // pred_check_branch
      %856 = sbr.rel (0) target = $region433
    $region432: #{traj_transformer_forward.1} parent=1 // pred_region
      %858 = dma.done [#allocation53], 16
    $region433: #{traj_transformer_forward.1} parent=1 // pred_fallthru
      _
    // Predicated region
    $region434: #{traj_transformer_forward.1} parent=1 // pred_check
      _
    $region435: #{traj_transformer_forward.1} parent=1 // pred_check_branch
      %860 = sbr.rel (0) target = $region437
    $region436: #{traj_transformer_forward.1} parent=1 // pred_region
      %862 = dma.done [#allocation56], 16
    $region437: #{traj_transformer_forward.1} parent=1 // pred_fallthru
      _
    // Predicated region
    $region438: #{traj_transformer_forward.1} parent=1 // pred_check
      _
    $region439: #{traj_transformer_forward.1} parent=1 // pred_check_branch
      %864 = sbr.rel (0) target = $region441
    $region440: #{traj_transformer_forward.1} parent=1 // pred_region
      %866 = dma.done [#allocation56], 16
    $region441: #{traj_transformer_forward.1} parent=1 // pred_fallthru
      _
    // Predicated region
    $region442: #{traj_transformer_forward.1} parent=1 // pred_check
      _
    $region443: #{traj_transformer_forward.1} parent=1 // pred_check_branch
      %868 = sbr.rel (0) target = $region445
    $region444: #{traj_transformer_forward.1} parent=1 // pred_region
      %870 = dma.done [#allocation59], 16
    $region445: #{traj_transformer_forward.1} parent=1 // pred_fallthru
      _
    // Predicated region
    $region446: #{traj_transformer_forward.1} parent=1 // pred_check
      _
    $region447: #{traj_transformer_forward.1} parent=1 // pred_check_branch
      %872 = sbr.rel (0) target = $region449
    $region448: #{traj_transformer_forward.1} parent=1 // pred_region
      %874 = dma.done [#allocation59], 16
    $region449: #{traj_transformer_forward.1} parent=1 // pred_fallthru
      _
    // Predicated region
    $region450: #{traj_transformer_forward.1} parent=1 // pred_check
      _
    $region451: #{traj_transformer_forward.1} parent=1 // pred_check_branch
      %876 = sbr.rel (0) target = $region453
    $region452: #{traj_transformer_forward.1} parent=1 // pred_region
      %878 = dma.done [#allocation62], 16
    $region453: #{traj_transformer_forward.1} parent=1 // pred_fallthru
      _
    // Predicated region
    $region454: #{traj_transformer_forward.1} parent=1 // pred_check
      _
    $region455: #{traj_transformer_forward.1} parent=1 // pred_check_branch
      %880 = sbr.rel (0) target = $region457
    $region456: #{traj_transformer_forward.1} parent=1 // pred_region
      %882 = dma.done [#allocation62], 16
    $region457: #{traj_transformer_forward.1} parent=1 // pred_fallthru
      _
    // Predicated region
    $region458: #{traj_transformer_forward.1} parent=1 // pred_check
      _
    $region459: #{traj_transformer_forward.1} parent=1 // pred_check_branch
      %884 = sbr.rel (0) target = $region461
    $region460: #{traj_transformer_forward.1} parent=1 // pred_region
      %886 = dma.done [#allocation65], 16
    $region461: #{traj_transformer_forward.1} parent=1 // pred_fallthru
      _
    // Predicated region
    $region462: #{traj_transformer_forward.1} parent=1 // pred_check
      _
    $region463: #{traj_transformer_forward.1} parent=1 // pred_check_branch
      %888 = sbr.rel (0) target = $region465
    $region464: #{traj_transformer_forward.1} parent=1 // pred_region
      %890 = dma.done [#allocation65], 16
    $region465: #{traj_transformer_forward.1} parent=1 // pred_fallthru
      _
    // Predicated region
    $region466: #{traj_transformer_forward.1} parent=1 // pred_check
      _
    $region467: #{traj_transformer_forward.1} parent=1 // pred_check_branch
      %892 = sbr.rel (0) target = $region469
    $region468: #{traj_transformer_forward.1} parent=1 // pred_region
      %894 = dma.done [#allocation68], 512
    $region469: #{traj_transformer_forward.1} parent=1 // pred_fallthru
      _
    %v895 = vld [vmem:[%s7] sm:$0x1]
    %v896 = vld [vmem:[%s9] sm:$0x1]
    %v897 = vld [vmem:[#allocation2] sm:$0x1]
    %v898 = vld [vmem:[#allocation4] sm:$0x1]
    %v899 = vld [vmem:[#allocation6] sm:$0x1]
    %v900 = vld [vmem:[%s17] sm:$0xff]
    %v901 = vld [vmem:[%s17 + $0x8] sm:$0xff]
    %v902 = vld [vmem:[%s17 + $0x10] sm:$0xff]
    %v903 = vld [vmem:[%s17 + $0x18] sm:$0xff]
    %v904 = vld [vmem:[%s19] sm:$0xff]
    %v905 = vld [vmem:[%s19 + $0x8] sm:$0xff]
    %v906 = vld [vmem:[%s19 + $0x10] sm:$0xff]
    %v907 = vld [vmem:[%s19 + $0x18] sm:$0xff]
    %v908 = vld [vmem:[%s21] sm:$0xff]
    %v909 = vld [vmem:[%s21 + $0x8] sm:$0xff]
    %v910 = vld [vmem:[%s21 + $0x10] sm:$0xff]
    %v911 = vld [vmem:[%s21 + $0x18] sm:$0xff]
    %v912 = vld [vmem:[#allocation7] sm:$0x1]
    %v913 = vld [vmem:[#allocation9] sm:$0x1]
    %v914 = vld [vmem:[#allocation10] sm:$0x1]
    %v915 = vld [vmem:[#allocation12] sm:$0x1]
    %v916 = vld [vmem:[#allocation13] sm:$0x1]
    %v917 = vld [vmem:[#allocation15] sm:$0x1]
    %v918 = vld [vmem:[#allocation16] sm:$0x1]
    %v919 = vld [vmem:[#allocation18] sm:$0x1]
    %v920 = vld [vmem:[%s39] sm:$0xff]
    %v921 = vld [vmem:[%s39 + $0x8] sm:$0xff]
    %v922 = vld [vmem:[%s39 + $0x10] sm:$0xff]
    %v923 = vld [vmem:[%s39 + $0x18] sm:$0xff]
    %v924 = vld [vmem:[%s41] sm:$0xff]
    %v925 = vld [vmem:[%s41 + $0x8] sm:$0xff]
    %v926 = vld [vmem:[%s41 + $0x10] sm:$0xff]
    %v927 = vld [vmem:[%s41 + $0x18] sm:$0xff]
    %v928 = vld [vmem:[%s43] sm:$0xff]
    %v929 = vld [vmem:[%s43 + $0x8] sm:$0xff]
    %v930 = vld [vmem:[%s43 + $0x10] sm:$0xff]
    %v931 = vld [vmem:[%s43 + $0x18] sm:$0xff]
    %v932 = vld [vmem:[%s45] sm:$0xff]
    %v933 = vld [vmem:[%s45 + $0x8] sm:$0xff]
    %v934 = vld [vmem:[%s45 + $0x10] sm:$0xff]
    %v935 = vld [vmem:[%s45 + $0x18] sm:$0xff]
    %v936 = vld [vmem:[%s45 + $0x20] sm:$0xff]
    %v937 = vld [vmem:[%s45 + $0x28] sm:$0xff]
    %v938 = vld [vmem:[%s45 + $0x30] sm:$0xff]
    %v939 = vld [vmem:[%s45 + $0x38] sm:$0xff]
    %v940 = vld [vmem:[#allocation19] sm:$0x1]
    %v941 = vld [vmem:[#allocation21] sm:$0x1]
    %v942 = vld [vmem:[#allocation22] sm:$0x1]
    %v943 = vld [vmem:[#allocation24] sm:$0x1]
    %v944 = vld [vmem:[#allocation25] sm:$0x1]
    %v945 = vld [vmem:[%s57] sm:$0xff]
    %v946 = vld [vmem:[%s57 + $0x8] sm:$0xff]
    %v947 = vld [vmem:[%s57 + $0x10] sm:$0xff]
    %v948 = vld [vmem:[%s57 + $0x18] sm:$0xff]
    %v949 = vld [vmem:[%s59] sm:$0xff]
    %v950 = vld [vmem:[%s59 + $0x8] sm:$0xff]
    %v951 = vld [vmem:[%s59 + $0x10] sm:$0xff]
    %v952 = vld [vmem:[%s59 + $0x18] sm:$0xff]
    %v953 = vld [vmem:[%s61] sm:$0xff]
    %v954 = vld [vmem:[%s61 + $0x8] sm:$0xff]
    %v955 = vld [vmem:[%s61 + $0x10] sm:$0xff]
    %v956 = vld [vmem:[%s61 + $0x18] sm:$0xff]
    %v957 = vld [vmem:[#allocation27] sm:$0x1]
    %v958 = vld [vmem:[#allocation28] sm:$0x1]
    %v959 = vld [vmem:[%s67] sm:$0x1]
    %v960 = vld [vmem:[%s69] sm:$0x1]
    %v961 = vld [vmem:[#allocation30] sm:$0x1]
    %v962 = vld [vmem:[#allocation31] sm:$0x1]
    %v963 = vld [vmem:[#allocation33] sm:$0x1]
    %v964 = vld [vmem:[#allocation34] sm:$0x1]
    %v965 = vld [vmem:[%s79] sm:$0xff]
    %v966 = vld [vmem:[%s79 + $0x8] sm:$0xff]
    %v967 = vld [vmem:[%s79 + $0x10] sm:$0xff]
    %v968 = vld [vmem:[%s79 + $0x18] sm:$0xff]
    %v969 = vld [vmem:[%s81] sm:$0xff]
    %v970 = vld [vmem:[%s81 + $0x8] sm:$0xff]
    %v971 = vld [vmem:[%s81 + $0x10] sm:$0xff]
    %v972 = vld [vmem:[%s81 + $0x18] sm:$0xff]
    %v973 = vld [vmem:[%s83] sm:$0xff]
    %v974 = vld [vmem:[%s83 + $0x8] sm:$0xff]
    %v975 = vld [vmem:[%s83 + $0x10] sm:$0xff]
    %v976 = vld [vmem:[%s83 + $0x18] sm:$0xff]
    %v977 = vld [vmem:[%s85] sm:$0xff]
    %v978 = vld [vmem:[%s85 + $0x8] sm:$0xff]
    %v979 = vld [vmem:[%s85 + $0x10] sm:$0xff]
    %v980 = vld [vmem:[%s85 + $0x18] sm:$0xff]
    %v981 = vld [vmem:[%s85 + $0x20] sm:$0xff]
    %v982 = vld [vmem:[%s85 + $0x28] sm:$0xff]
    %v983 = vld [vmem:[%s85 + $0x30] sm:$0xff]
    %v984 = vld [vmem:[%s85 + $0x38] sm:$0xff]
    %v985 = vld [vmem:[#allocation36] sm:$0x1]
    %v986 = vld [vmem:[#allocation37] sm:$0x1]
    %v987 = vld [vmem:[#allocation39] sm:$0x1]
    %v988 = vld [vmem:[#allocation40] sm:$0x1]
    %v989 = vld [vmem:[#allocation42] sm:$0x1]
    %v990 = vld [vmem:[#allocation43] sm:$0x1]
    %v991 = vld [vmem:[#allocation45] sm:$0x1]
    %v992 = vld [vmem:[#allocation46] sm:$0x1]
    %v993 = vld [vmem:[#allocation48] sm:$0x1]
    %v994 = vld [vmem:[#allocation49] sm:$0x1]
    %v995 = vld [vmem:[%s107] sm:$0xff]
    %v996 = vld [vmem:[%s107 + $0x8] sm:$0xff]
    %v997 = vld [vmem:[%s107 + $0x10] sm:$0xff]
    %v998 = vld [vmem:[%s107 + $0x18] sm:$0xff]
    %v999 = vld [vmem:[%s109] sm:$0xff]
    %v1000 = vld [vmem:[%s109 + $0x8] sm:$0xff]
    %v1001 = vld [vmem:[%s109 + $0x10] sm:$0xff]
    %v1002 = vld [vmem:[%s109 + $0x18] sm:$0xff]
    %v1003 = vld [vmem:[%s111] sm:$0xff]
    %v1004 = vld [vmem:[%s111 + $0x8] sm:$0xff]
    %v1005 = vld [vmem:[%s111 + $0x10] sm:$0xff]
    %v1006 = vld [vmem:[%s111 + $0x18] sm:$0xff]
    %v1007 = vld [vmem:[%s113] sm:$0xff]
    %v1008 = vld [vmem:[%s113 + $0x8] sm:$0xff]
    %v1009 = vld [vmem:[%s113 + $0x10] sm:$0xff]
    %v1010 = vld [vmem:[%s113 + $0x18] sm:$0xff]
    %v1011 = vld [vmem:[%s113 + $0x20] sm:$0xff]
    %v1012 = vld [vmem:[%s113 + $0x28] sm:$0xff]
    %v1013 = vld [vmem:[%s113 + $0x30] sm:$0xff]
    %v1014 = vld [vmem:[%s113 + $0x38] sm:$0xff]
    %v1015 = vld [vmem:[#allocation51] sm:$0x1]
    %v1016 = vld [vmem:[#allocation52] sm:$0x1]
    %v1017 = vld [vmem:[#allocation54] sm:$0x1]
    %v1018 = vld [vmem:[#allocation55] sm:$0x1]
    %v1019 = vld [vmem:[#allocation57] sm:$0x1]
    %v1020 = vld [vmem:[#allocation58] sm:$0x1]
    %v1021 = vld [vmem:[#allocation60] sm:$0x1]
    %v1022 = vld [vmem:[#allocation61] sm:$0x1]
    %v1023 = vld [vmem:[%s131] sm:$0xff]
    %v1024 = vld [vmem:[%s131 + $0x8] sm:$0xff]
    %v1025 = vld [vmem:[%s131 + $0x10] sm:$0xff]
    %v1026 = vld [vmem:[%s131 + $0x18] sm:$0xff]
    %v1027 = vld [vmem:[%s133] sm:$0xff]
    %v1028 = vld [vmem:[%s133 + $0x8] sm:$0xff]
    %v1029 = vld [vmem:[%s133 + $0x10] sm:$0xff]
    %v1030 = vld [vmem:[%s133 + $0x18] sm:$0xff]
    %v1031 = vld [vmem:[%s135] sm:$0xff]
    %v1032 = vld [vmem:[%s135 + $0x8] sm:$0xff]
    %v1033 = vld [vmem:[%s135 + $0x10] sm:$0xff]
    %v1034 = vld [vmem:[%s135 + $0x18] sm:$0xff]
    %v1035 = vld [vmem:[%s137] sm:$0xff]
    %v1036 = vld [vmem:[%s137 + $0x8] sm:$0xff]
    %v1037 = vld [vmem:[%s137 + $0x10] sm:$0xff]
    %v1038 = vld [vmem:[%s137 + $0x18] sm:$0xff]
    %v1039 = vld [vmem:[%s137 + $0x20] sm:$0xff]
    %v1040 = vld [vmem:[%s137 + $0x28] sm:$0xff]
    %v1041 = vld [vmem:[%s137 + $0x30] sm:$0xff]
    %v1042 = vld [vmem:[%s137 + $0x38] sm:$0xff]
    %v1043 = vld [vmem:[#allocation63] sm:$0x1]
    %v1044 = vld [vmem:[#allocation64] sm:$0x1]
    %v1045 = vld [vmem:[#allocation66] sm:$0x1]
    %v1046 = vld [vmem:[#allocation67] sm:$0xff]
    %v1047 = vld [vmem:[#allocation67 + $0x8] sm:$0xff]
    %v1048 = vld [vmem:[#allocation67 + $0x10] sm:$0xff]
    %v1049 = vld [vmem:[#allocation67 + $0x18] sm:$0xff]
    %v1050 = vld [vmem:[%s1] sm:$0xff]
    %v1051 = vld [vmem:[%s5] sm:$0x1]
    %v1052 = vperm.slane %v1051, 0
    %v1053 = vadd.f32 %v1050, %v1052
    %v1054 = vld [vmem:[%s5 + $0x1] sm:$0x1]
    %v1055 = vperm.slane %v1054, 0
    %1057 = vrot.lane.b32.xlu0 %v1055, 32
    %v1058 = vpop.permute.xlu0 %1057
    %v1060 = vadd.f32 %v1050, %v1058
    %1062 = vrot.lane.b32.xlu0 %v1060, 96
    %v1063 = vpop.permute.xlu0 %1062
    %v1066 = vperm.slane %v993, 0
    %vm1068 = vcmask 261120
    %v1070 = vsel %vm1068, %v1053, 0
    %v1072 = vsel %vm1068, %v1063, 0
    %1074 = vmatpush.msra.mxu0 0.0
    %1075 = vmatpush.msra.mxu0 0.0
    %1076 = vmatpush.msra.mxu0 0.0
    %1077 = vmatpush.msra.mxu0 0.0
    %1078 = vmatpush.msra.mxu0 0.0
    %1079 = vmatpush.msra.mxu0 0.0
    %1080 = vmatpush.msra.mxu0 0.0
    %1081 = vmatpush.msra.mxu0 0.0
    %1082 = vmatpush.msra.mxu0 0.0
    %1083 = vmatpush.msra.mxu0 0.0
    %1084 = vmatpush.msra.mxu0 0.0
    %1085 = vmatpush.msra.mxu0 0.0
    %1086 = vmatpush.msra.mxu0 %v998
    %1087 = vmatpush.msra.mxu0 %v997
    %1088 = vmatpush.msra.mxu0 %v996
    %1089 = vmatpush.msra.mxu0 %v995
    %1090 = vmatmul.f32.gmra.mxu0 %v1070
    %v1091 = vpop.f32.mrf.mxu0
    %v1092 = vadd.f32 %v1066, %v1091
    %1093 = vmatmul.f32.gmra.mxu0 %v1072
    %v1094 = vpop.f32.mrf.mxu0
    %v1095 = vadd.f32 %v1066, %v1094
    %1096 = vdwg.mxu0
    %v1097 = vmul.f32 %v1092, 0.35355338
    %v1098 = vmul.f32 %v1095, 0.35355338
    %1100 = vrot.lane.b32.xlu0 %v1092, 96
    %v1101 = vpop.permute.xlu0 %1100
    %vm1102 = vcmask 64512
    %v1104 = vsel %vm1102, %v1097, 0
    %v1106 = vsel %vm1102, %v1101, 0
    %1108 = vmatpush.xpose.msra.mxu0 0.0
    %1109 = vmatpush.xpose.msra.mxu0 0.0
    %1110 = vmatpush.xpose.msra.mxu0 0.0
    %1111 = vmatpush.xpose.msra.mxu0 0.0
    %1112 = vmatpush.xpose.msra.mxu0 0.0
    %1113 = vmatpush.xpose.msra.mxu0 0.0
    %1114 = vmatpush.xpose.msra.mxu0 0.0
    %1115 = vmatpush.xpose.msra.mxu0 0.0
    %1116 = vmatpush.xpose.msra.mxu0 0.0
    %1117 = vmatpush.xpose.msra.mxu0 0.0
    %1118 = vmatpush.xpose.msra.mxu0 0.0
    %1119 = vmatpush.xpose.msra.mxu0 0.0
    %1120 = vmatpush.xpose.msra.mxu0 0.0
    %1121 = vmatpush.xpose.msra.mxu0 0.0
    %1122 = vmatpush.xpose.msra.mxu0 0.0
    %1123 = vmatpush.xpose.msra.mxu0 %v1106
    %1124 = vmatmul.f32.gmra.mxu0 %v1104
    %v1125 = vpop.f32.mrf.mxu0
    %v1126 = vadd.f32 0.0, %v1125
    %1127 = vdwg.mxu0
    %1129 = vrot.lane.b32.xlu0 %v1095, 96
    %v1130 = vpop.permute.xlu0 %1129
    %v1132 = vsel %vm1102, %v1098, 0
    %v1134 = vsel %vm1102, %v1130, 0
    %1136 = vmatpush.xpose.msra.mxu0 0.0
    %1137 = vmatpush.xpose.msra.mxu0 0.0
    %1138 = vmatpush.xpose.msra.mxu0 0.0
    %1139 = vmatpush.xpose.msra.mxu0 0.0
    %1140 = vmatpush.xpose.msra.mxu0 0.0
    %1141 = vmatpush.xpose.msra.mxu0 0.0
    %1142 = vmatpush.xpose.msra.mxu0 0.0
    %1143 = vmatpush.xpose.msra.mxu0 0.0
    %1144 = vmatpush.xpose.msra.mxu0 0.0
    %1145 = vmatpush.xpose.msra.mxu0 0.0
    %1146 = vmatpush.xpose.msra.mxu0 0.0
    %1147 = vmatpush.xpose.msra.mxu0 0.0
    %1148 = vmatpush.xpose.msra.mxu0 0.0
    %1149 = vmatpush.xpose.msra.mxu0 0.0
    %1150 = vmatpush.xpose.msra.mxu0 0.0
    %1151 = vmatpush.xpose.msra.mxu0 %v1134
    %1152 = vmatmul.f32.gmra.mxu0 %v1132
    %v1153 = vpop.f32.mrf.mxu0
    %v1154 = vadd.f32 0.0, %v1153
    %1155 = vdwg.mxu0
    %v1156 = vsel %vm1102, %v1126, -inf
    %1157 = vmax.xlane.f32.xlu0 %v1156
    %v1158 = vpop.xlane.xlu0 %1157
    %v1159 = vsel %vm1102, %v1154, -inf
    %1160 = vmax.xlane.f32.xlu0 %v1159
    %v1161 = vpop.xlane.xlu0 %1160
    %v1162 = vsub.f32 %v1126, %v1158
    %v1163 = vsub.f32 %v1154, %v1161
    %v1164 = vmul.f32 %v1162, 1.442695
    %v1165 = vpow.pop %v1164
    %v1166 = vmul.f32 %v1163, 1.442695
    %v1167 = vpow.pop %v1166
    %v1168 = vsel %vm1102, %v1165, 0.0
    %1169 = vadd.xlane.f32.xlu0 %v1168
    %v1170 = vpop.xlane.xlu0 %1169
    %v1171 = vsel %vm1102, %v1167, 0.0
    %1172 = vadd.xlane.f32.xlu0 %v1171
    %v1173 = vpop.xlane.xlu0 %1172
    %v1174 = vrcp.pop %v1170
    %v1175 = vmul.f32 %v1170, %v1174
    %v1176 = vsub.f32 1.0, %v1175
    %v1177 = vmul.f32 %v1174, %v1176
    %v1178 = vadd.f32 %v1174, %v1177
    %vm1179 = vweird.f32 %v1170
    %vm1180 = vweird.f32 %v1174
    %vm1181 = vmor %vm1179, %vm1180
    %v1182 = vsel %vm1181, %v1174, %v1178
    %v1183 = vand.u32 2147483647, %v1170
    %vm1184 = vcmp.eq.f32.partialorder %v1183, 8.507059e+37
    %v1185 = vand.u32 %v1170, 2147483648
    %v1186 = vor.u32 1.1754944e-38, %v1185
    %v1187 = vsel %vm1184, %v1186, %v1182
    %v1188 = vrcp.pop %v1173
    %v1189 = vmul.f32 %v1173, %v1188
    %v1190 = vsub.f32 1.0, %v1189
    %v1191 = vmul.f32 %v1188, %v1190
    %v1192 = vadd.f32 %v1188, %v1191
    %vm1193 = vweird.f32 %v1173
    %vm1194 = vweird.f32 %v1188
    %vm1195 = vmor %vm1193, %vm1194
    %v1196 = vsel %vm1195, %v1188, %v1192
    %v1197 = vand.u32 2147483647, %v1173
    %vm1198 = vcmp.eq.f32.partialorder %v1197, 8.507059e+37
    %v1199 = vand.u32 %v1173, 2147483648
    %v1200 = vor.u32 1.1754944e-38, %v1199
    %v1201 = vsel %vm1198, %v1200, %v1196
    %v1202 = vmul.f32 %v1165, %v1187
    %v1203 = vmul.f32 %v1167, %v1201
    %1204 = vrot.lane.b32.xlu0 %v1092, 64
    %v1205 = vpop.permute.xlu0 %1204
    %v1208 = vsel %vm1102, %v1202, 0
    %1210 = vmatpush.msra.mxu0 0.0
    %1211 = vmatpush.msra.mxu0 0.0
    %1212 = vmatpush.msra.mxu0 0.0
    %1213 = vmatpush.msra.mxu0 0.0
    %1214 = vmatpush.msra.mxu0 0.0
    %1215 = vmatpush.msra.mxu0 0.0
    %1216 = vmatpush.msra.mxu0 0.0
    %1217 = vmatpush.msra.mxu0 0.0
    %1218 = vmatpush.msra.mxu0 0.0
    %1219 = vmatpush.msra.mxu0 0.0
    %1220 = vmatpush.msra.mxu0 0.0
    %1221 = vmatpush.msra.mxu0 0.0
    %1222 = vmatpush.msra.mxu0 0.0
    %1223 = vmatpush.msra.mxu0 0.0
    %1224 = vmatpush.msra.mxu0 0.0
    %1225 = vmatpush.msra.mxu0 %v1205
    %1226 = vmatmul.f32.gmra.mxu0 %v1208
    %v1227 = vpop.f32.mrf.mxu0
    %v1228 = vadd.f32 0.0, %v1227
    %1229 = vdwg.mxu0
    %1230 = vrot.lane.b32.xlu0 %v1095, 64
    %v1231 = vpop.permute.xlu0 %1230
    %v1234 = vsel %vm1102, %v1203, 0
    %1236 = vmatpush.msra.mxu0 0.0
    %1237 = vmatpush.msra.mxu0 0.0
    %1238 = vmatpush.msra.mxu0 0.0
    %1239 = vmatpush.msra.mxu0 0.0
    %1240 = vmatpush.msra.mxu0 0.0
    %1241 = vmatpush.msra.mxu0 0.0
    %1242 = vmatpush.msra.mxu0 0.0
    %1243 = vmatpush.msra.mxu0 0.0
    %1244 = vmatpush.msra.mxu0 0.0
    %1245 = vmatpush.msra.mxu0 0.0
    %1246 = vmatpush.msra.mxu0 0.0
    %1247 = vmatpush.msra.mxu0 0.0
    %1248 = vmatpush.msra.mxu0 0.0
    %1249 = vmatpush.msra.mxu0 0.0
    %1250 = vmatpush.msra.mxu0 0.0
    %1251 = vmatpush.msra.mxu0 %v1231
    %1252 = vmatmul.f32.gmra.mxu0 %v1234
    %v1253 = vpop.f32.mrf.mxu0
    %v1254 = vadd.f32 0.0, %v1253
    %1255 = vdwg.mxu0
    %1256 = vrot.lane.b32.xlu0 %v1097, 120
    %v1257 = vpop.permute.xlu0 %1256
    %1258 = vrot.lane.b32.xlu0 %v1092, 88
    %v1259 = vpop.permute.xlu0 %1258
    %v1260 = vsel %vm1102, %v1257, 0
    %v1262 = vsel %vm1102, %v1259, 0
    %1264 = vmatpush.xpose.msra.mxu0 0.0
    %1265 = vmatpush.xpose.msra.mxu0 0.0
    %1266 = vmatpush.xpose.msra.mxu0 0.0
    %1267 = vmatpush.xpose.msra.mxu0 0.0
    %1268 = vmatpush.xpose.msra.mxu0 0.0
    %1269 = vmatpush.xpose.msra.mxu0 0.0
    %1270 = vmatpush.xpose.msra.mxu0 0.0
    %1271 = vmatpush.xpose.msra.mxu0 0.0
    %1272 = vmatpush.xpose.msra.mxu0 0.0
    %1273 = vmatpush.xpose.msra.mxu0 0.0
    %1274 = vmatpush.xpose.msra.mxu0 0.0
    %1275 = vmatpush.xpose.msra.mxu0 0.0
    %1276 = vmatpush.xpose.msra.mxu0 0.0
    %1277 = vmatpush.xpose.msra.mxu0 0.0
    %1278 = vmatpush.xpose.msra.mxu0 0.0
    %1279 = vmatpush.xpose.msra.mxu0 %v1262
    %1280 = vmatmul.f32.gmra.mxu0 %v1260
    %v1281 = vpop.f32.mrf.mxu0
    %v1282 = vadd.f32 0.0, %v1281
    %1283 = vdwg.mxu0
    %1284 = vrot.lane.b32.xlu0 %v1098, 120
    %v1285 = vpop.permute.xlu0 %1284
    %1286 = vrot.lane.b32.xlu0 %v1095, 88
    %v1287 = vpop.permute.xlu0 %1286
    %v1288 = vsel %vm1102, %v1285, 0
    %v1290 = vsel %vm1102, %v1287, 0
    %1292 = vmatpush.xpose.msra.mxu0 0.0
    %1293 = vmatpush.xpose.msra.mxu0 0.0
    %1294 = vmatpush.xpose.msra.mxu0 0.0
    %1295 = vmatpush.xpose.msra.mxu0 0.0
    %1296 = vmatpush.xpose.msra.mxu0 0.0
    %1297 = vmatpush.xpose.msra.mxu0 0.0
    %1298 = vmatpush.xpose.msra.mxu0 0.0
    %1299 = vmatpush.xpose.msra.mxu0 0.0
    %1300 = vmatpush.xpose.msra.mxu0 0.0
    %1301 = vmatpush.xpose.msra.mxu0 0.0
    %1302 = vmatpush.xpose.msra.mxu0 0.0
    %1303 = vmatpush.xpose.msra.mxu0 0.0
    %1304 = vmatpush.xpose.msra.mxu0 0.0
    %1305 = vmatpush.xpose.msra.mxu0 0.0
    %1306 = vmatpush.xpose.msra.mxu0 0.0
    %1307 = vmatpush.xpose.msra.mxu0 %v1290
    %1308 = vmatmul.f32.gmra.mxu0 %v1288
    %v1309 = vpop.f32.mrf.mxu0
    %v1310 = vadd.f32 0.0, %v1309
    %1311 = vdwg.mxu0
    %v1312 = vsel %vm1102, %v1282, -inf
    %1313 = vmax.xlane.f32.xlu0 %v1312
    %v1314 = vpop.xlane.xlu0 %1313
    %v1315 = vsel %vm1102, %v1310, -inf
    %1316 = vmax.xlane.f32.xlu0 %v1315
    %v1317 = vpop.xlane.xlu0 %1316
    %v1318 = vsub.f32 %v1282, %v1314
    %v1319 = vsub.f32 %v1310, %v1317
    %v1320 = vmul.f32 %v1318, 1.442695
    %v1321 = vpow.pop %v1320
    %v1322 = vmul.f32 %v1319, 1.442695
    %v1323 = vpow.pop %v1322
    %v1324 = vsel %vm1102, %v1321, 0.0
    %1325 = vadd.xlane.f32.xlu0 %v1324
    %v1326 = vpop.xlane.xlu0 %1325
    %v1327 = vsel %vm1102, %v1323, 0.0
    %1328 = vadd.xlane.f32.xlu0 %v1327
    %v1329 = vpop.xlane.xlu0 %1328
    %v1330 = vrcp.pop %v1326
    %v1331 = vmul.f32 %v1326, %v1330
    %v1332 = vsub.f32 1.0, %v1331
    %v1333 = vmul.f32 %v1330, %v1332
    %v1334 = vadd.f32 %v1330, %v1333
    %vm1335 = vweird.f32 %v1326
    %vm1336 = vweird.f32 %v1330
    %vm1337 = vmor %vm1335, %vm1336
    %v1338 = vsel %vm1337, %v1330, %v1334
    %v1339 = vand.u32 2147483647, %v1326
    %vm1340 = vcmp.eq.f32.partialorder %v1339, 8.507059e+37
    %v1341 = vand.u32 %v1326, 2147483648
    %v1342 = vor.u32 1.1754944e-38, %v1341
    %v1343 = vsel %vm1340, %v1342, %v1338
    %v1344 = vrcp.pop %v1329
    %v1345 = vmul.f32 %v1329, %v1344
    %v1346 = vsub.f32 1.0, %v1345
    %v1347 = vmul.f32 %v1344, %v1346
    %v1348 = vadd.f32 %v1344, %v1347
    %vm1349 = vweird.f32 %v1329
    %vm1350 = vweird.f32 %v1344
    %vm1351 = vmor %vm1349, %vm1350
    %v1352 = vsel %vm1351, %v1344, %v1348
    %v1353 = vand.u32 2147483647, %v1329
    %vm1354 = vcmp.eq.f32.partialorder %v1353, 8.507059e+37
    %v1355 = vand.u32 %v1329, 2147483648
    %v1356 = vor.u32 1.1754944e-38, %v1355
    %v1357 = vsel %vm1354, %v1356, %v1352
    %v1358 = vmul.f32 %v1321, %v1343
    %v1359 = vmul.f32 %v1323, %v1357
    %1360 = vrot.lane.b32.xlu0 %v1092, 56
    %v1361 = vpop.permute.xlu0 %1360
    %v1364 = vsel %vm1102, %v1358, 0
    %1366 = vmatpush.msra.mxu0 0.0
    %1367 = vmatpush.msra.mxu0 0.0
    %1368 = vmatpush.msra.mxu0 0.0
    %1369 = vmatpush.msra.mxu0 0.0
    %1370 = vmatpush.msra.mxu0 0.0
    %1371 = vmatpush.msra.mxu0 0.0
    %1372 = vmatpush.msra.mxu0 0.0
    %1373 = vmatpush.msra.mxu0 0.0
    %1374 = vmatpush.msra.mxu0 0.0
    %1375 = vmatpush.msra.mxu0 0.0
    %1376 = vmatpush.msra.mxu0 0.0
    %1377 = vmatpush.msra.mxu0 0.0
    %1378 = vmatpush.msra.mxu0 0.0
    %1379 = vmatpush.msra.mxu0 0.0
    %1380 = vmatpush.msra.mxu0 0.0
    %1381 = vmatpush.msra.mxu0 %v1361
    %1382 = vmatmul.f32.gmra.mxu0 %v1364
    %v1383 = vpop.f32.mrf.mxu0
    %v1384 = vadd.f32 0.0, %v1383
    %1385 = vdwg.mxu0
    %1386 = vrot.lane.b32.xlu0 %v1095, 56
    %v1387 = vpop.permute.xlu0 %1386
    %v1390 = vsel %vm1102, %v1359, 0
    %1392 = vmatpush.msra.mxu0 0.0
    %1393 = vmatpush.msra.mxu0 0.0
    %1394 = vmatpush.msra.mxu0 0.0
    %1395 = vmatpush.msra.mxu0 0.0
    %1396 = vmatpush.msra.mxu0 0.0
    %1397 = vmatpush.msra.mxu0 0.0
    %1398 = vmatpush.msra.mxu0 0.0
    %1399 = vmatpush.msra.mxu0 0.0
    %1400 = vmatpush.msra.mxu0 0.0
    %1401 = vmatpush.msra.mxu0 0.0
    %1402 = vmatpush.msra.mxu0 0.0
    %1403 = vmatpush.msra.mxu0 0.0
    %1404 = vmatpush.msra.mxu0 0.0
    %1405 = vmatpush.msra.mxu0 0.0
    %1406 = vmatpush.msra.mxu0 0.0
    %1407 = vmatpush.msra.mxu0 %v1387
    %1408 = vmatmul.f32.gmra.mxu0 %v1390
    %v1409 = vpop.f32.mrf.mxu0
    %v1410 = vadd.f32 0.0, %v1409
    %1411 = vdwg.mxu0
    %v1413 = vsel %vm1102, %v1384, 0
    %v1416 = vsel %vm1102, %v1410, 0
    %1418 = vmatpush.msra.mxu0 0.0
    %1419 = vmatpush.msra.mxu0 0.0
    %1420 = vmatpush.msra.mxu0 0.0
    %1421 = vmatpush.msra.mxu0 0.0
    %1422 = vmatpush.msra.mxu0 0.0
    %1423 = vmatpush.msra.mxu0 0.0
    %1424 = vmatpush.msra.mxu0 0.0
    %1425 = vmatpush.msra.mxu0 0.0
    %1426 = vmatpush.msra.mxu0 0.0
    %1427 = vmatpush.msra.mxu0 0.0
    %1428 = vmatpush.msra.mxu0 0.0
    %1429 = vmatpush.msra.mxu0 0.0
    %1430 = vmatpush.msra.mxu0 0.0
    %1431 = vmatpush.msra.mxu0 0.0
    %1432 = vmatpush.msra.mxu0 0.0
    %1433 = vmatpush.msra.mxu0 %v1000
    %1434 = vmatmul.f32.gmra.mxu0 %v1413
    %v1435 = vpop.f32.mrf.mxu0
    %v1436 = vadd.f32 0.0, %v1435
    %1437 = vmatmul.f32.gmra.mxu0 %v1416
    %v1438 = vpop.f32.mrf.mxu0
    %v1439 = vadd.f32 0.0, %v1438
    %1440 = vdwg.mxu0
    %v1442 = vsel %vm1102, %v1228, 0
    %v1445 = vsel %vm1102, %v1254, 0
    %1447 = vmatpush.msra.mxu0 0.0
    %1448 = vmatpush.msra.mxu0 0.0
    %1449 = vmatpush.msra.mxu0 0.0
    %1450 = vmatpush.msra.mxu0 0.0
    %1451 = vmatpush.msra.mxu0 0.0
    %1452 = vmatpush.msra.mxu0 0.0
    %1453 = vmatpush.msra.mxu0 0.0
    %1454 = vmatpush.msra.mxu0 0.0
    %1455 = vmatpush.msra.mxu0 0.0
    %1456 = vmatpush.msra.mxu0 0.0
    %1457 = vmatpush.msra.mxu0 0.0
    %1458 = vmatpush.msra.mxu0 0.0
    %1459 = vmatpush.msra.mxu0 0.0
    %1460 = vmatpush.msra.mxu0 0.0
    %1461 = vmatpush.msra.mxu0 0.0
    %1462 = vmatpush.msra.mxu0 %v999
    %1463 = vmatmul.f32.gmra.mxu0 %v1442
    %v1464 = vpop.f32.mrf.mxu0
    %v1465 = vadd.f32 %v1436, %v1464
    %1466 = vmatmul.f32.gmra.mxu0 %v1445
    %v1467 = vpop.f32.mrf.mxu0
    %v1468 = vadd.f32 %v1439, %v1467
    %1469 = vdwg.mxu0
    %1470 = vrot.lane.b32.xlu0 %v1097, 112
    %v1471 = vpop.permute.xlu0 %1470
    %1472 = vrot.lane.b32.xlu0 %v1092, 80
    %v1473 = vpop.permute.xlu0 %1472
    %v1474 = vsel %vm1102, %v1471, 0
    %v1476 = vsel %vm1102, %v1473, 0
    %1478 = vmatpush.xpose.msra.mxu0 0.0
    %1479 = vmatpush.xpose.msra.mxu0 0.0
    %1480 = vmatpush.xpose.msra.mxu0 0.0
    %1481 = vmatpush.xpose.msra.mxu0 0.0
    %1482 = vmatpush.xpose.msra.mxu0 0.0
    %1483 = vmatpush.xpose.msra.mxu0 0.0
    %1484 = vmatpush.xpose.msra.mxu0 0.0
    %1485 = vmatpush.xpose.msra.mxu0 0.0
    %1486 = vmatpush.xpose.msra.mxu0 0.0
    %1487 = vmatpush.xpose.msra.mxu0 0.0
    %1488 = vmatpush.xpose.msra.mxu0 0.0
    %1489 = vmatpush.xpose.msra.mxu0 0.0
    %1490 = vmatpush.xpose.msra.mxu0 0.0
    %1491 = vmatpush.xpose.msra.mxu0 0.0
    %1492 = vmatpush.xpose.msra.mxu0 0.0
    %1493 = vmatpush.xpose.msra.mxu0 %v1476
    %1494 = vmatmul.f32.gmra.mxu0 %v1474
    %v1495 = vpop.f32.mrf.mxu0
    %v1496 = vadd.f32 0.0, %v1495
    %1497 = vdwg.mxu0
    %1498 = vrot.lane.b32.xlu0 %v1098, 112
    %v1499 = vpop.permute.xlu0 %1498
    %1500 = vrot.lane.b32.xlu0 %v1095, 80
    %v1501 = vpop.permute.xlu0 %1500
    %v1502 = vsel %vm1102, %v1499, 0
    %v1504 = vsel %vm1102, %v1501, 0
    %1506 = vmatpush.xpose.msra.mxu0 0.0
    %1507 = vmatpush.xpose.msra.mxu0 0.0
    %1508 = vmatpush.xpose.msra.mxu0 0.0
    %1509 = vmatpush.xpose.msra.mxu0 0.0
    %1510 = vmatpush.xpose.msra.mxu0 0.0
    %1511 = vmatpush.xpose.msra.mxu0 0.0
    %1512 = vmatpush.xpose.msra.mxu0 0.0
    %1513 = vmatpush.xpose.msra.mxu0 0.0
    %1514 = vmatpush.xpose.msra.mxu0 0.0
    %1515 = vmatpush.xpose.msra.mxu0 0.0
    %1516 = vmatpush.xpose.msra.mxu0 0.0
    %1517 = vmatpush.xpose.msra.mxu0 0.0
    %1518 = vmatpush.xpose.msra.mxu0 0.0
    %1519 = vmatpush.xpose.msra.mxu0 0.0
    %1520 = vmatpush.xpose.msra.mxu0 0.0
    %1521 = vmatpush.xpose.msra.mxu0 %v1504
    %1522 = vmatmul.f32.gmra.mxu0 %v1502
    %v1523 = vpop.f32.mrf.mxu0
    %v1524 = vadd.f32 0.0, %v1523
    %1525 = vdwg.mxu0
    %v1526 = vsel %vm1102, %v1496, -inf
    %1527 = vmax.xlane.f32.xlu0 %v1526
    %v1528 = vpop.xlane.xlu0 %1527
    %v1529 = vsel %vm1102, %v1524, -inf
    %1530 = vmax.xlane.f32.xlu0 %v1529
    %v1531 = vpop.xlane.xlu0 %1530
    %v1532 = vsub.f32 %v1496, %v1528
    %v1533 = vsub.f32 %v1524, %v1531
    %v1534 = vmul.f32 %v1532, 1.442695
    %v1535 = vpow.pop %v1534
    %v1536 = vmul.f32 %v1533, 1.442695
    %v1537 = vpow.pop %v1536
    %v1538 = vsel %vm1102, %v1535, 0.0
    %1539 = vadd.xlane.f32.xlu0 %v1538
    %v1540 = vpop.xlane.xlu0 %1539
    %v1541 = vsel %vm1102, %v1537, 0.0
    %1542 = vadd.xlane.f32.xlu0 %v1541
    %v1543 = vpop.xlane.xlu0 %1542
    %v1544 = vrcp.pop %v1540
    %v1545 = vmul.f32 %v1540, %v1544
    %v1546 = vsub.f32 1.0, %v1545
    %v1547 = vmul.f32 %v1544, %v1546
    %v1548 = vadd.f32 %v1544, %v1547
    %vm1549 = vweird.f32 %v1540
    %vm1550 = vweird.f32 %v1544
    %vm1551 = vmor %vm1549, %vm1550
    %v1552 = vsel %vm1551, %v1544, %v1548
    %v1553 = vand.u32 2147483647, %v1540
    %vm1554 = vcmp.eq.f32.partialorder %v1553, 8.507059e+37
    %v1555 = vand.u32 %v1540, 2147483648
    %v1556 = vor.u32 1.1754944e-38, %v1555
    %v1557 = vsel %vm1554, %v1556, %v1552
    %v1558 = vrcp.pop %v1543
    %v1559 = vmul.f32 %v1543, %v1558
    %v1560 = vsub.f32 1.0, %v1559
    %v1561 = vmul.f32 %v1558, %v1560
    %v1562 = vadd.f32 %v1558, %v1561
    %vm1563 = vweird.f32 %v1543
    %vm1564 = vweird.f32 %v1558
    %vm1565 = vmor %vm1563, %vm1564
    %v1566 = vsel %vm1565, %v1558, %v1562
    %v1567 = vand.u32 2147483647, %v1543
    %vm1568 = vcmp.eq.f32.partialorder %v1567, 8.507059e+37
    %v1569 = vand.u32 %v1543, 2147483648
    %v1570 = vor.u32 1.1754944e-38, %v1569
    %v1571 = vsel %vm1568, %v1570, %v1566
    %v1572 = vmul.f32 %v1535, %v1557
    %v1573 = vmul.f32 %v1537, %v1571
    %1574 = vrot.lane.b32.xlu0 %v1092, 48
    %v1575 = vpop.permute.xlu0 %1574
    %v1578 = vsel %vm1102, %v1572, 0
    %1580 = vmatpush.msra.mxu0 0.0
    %1581 = vmatpush.msra.mxu0 0.0
    %1582 = vmatpush.msra.mxu0 0.0
    %1583 = vmatpush.msra.mxu0 0.0
    %1584 = vmatpush.msra.mxu0 0.0
    %1585 = vmatpush.msra.mxu0 0.0
    %1586 = vmatpush.msra.mxu0 0.0
    %1587 = vmatpush.msra.mxu0 0.0
    %1588 = vmatpush.msra.mxu0 0.0
    %1589 = vmatpush.msra.mxu0 0.0
    %1590 = vmatpush.msra.mxu0 0.0
    %1591 = vmatpush.msra.mxu0 0.0
    %1592 = vmatpush.msra.mxu0 0.0
    %1593 = vmatpush.msra.mxu0 0.0
    %1594 = vmatpush.msra.mxu0 0.0
    %1595 = vmatpush.msra.mxu0 %v1575
    %1596 = vmatmul.f32.gmra.mxu0 %v1578
    %v1597 = vpop.f32.mrf.mxu0
    %v1598 = vadd.f32 0.0, %v1597
    %1599 = vdwg.mxu0
    %1600 = vrot.lane.b32.xlu0 %v1095, 48
    %v1601 = vpop.permute.xlu0 %1600
    %v1604 = vsel %vm1102, %v1573, 0
    %1606 = vmatpush.msra.mxu0 0.0
    %1607 = vmatpush.msra.mxu0 0.0
    %1608 = vmatpush.msra.mxu0 0.0
    %1609 = vmatpush.msra.mxu0 0.0
    %1610 = vmatpush.msra.mxu0 0.0
    %1611 = vmatpush.msra.mxu0 0.0
    %1612 = vmatpush.msra.mxu0 0.0
    %1613 = vmatpush.msra.mxu0 0.0
    %1614 = vmatpush.msra.mxu0 0.0
    %1615 = vmatpush.msra.mxu0 0.0
    %1616 = vmatpush.msra.mxu0 0.0
    %1617 = vmatpush.msra.mxu0 0.0
    %1618 = vmatpush.msra.mxu0 0.0
    %1619 = vmatpush.msra.mxu0 0.0
    %1620 = vmatpush.msra.mxu0 0.0
    %1621 = vmatpush.msra.mxu0 %v1601
    %1622 = vmatmul.f32.gmra.mxu0 %v1604
    %v1623 = vpop.f32.mrf.mxu0
    %v1624 = vadd.f32 0.0, %v1623
    %1625 = vdwg.mxu0
    %v1627 = vsel %vm1102, %v1598, 0
    %v1630 = vsel %vm1102, %v1624, 0
    %1632 = vmatpush.msra.mxu0 0.0
    %1633 = vmatpush.msra.mxu0 0.0
    %1634 = vmatpush.msra.mxu0 0.0
    %1635 = vmatpush.msra.mxu0 0.0
    %1636 = vmatpush.msra.mxu0 0.0
    %1637 = vmatpush.msra.mxu0 0.0
    %1638 = vmatpush.msra.mxu0 0.0
    %1639 = vmatpush.msra.mxu0 0.0
    %1640 = vmatpush.msra.mxu0 0.0
    %1641 = vmatpush.msra.mxu0 0.0
    %1642 = vmatpush.msra.mxu0 0.0
    %1643 = vmatpush.msra.mxu0 0.0
    %1644 = vmatpush.msra.mxu0 0.0
    %1645 = vmatpush.msra.mxu0 0.0
    %1646 = vmatpush.msra.mxu0 0.0
    %1647 = vmatpush.msra.mxu0 %v1001
    %1648 = vmatmul.f32.gmra.mxu0 %v1627
    %v1649 = vpop.f32.mrf.mxu0
    %v1650 = vadd.f32 0.0, %v1649
    %1651 = vmatmul.f32.gmra.mxu0 %v1630
    %v1652 = vpop.f32.mrf.mxu0
    %v1653 = vadd.f32 0.0, %v1652
    %1654 = vdwg.mxu0
    %v1655 = vadd.f32 %v1465, %v1650
    %v1656 = vadd.f32 %v1468, %v1653
    %1657 = vrot.lane.b32.xlu0 %v1097, 104
    %v1658 = vpop.permute.xlu0 %1657
    %1659 = vrot.lane.b32.xlu0 %v1092, 72
    %v1660 = vpop.permute.xlu0 %1659
    %v1661 = vsel %vm1102, %v1658, 0
    %v1663 = vsel %vm1102, %v1660, 0
    %1665 = vmatpush.xpose.msra.mxu0 0.0
    %1666 = vmatpush.xpose.msra.mxu0 0.0
    %1667 = vmatpush.xpose.msra.mxu0 0.0
    %1668 = vmatpush.xpose.msra.mxu0 0.0
    %1669 = vmatpush.xpose.msra.mxu0 0.0
    %1670 = vmatpush.xpose.msra.mxu0 0.0
    %1671 = vmatpush.xpose.msra.mxu0 0.0
    %1672 = vmatpush.xpose.msra.mxu0 0.0
    %1673 = vmatpush.xpose.msra.mxu0 0.0
    %1674 = vmatpush.xpose.msra.mxu0 0.0
    %1675 = vmatpush.xpose.msra.mxu0 0.0
    %1676 = vmatpush.xpose.msra.mxu0 0.0
    %1677 = vmatpush.xpose.msra.mxu0 0.0
    %1678 = vmatpush.xpose.msra.mxu0 0.0
    %1679 = vmatpush.xpose.msra.mxu0 0.0
    %1680 = vmatpush.xpose.msra.mxu0 %v1663
    %1681 = vmatmul.f32.gmra.mxu0 %v1661
    %v1682 = vpop.f32.mrf.mxu0
    %v1683 = vadd.f32 0.0, %v1682
    %1684 = vdwg.mxu0
    %1685 = vrot.lane.b32.xlu0 %v1098, 104
    %v1686 = vpop.permute.xlu0 %1685
    %1687 = vrot.lane.b32.xlu0 %v1095, 72
    %v1688 = vpop.permute.xlu0 %1687
    %v1689 = vsel %vm1102, %v1686, 0
    %v1691 = vsel %vm1102, %v1688, 0
    %1693 = vmatpush.xpose.msra.mxu0 0.0
    %1694 = vmatpush.xpose.msra.mxu0 0.0
    %1695 = vmatpush.xpose.msra.mxu0 0.0
    %1696 = vmatpush.xpose.msra.mxu0 0.0
    %1697 = vmatpush.xpose.msra.mxu0 0.0
    %1698 = vmatpush.xpose.msra.mxu0 0.0
    %1699 = vmatpush.xpose.msra.mxu0 0.0
    %1700 = vmatpush.xpose.msra.mxu0 0.0
    %1701 = vmatpush.xpose.msra.mxu0 0.0
    %1702 = vmatpush.xpose.msra.mxu0 0.0
    %1703 = vmatpush.xpose.msra.mxu0 0.0
    %1704 = vmatpush.xpose.msra.mxu0 0.0
    %1705 = vmatpush.xpose.msra.mxu0 0.0
    %1706 = vmatpush.xpose.msra.mxu0 0.0
    %1707 = vmatpush.xpose.msra.mxu0 0.0
    %1708 = vmatpush.xpose.msra.mxu0 %v1691
    %1709 = vmatmul.f32.gmra.mxu0 %v1689
    %v1710 = vpop.f32.mrf.mxu0
    %v1711 = vadd.f32 0.0, %v1710
    %1712 = vdwg.mxu0
    %v1713 = vsel %vm1102, %v1683, -inf
    %1714 = vmax.xlane.f32.xlu0 %v1713
    %v1715 = vpop.xlane.xlu0 %1714
    %v1716 = vsel %vm1102, %v1711, -inf
    %1717 = vmax.xlane.f32.xlu0 %v1716
    %v1718 = vpop.xlane.xlu0 %1717
    %v1719 = vsub.f32 %v1683, %v1715
    %v1720 = vsub.f32 %v1711, %v1718
    %v1721 = vmul.f32 %v1719, 1.442695
    %v1722 = vpow.pop %v1721
    %v1723 = vmul.f32 %v1720, 1.442695
    %v1724 = vpow.pop %v1723
    %v1725 = vsel %vm1102, %v1722, 0.0
    %1726 = vadd.xlane.f32.xlu0 %v1725
    %v1727 = vpop.xlane.xlu0 %1726
    %v1728 = vsel %vm1102, %v1724, 0.0
    %1729 = vadd.xlane.f32.xlu0 %v1728
    %v1730 = vpop.xlane.xlu0 %1729
    %v1731 = vrcp.pop %v1727
    %v1732 = vmul.f32 %v1727, %v1731
    %v1733 = vsub.f32 1.0, %v1732
    %v1734 = vmul.f32 %v1731, %v1733
    %v1735 = vadd.f32 %v1731, %v1734
    %vm1736 = vweird.f32 %v1727
    %vm1737 = vweird.f32 %v1731
    %vm1738 = vmor %vm1736, %vm1737
    %v1739 = vsel %vm1738, %v1731, %v1735
    %v1740 = vand.u32 2147483647, %v1727
    %vm1741 = vcmp.eq.f32.partialorder %v1740, 8.507059e+37
    %v1742 = vand.u32 %v1727, 2147483648
    %v1743 = vor.u32 1.1754944e-38, %v1742
    %v1744 = vsel %vm1741, %v1743, %v1739
    %v1745 = vrcp.pop %v1730
    %v1746 = vmul.f32 %v1730, %v1745
    %v1747 = vsub.f32 1.0, %v1746
    %v1748 = vmul.f32 %v1745, %v1747
    %v1749 = vadd.f32 %v1745, %v1748
    %vm1750 = vweird.f32 %v1730
    %vm1751 = vweird.f32 %v1745
    %vm1752 = vmor %vm1750, %vm1751
    %v1753 = vsel %vm1752, %v1745, %v1749
    %v1754 = vand.u32 2147483647, %v1730
    %vm1755 = vcmp.eq.f32.partialorder %v1754, 8.507059e+37
    %v1756 = vand.u32 %v1730, 2147483648
    %v1757 = vor.u32 1.1754944e-38, %v1756
    %v1758 = vsel %vm1755, %v1757, %v1753
    %v1759 = vmul.f32 %v1722, %v1744
    %v1760 = vmul.f32 %v1724, %v1758
    %1761 = vrot.lane.b32.xlu0 %v1092, 40
    %v1762 = vpop.permute.xlu0 %1761
    %v1765 = vsel %vm1102, %v1759, 0
    %1767 = vmatpush.msra.mxu0 0.0
    %1768 = vmatpush.msra.mxu0 0.0
    %1769 = vmatpush.msra.mxu0 0.0
    %1770 = vmatpush.msra.mxu0 0.0
    %1771 = vmatpush.msra.mxu0 0.0
    %1772 = vmatpush.msra.mxu0 0.0
    %1773 = vmatpush.msra.mxu0 0.0
    %1774 = vmatpush.msra.mxu0 0.0
    %1775 = vmatpush.msra.mxu0 0.0
    %1776 = vmatpush.msra.mxu0 0.0
    %1777 = vmatpush.msra.mxu0 0.0
    %1778 = vmatpush.msra.mxu0 0.0
    %1779 = vmatpush.msra.mxu0 0.0
    %1780 = vmatpush.msra.mxu0 0.0
    %1781 = vmatpush.msra.mxu0 0.0
    %1782 = vmatpush.msra.mxu0 %v1762
    %1783 = vmatmul.f32.gmra.mxu0 %v1765
    %v1784 = vpop.f32.mrf.mxu0
    %v1785 = vadd.f32 0.0, %v1784
    %1786 = vdwg.mxu0
    %1787 = vrot.lane.b32.xlu0 %v1095, 40
    %v1788 = vpop.permute.xlu0 %1787
    %v1791 = vsel %vm1102, %v1760, 0
    %1793 = vmatpush.msra.mxu0 0.0
    %1794 = vmatpush.msra.mxu0 0.0
    %1795 = vmatpush.msra.mxu0 0.0
    %1796 = vmatpush.msra.mxu0 0.0
    %1797 = vmatpush.msra.mxu0 0.0
    %1798 = vmatpush.msra.mxu0 0.0
    %1799 = vmatpush.msra.mxu0 0.0
    %1800 = vmatpush.msra.mxu0 0.0
    %1801 = vmatpush.msra.mxu0 0.0
    %1802 = vmatpush.msra.mxu0 0.0
    %1803 = vmatpush.msra.mxu0 0.0
    %1804 = vmatpush.msra.mxu0 0.0
    %1805 = vmatpush.msra.mxu0 0.0
    %1806 = vmatpush.msra.mxu0 0.0
    %1807 = vmatpush.msra.mxu0 0.0
    %1808 = vmatpush.msra.mxu0 %v1788
    %1809 = vmatmul.f32.gmra.mxu0 %v1791
    %v1810 = vpop.f32.mrf.mxu0
    %v1811 = vadd.f32 0.0, %v1810
    %1812 = vdwg.mxu0
    %v1814 = vsel %vm1102, %v1785, 0
    %v1817 = vsel %vm1102, %v1811, 0
    %1819 = vmatpush.msra.mxu0 0.0
    %1820 = vmatpush.msra.mxu0 0.0
    %1821 = vmatpush.msra.mxu0 0.0
    %1822 = vmatpush.msra.mxu0 0.0
    %1823 = vmatpush.msra.mxu0 0.0
    %1824 = vmatpush.msra.mxu0 0.0
    %1825 = vmatpush.msra.mxu0 0.0
    %1826 = vmatpush.msra.mxu0 0.0
    %1827 = vmatpush.msra.mxu0 0.0
    %1828 = vmatpush.msra.mxu0 0.0
    %1829 = vmatpush.msra.mxu0 0.0
    %1830 = vmatpush.msra.mxu0 0.0
    %1831 = vmatpush.msra.mxu0 0.0
    %1832 = vmatpush.msra.mxu0 0.0
    %1833 = vmatpush.msra.mxu0 0.0
    %1834 = vmatpush.msra.mxu0 %v1002
    %1835 = vmatmul.f32.gmra.mxu0 %v1814
    %v1836 = vpop.f32.mrf.mxu0
    %v1837 = vadd.f32 0.0, %v1836
    %1838 = vmatmul.f32.gmra.mxu0 %v1817
    %v1839 = vpop.f32.mrf.mxu0
    %v1840 = vadd.f32 0.0, %v1839
    %1841 = vdwg.mxu0
    %v1842 = vadd.f32 %v1655, %v1837
    %v1843 = vadd.f32 %v1656, %v1840
    %v1845 = vperm.slane %v994, 0
    %v1847 = vadd.f32 %v1842, %v1845
    %v1848 = vadd.f32 %v1843, %v1845
    %v1849 = vadd.f32 %v1053, %v1847
    %v1850 = vadd.f32 %v1063, %v1848
    %v1851 = vsel %vm1068, %v1849, 0.0
    %1852 = vadd.xlane.f32.xlu0 %v1851
    %v1853 = vpop.xlane.xlu0 %1852
    %v1854 = vsel %vm1068, %v1850, 0.0
    %1855 = vadd.xlane.f32.xlu0 %v1854
    %v1856 = vpop.xlane.xlu0 %1855
    %v1857 = vrcp.pop 32.0
    %v1858 = vmul.f32 32.0, %v1857
    %v1859 = vsub.f32 1.0, %v1858
    %v1860 = vmul.f32 %v1857, %v1859
    %v1861 = vadd.f32 %v1857, %v1860
    %vm1862 = vweird.f32 %v1857
    %v1863 = vsel %vm1862, %v1857, %v1861
    %v1864 = vmul.f32 %v1853, %v1863
    %v1865 = vmul.f32 %v1856, %v1863
    %v1866 = vsub.f32 %v1849, %v1864
    %v1867 = vsub.f32 %v1850, %v1865
    %v1868 = vmul.f32 %v1866, %v1866
    %v1869 = vmul.f32 %v1867, %v1867
    %v1870 = vsel %vm1068, %v1868, 0.0
    %1871 = vadd.xlane.f32.xlu0 %v1870
    %v1872 = vpop.xlane.xlu0 %1871
    %v1873 = vsel %vm1068, %v1869, 0.0
    %1874 = vadd.xlane.f32.xlu0 %v1873
    %v1875 = vpop.xlane.xlu0 %1874
    %v1876 = vmul.f32 %v1872, %v1863
    %v1877 = vmul.f32 %v1875, %v1863
    %v1878 = vadd.f32 %v1876, 1e-05
    %v1879 = vadd.f32 %v1877, 1e-05
    %v1880 = vrsqrt.pop %v1878
    %v1881 = vmul.f32 %v1880, %v1878
    %v1882 = vmul.f32 %v1881, %v1880
    %v1883 = vmul.f32 0.5, %v1882
    %v1884 = vsub.f32 1.5, %v1883
    %v1885 = vmul.f32 %v1880, %v1884
    %vm1886 = vweird.f32 %v1878
    %vm1887 = vweird.f32 %v1880
    %vm1888 = vmor %vm1886, %vm1887
    %v1889 = vsel %vm1888, %v1880, %v1885
    %v1890 = vrsqrt.pop %v1879
    %v1891 = vmul.f32 %v1890, %v1879
    %v1892 = vmul.f32 %v1891, %v1890
    %v1893 = vmul.f32 0.5, %v1892
    %v1894 = vsub.f32 1.5, %v1893
    %v1895 = vmul.f32 %v1890, %v1894
    %vm1896 = vweird.f32 %v1879
    %vm1897 = vweird.f32 %v1890
    %vm1898 = vmor %vm1896, %vm1897
    %v1899 = vsel %vm1898, %v1890, %v1895
    %v1900 = vmul.f32 %v1866, %v1889
    %v1901 = vmul.f32 %v1867, %v1899
    %v1903 = vperm.slane %v990, 0
    %v1905 = vmul.f32 %v1900, %v1903
    %v1906 = vmul.f32 %v1901, %v1903
    %v1908 = vperm.slane %v989, 0
    %v1910 = vadd.f32 %v1905, %v1908
    %v1911 = vadd.f32 %v1906, %v1908
    %v1913 = vperm.slane %v987, 0
    %v1916 = vsel %vm1068, %v1910, 0
    %v1919 = vsel %vm1068, %v1911, 0
    %1921 = vmatpush.msra.mxu0 0.0
    %1922 = vmatpush.msra.mxu0 0.0
    %1923 = vmatpush.msra.mxu0 0.0
    %1924 = vmatpush.msra.mxu0 0.0
    %1925 = vmatpush.msra.mxu0 0.0
    %1926 = vmatpush.msra.mxu0 0.0
    %1927 = vmatpush.msra.mxu0 0.0
    %1928 = vmatpush.msra.mxu0 0.0
    %1929 = vmatpush.msra.mxu0 0.0
    %1930 = vmatpush.msra.mxu0 0.0
    %1931 = vmatpush.msra.mxu0 0.0
    %1932 = vmatpush.msra.mxu0 0.0
    %1933 = vmatpush.msra.mxu0 %v1006
    %1934 = vmatpush.msra.mxu0 %v1005
    %1935 = vmatpush.msra.mxu0 %v1004
    %1936 = vmatpush.msra.mxu0 %v1003
    %1937 = vmatmul.f32.gmra.mxu0 %v1916
    %v1938 = vpop.f32.mrf.mxu0
    %v1939 = vadd.f32 %v1913, %v1938
    %1940 = vmatmul.f32.gmra.mxu0 %v1919
    %v1941 = vpop.f32.mrf.mxu0
    %v1942 = vadd.f32 %v1913, %v1941
    %1943 = vdwg.mxu0
    %v1944 = vmax.f32 %v1939, 0.0
    %v1945 = vmax.f32 %v1942, 0.0
    %v1947 = vperm.slane %v988, 0
    %vm1949 = vcmask 523264
    %v1951 = vsel %vm1949, %v1944, 0
    %v1954 = vsel %vm1949, %v1945, 0
    %1956 = vmatpush.msra.mxu0 0.0
    %1957 = vmatpush.msra.mxu0 0.0
    %1958 = vmatpush.msra.mxu0 0.0
    %1959 = vmatpush.msra.mxu0 0.0
    %1960 = vmatpush.msra.mxu0 0.0
    %1961 = vmatpush.msra.mxu0 0.0
    %1962 = vmatpush.msra.mxu0 0.0
    %1963 = vmatpush.msra.mxu0 0.0
    %1964 = vmatpush.msra.mxu0 %v1014
    %1965 = vmatpush.msra.mxu0 %v1013
    %1966 = vmatpush.msra.mxu0 %v1012
    %1967 = vmatpush.msra.mxu0 %v1011
    %1968 = vmatpush.msra.mxu0 %v1010
    %1969 = vmatpush.msra.mxu0 %v1009
    %1970 = vmatpush.msra.mxu0 %v1008
    %1971 = vmatpush.msra.mxu0 %v1007
    %1972 = vmatmul.f32.gmra.mxu0 %v1951
    %v1973 = vpop.f32.mrf.mxu0
    %v1974 = vadd.f32 %v1947, %v1973
    %1975 = vmatmul.f32.gmra.mxu0 %v1954
    %v1976 = vpop.f32.mrf.mxu0
    %v1977 = vadd.f32 %v1947, %v1976
    %1978 = vdwg.mxu0
    %v1979 = vadd.f32 %v1910, %v1974
    %v1980 = vadd.f32 %v1911, %v1977
    %v1981 = vsel %vm1068, %v1979, 0.0
    %1982 = vadd.xlane.f32.xlu0 %v1981
    %v1983 = vpop.xlane.xlu0 %1982
    %v1984 = vsel %vm1068, %v1980, 0.0
    %1985 = vadd.xlane.f32.xlu0 %v1984
    %v1986 = vpop.xlane.xlu0 %1985
    %v1987 = vmul.f32 %v1983, %v1863
    %v1988 = vmul.f32 %v1986, %v1863
    %v1989 = vsub.f32 %v1979, %v1987
    %v1990 = vsub.f32 %v1980, %v1988
    %v1991 = vmul.f32 %v1989, %v1989
    %v1992 = vmul.f32 %v1990, %v1990
    %v1993 = vsel %vm1068, %v1991, 0.0
    %1994 = vadd.xlane.f32.xlu0 %v1993
    %v1995 = vpop.xlane.xlu0 %1994
    %v1996 = vsel %vm1068, %v1992, 0.0
    %1997 = vadd.xlane.f32.xlu0 %v1996
    %v1998 = vpop.xlane.xlu0 %1997
    %v1999 = vmul.f32 %v1995, %v1863
    %v2000 = vmul.f32 %v1998, %v1863
    %v2001 = vadd.f32 %v1999, 1e-05
    %v2002 = vadd.f32 %v2000, 1e-05
    %v2003 = vrsqrt.pop %v2001
    %v2004 = vmul.f32 %v2003, %v2001
    %v2005 = vmul.f32 %v2004, %v2003
    %v2006 = vmul.f32 0.5, %v2005
    %v2007 = vsub.f32 1.5, %v2006
    %v2008 = vmul.f32 %v2003, %v2007
    %vm2009 = vweird.f32 %v2001
    %vm2010 = vweird.f32 %v2003
    %vm2011 = vmor %vm2009, %vm2010
    %v2012 = vsel %vm2011, %v2003, %v2008
    %v2013 = vrsqrt.pop %v2002
    %v2014 = vmul.f32 %v2013, %v2002
    %v2015 = vmul.f32 %v2014, %v2013
    %v2016 = vmul.f32 0.5, %v2015
    %v2017 = vsub.f32 1.5, %v2016
    %v2018 = vmul.f32 %v2013, %v2017
    %vm2019 = vweird.f32 %v2002
    %vm2020 = vweird.f32 %v2013
    %vm2021 = vmor %vm2019, %vm2020
    %v2022 = vsel %vm2021, %v2013, %v2018
    %v2023 = vmul.f32 %v1989, %v2012
    %v2024 = vmul.f32 %v1990, %v2022
    %v2026 = vperm.slane %v992, 0
    %v2028 = vmul.f32 %v2023, %v2026
    %v2029 = vmul.f32 %v2024, %v2026
    %v2031 = vperm.slane %v991, 0
    %v2033 = vadd.f32 %v2028, %v2031
    %v2034 = vadd.f32 %v2029, %v2031
    %v2036 = vperm.slane %v1021, 0
    %v2039 = vsel %vm1068, %v2033, 0
    %v2042 = vsel %vm1068, %v2034, 0
    %2044 = vmatpush.msra.mxu0 0.0
    %2045 = vmatpush.msra.mxu0 0.0
    %2046 = vmatpush.msra.mxu0 0.0
    %2047 = vmatpush.msra.mxu0 0.0
    %2048 = vmatpush.msra.mxu0 0.0
    %2049 = vmatpush.msra.mxu0 0.0
    %2050 = vmatpush.msra.mxu0 0.0
    %2051 = vmatpush.msra.mxu0 0.0
    %2052 = vmatpush.msra.mxu0 0.0
    %2053 = vmatpush.msra.mxu0 0.0
    %2054 = vmatpush.msra.mxu0 0.0
    %2055 = vmatpush.msra.mxu0 0.0
    %2056 = vmatpush.msra.mxu0 %v1026
    %2057 = vmatpush.msra.mxu0 %v1025
    %2058 = vmatpush.msra.mxu0 %v1024
    %2059 = vmatpush.msra.mxu0 %v1023
    %2060 = vmatmul.f32.gmra.mxu0 %v2039
    %v2061 = vpop.f32.mrf.mxu0
    %v2062 = vadd.f32 %v2036, %v2061
    %2063 = vmatmul.f32.gmra.mxu0 %v2042
    %v2064 = vpop.f32.mrf.mxu0
    %v2065 = vadd.f32 %v2036, %v2064
    %2066 = vdwg.mxu0
    %v2067 = vmul.f32 %v2062, 0.35355338
    %v2068 = vmul.f32 %v2065, 0.35355338
    %2070 = vrot.lane.b32.xlu0 %v2062, 96
    %v2071 = vpop.permute.xlu0 %2070
    %v2073 = vsel %vm1102, %v2067, 0
    %v2075 = vsel %vm1102, %v2071, 0
    %2077 = vmatpush.xpose.msra.mxu0 0.0
    %2078 = vmatpush.xpose.msra.mxu0 0.0
    %2079 = vmatpush.xpose.msra.mxu0 0.0
    %2080 = vmatpush.xpose.msra.mxu0 0.0
    %2081 = vmatpush.xpose.msra.mxu0 0.0
    %2082 = vmatpush.xpose.msra.mxu0 0.0
    %2083 = vmatpush.xpose.msra.mxu0 0.0
    %2084 = vmatpush.xpose.msra.mxu0 0.0
    %2085 = vmatpush.xpose.msra.mxu0 0.0
    %2086 = vmatpush.xpose.msra.mxu0 0.0
    %2087 = vmatpush.xpose.msra.mxu0 0.0
    %2088 = vmatpush.xpose.msra.mxu0 0.0
    %2089 = vmatpush.xpose.msra.mxu0 0.0
    %2090 = vmatpush.xpose.msra.mxu0 0.0
    %2091 = vmatpush.xpose.msra.mxu0 0.0
    %2092 = vmatpush.xpose.msra.mxu0 %v2075
    %2093 = vmatmul.f32.gmra.mxu0 %v2073
    %v2094 = vpop.f32.mrf.mxu0
    %v2095 = vadd.f32 0.0, %v2094
    %2096 = vdwg.mxu0
    %2098 = vrot.lane.b32.xlu0 %v2065, 96
    %v2099 = vpop.permute.xlu0 %2098
    %v2101 = vsel %vm1102, %v2068, 0
    %v2103 = vsel %vm1102, %v2099, 0
    %2105 = vmatpush.xpose.msra.mxu0 0.0
    %2106 = vmatpush.xpose.msra.mxu0 0.0
    %2107 = vmatpush.xpose.msra.mxu0 0.0
    %2108 = vmatpush.xpose.msra.mxu0 0.0
    %2109 = vmatpush.xpose.msra.mxu0 0.0
    %2110 = vmatpush.xpose.msra.mxu0 0.0
    %2111 = vmatpush.xpose.msra.mxu0 0.0
    %2112 = vmatpush.xpose.msra.mxu0 0.0
    %2113 = vmatpush.xpose.msra.mxu0 0.0
    %2114 = vmatpush.xpose.msra.mxu0 0.0
    %2115 = vmatpush.xpose.msra.mxu0 0.0
    %2116 = vmatpush.xpose.msra.mxu0 0.0
    %2117 = vmatpush.xpose.msra.mxu0 0.0
    %2118 = vmatpush.xpose.msra.mxu0 0.0
    %2119 = vmatpush.xpose.msra.mxu0 0.0
    %2120 = vmatpush.xpose.msra.mxu0 %v2103
    %2121 = vmatmul.f32.gmra.mxu0 %v2101
    %v2122 = vpop.f32.mrf.mxu0
    %v2123 = vadd.f32 0.0, %v2122
    %2124 = vdwg.mxu0
    %v2125 = vsel %vm1102, %v2095, -inf
    %2126 = vmax.xlane.f32.xlu0 %v2125
    %v2127 = vpop.xlane.xlu0 %2126
    %v2128 = vsel %vm1102, %v2123, -inf
    %2129 = vmax.xlane.f32.xlu0 %v2128
    %v2130 = vpop.xlane.xlu0 %2129
    %v2131 = vsub.f32 %v2095, %v2127
    %v2132 = vsub.f32 %v2123, %v2130
    %v2133 = vmul.f32 %v2131, 1.442695
    %v2134 = vpow.pop %v2133
    %v2135 = vmul.f32 %v2132, 1.442695
    %v2136 = vpow.pop %v2135
    %v2137 = vsel %vm1102, %v2134, 0.0
    %2138 = vadd.xlane.f32.xlu0 %v2137
    %v2139 = vpop.xlane.xlu0 %2138
    %v2140 = vsel %vm1102, %v2136, 0.0
    %2141 = vadd.xlane.f32.xlu0 %v2140
    %v2142 = vpop.xlane.xlu0 %2141
    %v2143 = vrcp.pop %v2139
    %v2144 = vmul.f32 %v2139, %v2143
    %v2145 = vsub.f32 1.0, %v2144
    %v2146 = vmul.f32 %v2143, %v2145
    %v2147 = vadd.f32 %v2143, %v2146
    %vm2148 = vweird.f32 %v2139
    %vm2149 = vweird.f32 %v2143
    %vm2150 = vmor %vm2148, %vm2149
    %v2151 = vsel %vm2150, %v2143, %v2147
    %v2152 = vand.u32 2147483647, %v2139
    %vm2153 = vcmp.eq.f32.partialorder %v2152, 8.507059e+37
    %v2154 = vand.u32 %v2139, 2147483648
    %v2155 = vor.u32 1.1754944e-38, %v2154
    %v2156 = vsel %vm2153, %v2155, %v2151
    %v2157 = vrcp.pop %v2142
    %v2158 = vmul.f32 %v2142, %v2157
    %v2159 = vsub.f32 1.0, %v2158
    %v2160 = vmul.f32 %v2157, %v2159
    %v2161 = vadd.f32 %v2157, %v2160
    %vm2162 = vweird.f32 %v2142
    %vm2163 = vweird.f32 %v2157
    %vm2164 = vmor %vm2162, %vm2163
    %v2165 = vsel %vm2164, %v2157, %v2161
    %v2166 = vand.u32 2147483647, %v2142
    %vm2167 = vcmp.eq.f32.partialorder %v2166, 8.507059e+37
    %v2168 = vand.u32 %v2142, 2147483648
    %v2169 = vor.u32 1.1754944e-38, %v2168
    %v2170 = vsel %vm2167, %v2169, %v2165
    %v2171 = vmul.f32 %v2134, %v2156
    %v2172 = vmul.f32 %v2136, %v2170
    %2173 = vrot.lane.b32.xlu0 %v2062, 64
    %v2174 = vpop.permute.xlu0 %2173
    %v2177 = vsel %vm1102, %v2171, 0
    %2179 = vmatpush.msra.mxu0 0.0
    %2180 = vmatpush.msra.mxu0 0.0
    %2181 = vmatpush.msra.mxu0 0.0
    %2182 = vmatpush.msra.mxu0 0.0
    %2183 = vmatpush.msra.mxu0 0.0
    %2184 = vmatpush.msra.mxu0 0.0
    %2185 = vmatpush.msra.mxu0 0.0
    %2186 = vmatpush.msra.mxu0 0.0
    %2187 = vmatpush.msra.mxu0 0.0
    %2188 = vmatpush.msra.mxu0 0.0
    %2189 = vmatpush.msra.mxu0 0.0
    %2190 = vmatpush.msra.mxu0 0.0
    %2191 = vmatpush.msra.mxu0 0.0
    %2192 = vmatpush.msra.mxu0 0.0
    %2193 = vmatpush.msra.mxu0 0.0
    %2194 = vmatpush.msra.mxu0 %v2174
    %2195 = vmatmul.f32.gmra.mxu0 %v2177
    %v2196 = vpop.f32.mrf.mxu0
    %v2197 = vadd.f32 0.0, %v2196
    %2198 = vdwg.mxu0
    %2199 = vrot.lane.b32.xlu0 %v2065, 64
    %v2200 = vpop.permute.xlu0 %2199
    %v2203 = vsel %vm1102, %v2172, 0
    %2205 = vmatpush.msra.mxu0 0.0
    %2206 = vmatpush.msra.mxu0 0.0
    %2207 = vmatpush.msra.mxu0 0.0
    %2208 = vmatpush.msra.mxu0 0.0
    %2209 = vmatpush.msra.mxu0 0.0
    %2210 = vmatpush.msra.mxu0 0.0
    %2211 = vmatpush.msra.mxu0 0.0
    %2212 = vmatpush.msra.mxu0 0.0
    %2213 = vmatpush.msra.mxu0 0.0
    %2214 = vmatpush.msra.mxu0 0.0
    %2215 = vmatpush.msra.mxu0 0.0
    %2216 = vmatpush.msra.mxu0 0.0
    %2217 = vmatpush.msra.mxu0 0.0
    %2218 = vmatpush.msra.mxu0 0.0
    %2219 = vmatpush.msra.mxu0 0.0
    %2220 = vmatpush.msra.mxu0 %v2200
    %2221 = vmatmul.f32.gmra.mxu0 %v2203
    %v2222 = vpop.f32.mrf.mxu0
    %v2223 = vadd.f32 0.0, %v2222
    %2224 = vdwg.mxu0
    %2225 = vrot.lane.b32.xlu0 %v2067, 120
    %v2226 = vpop.permute.xlu0 %2225
    %2227 = vrot.lane.b32.xlu0 %v2062, 88
    %v2228 = vpop.permute.xlu0 %2227
    %v2229 = vsel %vm1102, %v2226, 0
    %v2231 = vsel %vm1102, %v2228, 0
    %2233 = vmatpush.xpose.msra.mxu0 0.0
    %2234 = vmatpush.xpose.msra.mxu0 0.0
    %2235 = vmatpush.xpose.msra.mxu0 0.0
    %2236 = vmatpush.xpose.msra.mxu0 0.0
    %2237 = vmatpush.xpose.msra.mxu0 0.0
    %2238 = vmatpush.xpose.msra.mxu0 0.0
    %2239 = vmatpush.xpose.msra.mxu0 0.0
    %2240 = vmatpush.xpose.msra.mxu0 0.0
    %2241 = vmatpush.xpose.msra.mxu0 0.0
    %2242 = vmatpush.xpose.msra.mxu0 0.0
    %2243 = vmatpush.xpose.msra.mxu0 0.0
    %2244 = vmatpush.xpose.msra.mxu0 0.0
    %2245 = vmatpush.xpose.msra.mxu0 0.0
    %2246 = vmatpush.xpose.msra.mxu0 0.0
    %2247 = vmatpush.xpose.msra.mxu0 0.0
    %2248 = vmatpush.xpose.msra.mxu0 %v2231
    %2249 = vmatmul.f32.gmra.mxu0 %v2229
    %v2250 = vpop.f32.mrf.mxu0
    %v2251 = vadd.f32 0.0, %v2250
    %2252 = vdwg.mxu0
    %2253 = vrot.lane.b32.xlu0 %v2068, 120
    %v2254 = vpop.permute.xlu0 %2253
    %2255 = vrot.lane.b32.xlu0 %v2065, 88
    %v2256 = vpop.permute.xlu0 %2255
    %v2257 = vsel %vm1102, %v2254, 0
    %v2259 = vsel %vm1102, %v2256, 0
    %2261 = vmatpush.xpose.msra.mxu0 0.0
    %2262 = vmatpush.xpose.msra.mxu0 0.0
    %2263 = vmatpush.xpose.msra.mxu0 0.0
    %2264 = vmatpush.xpose.msra.mxu0 0.0
    %2265 = vmatpush.xpose.msra.mxu0 0.0
    %2266 = vmatpush.xpose.msra.mxu0 0.0
    %2267 = vmatpush.xpose.msra.mxu0 0.0
    %2268 = vmatpush.xpose.msra.mxu0 0.0
    %2269 = vmatpush.xpose.msra.mxu0 0.0
    %2270 = vmatpush.xpose.msra.mxu0 0.0
    %2271 = vmatpush.xpose.msra.mxu0 0.0
    %2272 = vmatpush.xpose.msra.mxu0 0.0
    %2273 = vmatpush.xpose.msra.mxu0 0.0
    %2274 = vmatpush.xpose.msra.mxu0 0.0
    %2275 = vmatpush.xpose.msra.mxu0 0.0
    %2276 = vmatpush.xpose.msra.mxu0 %v2259
    %2277 = vmatmul.f32.gmra.mxu0 %v2257
    %v2278 = vpop.f32.mrf.mxu0
    %v2279 = vadd.f32 0.0, %v2278
    %2280 = vdwg.mxu0
    %v2281 = vsel %vm1102, %v2251, -inf
    %2282 = vmax.xlane.f32.xlu0 %v2281
    %v2283 = vpop.xlane.xlu0 %2282
    %v2284 = vsel %vm1102, %v2279, -inf
    %2285 = vmax.xlane.f32.xlu0 %v2284
    %v2286 = vpop.xlane.xlu0 %2285
    %v2287 = vsub.f32 %v2251, %v2283
    %v2288 = vsub.f32 %v2279, %v2286
    %v2289 = vmul.f32 %v2287, 1.442695
    %v2290 = vpow.pop %v2289
    %v2291 = vmul.f32 %v2288, 1.442695
    %v2292 = vpow.pop %v2291
    %v2293 = vsel %vm1102, %v2290, 0.0
    %2294 = vadd.xlane.f32.xlu0 %v2293
    %v2295 = vpop.xlane.xlu0 %2294
    %v2296 = vsel %vm1102, %v2292, 0.0
    %2297 = vadd.xlane.f32.xlu0 %v2296
    %v2298 = vpop.xlane.xlu0 %2297
    %v2299 = vrcp.pop %v2295
    %v2300 = vmul.f32 %v2295, %v2299
    %v2301 = vsub.f32 1.0, %v2300
    %v2302 = vmul.f32 %v2299, %v2301
    %v2303 = vadd.f32 %v2299, %v2302
    %vm2304 = vweird.f32 %v2295
    %vm2305 = vweird.f32 %v2299
    %vm2306 = vmor %vm2304, %vm2305
    %v2307 = vsel %vm2306, %v2299, %v2303
    %v2308 = vand.u32 2147483647, %v2295
    %vm2309 = vcmp.eq.f32.partialorder %v2308, 8.507059e+37
    %v2310 = vand.u32 %v2295, 2147483648
    %v2311 = vor.u32 1.1754944e-38, %v2310
    %v2312 = vsel %vm2309, %v2311, %v2307
    %v2313 = vrcp.pop %v2298
    %v2314 = vmul.f32 %v2298, %v2313
    %v2315 = vsub.f32 1.0, %v2314
    %v2316 = vmul.f32 %v2313, %v2315
    %v2317 = vadd.f32 %v2313, %v2316
    %vm2318 = vweird.f32 %v2298
    %vm2319 = vweird.f32 %v2313
    %vm2320 = vmor %vm2318, %vm2319
    %v2321 = vsel %vm2320, %v2313, %v2317
    %v2322 = vand.u32 2147483647, %v2298
    %vm2323 = vcmp.eq.f32.partialorder %v2322, 8.507059e+37
    %v2324 = vand.u32 %v2298, 2147483648
    %v2325 = vor.u32 1.1754944e-38, %v2324
    %v2326 = vsel %vm2323, %v2325, %v2321
    %v2327 = vmul.f32 %v2290, %v2312
    %v2328 = vmul.f32 %v2292, %v2326
    %2329 = vrot.lane.b32.xlu0 %v2062, 56
    %v2330 = vpop.permute.xlu0 %2329
    %v2333 = vsel %vm1102, %v2327, 0
    %2335 = vmatpush.msra.mxu0 0.0
    %2336 = vmatpush.msra.mxu0 0.0
    %2337 = vmatpush.msra.mxu0 0.0
    %2338 = vmatpush.msra.mxu0 0.0
    %2339 = vmatpush.msra.mxu0 0.0
    %2340 = vmatpush.msra.mxu0 0.0
    %2341 = vmatpush.msra.mxu0 0.0
    %2342 = vmatpush.msra.mxu0 0.0
    %2343 = vmatpush.msra.mxu0 0.0
    %2344 = vmatpush.msra.mxu0 0.0
    %2345 = vmatpush.msra.mxu0 0.0
    %2346 = vmatpush.msra.mxu0 0.0
    %2347 = vmatpush.msra.mxu0 0.0
    %2348 = vmatpush.msra.mxu0 0.0
    %2349 = vmatpush.msra.mxu0 0.0
    %2350 = vmatpush.msra.mxu0 %v2330
    %2351 = vmatmul.f32.gmra.mxu0 %v2333
    %v2352 = vpop.f32.mrf.mxu0
    %v2353 = vadd.f32 0.0, %v2352
    %2354 = vdwg.mxu0
    %2355 = vrot.lane.b32.xlu0 %v2065, 56
    %v2356 = vpop.permute.xlu0 %2355
    %v2359 = vsel %vm1102, %v2328, 0
    %2361 = vmatpush.msra.mxu0 0.0
    %2362 = vmatpush.msra.mxu0 0.0
    %2363 = vmatpush.msra.mxu0 0.0
    %2364 = vmatpush.msra.mxu0 0.0
    %2365 = vmatpush.msra.mxu0 0.0
    %2366 = vmatpush.msra.mxu0 0.0
    %2367 = vmatpush.msra.mxu0 0.0
    %2368 = vmatpush.msra.mxu0 0.0
    %2369 = vmatpush.msra.mxu0 0.0
    %2370 = vmatpush.msra.mxu0 0.0
    %2371 = vmatpush.msra.mxu0 0.0
    %2372 = vmatpush.msra.mxu0 0.0
    %2373 = vmatpush.msra.mxu0 0.0
    %2374 = vmatpush.msra.mxu0 0.0
    %2375 = vmatpush.msra.mxu0 0.0
    %2376 = vmatpush.msra.mxu0 %v2356
    %2377 = vmatmul.f32.gmra.mxu0 %v2359
    %v2378 = vpop.f32.mrf.mxu0
    %v2379 = vadd.f32 0.0, %v2378
    %2380 = vdwg.mxu0
    %v2382 = vsel %vm1102, %v2353, 0
    %v2385 = vsel %vm1102, %v2379, 0
    %2387 = vmatpush.msra.mxu0 0.0
    %2388 = vmatpush.msra.mxu0 0.0
    %2389 = vmatpush.msra.mxu0 0.0
    %2390 = vmatpush.msra.mxu0 0.0
    %2391 = vmatpush.msra.mxu0 0.0
    %2392 = vmatpush.msra.mxu0 0.0
    %2393 = vmatpush.msra.mxu0 0.0
    %2394 = vmatpush.msra.mxu0 0.0
    %2395 = vmatpush.msra.mxu0 0.0
    %2396 = vmatpush.msra.mxu0 0.0
    %2397 = vmatpush.msra.mxu0 0.0
    %2398 = vmatpush.msra.mxu0 0.0
    %2399 = vmatpush.msra.mxu0 0.0
    %2400 = vmatpush.msra.mxu0 0.0
    %2401 = vmatpush.msra.mxu0 0.0
    %2402 = vmatpush.msra.mxu0 %v1028
    %2403 = vmatmul.f32.gmra.mxu0 %v2382
    %v2404 = vpop.f32.mrf.mxu0
    %v2405 = vadd.f32 0.0, %v2404
    %2406 = vmatmul.f32.gmra.mxu0 %v2385
    %v2407 = vpop.f32.mrf.mxu0
    %v2408 = vadd.f32 0.0, %v2407
    %2409 = vdwg.mxu0
    %v2411 = vsel %vm1102, %v2197, 0
    %v2414 = vsel %vm1102, %v2223, 0
    %2416 = vmatpush.msra.mxu0 0.0
    %2417 = vmatpush.msra.mxu0 0.0
    %2418 = vmatpush.msra.mxu0 0.0
    %2419 = vmatpush.msra.mxu0 0.0
    %2420 = vmatpush.msra.mxu0 0.0
    %2421 = vmatpush.msra.mxu0 0.0
    %2422 = vmatpush.msra.mxu0 0.0
    %2423 = vmatpush.msra.mxu0 0.0
    %2424 = vmatpush.msra.mxu0 0.0
    %2425 = vmatpush.msra.mxu0 0.0
    %2426 = vmatpush.msra.mxu0 0.0
    %2427 = vmatpush.msra.mxu0 0.0
    %2428 = vmatpush.msra.mxu0 0.0
    %2429 = vmatpush.msra.mxu0 0.0
    %2430 = vmatpush.msra.mxu0 0.0
    %2431 = vmatpush.msra.mxu0 %v1027
    %2432 = vmatmul.f32.gmra.mxu0 %v2411
    %v2433 = vpop.f32.mrf.mxu0
    %v2434 = vadd.f32 %v2405, %v2433
    %2435 = vmatmul.f32.gmra.mxu0 %v2414
    %v2436 = vpop.f32.mrf.mxu0
    %v2437 = vadd.f32 %v2408, %v2436
    %2438 = vdwg.mxu0
    %2439 = vrot.lane.b32.xlu0 %v2067, 112
    %v2440 = vpop.permute.xlu0 %2439
    %2441 = vrot.lane.b32.xlu0 %v2062, 80
    %v2442 = vpop.permute.xlu0 %2441
    %v2443 = vsel %vm1102, %v2440, 0
    %v2445 = vsel %vm1102, %v2442, 0
    %2447 = vmatpush.xpose.msra.mxu0 0.0
    %2448 = vmatpush.xpose.msra.mxu0 0.0
    %2449 = vmatpush.xpose.msra.mxu0 0.0
    %2450 = vmatpush.xpose.msra.mxu0 0.0
    %2451 = vmatpush.xpose.msra.mxu0 0.0
    %2452 = vmatpush.xpose.msra.mxu0 0.0
    %2453 = vmatpush.xpose.msra.mxu0 0.0
    %2454 = vmatpush.xpose.msra.mxu0 0.0
    %2455 = vmatpush.xpose.msra.mxu0 0.0
    %2456 = vmatpush.xpose.msra.mxu0 0.0
    %2457 = vmatpush.xpose.msra.mxu0 0.0
    %2458 = vmatpush.xpose.msra.mxu0 0.0
    %2459 = vmatpush.xpose.msra.mxu0 0.0
    %2460 = vmatpush.xpose.msra.mxu0 0.0
    %2461 = vmatpush.xpose.msra.mxu0 0.0
    %2462 = vmatpush.xpose.msra.mxu0 %v2445
    %2463 = vmatmul.f32.gmra.mxu0 %v2443
    %v2464 = vpop.f32.mrf.mxu0
    %v2465 = vadd.f32 0.0, %v2464
    %2466 = vdwg.mxu0
    %2467 = vrot.lane.b32.xlu0 %v2068, 112
    %v2468 = vpop.permute.xlu0 %2467
    %2469 = vrot.lane.b32.xlu0 %v2065, 80
    %v2470 = vpop.permute.xlu0 %2469
    %v2471 = vsel %vm1102, %v2468, 0
    %v2473 = vsel %vm1102, %v2470, 0
    %2475 = vmatpush.xpose.msra.mxu0 0.0
    %2476 = vmatpush.xpose.msra.mxu0 0.0
    %2477 = vmatpush.xpose.msra.mxu0 0.0
    %2478 = vmatpush.xpose.msra.mxu0 0.0
    %2479 = vmatpush.xpose.msra.mxu0 0.0
    %2480 = vmatpush.xpose.msra.mxu0 0.0
    %2481 = vmatpush.xpose.msra.mxu0 0.0
    %2482 = vmatpush.xpose.msra.mxu0 0.0
    %2483 = vmatpush.xpose.msra.mxu0 0.0
    %2484 = vmatpush.xpose.msra.mxu0 0.0
    %2485 = vmatpush.xpose.msra.mxu0 0.0
    %2486 = vmatpush.xpose.msra.mxu0 0.0
    %2487 = vmatpush.xpose.msra.mxu0 0.0
    %2488 = vmatpush.xpose.msra.mxu0 0.0
    %2489 = vmatpush.xpose.msra.mxu0 0.0
    %2490 = vmatpush.xpose.msra.mxu0 %v2473
    %2491 = vmatmul.f32.gmra.mxu0 %v2471
    %v2492 = vpop.f32.mrf.mxu0
    %v2493 = vadd.f32 0.0, %v2492
    %2494 = vdwg.mxu0
    %v2495 = vsel %vm1102, %v2465, -inf
    %2496 = vmax.xlane.f32.xlu0 %v2495
    %v2497 = vpop.xlane.xlu0 %2496
    %v2498 = vsel %vm1102, %v2493, -inf
    %2499 = vmax.xlane.f32.xlu0 %v2498
    %v2500 = vpop.xlane.xlu0 %2499
    %v2501 = vsub.f32 %v2465, %v2497
    %v2502 = vsub.f32 %v2493, %v2500
    %v2503 = vmul.f32 %v2501, 1.442695
    %v2504 = vpow.pop %v2503
    %v2505 = vmul.f32 %v2502, 1.442695
    %v2506 = vpow.pop %v2505
    %v2507 = vsel %vm1102, %v2504, 0.0
    %2508 = vadd.xlane.f32.xlu0 %v2507
    %v2509 = vpop.xlane.xlu0 %2508
    %v2510 = vsel %vm1102, %v2506, 0.0
    %2511 = vadd.xlane.f32.xlu0 %v2510
    %v2512 = vpop.xlane.xlu0 %2511
    %v2513 = vrcp.pop %v2509
    %v2514 = vmul.f32 %v2509, %v2513
    %v2515 = vsub.f32 1.0, %v2514
    %v2516 = vmul.f32 %v2513, %v2515
    %v2517 = vadd.f32 %v2513, %v2516
    %vm2518 = vweird.f32 %v2509
    %vm2519 = vweird.f32 %v2513
    %vm2520 = vmor %vm2518, %vm2519
    %v2521 = vsel %vm2520, %v2513, %v2517
    %v2522 = vand.u32 2147483647, %v2509
    %vm2523 = vcmp.eq.f32.partialorder %v2522, 8.507059e+37
    %v2524 = vand.u32 %v2509, 2147483648
    %v2525 = vor.u32 1.1754944e-38, %v2524
    %v2526 = vsel %vm2523, %v2525, %v2521
    %v2527 = vrcp.pop %v2512
    %v2528 = vmul.f32 %v2512, %v2527
    %v2529 = vsub.f32 1.0, %v2528
    %v2530 = vmul.f32 %v2527, %v2529
    %v2531 = vadd.f32 %v2527, %v2530
    %vm2532 = vweird.f32 %v2512
    %vm2533 = vweird.f32 %v2527
    %vm2534 = vmor %vm2532, %vm2533
    %v2535 = vsel %vm2534, %v2527, %v2531
    %v2536 = vand.u32 2147483647, %v2512
    %vm2537 = vcmp.eq.f32.partialorder %v2536, 8.507059e+37
    %v2538 = vand.u32 %v2512, 2147483648
    %v2539 = vor.u32 1.1754944e-38, %v2538
    %v2540 = vsel %vm2537, %v2539, %v2535
    %v2541 = vmul.f32 %v2504, %v2526
    %v2542 = vmul.f32 %v2506, %v2540
    %2543 = vrot.lane.b32.xlu0 %v2062, 48
    %v2544 = vpop.permute.xlu0 %2543
    %v2547 = vsel %vm1102, %v2541, 0
    %2549 = vmatpush.msra.mxu0 0.0
    %2550 = vmatpush.msra.mxu0 0.0
    %2551 = vmatpush.msra.mxu0 0.0
    %2552 = vmatpush.msra.mxu0 0.0
    %2553 = vmatpush.msra.mxu0 0.0
    %2554 = vmatpush.msra.mxu0 0.0
    %2555 = vmatpush.msra.mxu0 0.0
    %2556 = vmatpush.msra.mxu0 0.0
    %2557 = vmatpush.msra.mxu0 0.0
    %2558 = vmatpush.msra.mxu0 0.0
    %2559 = vmatpush.msra.mxu0 0.0
    %2560 = vmatpush.msra.mxu0 0.0
    %2561 = vmatpush.msra.mxu0 0.0
    %2562 = vmatpush.msra.mxu0 0.0
    %2563 = vmatpush.msra.mxu0 0.0
    %2564 = vmatpush.msra.mxu0 %v2544
    %2565 = vmatmul.f32.gmra.mxu0 %v2547
    %v2566 = vpop.f32.mrf.mxu0
    %v2567 = vadd.f32 0.0, %v2566
    %2568 = vdwg.mxu0
    %2569 = vrot.lane.b32.xlu0 %v2065, 48
    %v2570 = vpop.permute.xlu0 %2569
    %v2573 = vsel %vm1102, %v2542, 0
    %2575 = vmatpush.msra.mxu0 0.0
    %2576 = vmatpush.msra.mxu0 0.0
    %2577 = vmatpush.msra.mxu0 0.0
    %2578 = vmatpush.msra.mxu0 0.0
    %2579 = vmatpush.msra.mxu0 0.0
    %2580 = vmatpush.msra.mxu0 0.0
    %2581 = vmatpush.msra.mxu0 0.0
    %2582 = vmatpush.msra.mxu0 0.0
    %2583 = vmatpush.msra.mxu0 0.0
    %2584 = vmatpush.msra.mxu0 0.0
    %2585 = vmatpush.msra.mxu0 0.0
    %2586 = vmatpush.msra.mxu0 0.0
    %2587 = vmatpush.msra.mxu0 0.0
    %2588 = vmatpush.msra.mxu0 0.0
    %2589 = vmatpush.msra.mxu0 0.0
    %2590 = vmatpush.msra.mxu0 %v2570
    %2591 = vmatmul.f32.gmra.mxu0 %v2573
    %v2592 = vpop.f32.mrf.mxu0
    %v2593 = vadd.f32 0.0, %v2592
    %2594 = vdwg.mxu0
    %v2596 = vsel %vm1102, %v2567, 0
    %v2599 = vsel %vm1102, %v2593, 0
    %2601 = vmatpush.msra.mxu0 0.0
    %2602 = vmatpush.msra.mxu0 0.0
    %2603 = vmatpush.msra.mxu0 0.0
    %2604 = vmatpush.msra.mxu0 0.0
    %2605 = vmatpush.msra.mxu0 0.0
    %2606 = vmatpush.msra.mxu0 0.0
    %2607 = vmatpush.msra.mxu0 0.0
    %2608 = vmatpush.msra.mxu0 0.0
    %2609 = vmatpush.msra.mxu0 0.0
    %2610 = vmatpush.msra.mxu0 0.0
    %2611 = vmatpush.msra.mxu0 0.0
    %2612 = vmatpush.msra.mxu0 0.0
    %2613 = vmatpush.msra.mxu0 0.0
    %2614 = vmatpush.msra.mxu0 0.0
    %2615 = vmatpush.msra.mxu0 0.0
    %2616 = vmatpush.msra.mxu0 %v1029
    %2617 = vmatmul.f32.gmra.mxu0 %v2596
    %v2618 = vpop.f32.mrf.mxu0
    %v2619 = vadd.f32 0.0, %v2618
    %2620 = vmatmul.f32.gmra.mxu0 %v2599
    %v2621 = vpop.f32.mrf.mxu0
    %v2622 = vadd.f32 0.0, %v2621
    %2623 = vdwg.mxu0
    %v2624 = vadd.f32 %v2434, %v2619
    %v2625 = vadd.f32 %v2437, %v2622
    %2626 = vrot.lane.b32.xlu0 %v2067, 104
    %v2627 = vpop.permute.xlu0 %2626
    %2628 = vrot.lane.b32.xlu0 %v2062, 72
    %v2629 = vpop.permute.xlu0 %2628
    %v2630 = vsel %vm1102, %v2627, 0
    %v2632 = vsel %vm1102, %v2629, 0
    %2634 = vmatpush.xpose.msra.mxu0 0.0
    %2635 = vmatpush.xpose.msra.mxu0 0.0
    %2636 = vmatpush.xpose.msra.mxu0 0.0
    %2637 = vmatpush.xpose.msra.mxu0 0.0
    %2638 = vmatpush.xpose.msra.mxu0 0.0
    %2639 = vmatpush.xpose.msra.mxu0 0.0
    %2640 = vmatpush.xpose.msra.mxu0 0.0
    %2641 = vmatpush.xpose.msra.mxu0 0.0
    %2642 = vmatpush.xpose.msra.mxu0 0.0
    %2643 = vmatpush.xpose.msra.mxu0 0.0
    %2644 = vmatpush.xpose.msra.mxu0 0.0
    %2645 = vmatpush.xpose.msra.mxu0 0.0
    %2646 = vmatpush.xpose.msra.mxu0 0.0
    %2647 = vmatpush.xpose.msra.mxu0 0.0
    %2648 = vmatpush.xpose.msra.mxu0 0.0
    %2649 = vmatpush.xpose.msra.mxu0 %v2632
    %2650 = vmatmul.f32.gmra.mxu0 %v2630
    %v2651 = vpop.f32.mrf.mxu0
    %v2652 = vadd.f32 0.0, %v2651
    %2653 = vdwg.mxu0
    %2654 = vrot.lane.b32.xlu0 %v2068, 104
    %v2655 = vpop.permute.xlu0 %2654
    %2656 = vrot.lane.b32.xlu0 %v2065, 72
    %v2657 = vpop.permute.xlu0 %2656
    %v2658 = vsel %vm1102, %v2655, 0
    %v2660 = vsel %vm1102, %v2657, 0
    %2662 = vmatpush.xpose.msra.mxu0 0.0
    %2663 = vmatpush.xpose.msra.mxu0 0.0
    %2664 = vmatpush.xpose.msra.mxu0 0.0
    %2665 = vmatpush.xpose.msra.mxu0 0.0
    %2666 = vmatpush.xpose.msra.mxu0 0.0
    %2667 = vmatpush.xpose.msra.mxu0 0.0
    %2668 = vmatpush.xpose.msra.mxu0 0.0
    %2669 = vmatpush.xpose.msra.mxu0 0.0
    %2670 = vmatpush.xpose.msra.mxu0 0.0
    %2671 = vmatpush.xpose.msra.mxu0 0.0
    %2672 = vmatpush.xpose.msra.mxu0 0.0
    %2673 = vmatpush.xpose.msra.mxu0 0.0
    %2674 = vmatpush.xpose.msra.mxu0 0.0
    %2675 = vmatpush.xpose.msra.mxu0 0.0
    %2676 = vmatpush.xpose.msra.mxu0 0.0
    %2677 = vmatpush.xpose.msra.mxu0 %v2660
    %2678 = vmatmul.f32.gmra.mxu0 %v2658
    %v2679 = vpop.f32.mrf.mxu0
    %v2680 = vadd.f32 0.0, %v2679
    %2681 = vdwg.mxu0
    %v2682 = vsel %vm1102, %v2652, -inf
    %2683 = vmax.xlane.f32.xlu0 %v2682
    %v2684 = vpop.xlane.xlu0 %2683
    %v2685 = vsel %vm1102, %v2680, -inf
    %2686 = vmax.xlane.f32.xlu0 %v2685
    %v2687 = vpop.xlane.xlu0 %2686
    %v2688 = vsub.f32 %v2652, %v2684
    %v2689 = vsub.f32 %v2680, %v2687
    %v2690 = vmul.f32 %v2688, 1.442695
    %v2691 = vpow.pop %v2690
    %v2692 = vmul.f32 %v2689, 1.442695
    %v2693 = vpow.pop %v2692
    %v2694 = vsel %vm1102, %v2691, 0.0
    %2695 = vadd.xlane.f32.xlu0 %v2694
    %v2696 = vpop.xlane.xlu0 %2695
    %v2697 = vsel %vm1102, %v2693, 0.0
    %2698 = vadd.xlane.f32.xlu0 %v2697
    %v2699 = vpop.xlane.xlu0 %2698
    %v2700 = vrcp.pop %v2696
    %v2701 = vmul.f32 %v2696, %v2700
    %v2702 = vsub.f32 1.0, %v2701
    %v2703 = vmul.f32 %v2700, %v2702
    %v2704 = vadd.f32 %v2700, %v2703
    %vm2705 = vweird.f32 %v2696
    %vm2706 = vweird.f32 %v2700
    %vm2707 = vmor %vm2705, %vm2706
    %v2708 = vsel %vm2707, %v2700, %v2704
    %v2709 = vand.u32 2147483647, %v2696
    %vm2710 = vcmp.eq.f32.partialorder %v2709, 8.507059e+37
    %v2711 = vand.u32 %v2696, 2147483648
    %v2712 = vor.u32 1.1754944e-38, %v2711
    %v2713 = vsel %vm2710, %v2712, %v2708
    %v2714 = vrcp.pop %v2699
    %v2715 = vmul.f32 %v2699, %v2714
    %v2716 = vsub.f32 1.0, %v2715
    %v2717 = vmul.f32 %v2714, %v2716
    %v2718 = vadd.f32 %v2714, %v2717
    %vm2719 = vweird.f32 %v2699
    %vm2720 = vweird.f32 %v2714
    %vm2721 = vmor %vm2719, %vm2720
    %v2722 = vsel %vm2721, %v2714, %v2718
    %v2723 = vand.u32 2147483647, %v2699
    %vm2724 = vcmp.eq.f32.partialorder %v2723, 8.507059e+37
    %v2725 = vand.u32 %v2699, 2147483648
    %v2726 = vor.u32 1.1754944e-38, %v2725
    %v2727 = vsel %vm2724, %v2726, %v2722
    %v2728 = vmul.f32 %v2691, %v2713
    %v2729 = vmul.f32 %v2693, %v2727
    %2730 = vrot.lane.b32.xlu0 %v2062, 40
    %v2731 = vpop.permute.xlu0 %2730
    %v2734 = vsel %vm1102, %v2728, 0
    %2736 = vmatpush.msra.mxu0 0.0
    %2737 = vmatpush.msra.mxu0 0.0
    %2738 = vmatpush.msra.mxu0 0.0
    %2739 = vmatpush.msra.mxu0 0.0
    %2740 = vmatpush.msra.mxu0 0.0
    %2741 = vmatpush.msra.mxu0 0.0
    %2742 = vmatpush.msra.mxu0 0.0
    %2743 = vmatpush.msra.mxu0 0.0
    %2744 = vmatpush.msra.mxu0 0.0
    %2745 = vmatpush.msra.mxu0 0.0
    %2746 = vmatpush.msra.mxu0 0.0
    %2747 = vmatpush.msra.mxu0 0.0
    %2748 = vmatpush.msra.mxu0 0.0
    %2749 = vmatpush.msra.mxu0 0.0
    %2750 = vmatpush.msra.mxu0 0.0
    %2751 = vmatpush.msra.mxu0 %v2731
    %2752 = vmatmul.f32.gmra.mxu0 %v2734
    %v2753 = vpop.f32.mrf.mxu0
    %v2754 = vadd.f32 0.0, %v2753
    %2755 = vdwg.mxu0
    %2756 = vrot.lane.b32.xlu0 %v2065, 40
    %v2757 = vpop.permute.xlu0 %2756
    %v2760 = vsel %vm1102, %v2729, 0
    %2762 = vmatpush.msra.mxu0 0.0
    %2763 = vmatpush.msra.mxu0 0.0
    %2764 = vmatpush.msra.mxu0 0.0
    %2765 = vmatpush.msra.mxu0 0.0
    %2766 = vmatpush.msra.mxu0 0.0
    %2767 = vmatpush.msra.mxu0 0.0
    %2768 = vmatpush.msra.mxu0 0.0
    %2769 = vmatpush.msra.mxu0 0.0
    %2770 = vmatpush.msra.mxu0 0.0
    %2771 = vmatpush.msra.mxu0 0.0
    %2772 = vmatpush.msra.mxu0 0.0
    %2773 = vmatpush.msra.mxu0 0.0
    %2774 = vmatpush.msra.mxu0 0.0
    %2775 = vmatpush.msra.mxu0 0.0
    %2776 = vmatpush.msra.mxu0 0.0
    %2777 = vmatpush.msra.mxu0 %v2757
    %2778 = vmatmul.f32.gmra.mxu0 %v2760
    %v2779 = vpop.f32.mrf.mxu0
    %v2780 = vadd.f32 0.0, %v2779
    %2781 = vdwg.mxu0
    %v2783 = vsel %vm1102, %v2754, 0
    %v2786 = vsel %vm1102, %v2780, 0
    %2788 = vmatpush.msra.mxu0 0.0
    %2789 = vmatpush.msra.mxu0 0.0
    %2790 = vmatpush.msra.mxu0 0.0
    %2791 = vmatpush.msra.mxu0 0.0
    %2792 = vmatpush.msra.mxu0 0.0
    %2793 = vmatpush.msra.mxu0 0.0
    %2794 = vmatpush.msra.mxu0 0.0
    %2795 = vmatpush.msra.mxu0 0.0
    %2796 = vmatpush.msra.mxu0 0.0
    %2797 = vmatpush.msra.mxu0 0.0
    %2798 = vmatpush.msra.mxu0 0.0
    %2799 = vmatpush.msra.mxu0 0.0
    %2800 = vmatpush.msra.mxu0 0.0
    %2801 = vmatpush.msra.mxu0 0.0
    %2802 = vmatpush.msra.mxu0 0.0
    %2803 = vmatpush.msra.mxu0 %v1030
    %2804 = vmatmul.f32.gmra.mxu0 %v2783
    %v2805 = vpop.f32.mrf.mxu0
    %v2806 = vadd.f32 0.0, %v2805
    %2807 = vmatmul.f32.gmra.mxu0 %v2786
    %v2808 = vpop.f32.mrf.mxu0
    %v2809 = vadd.f32 0.0, %v2808
    %2810 = vdwg.mxu0
    %v2811 = vadd.f32 %v2624, %v2806
    %v2812 = vadd.f32 %v2625, %v2809
    %v2814 = vperm.slane %v1022, 0
    %v2816 = vadd.f32 %v2811, %v2814
    %v2817 = vadd.f32 %v2812, %v2814
    %v2818 = vadd.f32 %v2033, %v2816
    %v2819 = vadd.f32 %v2034, %v2817
    %v2820 = vsel %vm1068, %v2818, 0.0
    %2821 = vadd.xlane.f32.xlu0 %v2820
    %v2822 = vpop.xlane.xlu0 %2821
    %v2823 = vsel %vm1068, %v2819, 0.0
    %2824 = vadd.xlane.f32.xlu0 %v2823
    %v2825 = vpop.xlane.xlu0 %2824
    %v2826 = vmul.f32 %v2822, %v1863
    %v2827 = vmul.f32 %v2825, %v1863
    %v2828 = vsub.f32 %v2818, %v2826
    %v2829 = vsub.f32 %v2819, %v2827
    %v2830 = vmul.f32 %v2828, %v2828
    %v2831 = vmul.f32 %v2829, %v2829
    %v2832 = vsel %vm1068, %v2830, 0.0
    %2833 = vadd.xlane.f32.xlu0 %v2832
    %v2834 = vpop.xlane.xlu0 %2833
    %v2835 = vsel %vm1068, %v2831, 0.0
    %2836 = vadd.xlane.f32.xlu0 %v2835
    %v2837 = vpop.xlane.xlu0 %2836
    %v2838 = vmul.f32 %v2834, %v1863
    %v2839 = vmul.f32 %v2837, %v1863
    %v2840 = vadd.f32 %v2838, 1e-05
    %v2841 = vadd.f32 %v2839, 1e-05
    %v2842 = vrsqrt.pop %v2840
    %v2843 = vmul.f32 %v2842, %v2840
    %v2844 = vmul.f32 %v2843, %v2842
    %v2845 = vmul.f32 0.5, %v2844
    %v2846 = vsub.f32 1.5, %v2845
    %v2847 = vmul.f32 %v2842, %v2846
    %vm2848 = vweird.f32 %v2840
    %vm2849 = vweird.f32 %v2842
    %vm2850 = vmor %vm2848, %vm2849
    %v2851 = vsel %vm2850, %v2842, %v2847
    %v2852 = vrsqrt.pop %v2841
    %v2853 = vmul.f32 %v2852, %v2841
    %v2854 = vmul.f32 %v2853, %v2852
    %v2855 = vmul.f32 0.5, %v2854
    %v2856 = vsub.f32 1.5, %v2855
    %v2857 = vmul.f32 %v2852, %v2856
    %vm2858 = vweird.f32 %v2841
    %vm2859 = vweird.f32 %v2852
    %vm2860 = vmor %vm2858, %vm2859
    %v2861 = vsel %vm2860, %v2852, %v2857
    %v2862 = vmul.f32 %v2828, %v2851
    %v2863 = vmul.f32 %v2829, %v2861
    %v2865 = vperm.slane %v1018, 0
    %v2867 = vmul.f32 %v2862, %v2865
    %v2868 = vmul.f32 %v2863, %v2865
    %v2870 = vperm.slane %v1017, 0
    %v2872 = vadd.f32 %v2867, %v2870
    %v2873 = vadd.f32 %v2868, %v2870
    %v2875 = vperm.slane %v1015, 0
    %v2878 = vsel %vm1068, %v2872, 0
    %v2881 = vsel %vm1068, %v2873, 0
    %2883 = vmatpush.msra.mxu0 0.0
    %2884 = vmatpush.msra.mxu0 0.0
    %2885 = vmatpush.msra.mxu0 0.0
    %2886 = vmatpush.msra.mxu0 0.0
    %2887 = vmatpush.msra.mxu0 0.0
    %2888 = vmatpush.msra.mxu0 0.0
    %2889 = vmatpush.msra.mxu0 0.0
    %2890 = vmatpush.msra.mxu0 0.0
    %2891 = vmatpush.msra.mxu0 0.0
    %2892 = vmatpush.msra.mxu0 0.0
    %2893 = vmatpush.msra.mxu0 0.0
    %2894 = vmatpush.msra.mxu0 0.0
    %2895 = vmatpush.msra.mxu0 %v1034
    %2896 = vmatpush.msra.mxu0 %v1033
    %2897 = vmatpush.msra.mxu0 %v1032
    %2898 = vmatpush.msra.mxu0 %v1031
    %2899 = vmatmul.f32.gmra.mxu0 %v2878
    %v2900 = vpop.f32.mrf.mxu0
    %v2901 = vadd.f32 %v2875, %v2900
    %2902 = vmatmul.f32.gmra.mxu0 %v2881
    %v2903 = vpop.f32.mrf.mxu0
    %v2904 = vadd.f32 %v2875, %v2903
    %2905 = vdwg.mxu0
    %v2906 = vmax.f32 %v2901, 0.0
    %v2907 = vmax.f32 %v2904, 0.0
    %v2909 = vperm.slane %v1016, 0
    %v2912 = vsel %vm1949, %v2906, 0
    %v2915 = vsel %vm1949, %v2907, 0
    %2917 = vmatpush.msra.mxu0 0.0
    %2918 = vmatpush.msra.mxu0 0.0
    %2919 = vmatpush.msra.mxu0 0.0
    %2920 = vmatpush.msra.mxu0 0.0
    %2921 = vmatpush.msra.mxu0 0.0
    %2922 = vmatpush.msra.mxu0 0.0
    %2923 = vmatpush.msra.mxu0 0.0
    %2924 = vmatpush.msra.mxu0 0.0
    %2925 = vmatpush.msra.mxu0 %v1042
    %2926 = vmatpush.msra.mxu0 %v1041
    %2927 = vmatpush.msra.mxu0 %v1040
    %2928 = vmatpush.msra.mxu0 %v1039
    %2929 = vmatpush.msra.mxu0 %v1038
    %2930 = vmatpush.msra.mxu0 %v1037
    %2931 = vmatpush.msra.mxu0 %v1036
    %2932 = vmatpush.msra.mxu0 %v1035
    %2933 = vmatmul.f32.gmra.mxu0 %v2912
    %v2934 = vpop.f32.mrf.mxu0
    %v2935 = vadd.f32 %v2909, %v2934
    %2936 = vmatmul.f32.gmra.mxu0 %v2915
    %v2937 = vpop.f32.mrf.mxu0
    %v2938 = vadd.f32 %v2909, %v2937
    %2939 = vdwg.mxu0
    %v2940 = vadd.f32 %v2872, %v2935
    %v2941 = vadd.f32 %v2873, %v2938
    %v2942 = vsel %vm1068, %v2940, 0.0
    %2943 = vadd.xlane.f32.xlu0 %v2942
    %v2944 = vpop.xlane.xlu0 %2943
    %v2945 = vsel %vm1068, %v2941, 0.0
    %2946 = vadd.xlane.f32.xlu0 %v2945
    %v2947 = vpop.xlane.xlu0 %2946
    %v2948 = vmul.f32 %v2944, %v1863
    %v2949 = vmul.f32 %v2947, %v1863
    %v2950 = vsub.f32 %v2940, %v2948
    %v2951 = vsub.f32 %v2941, %v2949
    %v2952 = vmul.f32 %v2950, %v2950
    %v2953 = vmul.f32 %v2951, %v2951
    %v2954 = vsel %vm1068, %v2952, 0.0
    %2955 = vadd.xlane.f32.xlu0 %v2954
    %v2956 = vpop.xlane.xlu0 %2955
    %v2957 = vsel %vm1068, %v2953, 0.0
    %2958 = vadd.xlane.f32.xlu0 %v2957
    %v2959 = vpop.xlane.xlu0 %2958
    %v2960 = vmul.f32 %v2956, %v1863
    %v2961 = vmul.f32 %v2959, %v1863
    %v2962 = vadd.f32 %v2960, 1e-05
    %v2963 = vadd.f32 %v2961, 1e-05
    %v2964 = vrsqrt.pop %v2962
    %v2965 = vmul.f32 %v2964, %v2962
    %v2966 = vmul.f32 %v2965, %v2964
    %v2967 = vmul.f32 0.5, %v2966
    %v2968 = vsub.f32 1.5, %v2967
    %v2969 = vmul.f32 %v2964, %v2968
    %vm2970 = vweird.f32 %v2962
    %vm2971 = vweird.f32 %v2964
    %vm2972 = vmor %vm2970, %vm2971
    %v2973 = vsel %vm2972, %v2964, %v2969
    %v2974 = vrsqrt.pop %v2963
    %v2975 = vmul.f32 %v2974, %v2963
    %v2976 = vmul.f32 %v2975, %v2974
    %v2977 = vmul.f32 0.5, %v2976
    %v2978 = vsub.f32 1.5, %v2977
    %v2979 = vmul.f32 %v2974, %v2978
    %vm2980 = vweird.f32 %v2963
    %vm2981 = vweird.f32 %v2974
    %vm2982 = vmor %vm2980, %vm2981
    %v2983 = vsel %vm2982, %v2974, %v2979
    %v2984 = vmul.f32 %v2950, %v2973
    %v2985 = vmul.f32 %v2951, %v2983
    %v2987 = vperm.slane %v1020, 0
    %v2989 = vmul.f32 %v2984, %v2987
    %v2990 = vmul.f32 %v2985, %v2987
    %v2992 = vperm.slane %v1019, 0
    %v2994 = vadd.f32 %v2989, %v2992
    %v2995 = vadd.f32 %v2990, %v2992
    %v2996 = vsel %vm1068, %v2994, 0.0
    %2997 = vadd.xlane.f32.xlu0 %v2996
    %v2998 = vpop.xlane.xlu0 %2997
    %v2999 = vsel %vm1068, %v2995, 0.0
    %3000 = vadd.xlane.f32.xlu0 %v2999
    %v3001 = vpop.xlane.xlu0 %3000
    %v3002 = vmul.f32 %v2998, %v1863
    %v3003 = vmul.f32 %v3001, %v1863
    %v3004 = vsub.f32 %v2994, %v3002
    %v3005 = vsub.f32 %v2995, %v3003
    %v3006 = vmul.f32 %v3004, %v3004
    %v3007 = vmul.f32 %v3005, %v3005
    %v3008 = vsel %vm1068, %v3006, 0.0
    %3009 = vadd.xlane.f32.xlu0 %v3008
    %v3010 = vpop.xlane.xlu0 %3009
    %v3011 = vsel %vm1068, %v3007, 0.0
    %3012 = vadd.xlane.f32.xlu0 %v3011
    %v3013 = vpop.xlane.xlu0 %3012
    %v3014 = vmul.f32 %v3010, %v1863
    %v3015 = vmul.f32 %v3013, %v1863
    %v3016 = vadd.f32 %v3014, 1e-05
    %v3017 = vadd.f32 %v3015, 1e-05
    %v3018 = vrsqrt.pop %v3016
    %v3019 = vmul.f32 %v3018, %v3016
    %v3020 = vmul.f32 %v3019, %v3018
    %v3021 = vmul.f32 0.5, %v3020
    %v3022 = vsub.f32 1.5, %v3021
    %v3023 = vmul.f32 %v3018, %v3022
    %vm3024 = vweird.f32 %v3016
    %vm3025 = vweird.f32 %v3018
    %vm3026 = vmor %vm3024, %vm3025
    %v3027 = vsel %vm3026, %v3018, %v3023
    %v3028 = vrsqrt.pop %v3017
    %v3029 = vmul.f32 %v3028, %v3017
    %v3030 = vmul.f32 %v3029, %v3028
    %v3031 = vmul.f32 0.5, %v3030
    %v3032 = vsub.f32 1.5, %v3031
    %v3033 = vmul.f32 %v3028, %v3032
    %vm3034 = vweird.f32 %v3017
    %vm3035 = vweird.f32 %v3028
    %vm3036 = vmor %vm3034, %vm3035
    %v3037 = vsel %vm3036, %v3028, %v3033
    %v3038 = vmul.f32 %v3004, %v3027
    %v3039 = vmul.f32 %v3005, %v3037
    %v3041 = vperm.slane %v1044, 0
    %v3043 = vmul.f32 %v3038, %v3041
    %v3044 = vmul.f32 %v3039, %v3041
    %v3046 = vperm.slane %v1043, 0
    %v3048 = vadd.f32 %v3043, %v3046
    %v3049 = vadd.f32 %v3044, %v3046
    %v3050 = vld [vmem:[%s3] sm:$0xff]
    %v3051 = vld [vmem:[%s5] sm:$0x1]
    %v3052 = vperm.slane %v3051, 0
    %v3053 = vadd.f32 %v3050, %v3052
    %v3054 = vld [vmem:[%s5 + $0x1] sm:$0x1]
    %v3055 = vperm.slane %v3054, 0
    %3057 = vrot.lane.b32.xlu0 %v3055, 32
    %v3058 = vpop.permute.xlu0 %3057
    %v3060 = vadd.f32 %v3050, %v3058
    %3062 = vrot.lane.b32.xlu0 %v3060, 96
    %v3063 = vpop.permute.xlu0 %3062
    %v3066 = vperm.slane %v918, 0
    %v3069 = vsel %vm1068, %v3053, 0
    %v3071 = vsel %vm1068, %v3063, 0
    %3073 = vmatpush.msra.mxu0 0.0
    %3074 = vmatpush.msra.mxu0 0.0
    %3075 = vmatpush.msra.mxu0 0.0
    %3076 = vmatpush.msra.mxu0 0.0
    %3077 = vmatpush.msra.mxu0 0.0
    %3078 = vmatpush.msra.mxu0 0.0
    %3079 = vmatpush.msra.mxu0 0.0
    %3080 = vmatpush.msra.mxu0 0.0
    %3081 = vmatpush.msra.mxu0 0.0
    %3082 = vmatpush.msra.mxu0 0.0
    %3083 = vmatpush.msra.mxu0 0.0
    %3084 = vmatpush.msra.mxu0 0.0
    %3085 = vmatpush.msra.mxu0 %v923
    %3086 = vmatpush.msra.mxu0 %v922
    %3087 = vmatpush.msra.mxu0 %v921
    %3088 = vmatpush.msra.mxu0 %v920
    %3089 = vmatmul.f32.gmra.mxu0 %v3069
    %v3090 = vpop.f32.mrf.mxu0
    %v3091 = vadd.f32 %v3066, %v3090
    %3092 = vmatmul.f32.gmra.mxu0 %v3071
    %v3093 = vpop.f32.mrf.mxu0
    %v3094 = vadd.f32 %v3066, %v3093
    %3095 = vdwg.mxu0
    %v3096 = vmul.f32 %v3091, 0.35355338
    %v3097 = vmul.f32 %v3094, 0.35355338
    %3099 = vrot.lane.b32.xlu0 %v3091, 96
    %v3100 = vpop.permute.xlu0 %3099
    %v3102 = vsel %vm1102, %v3096, 0
    %v3104 = vsel %vm1102, %v3100, 0
    %3106 = vmatpush.xpose.msra.mxu0 0.0
    %3107 = vmatpush.xpose.msra.mxu0 0.0
    %3108 = vmatpush.xpose.msra.mxu0 0.0
    %3109 = vmatpush.xpose.msra.mxu0 0.0
    %3110 = vmatpush.xpose.msra.mxu0 0.0
    %3111 = vmatpush.xpose.msra.mxu0 0.0
    %3112 = vmatpush.xpose.msra.mxu0 0.0
    %3113 = vmatpush.xpose.msra.mxu0 0.0
    %3114 = vmatpush.xpose.msra.mxu0 0.0
    %3115 = vmatpush.xpose.msra.mxu0 0.0
    %3116 = vmatpush.xpose.msra.mxu0 0.0
    %3117 = vmatpush.xpose.msra.mxu0 0.0
    %3118 = vmatpush.xpose.msra.mxu0 0.0
    %3119 = vmatpush.xpose.msra.mxu0 0.0
    %3120 = vmatpush.xpose.msra.mxu0 0.0
    %3121 = vmatpush.xpose.msra.mxu0 %v3104
    %3122 = vmatmul.f32.gmra.mxu0 %v3102
    %v3123 = vpop.f32.mrf.mxu0
    %v3124 = vadd.f32 0.0, %v3123
    %3125 = vdwg.mxu0
    %3127 = vrot.lane.b32.xlu0 %v3094, 96
    %v3128 = vpop.permute.xlu0 %3127
    %v3130 = vsel %vm1102, %v3097, 0
    %v3132 = vsel %vm1102, %v3128, 0
    %3134 = vmatpush.xpose.msra.mxu0 0.0
    %3135 = vmatpush.xpose.msra.mxu0 0.0
    %3136 = vmatpush.xpose.msra.mxu0 0.0
    %3137 = vmatpush.xpose.msra.mxu0 0.0
    %3138 = vmatpush.xpose.msra.mxu0 0.0
    %3139 = vmatpush.xpose.msra.mxu0 0.0
    %3140 = vmatpush.xpose.msra.mxu0 0.0
    %3141 = vmatpush.xpose.msra.mxu0 0.0
    %3142 = vmatpush.xpose.msra.mxu0 0.0
    %3143 = vmatpush.xpose.msra.mxu0 0.0
    %3144 = vmatpush.xpose.msra.mxu0 0.0
    %3145 = vmatpush.xpose.msra.mxu0 0.0
    %3146 = vmatpush.xpose.msra.mxu0 0.0
    %3147 = vmatpush.xpose.msra.mxu0 0.0
    %3148 = vmatpush.xpose.msra.mxu0 0.0
    %3149 = vmatpush.xpose.msra.mxu0 %v3132
    %3150 = vmatmul.f32.gmra.mxu0 %v3130
    %v3151 = vpop.f32.mrf.mxu0
    %v3152 = vadd.f32 0.0, %v3151
    %3153 = vdwg.mxu0
    %v3154 = vsel %vm1102, %v3124, -inf
    %3155 = vmax.xlane.f32.xlu0 %v3154
    %v3156 = vpop.xlane.xlu0 %3155
    %v3157 = vsel %vm1102, %v3152, -inf
    %3158 = vmax.xlane.f32.xlu0 %v3157
    %v3159 = vpop.xlane.xlu0 %3158
    %v3160 = vsub.f32 %v3124, %v3156
    %v3161 = vsub.f32 %v3152, %v3159
    %v3162 = vmul.f32 %v3160, 1.442695
    %v3163 = vpow.pop %v3162
    %v3164 = vmul.f32 %v3161, 1.442695
    %v3165 = vpow.pop %v3164
    %v3166 = vsel %vm1102, %v3163, 0.0
    %3167 = vadd.xlane.f32.xlu0 %v3166
    %v3168 = vpop.xlane.xlu0 %3167
    %v3169 = vsel %vm1102, %v3165, 0.0
    %3170 = vadd.xlane.f32.xlu0 %v3169
    %v3171 = vpop.xlane.xlu0 %3170
    %v3172 = vrcp.pop %v3168
    %v3173 = vmul.f32 %v3168, %v3172
    %v3174 = vsub.f32 1.0, %v3173
    %v3175 = vmul.f32 %v3172, %v3174
    %v3176 = vadd.f32 %v3172, %v3175
    %vm3177 = vweird.f32 %v3168
    %vm3178 = vweird.f32 %v3172
    %vm3179 = vmor %vm3177, %vm3178
    %v3180 = vsel %vm3179, %v3172, %v3176
    %v3181 = vand.u32 2147483647, %v3168
    %vm3182 = vcmp.eq.f32.partialorder %v3181, 8.507059e+37
    %v3183 = vand.u32 %v3168, 2147483648
    %v3184 = vor.u32 1.1754944e-38, %v3183
    %v3185 = vsel %vm3182, %v3184, %v3180
    %v3186 = vrcp.pop %v3171
    %v3187 = vmul.f32 %v3171, %v3186
    %v3188 = vsub.f32 1.0, %v3187
    %v3189 = vmul.f32 %v3186, %v3188
    %v3190 = vadd.f32 %v3186, %v3189
    %vm3191 = vweird.f32 %v3171
    %vm3192 = vweird.f32 %v3186
    %vm3193 = vmor %vm3191, %vm3192
    %v3194 = vsel %vm3193, %v3186, %v3190
    %v3195 = vand.u32 2147483647, %v3171
    %vm3196 = vcmp.eq.f32.partialorder %v3195, 8.507059e+37
    %v3197 = vand.u32 %v3171, 2147483648
    %v3198 = vor.u32 1.1754944e-38, %v3197
    %v3199 = vsel %vm3196, %v3198, %v3194
    %v3200 = vmul.f32 %v3163, %v3185
    %v3201 = vmul.f32 %v3165, %v3199
    %3202 = vrot.lane.b32.xlu0 %v3091, 64
    %v3203 = vpop.permute.xlu0 %3202
    %v3206 = vsel %vm1102, %v3200, 0
    %3208 = vmatpush.msra.mxu0 0.0
    %3209 = vmatpush.msra.mxu0 0.0
    %3210 = vmatpush.msra.mxu0 0.0
    %3211 = vmatpush.msra.mxu0 0.0
    %3212 = vmatpush.msra.mxu0 0.0
    %3213 = vmatpush.msra.mxu0 0.0
    %3214 = vmatpush.msra.mxu0 0.0
    %3215 = vmatpush.msra.mxu0 0.0
    %3216 = vmatpush.msra.mxu0 0.0
    %3217 = vmatpush.msra.mxu0 0.0
    %3218 = vmatpush.msra.mxu0 0.0
    %3219 = vmatpush.msra.mxu0 0.0
    %3220 = vmatpush.msra.mxu0 0.0
    %3221 = vmatpush.msra.mxu0 0.0
    %3222 = vmatpush.msra.mxu0 0.0
    %3223 = vmatpush.msra.mxu0 %v3203
    %3224 = vmatmul.f32.gmra.mxu0 %v3206
    %v3225 = vpop.f32.mrf.mxu0
    %v3226 = vadd.f32 0.0, %v3225
    %3227 = vdwg.mxu0
    %3228 = vrot.lane.b32.xlu0 %v3094, 64
    %v3229 = vpop.permute.xlu0 %3228
    %v3232 = vsel %vm1102, %v3201, 0
    %3234 = vmatpush.msra.mxu0 0.0
    %3235 = vmatpush.msra.mxu0 0.0
    %3236 = vmatpush.msra.mxu0 0.0
    %3237 = vmatpush.msra.mxu0 0.0
    %3238 = vmatpush.msra.mxu0 0.0
    %3239 = vmatpush.msra.mxu0 0.0
    %3240 = vmatpush.msra.mxu0 0.0
    %3241 = vmatpush.msra.mxu0 0.0
    %3242 = vmatpush.msra.mxu0 0.0
    %3243 = vmatpush.msra.mxu0 0.0
    %3244 = vmatpush.msra.mxu0 0.0
    %3245 = vmatpush.msra.mxu0 0.0
    %3246 = vmatpush.msra.mxu0 0.0
    %3247 = vmatpush.msra.mxu0 0.0
    %3248 = vmatpush.msra.mxu0 0.0
    %3249 = vmatpush.msra.mxu0 %v3229
    %3250 = vmatmul.f32.gmra.mxu0 %v3232
    %v3251 = vpop.f32.mrf.mxu0
    %v3252 = vadd.f32 0.0, %v3251
    %3253 = vdwg.mxu0
    %3254 = vrot.lane.b32.xlu0 %v3096, 120
    %v3255 = vpop.permute.xlu0 %3254
    %3256 = vrot.lane.b32.xlu0 %v3091, 88
    %v3257 = vpop.permute.xlu0 %3256
    %v3258 = vsel %vm1102, %v3255, 0
    %v3260 = vsel %vm1102, %v3257, 0
    %3262 = vmatpush.xpose.msra.mxu0 0.0
    %3263 = vmatpush.xpose.msra.mxu0 0.0
    %3264 = vmatpush.xpose.msra.mxu0 0.0
    %3265 = vmatpush.xpose.msra.mxu0 0.0
    %3266 = vmatpush.xpose.msra.mxu0 0.0
    %3267 = vmatpush.xpose.msra.mxu0 0.0
    %3268 = vmatpush.xpose.msra.mxu0 0.0
    %3269 = vmatpush.xpose.msra.mxu0 0.0
    %3270 = vmatpush.xpose.msra.mxu0 0.0
    %3271 = vmatpush.xpose.msra.mxu0 0.0
    %3272 = vmatpush.xpose.msra.mxu0 0.0
    %3273 = vmatpush.xpose.msra.mxu0 0.0
    %3274 = vmatpush.xpose.msra.mxu0 0.0
    %3275 = vmatpush.xpose.msra.mxu0 0.0
    %3276 = vmatpush.xpose.msra.mxu0 0.0
    %3277 = vmatpush.xpose.msra.mxu0 %v3260
    %3278 = vmatmul.f32.gmra.mxu0 %v3258
    %v3279 = vpop.f32.mrf.mxu0
    %v3280 = vadd.f32 0.0, %v3279
    %3281 = vdwg.mxu0
    %3282 = vrot.lane.b32.xlu0 %v3097, 120
    %v3283 = vpop.permute.xlu0 %3282
    %3284 = vrot.lane.b32.xlu0 %v3094, 88
    %v3285 = vpop.permute.xlu0 %3284
    %v3286 = vsel %vm1102, %v3283, 0
    %v3288 = vsel %vm1102, %v3285, 0
    %3290 = vmatpush.xpose.msra.mxu0 0.0
    %3291 = vmatpush.xpose.msra.mxu0 0.0
    %3292 = vmatpush.xpose.msra.mxu0 0.0
    %3293 = vmatpush.xpose.msra.mxu0 0.0
    %3294 = vmatpush.xpose.msra.mxu0 0.0
    %3295 = vmatpush.xpose.msra.mxu0 0.0
    %3296 = vmatpush.xpose.msra.mxu0 0.0
    %3297 = vmatpush.xpose.msra.mxu0 0.0
    %3298 = vmatpush.xpose.msra.mxu0 0.0
    %3299 = vmatpush.xpose.msra.mxu0 0.0
    %3300 = vmatpush.xpose.msra.mxu0 0.0
    %3301 = vmatpush.xpose.msra.mxu0 0.0
    %3302 = vmatpush.xpose.msra.mxu0 0.0
    %3303 = vmatpush.xpose.msra.mxu0 0.0
    %3304 = vmatpush.xpose.msra.mxu0 0.0
    %3305 = vmatpush.xpose.msra.mxu0 %v3288
    %3306 = vmatmul.f32.gmra.mxu0 %v3286
    %v3307 = vpop.f32.mrf.mxu0
    %v3308 = vadd.f32 0.0, %v3307
    %3309 = vdwg.mxu0
    %v3310 = vsel %vm1102, %v3280, -inf
    %3311 = vmax.xlane.f32.xlu0 %v3310
    %v3312 = vpop.xlane.xlu0 %3311
    %v3313 = vsel %vm1102, %v3308, -inf
    %3314 = vmax.xlane.f32.xlu0 %v3313
    %v3315 = vpop.xlane.xlu0 %3314
    %v3316 = vsub.f32 %v3280, %v3312
    %v3317 = vsub.f32 %v3308, %v3315
    %v3318 = vmul.f32 %v3316, 1.442695
    %v3319 = vpow.pop %v3318
    %v3320 = vmul.f32 %v3317, 1.442695
    %v3321 = vpow.pop %v3320
    %v3322 = vsel %vm1102, %v3319, 0.0
    %3323 = vadd.xlane.f32.xlu0 %v3322
    %v3324 = vpop.xlane.xlu0 %3323
    %v3325 = vsel %vm1102, %v3321, 0.0
    %3326 = vadd.xlane.f32.xlu0 %v3325
    %v3327 = vpop.xlane.xlu0 %3326
    %v3328 = vrcp.pop %v3324
    %v3329 = vmul.f32 %v3324, %v3328
    %v3330 = vsub.f32 1.0, %v3329
    %v3331 = vmul.f32 %v3328, %v3330
    %v3332 = vadd.f32 %v3328, %v3331
    %vm3333 = vweird.f32 %v3324
    %vm3334 = vweird.f32 %v3328
    %vm3335 = vmor %vm3333, %vm3334
    %v3336 = vsel %vm3335, %v3328, %v3332
    %v3337 = vand.u32 2147483647, %v3324
    %vm3338 = vcmp.eq.f32.partialorder %v3337, 8.507059e+37
    %v3339 = vand.u32 %v3324, 2147483648
    %v3340 = vor.u32 1.1754944e-38, %v3339
    %v3341 = vsel %vm3338, %v3340, %v3336
    %v3342 = vrcp.pop %v3327
    %v3343 = vmul.f32 %v3327, %v3342
    %v3344 = vsub.f32 1.0, %v3343
    %v3345 = vmul.f32 %v3342, %v3344
    %v3346 = vadd.f32 %v3342, %v3345
    %vm3347 = vweird.f32 %v3327
    %vm3348 = vweird.f32 %v3342
    %vm3349 = vmor %vm3347, %vm3348
    %v3350 = vsel %vm3349, %v3342, %v3346
    %v3351 = vand.u32 2147483647, %v3327
    %vm3352 = vcmp.eq.f32.partialorder %v3351, 8.507059e+37
    %v3353 = vand.u32 %v3327, 2147483648
    %v3354 = vor.u32 1.1754944e-38, %v3353
    %v3355 = vsel %vm3352, %v3354, %v3350
    %v3356 = vmul.f32 %v3319, %v3341
    %v3357 = vmul.f32 %v3321, %v3355
    %3358 = vrot.lane.b32.xlu0 %v3091, 56
    %v3359 = vpop.permute.xlu0 %3358
    %v3362 = vsel %vm1102, %v3356, 0
    %3364 = vmatpush.msra.mxu0 0.0
    %3365 = vmatpush.msra.mxu0 0.0
    %3366 = vmatpush.msra.mxu0 0.0
    %3367 = vmatpush.msra.mxu0 0.0
    %3368 = vmatpush.msra.mxu0 0.0
    %3369 = vmatpush.msra.mxu0 0.0
    %3370 = vmatpush.msra.mxu0 0.0
    %3371 = vmatpush.msra.mxu0 0.0
    %3372 = vmatpush.msra.mxu0 0.0
    %3373 = vmatpush.msra.mxu0 0.0
    %3374 = vmatpush.msra.mxu0 0.0
    %3375 = vmatpush.msra.mxu0 0.0
    %3376 = vmatpush.msra.mxu0 0.0
    %3377 = vmatpush.msra.mxu0 0.0
    %3378 = vmatpush.msra.mxu0 0.0
    %3379 = vmatpush.msra.mxu0 %v3359
    %3380 = vmatmul.f32.gmra.mxu0 %v3362
    %v3381 = vpop.f32.mrf.mxu0
    %v3382 = vadd.f32 0.0, %v3381
    %3383 = vdwg.mxu0
    %3384 = vrot.lane.b32.xlu0 %v3094, 56
    %v3385 = vpop.permute.xlu0 %3384
    %v3388 = vsel %vm1102, %v3357, 0
    %3390 = vmatpush.msra.mxu0 0.0
    %3391 = vmatpush.msra.mxu0 0.0
    %3392 = vmatpush.msra.mxu0 0.0
    %3393 = vmatpush.msra.mxu0 0.0
    %3394 = vmatpush.msra.mxu0 0.0
    %3395 = vmatpush.msra.mxu0 0.0
    %3396 = vmatpush.msra.mxu0 0.0
    %3397 = vmatpush.msra.mxu0 0.0
    %3398 = vmatpush.msra.mxu0 0.0
    %3399 = vmatpush.msra.mxu0 0.0
    %3400 = vmatpush.msra.mxu0 0.0
    %3401 = vmatpush.msra.mxu0 0.0
    %3402 = vmatpush.msra.mxu0 0.0
    %3403 = vmatpush.msra.mxu0 0.0
    %3404 = vmatpush.msra.mxu0 0.0
    %3405 = vmatpush.msra.mxu0 %v3385
    %3406 = vmatmul.f32.gmra.mxu0 %v3388
    %v3407 = vpop.f32.mrf.mxu0
    %v3408 = vadd.f32 0.0, %v3407
    %3409 = vdwg.mxu0
    %v3411 = vsel %vm1102, %v3382, 0
    %v3414 = vsel %vm1102, %v3408, 0
    %3416 = vmatpush.msra.mxu0 0.0
    %3417 = vmatpush.msra.mxu0 0.0
    %3418 = vmatpush.msra.mxu0 0.0
    %3419 = vmatpush.msra.mxu0 0.0
    %3420 = vmatpush.msra.mxu0 0.0
    %3421 = vmatpush.msra.mxu0 0.0
    %3422 = vmatpush.msra.mxu0 0.0
    %3423 = vmatpush.msra.mxu0 0.0
    %3424 = vmatpush.msra.mxu0 0.0
    %3425 = vmatpush.msra.mxu0 0.0
    %3426 = vmatpush.msra.mxu0 0.0
    %3427 = vmatpush.msra.mxu0 0.0
    %3428 = vmatpush.msra.mxu0 0.0
    %3429 = vmatpush.msra.mxu0 0.0
    %3430 = vmatpush.msra.mxu0 0.0
    %3431 = vmatpush.msra.mxu0 %v925
    %3432 = vmatmul.f32.gmra.mxu0 %v3411
    %v3433 = vpop.f32.mrf.mxu0
    %v3434 = vadd.f32 0.0, %v3433
    %3435 = vmatmul.f32.gmra.mxu0 %v3414
    %v3436 = vpop.f32.mrf.mxu0
    %v3437 = vadd.f32 0.0, %v3436
    %3438 = vdwg.mxu0
    %v3440 = vsel %vm1102, %v3226, 0
    %v3443 = vsel %vm1102, %v3252, 0
    %3445 = vmatpush.msra.mxu0 0.0
    %3446 = vmatpush.msra.mxu0 0.0
    %3447 = vmatpush.msra.mxu0 0.0
    %3448 = vmatpush.msra.mxu0 0.0
    %3449 = vmatpush.msra.mxu0 0.0
    %3450 = vmatpush.msra.mxu0 0.0
    %3451 = vmatpush.msra.mxu0 0.0
    %3452 = vmatpush.msra.mxu0 0.0
    %3453 = vmatpush.msra.mxu0 0.0
    %3454 = vmatpush.msra.mxu0 0.0
    %3455 = vmatpush.msra.mxu0 0.0
    %3456 = vmatpush.msra.mxu0 0.0
    %3457 = vmatpush.msra.mxu0 0.0
    %3458 = vmatpush.msra.mxu0 0.0
    %3459 = vmatpush.msra.mxu0 0.0
    %3460 = vmatpush.msra.mxu0 %v924
    %3461 = vmatmul.f32.gmra.mxu0 %v3440
    %v3462 = vpop.f32.mrf.mxu0
    %v3463 = vadd.f32 %v3434, %v3462
    %3464 = vmatmul.f32.gmra.mxu0 %v3443
    %v3465 = vpop.f32.mrf.mxu0
    %v3466 = vadd.f32 %v3437, %v3465
    %3467 = vdwg.mxu0
    %3468 = vrot.lane.b32.xlu0 %v3096, 112
    %v3469 = vpop.permute.xlu0 %3468
    %3470 = vrot.lane.b32.xlu0 %v3091, 80
    %v3471 = vpop.permute.xlu0 %3470
    %v3472 = vsel %vm1102, %v3469, 0
    %v3474 = vsel %vm1102, %v3471, 0
    %3476 = vmatpush.xpose.msra.mxu0 0.0
    %3477 = vmatpush.xpose.msra.mxu0 0.0
    %3478 = vmatpush.xpose.msra.mxu0 0.0
    %3479 = vmatpush.xpose.msra.mxu0 0.0
    %3480 = vmatpush.xpose.msra.mxu0 0.0
    %3481 = vmatpush.xpose.msra.mxu0 0.0
    %3482 = vmatpush.xpose.msra.mxu0 0.0
    %3483 = vmatpush.xpose.msra.mxu0 0.0
    %3484 = vmatpush.xpose.msra.mxu0 0.0
    %3485 = vmatpush.xpose.msra.mxu0 0.0
    %3486 = vmatpush.xpose.msra.mxu0 0.0
    %3487 = vmatpush.xpose.msra.mxu0 0.0
    %3488 = vmatpush.xpose.msra.mxu0 0.0
    %3489 = vmatpush.xpose.msra.mxu0 0.0
    %3490 = vmatpush.xpose.msra.mxu0 0.0
    %3491 = vmatpush.xpose.msra.mxu0 %v3474
    %3492 = vmatmul.f32.gmra.mxu0 %v3472
    %v3493 = vpop.f32.mrf.mxu0
    %v3494 = vadd.f32 0.0, %v3493
    %3495 = vdwg.mxu0
    %3496 = vrot.lane.b32.xlu0 %v3097, 112
    %v3497 = vpop.permute.xlu0 %3496
    %3498 = vrot.lane.b32.xlu0 %v3094, 80
    %v3499 = vpop.permute.xlu0 %3498
    %v3500 = vsel %vm1102, %v3497, 0
    %v3502 = vsel %vm1102, %v3499, 0
    %3504 = vmatpush.xpose.msra.mxu0 0.0
    %3505 = vmatpush.xpose.msra.mxu0 0.0
    %3506 = vmatpush.xpose.msra.mxu0 0.0
    %3507 = vmatpush.xpose.msra.mxu0 0.0
    %3508 = vmatpush.xpose.msra.mxu0 0.0
    %3509 = vmatpush.xpose.msra.mxu0 0.0
    %3510 = vmatpush.xpose.msra.mxu0 0.0
    %3511 = vmatpush.xpose.msra.mxu0 0.0
    %3512 = vmatpush.xpose.msra.mxu0 0.0
    %3513 = vmatpush.xpose.msra.mxu0 0.0
    %3514 = vmatpush.xpose.msra.mxu0 0.0
    %3515 = vmatpush.xpose.msra.mxu0 0.0
    %3516 = vmatpush.xpose.msra.mxu0 0.0
    %3517 = vmatpush.xpose.msra.mxu0 0.0
    %3518 = vmatpush.xpose.msra.mxu0 0.0
    %3519 = vmatpush.xpose.msra.mxu0 %v3502
    %3520 = vmatmul.f32.gmra.mxu0 %v3500
    %v3521 = vpop.f32.mrf.mxu0
    %v3522 = vadd.f32 0.0, %v3521
    %3523 = vdwg.mxu0
    %v3524 = vsel %vm1102, %v3494, -inf
    %3525 = vmax.xlane.f32.xlu0 %v3524
    %v3526 = vpop.xlane.xlu0 %3525
    %v3527 = vsel %vm1102, %v3522, -inf
    %3528 = vmax.xlane.f32.xlu0 %v3527
    %v3529 = vpop.xlane.xlu0 %3528
    %v3530 = vsub.f32 %v3494, %v3526
    %v3531 = vsub.f32 %v3522, %v3529
    %v3532 = vmul.f32 %v3530, 1.442695
    %v3533 = vpow.pop %v3532
    %v3534 = vmul.f32 %v3531, 1.442695
    %v3535 = vpow.pop %v3534
    %v3536 = vsel %vm1102, %v3533, 0.0
    %3537 = vadd.xlane.f32.xlu0 %v3536
    %v3538 = vpop.xlane.xlu0 %3537
    %v3539 = vsel %vm1102, %v3535, 0.0
    %3540 = vadd.xlane.f32.xlu0 %v3539
    %v3541 = vpop.xlane.xlu0 %3540
    %v3542 = vrcp.pop %v3538
    %v3543 = vmul.f32 %v3538, %v3542
    %v3544 = vsub.f32 1.0, %v3543
    %v3545 = vmul.f32 %v3542, %v3544
    %v3546 = vadd.f32 %v3542, %v3545
    %vm3547 = vweird.f32 %v3538
    %vm3548 = vweird.f32 %v3542
    %vm3549 = vmor %vm3547, %vm3548
    %v3550 = vsel %vm3549, %v3542, %v3546
    %v3551 = vand.u32 2147483647, %v3538
    %vm3552 = vcmp.eq.f32.partialorder %v3551, 8.507059e+37
    %v3553 = vand.u32 %v3538, 2147483648
    %v3554 = vor.u32 1.1754944e-38, %v3553
    %v3555 = vsel %vm3552, %v3554, %v3550
    %v3556 = vrcp.pop %v3541
    %v3557 = vmul.f32 %v3541, %v3556
    %v3558 = vsub.f32 1.0, %v3557
    %v3559 = vmul.f32 %v3556, %v3558
    %v3560 = vadd.f32 %v3556, %v3559
    %vm3561 = vweird.f32 %v3541
    %vm3562 = vweird.f32 %v3556
    %vm3563 = vmor %vm3561, %vm3562
    %v3564 = vsel %vm3563, %v3556, %v3560
    %v3565 = vand.u32 2147483647, %v3541
    %vm3566 = vcmp.eq.f32.partialorder %v3565, 8.507059e+37
    %v3567 = vand.u32 %v3541, 2147483648
    %v3568 = vor.u32 1.1754944e-38, %v3567
    %v3569 = vsel %vm3566, %v3568, %v3564
    %v3570 = vmul.f32 %v3533, %v3555
    %v3571 = vmul.f32 %v3535, %v3569
    %3572 = vrot.lane.b32.xlu0 %v3091, 48
    %v3573 = vpop.permute.xlu0 %3572
    %v3576 = vsel %vm1102, %v3570, 0
    %3578 = vmatpush.msra.mxu0 0.0
    %3579 = vmatpush.msra.mxu0 0.0
    %3580 = vmatpush.msra.mxu0 0.0
    %3581 = vmatpush.msra.mxu0 0.0
    %3582 = vmatpush.msra.mxu0 0.0
    %3583 = vmatpush.msra.mxu0 0.0
    %3584 = vmatpush.msra.mxu0 0.0
    %3585 = vmatpush.msra.mxu0 0.0
    %3586 = vmatpush.msra.mxu0 0.0
    %3587 = vmatpush.msra.mxu0 0.0
    %3588 = vmatpush.msra.mxu0 0.0
    %3589 = vmatpush.msra.mxu0 0.0
    %3590 = vmatpush.msra.mxu0 0.0
    %3591 = vmatpush.msra.mxu0 0.0
    %3592 = vmatpush.msra.mxu0 0.0
    %3593 = vmatpush.msra.mxu0 %v3573
    %3594 = vmatmul.f32.gmra.mxu0 %v3576
    %v3595 = vpop.f32.mrf.mxu0
    %v3596 = vadd.f32 0.0, %v3595
    %3597 = vdwg.mxu0
    %3598 = vrot.lane.b32.xlu0 %v3094, 48
    %v3599 = vpop.permute.xlu0 %3598
    %v3602 = vsel %vm1102, %v3571, 0
    %3604 = vmatpush.msra.mxu0 0.0
    %3605 = vmatpush.msra.mxu0 0.0
    %3606 = vmatpush.msra.mxu0 0.0
    %3607 = vmatpush.msra.mxu0 0.0
    %3608 = vmatpush.msra.mxu0 0.0
    %3609 = vmatpush.msra.mxu0 0.0
    %3610 = vmatpush.msra.mxu0 0.0
    %3611 = vmatpush.msra.mxu0 0.0
    %3612 = vmatpush.msra.mxu0 0.0
    %3613 = vmatpush.msra.mxu0 0.0
    %3614 = vmatpush.msra.mxu0 0.0
    %3615 = vmatpush.msra.mxu0 0.0
    %3616 = vmatpush.msra.mxu0 0.0
    %3617 = vmatpush.msra.mxu0 0.0
    %3618 = vmatpush.msra.mxu0 0.0
    %3619 = vmatpush.msra.mxu0 %v3599
    %3620 = vmatmul.f32.gmra.mxu0 %v3602
    %v3621 = vpop.f32.mrf.mxu0
    %v3622 = vadd.f32 0.0, %v3621
    %3623 = vdwg.mxu0
    %v3625 = vsel %vm1102, %v3596, 0
    %v3628 = vsel %vm1102, %v3622, 0
    %3630 = vmatpush.msra.mxu0 0.0
    %3631 = vmatpush.msra.mxu0 0.0
    %3632 = vmatpush.msra.mxu0 0.0
    %3633 = vmatpush.msra.mxu0 0.0
    %3634 = vmatpush.msra.mxu0 0.0
    %3635 = vmatpush.msra.mxu0 0.0
    %3636 = vmatpush.msra.mxu0 0.0
    %3637 = vmatpush.msra.mxu0 0.0
    %3638 = vmatpush.msra.mxu0 0.0
    %3639 = vmatpush.msra.mxu0 0.0
    %3640 = vmatpush.msra.mxu0 0.0
    %3641 = vmatpush.msra.mxu0 0.0
    %3642 = vmatpush.msra.mxu0 0.0
    %3643 = vmatpush.msra.mxu0 0.0
    %3644 = vmatpush.msra.mxu0 0.0
    %3645 = vmatpush.msra.mxu0 %v926
    %3646 = vmatmul.f32.gmra.mxu0 %v3625
    %v3647 = vpop.f32.mrf.mxu0
    %v3648 = vadd.f32 0.0, %v3647
    %3649 = vmatmul.f32.gmra.mxu0 %v3628
    %v3650 = vpop.f32.mrf.mxu0
    %v3651 = vadd.f32 0.0, %v3650
    %3652 = vdwg.mxu0
    %v3653 = vadd.f32 %v3463, %v3648
    %v3654 = vadd.f32 %v3466, %v3651
    %3655 = vrot.lane.b32.xlu0 %v3096, 104
    %v3656 = vpop.permute.xlu0 %3655
    %3657 = vrot.lane.b32.xlu0 %v3091, 72
    %v3658 = vpop.permute.xlu0 %3657
    %v3659 = vsel %vm1102, %v3656, 0
    %v3661 = vsel %vm1102, %v3658, 0
    %3663 = vmatpush.xpose.msra.mxu0 0.0
    %3664 = vmatpush.xpose.msra.mxu0 0.0
    %3665 = vmatpush.xpose.msra.mxu0 0.0
    %3666 = vmatpush.xpose.msra.mxu0 0.0
    %3667 = vmatpush.xpose.msra.mxu0 0.0
    %3668 = vmatpush.xpose.msra.mxu0 0.0
    %3669 = vmatpush.xpose.msra.mxu0 0.0
    %3670 = vmatpush.xpose.msra.mxu0 0.0
    %3671 = vmatpush.xpose.msra.mxu0 0.0
    %3672 = vmatpush.xpose.msra.mxu0 0.0
    %3673 = vmatpush.xpose.msra.mxu0 0.0
    %3674 = vmatpush.xpose.msra.mxu0 0.0
    %3675 = vmatpush.xpose.msra.mxu0 0.0
    %3676 = vmatpush.xpose.msra.mxu0 0.0
    %3677 = vmatpush.xpose.msra.mxu0 0.0
    %3678 = vmatpush.xpose.msra.mxu0 %v3661
    %3679 = vmatmul.f32.gmra.mxu0 %v3659
    %v3680 = vpop.f32.mrf.mxu0
    %v3681 = vadd.f32 0.0, %v3680
    %3682 = vdwg.mxu0
    %3683 = vrot.lane.b32.xlu0 %v3097, 104
    %v3684 = vpop.permute.xlu0 %3683
    %3685 = vrot.lane.b32.xlu0 %v3094, 72
    %v3686 = vpop.permute.xlu0 %3685
    %v3687 = vsel %vm1102, %v3684, 0
    %v3689 = vsel %vm1102, %v3686, 0
    %3691 = vmatpush.xpose.msra.mxu0 0.0
    %3692 = vmatpush.xpose.msra.mxu0 0.0
    %3693 = vmatpush.xpose.msra.mxu0 0.0
    %3694 = vmatpush.xpose.msra.mxu0 0.0
    %3695 = vmatpush.xpose.msra.mxu0 0.0
    %3696 = vmatpush.xpose.msra.mxu0 0.0
    %3697 = vmatpush.xpose.msra.mxu0 0.0
    %3698 = vmatpush.xpose.msra.mxu0 0.0
    %3699 = vmatpush.xpose.msra.mxu0 0.0
    %3700 = vmatpush.xpose.msra.mxu0 0.0
    %3701 = vmatpush.xpose.msra.mxu0 0.0
    %3702 = vmatpush.xpose.msra.mxu0 0.0
    %3703 = vmatpush.xpose.msra.mxu0 0.0
    %3704 = vmatpush.xpose.msra.mxu0 0.0
    %3705 = vmatpush.xpose.msra.mxu0 0.0
    %3706 = vmatpush.xpose.msra.mxu0 %v3689
    %3707 = vmatmul.f32.gmra.mxu0 %v3687
    %v3708 = vpop.f32.mrf.mxu0
    %v3709 = vadd.f32 0.0, %v3708
    %3710 = vdwg.mxu0
    %v3711 = vsel %vm1102, %v3681, -inf
    %3712 = vmax.xlane.f32.xlu0 %v3711
    %v3713 = vpop.xlane.xlu0 %3712
    %v3714 = vsel %vm1102, %v3709, -inf
    %3715 = vmax.xlane.f32.xlu0 %v3714
    %v3716 = vpop.xlane.xlu0 %3715
    %v3717 = vsub.f32 %v3681, %v3713
    %v3718 = vsub.f32 %v3709, %v3716
    %v3719 = vmul.f32 %v3717, 1.442695
    %v3720 = vpow.pop %v3719
    %v3721 = vmul.f32 %v3718, 1.442695
    %v3722 = vpow.pop %v3721
    %v3723 = vsel %vm1102, %v3720, 0.0
    %3724 = vadd.xlane.f32.xlu0 %v3723
    %v3725 = vpop.xlane.xlu0 %3724
    %v3726 = vsel %vm1102, %v3722, 0.0
    %3727 = vadd.xlane.f32.xlu0 %v3726
    %v3728 = vpop.xlane.xlu0 %3727
    %v3729 = vrcp.pop %v3725
    %v3730 = vmul.f32 %v3725, %v3729
    %v3731 = vsub.f32 1.0, %v3730
    %v3732 = vmul.f32 %v3729, %v3731
    %v3733 = vadd.f32 %v3729, %v3732
    %vm3734 = vweird.f32 %v3725
    %vm3735 = vweird.f32 %v3729
    %vm3736 = vmor %vm3734, %vm3735
    %v3737 = vsel %vm3736, %v3729, %v3733
    %v3738 = vand.u32 2147483647, %v3725
    %vm3739 = vcmp.eq.f32.partialorder %v3738, 8.507059e+37
    %v3740 = vand.u32 %v3725, 2147483648
    %v3741 = vor.u32 1.1754944e-38, %v3740
    %v3742 = vsel %vm3739, %v3741, %v3737
    %v3743 = vrcp.pop %v3728
    %v3744 = vmul.f32 %v3728, %v3743
    %v3745 = vsub.f32 1.0, %v3744
    %v3746 = vmul.f32 %v3743, %v3745
    %v3747 = vadd.f32 %v3743, %v3746
    %vm3748 = vweird.f32 %v3728
    %vm3749 = vweird.f32 %v3743
    %vm3750 = vmor %vm3748, %vm3749
    %v3751 = vsel %vm3750, %v3743, %v3747
    %v3752 = vand.u32 2147483647, %v3728
    %vm3753 = vcmp.eq.f32.partialorder %v3752, 8.507059e+37
    %v3754 = vand.u32 %v3728, 2147483648
    %v3755 = vor.u32 1.1754944e-38, %v3754
    %v3756 = vsel %vm3753, %v3755, %v3751
    %v3757 = vmul.f32 %v3720, %v3742
    %v3758 = vmul.f32 %v3722, %v3756
    %3759 = vrot.lane.b32.xlu0 %v3091, 40
    %v3760 = vpop.permute.xlu0 %3759
    %v3763 = vsel %vm1102, %v3757, 0
    %3765 = vmatpush.msra.mxu0 0.0
    %3766 = vmatpush.msra.mxu0 0.0
    %3767 = vmatpush.msra.mxu0 0.0
    %3768 = vmatpush.msra.mxu0 0.0
    %3769 = vmatpush.msra.mxu0 0.0
    %3770 = vmatpush.msra.mxu0 0.0
    %3771 = vmatpush.msra.mxu0 0.0
    %3772 = vmatpush.msra.mxu0 0.0
    %3773 = vmatpush.msra.mxu0 0.0
    %3774 = vmatpush.msra.mxu0 0.0
    %3775 = vmatpush.msra.mxu0 0.0
    %3776 = vmatpush.msra.mxu0 0.0
    %3777 = vmatpush.msra.mxu0 0.0
    %3778 = vmatpush.msra.mxu0 0.0
    %3779 = vmatpush.msra.mxu0 0.0
    %3780 = vmatpush.msra.mxu0 %v3760
    %3781 = vmatmul.f32.gmra.mxu0 %v3763
    %v3782 = vpop.f32.mrf.mxu0
    %v3783 = vadd.f32 0.0, %v3782
    %3784 = vdwg.mxu0
    %3785 = vrot.lane.b32.xlu0 %v3094, 40
    %v3786 = vpop.permute.xlu0 %3785
    %v3789 = vsel %vm1102, %v3758, 0
    %3791 = vmatpush.msra.mxu0 0.0
    %3792 = vmatpush.msra.mxu0 0.0
    %3793 = vmatpush.msra.mxu0 0.0
    %3794 = vmatpush.msra.mxu0 0.0
    %3795 = vmatpush.msra.mxu0 0.0
    %3796 = vmatpush.msra.mxu0 0.0
    %3797 = vmatpush.msra.mxu0 0.0
    %3798 = vmatpush.msra.mxu0 0.0
    %3799 = vmatpush.msra.mxu0 0.0
    %3800 = vmatpush.msra.mxu0 0.0
    %3801 = vmatpush.msra.mxu0 0.0
    %3802 = vmatpush.msra.mxu0 0.0
    %3803 = vmatpush.msra.mxu0 0.0
    %3804 = vmatpush.msra.mxu0 0.0
    %3805 = vmatpush.msra.mxu0 0.0
    %3806 = vmatpush.msra.mxu0 %v3786
    %3807 = vmatmul.f32.gmra.mxu0 %v3789
    %v3808 = vpop.f32.mrf.mxu0
    %v3809 = vadd.f32 0.0, %v3808
    %3810 = vdwg.mxu0
    %v3812 = vsel %vm1102, %v3783, 0
    %v3815 = vsel %vm1102, %v3809, 0
    %3817 = vmatpush.msra.mxu0 0.0
    %3818 = vmatpush.msra.mxu0 0.0
    %3819 = vmatpush.msra.mxu0 0.0
    %3820 = vmatpush.msra.mxu0 0.0
    %3821 = vmatpush.msra.mxu0 0.0
    %3822 = vmatpush.msra.mxu0 0.0
    %3823 = vmatpush.msra.mxu0 0.0
    %3824 = vmatpush.msra.mxu0 0.0
    %3825 = vmatpush.msra.mxu0 0.0
    %3826 = vmatpush.msra.mxu0 0.0
    %3827 = vmatpush.msra.mxu0 0.0
    %3828 = vmatpush.msra.mxu0 0.0
    %3829 = vmatpush.msra.mxu0 0.0
    %3830 = vmatpush.msra.mxu0 0.0
    %3831 = vmatpush.msra.mxu0 0.0
    %3832 = vmatpush.msra.mxu0 %v927
    %3833 = vmatmul.f32.gmra.mxu0 %v3812
    %v3834 = vpop.f32.mrf.mxu0
    %v3835 = vadd.f32 0.0, %v3834
    %3836 = vmatmul.f32.gmra.mxu0 %v3815
    %v3837 = vpop.f32.mrf.mxu0
    %v3838 = vadd.f32 0.0, %v3837
    %3839 = vdwg.mxu0
    %v3840 = vadd.f32 %v3653, %v3835
    %v3841 = vadd.f32 %v3654, %v3838
    %v3843 = vperm.slane %v919, 0
    %v3845 = vadd.f32 %v3840, %v3843
    %v3846 = vadd.f32 %v3841, %v3843
    %v3847 = vadd.f32 %v3053, %v3845
    %v3848 = vadd.f32 %v3063, %v3846
    %v3849 = vsel %vm1068, %v3847, 0.0
    %3850 = vadd.xlane.f32.xlu0 %v3849
    %v3851 = vpop.xlane.xlu0 %3850
    %v3852 = vsel %vm1068, %v3848, 0.0
    %3853 = vadd.xlane.f32.xlu0 %v3852
    %v3854 = vpop.xlane.xlu0 %3853
    %v3855 = vmul.f32 %v3851, %v1863
    %v3856 = vmul.f32 %v3854, %v1863
    %v3857 = vsub.f32 %v3847, %v3855
    %v3858 = vsub.f32 %v3848, %v3856
    %v3859 = vmul.f32 %v3857, %v3857
    %v3860 = vmul.f32 %v3858, %v3858
    %v3861 = vsel %vm1068, %v3859, 0.0
    %3862 = vadd.xlane.f32.xlu0 %v3861
    %v3863 = vpop.xlane.xlu0 %3862
    %v3864 = vsel %vm1068, %v3860, 0.0
    %3865 = vadd.xlane.f32.xlu0 %v3864
    %v3866 = vpop.xlane.xlu0 %3865
    %v3867 = vmul.f32 %v3863, %v1863
    %v3868 = vmul.f32 %v3866, %v1863
    %v3869 = vadd.f32 %v3867, 1e-05
    %v3870 = vadd.f32 %v3868, 1e-05
    %v3871 = vrsqrt.pop %v3869
    %v3872 = vmul.f32 %v3871, %v3869
    %v3873 = vmul.f32 %v3872, %v3871
    %v3874 = vmul.f32 0.5, %v3873
    %v3875 = vsub.f32 1.5, %v3874
    %v3876 = vmul.f32 %v3871, %v3875
    %vm3877 = vweird.f32 %v3869
    %vm3878 = vweird.f32 %v3871
    %vm3879 = vmor %vm3877, %vm3878
    %v3880 = vsel %vm3879, %v3871, %v3876
    %v3881 = vrsqrt.pop %v3870
    %v3882 = vmul.f32 %v3881, %v3870
    %v3883 = vmul.f32 %v3882, %v3881
    %v3884 = vmul.f32 0.5, %v3883
    %v3885 = vsub.f32 1.5, %v3884
    %v3886 = vmul.f32 %v3881, %v3885
    %vm3887 = vweird.f32 %v3870
    %vm3888 = vweird.f32 %v3881
    %vm3889 = vmor %vm3887, %vm3888
    %v3890 = vsel %vm3889, %v3881, %v3886
    %v3891 = vmul.f32 %v3857, %v3880
    %v3892 = vmul.f32 %v3858, %v3890
    %v3894 = vperm.slane %v913, 0
    %v3896 = vmul.f32 %v3891, %v3894
    %v3897 = vmul.f32 %v3892, %v3894
    %v3899 = vperm.slane %v912, 0
    %v3901 = vadd.f32 %v3896, %v3899
    %v3902 = vadd.f32 %v3897, %v3899
    %v3904 = vperm.slane %v899, 0
    %v3907 = vsel %vm1068, %v3901, 0
    %v3910 = vsel %vm1068, %v3902, 0
    %3912 = vmatpush.msra.mxu0 0.0
    %3913 = vmatpush.msra.mxu0 0.0
    %3914 = vmatpush.msra.mxu0 0.0
    %3915 = vmatpush.msra.mxu0 0.0
    %3916 = vmatpush.msra.mxu0 0.0
    %3917 = vmatpush.msra.mxu0 0.0
    %3918 = vmatpush.msra.mxu0 0.0
    %3919 = vmatpush.msra.mxu0 0.0
    %3920 = vmatpush.msra.mxu0 0.0
    %3921 = vmatpush.msra.mxu0 0.0
    %3922 = vmatpush.msra.mxu0 0.0
    %3923 = vmatpush.msra.mxu0 0.0
    %3924 = vmatpush.msra.mxu0 %v911
    %3925 = vmatpush.msra.mxu0 %v910
    %3926 = vmatpush.msra.mxu0 %v909
    %3927 = vmatpush.msra.mxu0 %v908
    %3928 = vmatmul.f32.gmra.mxu0 %v3907
    %v3929 = vpop.f32.mrf.mxu0
    %v3930 = vadd.f32 %v3904, %v3929
    %3931 = vmatmul.f32.gmra.mxu0 %v3910
    %v3932 = vpop.f32.mrf.mxu0
    %v3933 = vadd.f32 %v3904, %v3932
    %3934 = vdwg.mxu0
    %v3936 = vperm.slane %v897, 0
    %v3939 = vsel %vm1068, %v3048, 0
    %v3942 = vsel %vm1068, %v3049, 0
    %3944 = vmatpush.msra.mxu0 0.0
    %3945 = vmatpush.msra.mxu0 0.0
    %3946 = vmatpush.msra.mxu0 0.0
    %3947 = vmatpush.msra.mxu0 0.0
    %3948 = vmatpush.msra.mxu0 0.0
    %3949 = vmatpush.msra.mxu0 0.0
    %3950 = vmatpush.msra.mxu0 0.0
    %3951 = vmatpush.msra.mxu0 0.0
    %3952 = vmatpush.msra.mxu0 0.0
    %3953 = vmatpush.msra.mxu0 0.0
    %3954 = vmatpush.msra.mxu0 0.0
    %3955 = vmatpush.msra.mxu0 0.0
    %3956 = vmatpush.msra.mxu0 %v903
    %3957 = vmatpush.msra.mxu0 %v902
    %3958 = vmatpush.msra.mxu0 %v901
    %3959 = vmatpush.msra.mxu0 %v900
    %3960 = vmatmul.f32.gmra.mxu0 %v3939
    %v3961 = vpop.f32.mrf.mxu0
    %v3962 = vadd.f32 %v3936, %v3961
    %3963 = vmatmul.f32.gmra.mxu0 %v3942
    %v3964 = vpop.f32.mrf.mxu0
    %v3965 = vadd.f32 %v3936, %v3964
    %3966 = vdwg.mxu0
    %v3967 = vmul.f32 %v3930, 0.35355338
    %v3968 = vmul.f32 %v3933, 0.35355338
    %v3970 = vsel %vm1102, %v3967, 0
    %v3973 = vsel %vm1102, %v3962, 0
    %3975 = vmatpush.xpose.msra.mxu0 0.0
    %3976 = vmatpush.xpose.msra.mxu0 0.0
    %3977 = vmatpush.xpose.msra.mxu0 0.0
    %3978 = vmatpush.xpose.msra.mxu0 0.0
    %3979 = vmatpush.xpose.msra.mxu0 0.0
    %3980 = vmatpush.xpose.msra.mxu0 0.0
    %3981 = vmatpush.xpose.msra.mxu0 0.0
    %3982 = vmatpush.xpose.msra.mxu0 0.0
    %3983 = vmatpush.xpose.msra.mxu0 0.0
    %3984 = vmatpush.xpose.msra.mxu0 0.0
    %3985 = vmatpush.xpose.msra.mxu0 0.0
    %3986 = vmatpush.xpose.msra.mxu0 0.0
    %3987 = vmatpush.xpose.msra.mxu0 0.0
    %3988 = vmatpush.xpose.msra.mxu0 0.0
    %3989 = vmatpush.xpose.msra.mxu0 0.0
    %3990 = vmatpush.xpose.msra.mxu0 %v3973
    %3991 = vmatmul.f32.gmra.mxu0 %v3970
    %v3992 = vpop.f32.mrf.mxu0
    %v3993 = vadd.f32 0.0, %v3992
    %3994 = vdwg.mxu0
    %v3996 = vsel %vm1102, %v3968, 0
    %v3999 = vsel %vm1102, %v3965, 0
    %4001 = vmatpush.xpose.msra.mxu0 0.0
    %4002 = vmatpush.xpose.msra.mxu0 0.0
    %4003 = vmatpush.xpose.msra.mxu0 0.0
    %4004 = vmatpush.xpose.msra.mxu0 0.0
    %4005 = vmatpush.xpose.msra.mxu0 0.0
    %4006 = vmatpush.xpose.msra.mxu0 0.0
    %4007 = vmatpush.xpose.msra.mxu0 0.0
    %4008 = vmatpush.xpose.msra.mxu0 0.0
    %4009 = vmatpush.xpose.msra.mxu0 0.0
    %4010 = vmatpush.xpose.msra.mxu0 0.0
    %4011 = vmatpush.xpose.msra.mxu0 0.0
    %4012 = vmatpush.xpose.msra.mxu0 0.0
    %4013 = vmatpush.xpose.msra.mxu0 0.0
    %4014 = vmatpush.xpose.msra.mxu0 0.0
    %4015 = vmatpush.xpose.msra.mxu0 0.0
    %4016 = vmatpush.xpose.msra.mxu0 %v3999
    %4017 = vmatmul.f32.gmra.mxu0 %v3996
    %v4018 = vpop.f32.mrf.mxu0
    %v4019 = vadd.f32 0.0, %v4018
    %4020 = vdwg.mxu0
    %v4021 = vsel %vm1102, %v3993, -inf
    %4022 = vmax.xlane.f32.xlu0 %v4021
    %v4023 = vpop.xlane.xlu0 %4022
    %v4024 = vsel %vm1102, %v4019, -inf
    %4025 = vmax.xlane.f32.xlu0 %v4024
    %v4026 = vpop.xlane.xlu0 %4025
    %v4027 = vsub.f32 %v3993, %v4023
    %v4028 = vsub.f32 %v4019, %v4026
    %v4029 = vmul.f32 %v4027, 1.442695
    %v4030 = vpow.pop %v4029
    %v4031 = vmul.f32 %v4028, 1.442695
    %v4032 = vpow.pop %v4031
    %v4033 = vsel %vm1102, %v4030, 0.0
    %4034 = vadd.xlane.f32.xlu0 %v4033
    %v4035 = vpop.xlane.xlu0 %4034
    %v4036 = vsel %vm1102, %v4032, 0.0
    %4037 = vadd.xlane.f32.xlu0 %v4036
    %v4038 = vpop.xlane.xlu0 %4037
    %v4039 = vrcp.pop %v4035
    %v4040 = vmul.f32 %v4035, %v4039
    %v4041 = vsub.f32 1.0, %v4040
    %v4042 = vmul.f32 %v4039, %v4041
    %v4043 = vadd.f32 %v4039, %v4042
    %vm4044 = vweird.f32 %v4035
    %vm4045 = vweird.f32 %v4039
    %vm4046 = vmor %vm4044, %vm4045
    %v4047 = vsel %vm4046, %v4039, %v4043
    %v4048 = vand.u32 2147483647, %v4035
    %vm4049 = vcmp.eq.f32.partialorder %v4048, 8.507059e+37
    %v4050 = vand.u32 %v4035, 2147483648
    %v4051 = vor.u32 1.1754944e-38, %v4050
    %v4052 = vsel %vm4049, %v4051, %v4047
    %v4053 = vrcp.pop %v4038
    %v4054 = vmul.f32 %v4038, %v4053
    %v4055 = vsub.f32 1.0, %v4054
    %v4056 = vmul.f32 %v4053, %v4055
    %v4057 = vadd.f32 %v4053, %v4056
    %vm4058 = vweird.f32 %v4038
    %vm4059 = vweird.f32 %v4053
    %vm4060 = vmor %vm4058, %vm4059
    %v4061 = vsel %vm4060, %v4053, %v4057
    %v4062 = vand.u32 2147483647, %v4038
    %vm4063 = vcmp.eq.f32.partialorder %v4062, 8.507059e+37
    %v4064 = vand.u32 %v4038, 2147483648
    %v4065 = vor.u32 1.1754944e-38, %v4064
    %v4066 = vsel %vm4063, %v4065, %v4061
    %v4067 = vmul.f32 %v4030, %v4052
    %v4068 = vmul.f32 %v4032, %v4066
    %4069 = vrot.lane.b32.xlu0 %v3962, 96
    %v4070 = vpop.permute.xlu0 %4069
    %v4073 = vsel %vm1102, %v4067, 0
    %4075 = vmatpush.msra.mxu0 0.0
    %4076 = vmatpush.msra.mxu0 0.0
    %4077 = vmatpush.msra.mxu0 0.0
    %4078 = vmatpush.msra.mxu0 0.0
    %4079 = vmatpush.msra.mxu0 0.0
    %4080 = vmatpush.msra.mxu0 0.0
    %4081 = vmatpush.msra.mxu0 0.0
    %4082 = vmatpush.msra.mxu0 0.0
    %4083 = vmatpush.msra.mxu0 0.0
    %4084 = vmatpush.msra.mxu0 0.0
    %4085 = vmatpush.msra.mxu0 0.0
    %4086 = vmatpush.msra.mxu0 0.0
    %4087 = vmatpush.msra.mxu0 0.0
    %4088 = vmatpush.msra.mxu0 0.0
    %4089 = vmatpush.msra.mxu0 0.0
    %4090 = vmatpush.msra.mxu0 %v4070
    %4091 = vmatmul.f32.gmra.mxu0 %v4073
    %v4092 = vpop.f32.mrf.mxu0
    %v4093 = vadd.f32 0.0, %v4092
    %4094 = vdwg.mxu0
    %4095 = vrot.lane.b32.xlu0 %v3965, 96
    %v4096 = vpop.permute.xlu0 %4095
    %v4099 = vsel %vm1102, %v4068, 0
    %4101 = vmatpush.msra.mxu0 0.0
    %4102 = vmatpush.msra.mxu0 0.0
    %4103 = vmatpush.msra.mxu0 0.0
    %4104 = vmatpush.msra.mxu0 0.0
    %4105 = vmatpush.msra.mxu0 0.0
    %4106 = vmatpush.msra.mxu0 0.0
    %4107 = vmatpush.msra.mxu0 0.0
    %4108 = vmatpush.msra.mxu0 0.0
    %4109 = vmatpush.msra.mxu0 0.0
    %4110 = vmatpush.msra.mxu0 0.0
    %4111 = vmatpush.msra.mxu0 0.0
    %4112 = vmatpush.msra.mxu0 0.0
    %4113 = vmatpush.msra.mxu0 0.0
    %4114 = vmatpush.msra.mxu0 0.0
    %4115 = vmatpush.msra.mxu0 0.0
    %4116 = vmatpush.msra.mxu0 %v4096
    %4117 = vmatmul.f32.gmra.mxu0 %v4099
    %v4118 = vpop.f32.mrf.mxu0
    %v4119 = vadd.f32 0.0, %v4118
    %4120 = vdwg.mxu0
    %4121 = vrot.lane.b32.xlu0 %v3967, 120
    %v4122 = vpop.permute.xlu0 %4121
    %4123 = vrot.lane.b32.xlu0 %v3962, 120
    %v4124 = vpop.permute.xlu0 %4123
    %v4125 = vsel %vm1102, %v4122, 0
    %v4127 = vsel %vm1102, %v4124, 0
    %4129 = vmatpush.xpose.msra.mxu0 0.0
    %4130 = vmatpush.xpose.msra.mxu0 0.0
    %4131 = vmatpush.xpose.msra.mxu0 0.0
    %4132 = vmatpush.xpose.msra.mxu0 0.0
    %4133 = vmatpush.xpose.msra.mxu0 0.0
    %4134 = vmatpush.xpose.msra.mxu0 0.0
    %4135 = vmatpush.xpose.msra.mxu0 0.0
    %4136 = vmatpush.xpose.msra.mxu0 0.0
    %4137 = vmatpush.xpose.msra.mxu0 0.0
    %4138 = vmatpush.xpose.msra.mxu0 0.0
    %4139 = vmatpush.xpose.msra.mxu0 0.0
    %4140 = vmatpush.xpose.msra.mxu0 0.0
    %4141 = vmatpush.xpose.msra.mxu0 0.0
    %4142 = vmatpush.xpose.msra.mxu0 0.0
    %4143 = vmatpush.xpose.msra.mxu0 0.0
    %4144 = vmatpush.xpose.msra.mxu0 %v4127
    %4145 = vmatmul.f32.gmra.mxu0 %v4125
    %v4146 = vpop.f32.mrf.mxu0
    %v4147 = vadd.f32 0.0, %v4146
    %4148 = vdwg.mxu0
    %4149 = vrot.lane.b32.xlu0 %v3968, 120
    %v4150 = vpop.permute.xlu0 %4149
    %4151 = vrot.lane.b32.xlu0 %v3965, 120
    %v4152 = vpop.permute.xlu0 %4151
    %v4153 = vsel %vm1102, %v4150, 0
    %v4155 = vsel %vm1102, %v4152, 0
    %4157 = vmatpush.xpose.msra.mxu0 0.0
    %4158 = vmatpush.xpose.msra.mxu0 0.0
    %4159 = vmatpush.xpose.msra.mxu0 0.0
    %4160 = vmatpush.xpose.msra.mxu0 0.0
    %4161 = vmatpush.xpose.msra.mxu0 0.0
    %4162 = vmatpush.xpose.msra.mxu0 0.0
    %4163 = vmatpush.xpose.msra.mxu0 0.0
    %4164 = vmatpush.xpose.msra.mxu0 0.0
    %4165 = vmatpush.xpose.msra.mxu0 0.0
    %4166 = vmatpush.xpose.msra.mxu0 0.0
    %4167 = vmatpush.xpose.msra.mxu0 0.0
    %4168 = vmatpush.xpose.msra.mxu0 0.0
    %4169 = vmatpush.xpose.msra.mxu0 0.0
    %4170 = vmatpush.xpose.msra.mxu0 0.0
    %4171 = vmatpush.xpose.msra.mxu0 0.0
    %4172 = vmatpush.xpose.msra.mxu0 %v4155
    %4173 = vmatmul.f32.gmra.mxu0 %v4153
    %v4174 = vpop.f32.mrf.mxu0
    %v4175 = vadd.f32 0.0, %v4174
    %4176 = vdwg.mxu0
    %v4177 = vsel %vm1102, %v4147, -inf
    %4178 = vmax.xlane.f32.xlu0 %v4177
    %v4179 = vpop.xlane.xlu0 %4178
    %v4180 = vsel %vm1102, %v4175, -inf
    %4181 = vmax.xlane.f32.xlu0 %v4180
    %v4182 = vpop.xlane.xlu0 %4181
    %v4183 = vsub.f32 %v4147, %v4179
    %v4184 = vsub.f32 %v4175, %v4182
    %v4185 = vmul.f32 %v4183, 1.442695
    %v4186 = vpow.pop %v4185
    %v4187 = vmul.f32 %v4184, 1.442695
    %v4188 = vpow.pop %v4187
    %v4189 = vsel %vm1102, %v4186, 0.0
    %4190 = vadd.xlane.f32.xlu0 %v4189
    %v4191 = vpop.xlane.xlu0 %4190
    %v4192 = vsel %vm1102, %v4188, 0.0
    %4193 = vadd.xlane.f32.xlu0 %v4192
    %v4194 = vpop.xlane.xlu0 %4193
    %v4195 = vrcp.pop %v4191
    %v4196 = vmul.f32 %v4191, %v4195
    %v4197 = vsub.f32 1.0, %v4196
    %v4198 = vmul.f32 %v4195, %v4197
    %v4199 = vadd.f32 %v4195, %v4198
    %vm4200 = vweird.f32 %v4191
    %vm4201 = vweird.f32 %v4195
    %vm4202 = vmor %vm4200, %vm4201
    %v4203 = vsel %vm4202, %v4195, %v4199
    %v4204 = vand.u32 2147483647, %v4191
    %vm4205 = vcmp.eq.f32.partialorder %v4204, 8.507059e+37
    %v4206 = vand.u32 %v4191, 2147483648
    %v4207 = vor.u32 1.1754944e-38, %v4206
    %v4208 = vsel %vm4205, %v4207, %v4203
    %v4209 = vrcp.pop %v4194
    %v4210 = vmul.f32 %v4194, %v4209
    %v4211 = vsub.f32 1.0, %v4210
    %v4212 = vmul.f32 %v4209, %v4211
    %v4213 = vadd.f32 %v4209, %v4212
    %vm4214 = vweird.f32 %v4194
    %vm4215 = vweird.f32 %v4209
    %vm4216 = vmor %vm4214, %vm4215
    %v4217 = vsel %vm4216, %v4209, %v4213
    %v4218 = vand.u32 2147483647, %v4194
    %vm4219 = vcmp.eq.f32.partialorder %v4218, 8.507059e+37
    %v4220 = vand.u32 %v4194, 2147483648
    %v4221 = vor.u32 1.1754944e-38, %v4220
    %v4222 = vsel %vm4219, %v4221, %v4217
    %v4223 = vmul.f32 %v4186, %v4208
    %v4224 = vmul.f32 %v4188, %v4222
    %4225 = vrot.lane.b32.xlu0 %v3962, 88
    %v4226 = vpop.permute.xlu0 %4225
    %v4229 = vsel %vm1102, %v4223, 0
    %4231 = vmatpush.msra.mxu0 0.0
    %4232 = vmatpush.msra.mxu0 0.0
    %4233 = vmatpush.msra.mxu0 0.0
    %4234 = vmatpush.msra.mxu0 0.0
    %4235 = vmatpush.msra.mxu0 0.0
    %4236 = vmatpush.msra.mxu0 0.0
    %4237 = vmatpush.msra.mxu0 0.0
    %4238 = vmatpush.msra.mxu0 0.0
    %4239 = vmatpush.msra.mxu0 0.0
    %4240 = vmatpush.msra.mxu0 0.0
    %4241 = vmatpush.msra.mxu0 0.0
    %4242 = vmatpush.msra.mxu0 0.0
    %4243 = vmatpush.msra.mxu0 0.0
    %4244 = vmatpush.msra.mxu0 0.0
    %4245 = vmatpush.msra.mxu0 0.0
    %4246 = vmatpush.msra.mxu0 %v4226
    %4247 = vmatmul.f32.gmra.mxu0 %v4229
    %v4248 = vpop.f32.mrf.mxu0
    %v4249 = vadd.f32 0.0, %v4248
    %4250 = vdwg.mxu0
    %4251 = vrot.lane.b32.xlu0 %v3965, 88
    %v4252 = vpop.permute.xlu0 %4251
    %v4255 = vsel %vm1102, %v4224, 0
    %4257 = vmatpush.msra.mxu0 0.0
    %4258 = vmatpush.msra.mxu0 0.0
    %4259 = vmatpush.msra.mxu0 0.0
    %4260 = vmatpush.msra.mxu0 0.0
    %4261 = vmatpush.msra.mxu0 0.0
    %4262 = vmatpush.msra.mxu0 0.0
    %4263 = vmatpush.msra.mxu0 0.0
    %4264 = vmatpush.msra.mxu0 0.0
    %4265 = vmatpush.msra.mxu0 0.0
    %4266 = vmatpush.msra.mxu0 0.0
    %4267 = vmatpush.msra.mxu0 0.0
    %4268 = vmatpush.msra.mxu0 0.0
    %4269 = vmatpush.msra.mxu0 0.0
    %4270 = vmatpush.msra.mxu0 0.0
    %4271 = vmatpush.msra.mxu0 0.0
    %4272 = vmatpush.msra.mxu0 %v4252
    %4273 = vmatmul.f32.gmra.mxu0 %v4255
    %v4274 = vpop.f32.mrf.mxu0
    %v4275 = vadd.f32 0.0, %v4274
    %4276 = vdwg.mxu0
    %v4278 = vsel %vm1102, %v4249, 0
    %v4281 = vsel %vm1102, %v4275, 0
    %4283 = vmatpush.msra.mxu0 0.0
    %4284 = vmatpush.msra.mxu0 0.0
    %4285 = vmatpush.msra.mxu0 0.0
    %4286 = vmatpush.msra.mxu0 0.0
    %4287 = vmatpush.msra.mxu0 0.0
    %4288 = vmatpush.msra.mxu0 0.0
    %4289 = vmatpush.msra.mxu0 0.0
    %4290 = vmatpush.msra.mxu0 0.0
    %4291 = vmatpush.msra.mxu0 0.0
    %4292 = vmatpush.msra.mxu0 0.0
    %4293 = vmatpush.msra.mxu0 0.0
    %4294 = vmatpush.msra.mxu0 0.0
    %4295 = vmatpush.msra.mxu0 0.0
    %4296 = vmatpush.msra.mxu0 0.0
    %4297 = vmatpush.msra.mxu0 0.0
    %4298 = vmatpush.msra.mxu0 %v905
    %4299 = vmatmul.f32.gmra.mxu0 %v4278
    %v4300 = vpop.f32.mrf.mxu0
    %v4301 = vadd.f32 0.0, %v4300
    %4302 = vmatmul.f32.gmra.mxu0 %v4281
    %v4303 = vpop.f32.mrf.mxu0
    %v4304 = vadd.f32 0.0, %v4303
    %4305 = vdwg.mxu0
    %v4307 = vsel %vm1102, %v4093, 0
    %v4310 = vsel %vm1102, %v4119, 0
    %4312 = vmatpush.msra.mxu0 0.0
    %4313 = vmatpush.msra.mxu0 0.0
    %4314 = vmatpush.msra.mxu0 0.0
    %4315 = vmatpush.msra.mxu0 0.0
    %4316 = vmatpush.msra.mxu0 0.0
    %4317 = vmatpush.msra.mxu0 0.0
    %4318 = vmatpush.msra.mxu0 0.0
    %4319 = vmatpush.msra.mxu0 0.0
    %4320 = vmatpush.msra.mxu0 0.0
    %4321 = vmatpush.msra.mxu0 0.0
    %4322 = vmatpush.msra.mxu0 0.0
    %4323 = vmatpush.msra.mxu0 0.0
    %4324 = vmatpush.msra.mxu0 0.0
    %4325 = vmatpush.msra.mxu0 0.0
    %4326 = vmatpush.msra.mxu0 0.0
    %4327 = vmatpush.msra.mxu0 %v904
    %4328 = vmatmul.f32.gmra.mxu0 %v4307
    %v4329 = vpop.f32.mrf.mxu0
    %v4330 = vadd.f32 %v4301, %v4329
    %4331 = vmatmul.f32.gmra.mxu0 %v4310
    %v4332 = vpop.f32.mrf.mxu0
    %v4333 = vadd.f32 %v4304, %v4332
    %4334 = vdwg.mxu0
    %4335 = vrot.lane.b32.xlu0 %v3967, 112
    %v4336 = vpop.permute.xlu0 %4335
    %4337 = vrot.lane.b32.xlu0 %v3962, 112
    %v4338 = vpop.permute.xlu0 %4337
    %v4339 = vsel %vm1102, %v4336, 0
    %v4341 = vsel %vm1102, %v4338, 0
    %4343 = vmatpush.xpose.msra.mxu0 0.0
    %4344 = vmatpush.xpose.msra.mxu0 0.0
    %4345 = vmatpush.xpose.msra.mxu0 0.0
    %4346 = vmatpush.xpose.msra.mxu0 0.0
    %4347 = vmatpush.xpose.msra.mxu0 0.0
    %4348 = vmatpush.xpose.msra.mxu0 0.0
    %4349 = vmatpush.xpose.msra.mxu0 0.0
    %4350 = vmatpush.xpose.msra.mxu0 0.0
    %4351 = vmatpush.xpose.msra.mxu0 0.0
    %4352 = vmatpush.xpose.msra.mxu0 0.0
    %4353 = vmatpush.xpose.msra.mxu0 0.0
    %4354 = vmatpush.xpose.msra.mxu0 0.0
    %4355 = vmatpush.xpose.msra.mxu0 0.0
    %4356 = vmatpush.xpose.msra.mxu0 0.0
    %4357 = vmatpush.xpose.msra.mxu0 0.0
    %4358 = vmatpush.xpose.msra.mxu0 %v4341
    %4359 = vmatmul.f32.gmra.mxu0 %v4339
    %v4360 = vpop.f32.mrf.mxu0
    %v4361 = vadd.f32 0.0, %v4360
    %4362 = vdwg.mxu0
    %4363 = vrot.lane.b32.xlu0 %v3968, 112
    %v4364 = vpop.permute.xlu0 %4363
    %4365 = vrot.lane.b32.xlu0 %v3965, 112
    %v4366 = vpop.permute.xlu0 %4365
    %v4367 = vsel %vm1102, %v4364, 0
    %v4369 = vsel %vm1102, %v4366, 0
    %4371 = vmatpush.xpose.msra.mxu0 0.0
    %4372 = vmatpush.xpose.msra.mxu0 0.0
    %4373 = vmatpush.xpose.msra.mxu0 0.0
    %4374 = vmatpush.xpose.msra.mxu0 0.0
    %4375 = vmatpush.xpose.msra.mxu0 0.0
    %4376 = vmatpush.xpose.msra.mxu0 0.0
    %4377 = vmatpush.xpose.msra.mxu0 0.0
    %4378 = vmatpush.xpose.msra.mxu0 0.0
    %4379 = vmatpush.xpose.msra.mxu0 0.0
    %4380 = vmatpush.xpose.msra.mxu0 0.0
    %4381 = vmatpush.xpose.msra.mxu0 0.0
    %4382 = vmatpush.xpose.msra.mxu0 0.0
    %4383 = vmatpush.xpose.msra.mxu0 0.0
    %4384 = vmatpush.xpose.msra.mxu0 0.0
    %4385 = vmatpush.xpose.msra.mxu0 0.0
    %4386 = vmatpush.xpose.msra.mxu0 %v4369
    %4387 = vmatmul.f32.gmra.mxu0 %v4367
    %v4388 = vpop.f32.mrf.mxu0
    %v4389 = vadd.f32 0.0, %v4388
    %4390 = vdwg.mxu0
    %v4391 = vsel %vm1102, %v4361, -inf
    %4392 = vmax.xlane.f32.xlu0 %v4391
    %v4393 = vpop.xlane.xlu0 %4392
    %v4394 = vsel %vm1102, %v4389, -inf
    %4395 = vmax.xlane.f32.xlu0 %v4394
    %v4396 = vpop.xlane.xlu0 %4395
    %v4397 = vsub.f32 %v4361, %v4393
    %v4398 = vsub.f32 %v4389, %v4396
    %v4399 = vmul.f32 %v4397, 1.442695
    %v4400 = vpow.pop %v4399
    %v4401 = vmul.f32 %v4398, 1.442695
    %v4402 = vpow.pop %v4401
    %v4403 = vsel %vm1102, %v4400, 0.0
    %4404 = vadd.xlane.f32.xlu0 %v4403
    %v4405 = vpop.xlane.xlu0 %4404
    %v4406 = vsel %vm1102, %v4402, 0.0
    %4407 = vadd.xlane.f32.xlu0 %v4406
    %v4408 = vpop.xlane.xlu0 %4407
    %v4409 = vrcp.pop %v4405
    %v4410 = vmul.f32 %v4405, %v4409
    %v4411 = vsub.f32 1.0, %v4410
    %v4412 = vmul.f32 %v4409, %v4411
    %v4413 = vadd.f32 %v4409, %v4412
    %vm4414 = vweird.f32 %v4405
    %vm4415 = vweird.f32 %v4409
    %vm4416 = vmor %vm4414, %vm4415
    %v4417 = vsel %vm4416, %v4409, %v4413
    %v4418 = vand.u32 2147483647, %v4405
    %vm4419 = vcmp.eq.f32.partialorder %v4418, 8.507059e+37
    %v4420 = vand.u32 %v4405, 2147483648
    %v4421 = vor.u32 1.1754944e-38, %v4420
    %v4422 = vsel %vm4419, %v4421, %v4417
    %v4423 = vrcp.pop %v4408
    %v4424 = vmul.f32 %v4408, %v4423
    %v4425 = vsub.f32 1.0, %v4424
    %v4426 = vmul.f32 %v4423, %v4425
    %v4427 = vadd.f32 %v4423, %v4426
    %vm4428 = vweird.f32 %v4408
    %vm4429 = vweird.f32 %v4423
    %vm4430 = vmor %vm4428, %vm4429
    %v4431 = vsel %vm4430, %v4423, %v4427
    %v4432 = vand.u32 2147483647, %v4408
    %vm4433 = vcmp.eq.f32.partialorder %v4432, 8.507059e+37
    %v4434 = vand.u32 %v4408, 2147483648
    %v4435 = vor.u32 1.1754944e-38, %v4434
    %v4436 = vsel %vm4433, %v4435, %v4431
    %v4437 = vmul.f32 %v4400, %v4422
    %v4438 = vmul.f32 %v4402, %v4436
    %4439 = vrot.lane.b32.xlu0 %v3962, 80
    %v4440 = vpop.permute.xlu0 %4439
    %v4443 = vsel %vm1102, %v4437, 0
    %4445 = vmatpush.msra.mxu0 0.0
    %4446 = vmatpush.msra.mxu0 0.0
    %4447 = vmatpush.msra.mxu0 0.0
    %4448 = vmatpush.msra.mxu0 0.0
    %4449 = vmatpush.msra.mxu0 0.0
    %4450 = vmatpush.msra.mxu0 0.0
    %4451 = vmatpush.msra.mxu0 0.0
    %4452 = vmatpush.msra.mxu0 0.0
    %4453 = vmatpush.msra.mxu0 0.0
    %4454 = vmatpush.msra.mxu0 0.0
    %4455 = vmatpush.msra.mxu0 0.0
    %4456 = vmatpush.msra.mxu0 0.0
    %4457 = vmatpush.msra.mxu0 0.0
    %4458 = vmatpush.msra.mxu0 0.0
    %4459 = vmatpush.msra.mxu0 0.0
    %4460 = vmatpush.msra.mxu0 %v4440
    %4461 = vmatmul.f32.gmra.mxu0 %v4443
    %v4462 = vpop.f32.mrf.mxu0
    %v4463 = vadd.f32 0.0, %v4462
    %4464 = vdwg.mxu0
    %4465 = vrot.lane.b32.xlu0 %v3965, 80
    %v4466 = vpop.permute.xlu0 %4465
    %v4469 = vsel %vm1102, %v4438, 0
    %4471 = vmatpush.msra.mxu0 0.0
    %4472 = vmatpush.msra.mxu0 0.0
    %4473 = vmatpush.msra.mxu0 0.0
    %4474 = vmatpush.msra.mxu0 0.0
    %4475 = vmatpush.msra.mxu0 0.0
    %4476 = vmatpush.msra.mxu0 0.0
    %4477 = vmatpush.msra.mxu0 0.0
    %4478 = vmatpush.msra.mxu0 0.0
    %4479 = vmatpush.msra.mxu0 0.0
    %4480 = vmatpush.msra.mxu0 0.0
    %4481 = vmatpush.msra.mxu0 0.0
    %4482 = vmatpush.msra.mxu0 0.0
    %4483 = vmatpush.msra.mxu0 0.0
    %4484 = vmatpush.msra.mxu0 0.0
    %4485 = vmatpush.msra.mxu0 0.0
    %4486 = vmatpush.msra.mxu0 %v4466
    %4487 = vmatmul.f32.gmra.mxu0 %v4469
    %v4488 = vpop.f32.mrf.mxu0
    %v4489 = vadd.f32 0.0, %v4488
    %4490 = vdwg.mxu0
    %v4492 = vsel %vm1102, %v4463, 0
    %v4495 = vsel %vm1102, %v4489, 0
    %4497 = vmatpush.msra.mxu0 0.0
    %4498 = vmatpush.msra.mxu0 0.0
    %4499 = vmatpush.msra.mxu0 0.0
    %4500 = vmatpush.msra.mxu0 0.0
    %4501 = vmatpush.msra.mxu0 0.0
    %4502 = vmatpush.msra.mxu0 0.0
    %4503 = vmatpush.msra.mxu0 0.0
    %4504 = vmatpush.msra.mxu0 0.0
    %4505 = vmatpush.msra.mxu0 0.0
    %4506 = vmatpush.msra.mxu0 0.0
    %4507 = vmatpush.msra.mxu0 0.0
    %4508 = vmatpush.msra.mxu0 0.0
    %4509 = vmatpush.msra.mxu0 0.0
    %4510 = vmatpush.msra.mxu0 0.0
    %4511 = vmatpush.msra.mxu0 0.0
    %4512 = vmatpush.msra.mxu0 %v906
    %4513 = vmatmul.f32.gmra.mxu0 %v4492
    %v4514 = vpop.f32.mrf.mxu0
    %v4515 = vadd.f32 0.0, %v4514
    %4516 = vmatmul.f32.gmra.mxu0 %v4495
    %v4517 = vpop.f32.mrf.mxu0
    %v4518 = vadd.f32 0.0, %v4517
    %4519 = vdwg.mxu0
    %v4520 = vadd.f32 %v4330, %v4515
    %v4521 = vadd.f32 %v4333, %v4518
    %4522 = vrot.lane.b32.xlu0 %v3967, 104
    %v4523 = vpop.permute.xlu0 %4522
    %4524 = vrot.lane.b32.xlu0 %v3962, 104
    %v4525 = vpop.permute.xlu0 %4524
    %v4526 = vsel %vm1102, %v4523, 0
    %v4528 = vsel %vm1102, %v4525, 0
    %4530 = vmatpush.xpose.msra.mxu0 0.0
    %4531 = vmatpush.xpose.msra.mxu0 0.0
    %4532 = vmatpush.xpose.msra.mxu0 0.0
    %4533 = vmatpush.xpose.msra.mxu0 0.0
    %4534 = vmatpush.xpose.msra.mxu0 0.0
    %4535 = vmatpush.xpose.msra.mxu0 0.0
    %4536 = vmatpush.xpose.msra.mxu0 0.0
    %4537 = vmatpush.xpose.msra.mxu0 0.0
    %4538 = vmatpush.xpose.msra.mxu0 0.0
    %4539 = vmatpush.xpose.msra.mxu0 0.0
    %4540 = vmatpush.xpose.msra.mxu0 0.0
    %4541 = vmatpush.xpose.msra.mxu0 0.0
    %4542 = vmatpush.xpose.msra.mxu0 0.0
    %4543 = vmatpush.xpose.msra.mxu0 0.0
    %4544 = vmatpush.xpose.msra.mxu0 0.0
    %4545 = vmatpush.xpose.msra.mxu0 %v4528
    %4546 = vmatmul.f32.gmra.mxu0 %v4526
    %v4547 = vpop.f32.mrf.mxu0
    %v4548 = vadd.f32 0.0, %v4547
    %4549 = vdwg.mxu0
    %4550 = vrot.lane.b32.xlu0 %v3968, 104
    %v4551 = vpop.permute.xlu0 %4550
    %4552 = vrot.lane.b32.xlu0 %v3965, 104
    %v4553 = vpop.permute.xlu0 %4552
    %v4554 = vsel %vm1102, %v4551, 0
    %v4556 = vsel %vm1102, %v4553, 0
    %4558 = vmatpush.xpose.msra.mxu0 0.0
    %4559 = vmatpush.xpose.msra.mxu0 0.0
    %4560 = vmatpush.xpose.msra.mxu0 0.0
    %4561 = vmatpush.xpose.msra.mxu0 0.0
    %4562 = vmatpush.xpose.msra.mxu0 0.0
    %4563 = vmatpush.xpose.msra.mxu0 0.0
    %4564 = vmatpush.xpose.msra.mxu0 0.0
    %4565 = vmatpush.xpose.msra.mxu0 0.0
    %4566 = vmatpush.xpose.msra.mxu0 0.0
    %4567 = vmatpush.xpose.msra.mxu0 0.0
    %4568 = vmatpush.xpose.msra.mxu0 0.0
    %4569 = vmatpush.xpose.msra.mxu0 0.0
    %4570 = vmatpush.xpose.msra.mxu0 0.0
    %4571 = vmatpush.xpose.msra.mxu0 0.0
    %4572 = vmatpush.xpose.msra.mxu0 0.0
    %4573 = vmatpush.xpose.msra.mxu0 %v4556
    %4574 = vmatmul.f32.gmra.mxu0 %v4554
    %v4575 = vpop.f32.mrf.mxu0
    %v4576 = vadd.f32 0.0, %v4575
    %4577 = vdwg.mxu0
    %v4578 = vsel %vm1102, %v4548, -inf
    %4579 = vmax.xlane.f32.xlu0 %v4578
    %v4580 = vpop.xlane.xlu0 %4579
    %v4581 = vsel %vm1102, %v4576, -inf
    %4582 = vmax.xlane.f32.xlu0 %v4581
    %v4583 = vpop.xlane.xlu0 %4582
    %v4584 = vsub.f32 %v4548, %v4580
    %v4585 = vsub.f32 %v4576, %v4583
    %v4586 = vmul.f32 %v4584, 1.442695
    %v4587 = vpow.pop %v4586
    %v4588 = vmul.f32 %v4585, 1.442695
    %v4589 = vpow.pop %v4588
    %v4590 = vsel %vm1102, %v4587, 0.0
    %4591 = vadd.xlane.f32.xlu0 %v4590
    %v4592 = vpop.xlane.xlu0 %4591
    %v4593 = vsel %vm1102, %v4589, 0.0
    %4594 = vadd.xlane.f32.xlu0 %v4593
    %v4595 = vpop.xlane.xlu0 %4594
    %v4596 = vrcp.pop %v4592
    %v4597 = vmul.f32 %v4592, %v4596
    %v4598 = vsub.f32 1.0, %v4597
    %v4599 = vmul.f32 %v4596, %v4598
    %v4600 = vadd.f32 %v4596, %v4599
    %vm4601 = vweird.f32 %v4592
    %vm4602 = vweird.f32 %v4596
    %vm4603 = vmor %vm4601, %vm4602
    %v4604 = vsel %vm4603, %v4596, %v4600
    %v4605 = vand.u32 2147483647, %v4592
    %vm4606 = vcmp.eq.f32.partialorder %v4605, 8.507059e+37
    %v4607 = vand.u32 %v4592, 2147483648
    %v4608 = vor.u32 1.1754944e-38, %v4607
    %v4609 = vsel %vm4606, %v4608, %v4604
    %v4610 = vrcp.pop %v4595
    %v4611 = vmul.f32 %v4595, %v4610
    %v4612 = vsub.f32 1.0, %v4611
    %v4613 = vmul.f32 %v4610, %v4612
    %v4614 = vadd.f32 %v4610, %v4613
    %vm4615 = vweird.f32 %v4595
    %vm4616 = vweird.f32 %v4610
    %vm4617 = vmor %vm4615, %vm4616
    %v4618 = vsel %vm4617, %v4610, %v4614
    %v4619 = vand.u32 2147483647, %v4595
    %vm4620 = vcmp.eq.f32.partialorder %v4619, 8.507059e+37
    %v4621 = vand.u32 %v4595, 2147483648
    %v4622 = vor.u32 1.1754944e-38, %v4621
    %v4623 = vsel %vm4620, %v4622, %v4618
    %v4624 = vmul.f32 %v4587, %v4609
    %v4625 = vmul.f32 %v4589, %v4623
    %4626 = vrot.lane.b32.xlu0 %v3962, 72
    %v4627 = vpop.permute.xlu0 %4626
    %v4630 = vsel %vm1102, %v4624, 0
    %4632 = vmatpush.msra.mxu0 0.0
    %4633 = vmatpush.msra.mxu0 0.0
    %4634 = vmatpush.msra.mxu0 0.0
    %4635 = vmatpush.msra.mxu0 0.0
    %4636 = vmatpush.msra.mxu0 0.0
    %4637 = vmatpush.msra.mxu0 0.0
    %4638 = vmatpush.msra.mxu0 0.0
    %4639 = vmatpush.msra.mxu0 0.0
    %4640 = vmatpush.msra.mxu0 0.0
    %4641 = vmatpush.msra.mxu0 0.0
    %4642 = vmatpush.msra.mxu0 0.0
    %4643 = vmatpush.msra.mxu0 0.0
    %4644 = vmatpush.msra.mxu0 0.0
    %4645 = vmatpush.msra.mxu0 0.0
    %4646 = vmatpush.msra.mxu0 0.0
    %4647 = vmatpush.msra.mxu0 %v4627
    %4648 = vmatmul.f32.gmra.mxu0 %v4630
    %v4649 = vpop.f32.mrf.mxu0
    %v4650 = vadd.f32 0.0, %v4649
    %4651 = vdwg.mxu0
    %4652 = vrot.lane.b32.xlu0 %v3965, 72
    %v4653 = vpop.permute.xlu0 %4652
    %v4656 = vsel %vm1102, %v4625, 0
    %4658 = vmatpush.msra.mxu0 0.0
    %4659 = vmatpush.msra.mxu0 0.0
    %4660 = vmatpush.msra.mxu0 0.0
    %4661 = vmatpush.msra.mxu0 0.0
    %4662 = vmatpush.msra.mxu0 0.0
    %4663 = vmatpush.msra.mxu0 0.0
    %4664 = vmatpush.msra.mxu0 0.0
    %4665 = vmatpush.msra.mxu0 0.0
    %4666 = vmatpush.msra.mxu0 0.0
    %4667 = vmatpush.msra.mxu0 0.0
    %4668 = vmatpush.msra.mxu0 0.0
    %4669 = vmatpush.msra.mxu0 0.0
    %4670 = vmatpush.msra.mxu0 0.0
    %4671 = vmatpush.msra.mxu0 0.0
    %4672 = vmatpush.msra.mxu0 0.0
    %4673 = vmatpush.msra.mxu0 %v4653
    %4674 = vmatmul.f32.gmra.mxu0 %v4656
    %v4675 = vpop.f32.mrf.mxu0
    %v4676 = vadd.f32 0.0, %v4675
    %4677 = vdwg.mxu0
    %v4679 = vsel %vm1102, %v4650, 0
    %v4682 = vsel %vm1102, %v4676, 0
    %4684 = vmatpush.msra.mxu0 0.0
    %4685 = vmatpush.msra.mxu0 0.0
    %4686 = vmatpush.msra.mxu0 0.0
    %4687 = vmatpush.msra.mxu0 0.0
    %4688 = vmatpush.msra.mxu0 0.0
    %4689 = vmatpush.msra.mxu0 0.0
    %4690 = vmatpush.msra.mxu0 0.0
    %4691 = vmatpush.msra.mxu0 0.0
    %4692 = vmatpush.msra.mxu0 0.0
    %4693 = vmatpush.msra.mxu0 0.0
    %4694 = vmatpush.msra.mxu0 0.0
    %4695 = vmatpush.msra.mxu0 0.0
    %4696 = vmatpush.msra.mxu0 0.0
    %4697 = vmatpush.msra.mxu0 0.0
    %4698 = vmatpush.msra.mxu0 0.0
    %4699 = vmatpush.msra.mxu0 %v907
    %4700 = vmatmul.f32.gmra.mxu0 %v4679
    %v4701 = vpop.f32.mrf.mxu0
    %v4702 = vadd.f32 0.0, %v4701
    %4703 = vmatmul.f32.gmra.mxu0 %v4682
    %v4704 = vpop.f32.mrf.mxu0
    %v4705 = vadd.f32 0.0, %v4704
    %4706 = vdwg.mxu0
    %v4707 = vadd.f32 %v4520, %v4702
    %v4708 = vadd.f32 %v4521, %v4705
    %v4710 = vperm.slane %v898, 0
    %v4712 = vadd.f32 %v4707, %v4710
    %v4713 = vadd.f32 %v4708, %v4710
    %v4714 = vadd.f32 %v3901, %v4712
    %v4715 = vadd.f32 %v3902, %v4713
    %v4716 = vsel %vm1068, %v4714, 0.0
    %4717 = vadd.xlane.f32.xlu0 %v4716
    %v4718 = vpop.xlane.xlu0 %4717
    %v4719 = vsel %vm1068, %v4715, 0.0
    %4720 = vadd.xlane.f32.xlu0 %v4719
    %v4721 = vpop.xlane.xlu0 %4720
    %v4722 = vmul.f32 %v4718, %v1863
    %v4723 = vmul.f32 %v4721, %v1863
    %v4724 = vsub.f32 %v4714, %v4722
    %v4725 = vsub.f32 %v4715, %v4723
    %v4726 = vmul.f32 %v4724, %v4724
    %v4727 = vmul.f32 %v4725, %v4725
    %v4728 = vsel %vm1068, %v4726, 0.0
    %4729 = vadd.xlane.f32.xlu0 %v4728
    %v4730 = vpop.xlane.xlu0 %4729
    %v4731 = vsel %vm1068, %v4727, 0.0
    %4732 = vadd.xlane.f32.xlu0 %v4731
    %v4733 = vpop.xlane.xlu0 %4732
    %v4734 = vmul.f32 %v4730, %v1863
    %v4735 = vmul.f32 %v4733, %v1863
    %v4736 = vadd.f32 %v4734, 1e-05
    %v4737 = vadd.f32 %v4735, 1e-05
    %v4738 = vrsqrt.pop %v4736
    %v4739 = vmul.f32 %v4738, %v4736
    %v4740 = vmul.f32 %v4739, %v4738
    %v4741 = vmul.f32 0.5, %v4740
    %v4742 = vsub.f32 1.5, %v4741
    %v4743 = vmul.f32 %v4738, %v4742
    %vm4744 = vweird.f32 %v4736
    %vm4745 = vweird.f32 %v4738
    %vm4746 = vmor %vm4744, %vm4745
    %v4747 = vsel %vm4746, %v4738, %v4743
    %v4748 = vrsqrt.pop %v4737
    %v4749 = vmul.f32 %v4748, %v4737
    %v4750 = vmul.f32 %v4749, %v4748
    %v4751 = vmul.f32 0.5, %v4750
    %v4752 = vsub.f32 1.5, %v4751
    %v4753 = vmul.f32 %v4748, %v4752
    %vm4754 = vweird.f32 %v4737
    %vm4755 = vweird.f32 %v4748
    %vm4756 = vmor %vm4754, %vm4755
    %v4757 = vsel %vm4756, %v4748, %v4753
    %v4758 = vmul.f32 %v4724, %v4747
    %v4759 = vmul.f32 %v4725, %v4757
    %v4761 = vperm.slane %v915, 0
    %v4763 = vmul.f32 %v4758, %v4761
    %v4764 = vmul.f32 %v4759, %v4761
    %v4766 = vperm.slane %v914, 0
    %v4768 = vadd.f32 %v4763, %v4766
    %v4769 = vadd.f32 %v4764, %v4766
    %v4771 = vperm.slane %v895, 0
    %v4774 = vsel %vm1068, %v4768, 0
    %v4777 = vsel %vm1068, %v4769, 0
    %4779 = vmatpush.msra.mxu0 0.0
    %4780 = vmatpush.msra.mxu0 0.0
    %4781 = vmatpush.msra.mxu0 0.0
    %4782 = vmatpush.msra.mxu0 0.0
    %4783 = vmatpush.msra.mxu0 0.0
    %4784 = vmatpush.msra.mxu0 0.0
    %4785 = vmatpush.msra.mxu0 0.0
    %4786 = vmatpush.msra.mxu0 0.0
    %4787 = vmatpush.msra.mxu0 0.0
    %4788 = vmatpush.msra.mxu0 0.0
    %4789 = vmatpush.msra.mxu0 0.0
    %4790 = vmatpush.msra.mxu0 0.0
    %4791 = vmatpush.msra.mxu0 %v931
    %4792 = vmatpush.msra.mxu0 %v930
    %4793 = vmatpush.msra.mxu0 %v929
    %4794 = vmatpush.msra.mxu0 %v928
    %4795 = vmatmul.f32.gmra.mxu0 %v4774
    %v4796 = vpop.f32.mrf.mxu0
    %v4797 = vadd.f32 %v4771, %v4796
    %4798 = vmatmul.f32.gmra.mxu0 %v4777
    %v4799 = vpop.f32.mrf.mxu0
    %v4800 = vadd.f32 %v4771, %v4799
    %4801 = vdwg.mxu0
    %v4802 = vmax.f32 %v4797, 0.0
    %v4803 = vmax.f32 %v4800, 0.0
    %v4805 = vperm.slane %v896, 0
    %v4808 = vsel %vm1949, %v4802, 0
    %v4811 = vsel %vm1949, %v4803, 0
    %4813 = vmatpush.msra.mxu0 0.0
    %4814 = vmatpush.msra.mxu0 0.0
    %4815 = vmatpush.msra.mxu0 0.0
    %4816 = vmatpush.msra.mxu0 0.0
    %4817 = vmatpush.msra.mxu0 0.0
    %4818 = vmatpush.msra.mxu0 0.0
    %4819 = vmatpush.msra.mxu0 0.0
    %4820 = vmatpush.msra.mxu0 0.0
    %4821 = vmatpush.msra.mxu0 %v939
    %4822 = vmatpush.msra.mxu0 %v938
    %4823 = vmatpush.msra.mxu0 %v937
    %4824 = vmatpush.msra.mxu0 %v936
    %4825 = vmatpush.msra.mxu0 %v935
    %4826 = vmatpush.msra.mxu0 %v934
    %4827 = vmatpush.msra.mxu0 %v933
    %4828 = vmatpush.msra.mxu0 %v932
    %4829 = vmatmul.f32.gmra.mxu0 %v4808
    %v4830 = vpop.f32.mrf.mxu0
    %v4831 = vadd.f32 %v4805, %v4830
    %4832 = vmatmul.f32.gmra.mxu0 %v4811
    %v4833 = vpop.f32.mrf.mxu0
    %v4834 = vadd.f32 %v4805, %v4833
    %4835 = vdwg.mxu0
    %v4836 = vadd.f32 %v4768, %v4831
    %v4837 = vadd.f32 %v4769, %v4834
    %v4838 = vsel %vm1068, %v4836, 0.0
    %4839 = vadd.xlane.f32.xlu0 %v4838
    %v4840 = vpop.xlane.xlu0 %4839
    %v4841 = vsel %vm1068, %v4837, 0.0
    %4842 = vadd.xlane.f32.xlu0 %v4841
    %v4843 = vpop.xlane.xlu0 %4842
    %v4844 = vmul.f32 %v4840, %v1863
    %v4845 = vmul.f32 %v4843, %v1863
    %v4846 = vsub.f32 %v4836, %v4844
    %v4847 = vsub.f32 %v4837, %v4845
    %v4848 = vmul.f32 %v4846, %v4846
    %v4849 = vmul.f32 %v4847, %v4847
    %v4850 = vsel %vm1068, %v4848, 0.0
    %4851 = vadd.xlane.f32.xlu0 %v4850
    %v4852 = vpop.xlane.xlu0 %4851
    %v4853 = vsel %vm1068, %v4849, 0.0
    %4854 = vadd.xlane.f32.xlu0 %v4853
    %v4855 = vpop.xlane.xlu0 %4854
    %v4856 = vmul.f32 %v4852, %v1863
    %v4857 = vmul.f32 %v4855, %v1863
    %v4858 = vadd.f32 %v4856, 1e-05
    %v4859 = vadd.f32 %v4857, 1e-05
    %v4860 = vrsqrt.pop %v4858
    %v4861 = vmul.f32 %v4860, %v4858
    %v4862 = vmul.f32 %v4861, %v4860
    %v4863 = vmul.f32 0.5, %v4862
    %v4864 = vsub.f32 1.5, %v4863
    %v4865 = vmul.f32 %v4860, %v4864
    %vm4866 = vweird.f32 %v4858
    %vm4867 = vweird.f32 %v4860
    %vm4868 = vmor %vm4866, %vm4867
    %v4869 = vsel %vm4868, %v4860, %v4865
    %v4870 = vrsqrt.pop %v4859
    %v4871 = vmul.f32 %v4870, %v4859
    %v4872 = vmul.f32 %v4871, %v4870
    %v4873 = vmul.f32 0.5, %v4872
    %v4874 = vsub.f32 1.5, %v4873
    %v4875 = vmul.f32 %v4870, %v4874
    %vm4876 = vweird.f32 %v4859
    %vm4877 = vweird.f32 %v4870
    %vm4878 = vmor %vm4876, %vm4877
    %v4879 = vsel %vm4878, %v4870, %v4875
    %v4880 = vmul.f32 %v4846, %v4869
    %v4881 = vmul.f32 %v4847, %v4879
    %v4883 = vperm.slane %v917, 0
    %v4885 = vmul.f32 %v4880, %v4883
    %v4886 = vmul.f32 %v4881, %v4883
    %v4888 = vperm.slane %v916, 0
    %v4890 = vadd.f32 %v4885, %v4888
    %v4891 = vadd.f32 %v4886, %v4888
    %v4893 = vperm.slane %v963, 0
    %v4896 = vsel %vm1068, %v4890, 0
    %v4899 = vsel %vm1068, %v4891, 0
    %4901 = vmatpush.msra.mxu0 0.0
    %4902 = vmatpush.msra.mxu0 0.0
    %4903 = vmatpush.msra.mxu0 0.0
    %4904 = vmatpush.msra.mxu0 0.0
    %4905 = vmatpush.msra.mxu0 0.0
    %4906 = vmatpush.msra.mxu0 0.0
    %4907 = vmatpush.msra.mxu0 0.0
    %4908 = vmatpush.msra.mxu0 0.0
    %4909 = vmatpush.msra.mxu0 0.0
    %4910 = vmatpush.msra.mxu0 0.0
    %4911 = vmatpush.msra.mxu0 0.0
    %4912 = vmatpush.msra.mxu0 0.0
    %4913 = vmatpush.msra.mxu0 %v968
    %4914 = vmatpush.msra.mxu0 %v967
    %4915 = vmatpush.msra.mxu0 %v966
    %4916 = vmatpush.msra.mxu0 %v965
    %4917 = vmatmul.f32.gmra.mxu0 %v4896
    %v4918 = vpop.f32.mrf.mxu0
    %v4919 = vadd.f32 %v4893, %v4918
    %4920 = vmatmul.f32.gmra.mxu0 %v4899
    %v4921 = vpop.f32.mrf.mxu0
    %v4922 = vadd.f32 %v4893, %v4921
    %4923 = vdwg.mxu0
    %v4924 = vmul.f32 %v4919, 0.35355338
    %v4925 = vmul.f32 %v4922, 0.35355338
    %4927 = vrot.lane.b32.xlu0 %v4919, 96
    %v4928 = vpop.permute.xlu0 %4927
    %v4930 = vsel %vm1102, %v4924, 0
    %v4932 = vsel %vm1102, %v4928, 0
    %4934 = vmatpush.xpose.msra.mxu0 0.0
    %4935 = vmatpush.xpose.msra.mxu0 0.0
    %4936 = vmatpush.xpose.msra.mxu0 0.0
    %4937 = vmatpush.xpose.msra.mxu0 0.0
    %4938 = vmatpush.xpose.msra.mxu0 0.0
    %4939 = vmatpush.xpose.msra.mxu0 0.0
    %4940 = vmatpush.xpose.msra.mxu0 0.0
    %4941 = vmatpush.xpose.msra.mxu0 0.0
    %4942 = vmatpush.xpose.msra.mxu0 0.0
    %4943 = vmatpush.xpose.msra.mxu0 0.0
    %4944 = vmatpush.xpose.msra.mxu0 0.0
    %4945 = vmatpush.xpose.msra.mxu0 0.0
    %4946 = vmatpush.xpose.msra.mxu0 0.0
    %4947 = vmatpush.xpose.msra.mxu0 0.0
    %4948 = vmatpush.xpose.msra.mxu0 0.0
    %4949 = vmatpush.xpose.msra.mxu0 %v4932
    %4950 = vmatmul.f32.gmra.mxu0 %v4930
    %v4951 = vpop.f32.mrf.mxu0
    %v4952 = vadd.f32 0.0, %v4951
    %4953 = vdwg.mxu0
    %4955 = vrot.lane.b32.xlu0 %v4922, 96
    %v4956 = vpop.permute.xlu0 %4955
    %v4958 = vsel %vm1102, %v4925, 0
    %v4960 = vsel %vm1102, %v4956, 0
    %4962 = vmatpush.xpose.msra.mxu0 0.0
    %4963 = vmatpush.xpose.msra.mxu0 0.0
    %4964 = vmatpush.xpose.msra.mxu0 0.0
    %4965 = vmatpush.xpose.msra.mxu0 0.0
    %4966 = vmatpush.xpose.msra.mxu0 0.0
    %4967 = vmatpush.xpose.msra.mxu0 0.0
    %4968 = vmatpush.xpose.msra.mxu0 0.0
    %4969 = vmatpush.xpose.msra.mxu0 0.0
    %4970 = vmatpush.xpose.msra.mxu0 0.0
    %4971 = vmatpush.xpose.msra.mxu0 0.0
    %4972 = vmatpush.xpose.msra.mxu0 0.0
    %4973 = vmatpush.xpose.msra.mxu0 0.0
    %4974 = vmatpush.xpose.msra.mxu0 0.0
    %4975 = vmatpush.xpose.msra.mxu0 0.0
    %4976 = vmatpush.xpose.msra.mxu0 0.0
    %4977 = vmatpush.xpose.msra.mxu0 %v4960
    %4978 = vmatmul.f32.gmra.mxu0 %v4958
    %v4979 = vpop.f32.mrf.mxu0
    %v4980 = vadd.f32 0.0, %v4979
    %4981 = vdwg.mxu0
    %v4982 = vsel %vm1102, %v4952, -inf
    %4983 = vmax.xlane.f32.xlu0 %v4982
    %v4984 = vpop.xlane.xlu0 %4983
    %v4985 = vsel %vm1102, %v4980, -inf
    %4986 = vmax.xlane.f32.xlu0 %v4985
    %v4987 = vpop.xlane.xlu0 %4986
    %v4988 = vsub.f32 %v4952, %v4984
    %v4989 = vsub.f32 %v4980, %v4987
    %v4990 = vmul.f32 %v4988, 1.442695
    %v4991 = vpow.pop %v4990
    %v4992 = vmul.f32 %v4989, 1.442695
    %v4993 = vpow.pop %v4992
    %v4994 = vsel %vm1102, %v4991, 0.0
    %4995 = vadd.xlane.f32.xlu0 %v4994
    %v4996 = vpop.xlane.xlu0 %4995
    %v4997 = vsel %vm1102, %v4993, 0.0
    %4998 = vadd.xlane.f32.xlu0 %v4997
    %v4999 = vpop.xlane.xlu0 %4998
    %v5000 = vrcp.pop %v4996
    %v5001 = vmul.f32 %v4996, %v5000
    %v5002 = vsub.f32 1.0, %v5001
    %v5003 = vmul.f32 %v5000, %v5002
    %v5004 = vadd.f32 %v5000, %v5003
    %vm5005 = vweird.f32 %v4996
    %vm5006 = vweird.f32 %v5000
    %vm5007 = vmor %vm5005, %vm5006
    %v5008 = vsel %vm5007, %v5000, %v5004
    %v5009 = vand.u32 2147483647, %v4996
    %vm5010 = vcmp.eq.f32.partialorder %v5009, 8.507059e+37
    %v5011 = vand.u32 %v4996, 2147483648
    %v5012 = vor.u32 1.1754944e-38, %v5011
    %v5013 = vsel %vm5010, %v5012, %v5008
    %v5014 = vrcp.pop %v4999
    %v5015 = vmul.f32 %v4999, %v5014
    %v5016 = vsub.f32 1.0, %v5015
    %v5017 = vmul.f32 %v5014, %v5016
    %v5018 = vadd.f32 %v5014, %v5017
    %vm5019 = vweird.f32 %v4999
    %vm5020 = vweird.f32 %v5014
    %vm5021 = vmor %vm5019, %vm5020
    %v5022 = vsel %vm5021, %v5014, %v5018
    %v5023 = vand.u32 2147483647, %v4999
    %vm5024 = vcmp.eq.f32.partialorder %v5023, 8.507059e+37
    %v5025 = vand.u32 %v4999, 2147483648
    %v5026 = vor.u32 1.1754944e-38, %v5025
    %v5027 = vsel %vm5024, %v5026, %v5022
    %v5028 = vmul.f32 %v4991, %v5013
    %v5029 = vmul.f32 %v4993, %v5027
    %5030 = vrot.lane.b32.xlu0 %v4919, 64
    %v5031 = vpop.permute.xlu0 %5030
    %v5034 = vsel %vm1102, %v5028, 0
    %5036 = vmatpush.msra.mxu0 0.0
    %5037 = vmatpush.msra.mxu0 0.0
    %5038 = vmatpush.msra.mxu0 0.0
    %5039 = vmatpush.msra.mxu0 0.0
    %5040 = vmatpush.msra.mxu0 0.0
    %5041 = vmatpush.msra.mxu0 0.0
    %5042 = vmatpush.msra.mxu0 0.0
    %5043 = vmatpush.msra.mxu0 0.0
    %5044 = vmatpush.msra.mxu0 0.0
    %5045 = vmatpush.msra.mxu0 0.0
    %5046 = vmatpush.msra.mxu0 0.0
    %5047 = vmatpush.msra.mxu0 0.0
    %5048 = vmatpush.msra.mxu0 0.0
    %5049 = vmatpush.msra.mxu0 0.0
    %5050 = vmatpush.msra.mxu0 0.0
    %5051 = vmatpush.msra.mxu0 %v5031
    %5052 = vmatmul.f32.gmra.mxu0 %v5034
    %v5053 = vpop.f32.mrf.mxu0
    %v5054 = vadd.f32 0.0, %v5053
    %5055 = vdwg.mxu0
    %5056 = vrot.lane.b32.xlu0 %v4922, 64
    %v5057 = vpop.permute.xlu0 %5056
    %v5060 = vsel %vm1102, %v5029, 0
    %5062 = vmatpush.msra.mxu0 0.0
    %5063 = vmatpush.msra.mxu0 0.0
    %5064 = vmatpush.msra.mxu0 0.0
    %5065 = vmatpush.msra.mxu0 0.0
    %5066 = vmatpush.msra.mxu0 0.0
    %5067 = vmatpush.msra.mxu0 0.0
    %5068 = vmatpush.msra.mxu0 0.0
    %5069 = vmatpush.msra.mxu0 0.0
    %5070 = vmatpush.msra.mxu0 0.0
    %5071 = vmatpush.msra.mxu0 0.0
    %5072 = vmatpush.msra.mxu0 0.0
    %5073 = vmatpush.msra.mxu0 0.0
    %5074 = vmatpush.msra.mxu0 0.0
    %5075 = vmatpush.msra.mxu0 0.0
    %5076 = vmatpush.msra.mxu0 0.0
    %5077 = vmatpush.msra.mxu0 %v5057
    %5078 = vmatmul.f32.gmra.mxu0 %v5060
    %v5079 = vpop.f32.mrf.mxu0
    %v5080 = vadd.f32 0.0, %v5079
    %5081 = vdwg.mxu0
    %5082 = vrot.lane.b32.xlu0 %v4924, 120
    %v5083 = vpop.permute.xlu0 %5082
    %5084 = vrot.lane.b32.xlu0 %v4919, 88
    %v5085 = vpop.permute.xlu0 %5084
    %v5086 = vsel %vm1102, %v5083, 0
    %v5088 = vsel %vm1102, %v5085, 0
    %5090 = vmatpush.xpose.msra.mxu0 0.0
    %5091 = vmatpush.xpose.msra.mxu0 0.0
    %5092 = vmatpush.xpose.msra.mxu0 0.0
    %5093 = vmatpush.xpose.msra.mxu0 0.0
    %5094 = vmatpush.xpose.msra.mxu0 0.0
    %5095 = vmatpush.xpose.msra.mxu0 0.0
    %5096 = vmatpush.xpose.msra.mxu0 0.0
    %5097 = vmatpush.xpose.msra.mxu0 0.0
    %5098 = vmatpush.xpose.msra.mxu0 0.0
    %5099 = vmatpush.xpose.msra.mxu0 0.0
    %5100 = vmatpush.xpose.msra.mxu0 0.0
    %5101 = vmatpush.xpose.msra.mxu0 0.0
    %5102 = vmatpush.xpose.msra.mxu0 0.0
    %5103 = vmatpush.xpose.msra.mxu0 0.0
    %5104 = vmatpush.xpose.msra.mxu0 0.0
    %5105 = vmatpush.xpose.msra.mxu0 %v5088
    %5106 = vmatmul.f32.gmra.mxu0 %v5086
    %v5107 = vpop.f32.mrf.mxu0
    %v5108 = vadd.f32 0.0, %v5107
    %5109 = vdwg.mxu0
    %5110 = vrot.lane.b32.xlu0 %v4925, 120
    %v5111 = vpop.permute.xlu0 %5110
    %5112 = vrot.lane.b32.xlu0 %v4922, 88
    %v5113 = vpop.permute.xlu0 %5112
    %v5114 = vsel %vm1102, %v5111, 0
    %v5116 = vsel %vm1102, %v5113, 0
    %5118 = vmatpush.xpose.msra.mxu0 0.0
    %5119 = vmatpush.xpose.msra.mxu0 0.0
    %5120 = vmatpush.xpose.msra.mxu0 0.0
    %5121 = vmatpush.xpose.msra.mxu0 0.0
    %5122 = vmatpush.xpose.msra.mxu0 0.0
    %5123 = vmatpush.xpose.msra.mxu0 0.0
    %5124 = vmatpush.xpose.msra.mxu0 0.0
    %5125 = vmatpush.xpose.msra.mxu0 0.0
    %5126 = vmatpush.xpose.msra.mxu0 0.0
    %5127 = vmatpush.xpose.msra.mxu0 0.0
    %5128 = vmatpush.xpose.msra.mxu0 0.0
    %5129 = vmatpush.xpose.msra.mxu0 0.0
    %5130 = vmatpush.xpose.msra.mxu0 0.0
    %5131 = vmatpush.xpose.msra.mxu0 0.0
    %5132 = vmatpush.xpose.msra.mxu0 0.0
    %5133 = vmatpush.xpose.msra.mxu0 %v5116
    %5134 = vmatmul.f32.gmra.mxu0 %v5114
    %v5135 = vpop.f32.mrf.mxu0
    %v5136 = vadd.f32 0.0, %v5135
    %5137 = vdwg.mxu0
    %v5138 = vsel %vm1102, %v5108, -inf
    %5139 = vmax.xlane.f32.xlu0 %v5138
    %v5140 = vpop.xlane.xlu0 %5139
    %v5141 = vsel %vm1102, %v5136, -inf
    %5142 = vmax.xlane.f32.xlu0 %v5141
    %v5143 = vpop.xlane.xlu0 %5142
    %v5144 = vsub.f32 %v5108, %v5140
    %v5145 = vsub.f32 %v5136, %v5143
    %v5146 = vmul.f32 %v5144, 1.442695
    %v5147 = vpow.pop %v5146
    %v5148 = vmul.f32 %v5145, 1.442695
    %v5149 = vpow.pop %v5148
    %v5150 = vsel %vm1102, %v5147, 0.0
    %5151 = vadd.xlane.f32.xlu0 %v5150
    %v5152 = vpop.xlane.xlu0 %5151
    %v5153 = vsel %vm1102, %v5149, 0.0
    %5154 = vadd.xlane.f32.xlu0 %v5153
    %v5155 = vpop.xlane.xlu0 %5154
    %v5156 = vrcp.pop %v5152
    %v5157 = vmul.f32 %v5152, %v5156
    %v5158 = vsub.f32 1.0, %v5157
    %v5159 = vmul.f32 %v5156, %v5158
    %v5160 = vadd.f32 %v5156, %v5159
    %vm5161 = vweird.f32 %v5152
    %vm5162 = vweird.f32 %v5156
    %vm5163 = vmor %vm5161, %vm5162
    %v5164 = vsel %vm5163, %v5156, %v5160
    %v5165 = vand.u32 2147483647, %v5152
    %vm5166 = vcmp.eq.f32.partialorder %v5165, 8.507059e+37
    %v5167 = vand.u32 %v5152, 2147483648
    %v5168 = vor.u32 1.1754944e-38, %v5167
    %v5169 = vsel %vm5166, %v5168, %v5164
    %v5170 = vrcp.pop %v5155
    %v5171 = vmul.f32 %v5155, %v5170
    %v5172 = vsub.f32 1.0, %v5171
    %v5173 = vmul.f32 %v5170, %v5172
    %v5174 = vadd.f32 %v5170, %v5173
    %vm5175 = vweird.f32 %v5155
    %vm5176 = vweird.f32 %v5170
    %vm5177 = vmor %vm5175, %vm5176
    %v5178 = vsel %vm5177, %v5170, %v5174
    %v5179 = vand.u32 2147483647, %v5155
    %vm5180 = vcmp.eq.f32.partialorder %v5179, 8.507059e+37
    %v5181 = vand.u32 %v5155, 2147483648
    %v5182 = vor.u32 1.1754944e-38, %v5181
    %v5183 = vsel %vm5180, %v5182, %v5178
    %v5184 = vmul.f32 %v5147, %v5169
    %v5185 = vmul.f32 %v5149, %v5183
    %5186 = vrot.lane.b32.xlu0 %v4919, 56
    %v5187 = vpop.permute.xlu0 %5186
    %v5190 = vsel %vm1102, %v5184, 0
    %5192 = vmatpush.msra.mxu0 0.0
    %5193 = vmatpush.msra.mxu0 0.0
    %5194 = vmatpush.msra.mxu0 0.0
    %5195 = vmatpush.msra.mxu0 0.0
    %5196 = vmatpush.msra.mxu0 0.0
    %5197 = vmatpush.msra.mxu0 0.0
    %5198 = vmatpush.msra.mxu0 0.0
    %5199 = vmatpush.msra.mxu0 0.0
    %5200 = vmatpush.msra.mxu0 0.0
    %5201 = vmatpush.msra.mxu0 0.0
    %5202 = vmatpush.msra.mxu0 0.0
    %5203 = vmatpush.msra.mxu0 0.0
    %5204 = vmatpush.msra.mxu0 0.0
    %5205 = vmatpush.msra.mxu0 0.0
    %5206 = vmatpush.msra.mxu0 0.0
    %5207 = vmatpush.msra.mxu0 %v5187
    %5208 = vmatmul.f32.gmra.mxu0 %v5190
    %v5209 = vpop.f32.mrf.mxu0
    %v5210 = vadd.f32 0.0, %v5209
    %5211 = vdwg.mxu0
    %5212 = vrot.lane.b32.xlu0 %v4922, 56
    %v5213 = vpop.permute.xlu0 %5212
    %v5216 = vsel %vm1102, %v5185, 0
    %5218 = vmatpush.msra.mxu0 0.0
    %5219 = vmatpush.msra.mxu0 0.0
    %5220 = vmatpush.msra.mxu0 0.0
    %5221 = vmatpush.msra.mxu0 0.0
    %5222 = vmatpush.msra.mxu0 0.0
    %5223 = vmatpush.msra.mxu0 0.0
    %5224 = vmatpush.msra.mxu0 0.0
    %5225 = vmatpush.msra.mxu0 0.0
    %5226 = vmatpush.msra.mxu0 0.0
    %5227 = vmatpush.msra.mxu0 0.0
    %5228 = vmatpush.msra.mxu0 0.0
    %5229 = vmatpush.msra.mxu0 0.0
    %5230 = vmatpush.msra.mxu0 0.0
    %5231 = vmatpush.msra.mxu0 0.0
    %5232 = vmatpush.msra.mxu0 0.0
    %5233 = vmatpush.msra.mxu0 %v5213
    %5234 = vmatmul.f32.gmra.mxu0 %v5216
    %v5235 = vpop.f32.mrf.mxu0
    %v5236 = vadd.f32 0.0, %v5235
    %5237 = vdwg.mxu0
    %v5239 = vsel %vm1102, %v5210, 0
    %v5242 = vsel %vm1102, %v5236, 0
    %5244 = vmatpush.msra.mxu0 0.0
    %5245 = vmatpush.msra.mxu0 0.0
    %5246 = vmatpush.msra.mxu0 0.0
    %5247 = vmatpush.msra.mxu0 0.0
    %5248 = vmatpush.msra.mxu0 0.0
    %5249 = vmatpush.msra.mxu0 0.0
    %5250 = vmatpush.msra.mxu0 0.0
    %5251 = vmatpush.msra.mxu0 0.0
    %5252 = vmatpush.msra.mxu0 0.0
    %5253 = vmatpush.msra.mxu0 0.0
    %5254 = vmatpush.msra.mxu0 0.0
    %5255 = vmatpush.msra.mxu0 0.0
    %5256 = vmatpush.msra.mxu0 0.0
    %5257 = vmatpush.msra.mxu0 0.0
    %5258 = vmatpush.msra.mxu0 0.0
    %5259 = vmatpush.msra.mxu0 %v970
    %5260 = vmatmul.f32.gmra.mxu0 %v5239
    %v5261 = vpop.f32.mrf.mxu0
    %v5262 = vadd.f32 0.0, %v5261
    %5263 = vmatmul.f32.gmra.mxu0 %v5242
    %v5264 = vpop.f32.mrf.mxu0
    %v5265 = vadd.f32 0.0, %v5264
    %5266 = vdwg.mxu0
    %v5268 = vsel %vm1102, %v5054, 0
    %v5271 = vsel %vm1102, %v5080, 0
    %5273 = vmatpush.msra.mxu0 0.0
    %5274 = vmatpush.msra.mxu0 0.0
    %5275 = vmatpush.msra.mxu0 0.0
    %5276 = vmatpush.msra.mxu0 0.0
    %5277 = vmatpush.msra.mxu0 0.0
    %5278 = vmatpush.msra.mxu0 0.0
    %5279 = vmatpush.msra.mxu0 0.0
    %5280 = vmatpush.msra.mxu0 0.0
    %5281 = vmatpush.msra.mxu0 0.0
    %5282 = vmatpush.msra.mxu0 0.0
    %5283 = vmatpush.msra.mxu0 0.0
    %5284 = vmatpush.msra.mxu0 0.0
    %5285 = vmatpush.msra.mxu0 0.0
    %5286 = vmatpush.msra.mxu0 0.0
    %5287 = vmatpush.msra.mxu0 0.0
    %5288 = vmatpush.msra.mxu0 %v969
    %5289 = vmatmul.f32.gmra.mxu0 %v5268
    %v5290 = vpop.f32.mrf.mxu0
    %v5291 = vadd.f32 %v5262, %v5290
    %5292 = vmatmul.f32.gmra.mxu0 %v5271
    %v5293 = vpop.f32.mrf.mxu0
    %v5294 = vadd.f32 %v5265, %v5293
    %5295 = vdwg.mxu0
    %5296 = vrot.lane.b32.xlu0 %v4924, 112
    %v5297 = vpop.permute.xlu0 %5296
    %5298 = vrot.lane.b32.xlu0 %v4919, 80
    %v5299 = vpop.permute.xlu0 %5298
    %v5300 = vsel %vm1102, %v5297, 0
    %v5302 = vsel %vm1102, %v5299, 0
    %5304 = vmatpush.xpose.msra.mxu0 0.0
    %5305 = vmatpush.xpose.msra.mxu0 0.0
    %5306 = vmatpush.xpose.msra.mxu0 0.0
    %5307 = vmatpush.xpose.msra.mxu0 0.0
    %5308 = vmatpush.xpose.msra.mxu0 0.0
    %5309 = vmatpush.xpose.msra.mxu0 0.0
    %5310 = vmatpush.xpose.msra.mxu0 0.0
    %5311 = vmatpush.xpose.msra.mxu0 0.0
    %5312 = vmatpush.xpose.msra.mxu0 0.0
    %5313 = vmatpush.xpose.msra.mxu0 0.0
    %5314 = vmatpush.xpose.msra.mxu0 0.0
    %5315 = vmatpush.xpose.msra.mxu0 0.0
    %5316 = vmatpush.xpose.msra.mxu0 0.0
    %5317 = vmatpush.xpose.msra.mxu0 0.0
    %5318 = vmatpush.xpose.msra.mxu0 0.0
    %5319 = vmatpush.xpose.msra.mxu0 %v5302
    %5320 = vmatmul.f32.gmra.mxu0 %v5300
    %v5321 = vpop.f32.mrf.mxu0
    %v5322 = vadd.f32 0.0, %v5321
    %5323 = vdwg.mxu0
    %5324 = vrot.lane.b32.xlu0 %v4925, 112
    %v5325 = vpop.permute.xlu0 %5324
    %5326 = vrot.lane.b32.xlu0 %v4922, 80
    %v5327 = vpop.permute.xlu0 %5326
    %v5328 = vsel %vm1102, %v5325, 0
    %v5330 = vsel %vm1102, %v5327, 0
    %5332 = vmatpush.xpose.msra.mxu0 0.0
    %5333 = vmatpush.xpose.msra.mxu0 0.0
    %5334 = vmatpush.xpose.msra.mxu0 0.0
    %5335 = vmatpush.xpose.msra.mxu0 0.0
    %5336 = vmatpush.xpose.msra.mxu0 0.0
    %5337 = vmatpush.xpose.msra.mxu0 0.0
    %5338 = vmatpush.xpose.msra.mxu0 0.0
    %5339 = vmatpush.xpose.msra.mxu0 0.0
    %5340 = vmatpush.xpose.msra.mxu0 0.0
    %5341 = vmatpush.xpose.msra.mxu0 0.0
    %5342 = vmatpush.xpose.msra.mxu0 0.0
    %5343 = vmatpush.xpose.msra.mxu0 0.0
    %5344 = vmatpush.xpose.msra.mxu0 0.0
    %5345 = vmatpush.xpose.msra.mxu0 0.0
    %5346 = vmatpush.xpose.msra.mxu0 0.0
    %5347 = vmatpush.xpose.msra.mxu0 %v5330
    %5348 = vmatmul.f32.gmra.mxu0 %v5328
    %v5349 = vpop.f32.mrf.mxu0
    %v5350 = vadd.f32 0.0, %v5349
    %5351 = vdwg.mxu0
    %v5352 = vsel %vm1102, %v5322, -inf
    %5353 = vmax.xlane.f32.xlu0 %v5352
    %v5354 = vpop.xlane.xlu0 %5353
    %v5355 = vsel %vm1102, %v5350, -inf
    %5356 = vmax.xlane.f32.xlu0 %v5355
    %v5357 = vpop.xlane.xlu0 %5356
    %v5358 = vsub.f32 %v5322, %v5354
    %v5359 = vsub.f32 %v5350, %v5357
    %v5360 = vmul.f32 %v5358, 1.442695
    %v5361 = vpow.pop %v5360
    %v5362 = vmul.f32 %v5359, 1.442695
    %v5363 = vpow.pop %v5362
    %v5364 = vsel %vm1102, %v5361, 0.0
    %5365 = vadd.xlane.f32.xlu0 %v5364
    %v5366 = vpop.xlane.xlu0 %5365
    %v5367 = vsel %vm1102, %v5363, 0.0
    %5368 = vadd.xlane.f32.xlu0 %v5367
    %v5369 = vpop.xlane.xlu0 %5368
    %v5370 = vrcp.pop %v5366
    %v5371 = vmul.f32 %v5366, %v5370
    %v5372 = vsub.f32 1.0, %v5371
    %v5373 = vmul.f32 %v5370, %v5372
    %v5374 = vadd.f32 %v5370, %v5373
    %vm5375 = vweird.f32 %v5366
    %vm5376 = vweird.f32 %v5370
    %vm5377 = vmor %vm5375, %vm5376
    %v5378 = vsel %vm5377, %v5370, %v5374
    %v5379 = vand.u32 2147483647, %v5366
    %vm5380 = vcmp.eq.f32.partialorder %v5379, 8.507059e+37
    %v5381 = vand.u32 %v5366, 2147483648
    %v5382 = vor.u32 1.1754944e-38, %v5381
    %v5383 = vsel %vm5380, %v5382, %v5378
    %v5384 = vrcp.pop %v5369
    %v5385 = vmul.f32 %v5369, %v5384
    %v5386 = vsub.f32 1.0, %v5385
    %v5387 = vmul.f32 %v5384, %v5386
    %v5388 = vadd.f32 %v5384, %v5387
    %vm5389 = vweird.f32 %v5369
    %vm5390 = vweird.f32 %v5384
    %vm5391 = vmor %vm5389, %vm5390
    %v5392 = vsel %vm5391, %v5384, %v5388
    %v5393 = vand.u32 2147483647, %v5369
    %vm5394 = vcmp.eq.f32.partialorder %v5393, 8.507059e+37
    %v5395 = vand.u32 %v5369, 2147483648
    %v5396 = vor.u32 1.1754944e-38, %v5395
    %v5397 = vsel %vm5394, %v5396, %v5392
    %v5398 = vmul.f32 %v5361, %v5383
    %v5399 = vmul.f32 %v5363, %v5397
    %5400 = vrot.lane.b32.xlu0 %v4919, 48
    %v5401 = vpop.permute.xlu0 %5400
    %v5404 = vsel %vm1102, %v5398, 0
    %5406 = vmatpush.msra.mxu0 0.0
    %5407 = vmatpush.msra.mxu0 0.0
    %5408 = vmatpush.msra.mxu0 0.0
    %5409 = vmatpush.msra.mxu0 0.0
    %5410 = vmatpush.msra.mxu0 0.0
    %5411 = vmatpush.msra.mxu0 0.0
    %5412 = vmatpush.msra.mxu0 0.0
    %5413 = vmatpush.msra.mxu0 0.0
    %5414 = vmatpush.msra.mxu0 0.0
    %5415 = vmatpush.msra.mxu0 0.0
    %5416 = vmatpush.msra.mxu0 0.0
    %5417 = vmatpush.msra.mxu0 0.0
    %5418 = vmatpush.msra.mxu0 0.0
    %5419 = vmatpush.msra.mxu0 0.0
    %5420 = vmatpush.msra.mxu0 0.0
    %5421 = vmatpush.msra.mxu0 %v5401
    %5422 = vmatmul.f32.gmra.mxu0 %v5404
    %v5423 = vpop.f32.mrf.mxu0
    %v5424 = vadd.f32 0.0, %v5423
    %5425 = vdwg.mxu0
    %5426 = vrot.lane.b32.xlu0 %v4922, 48
    %v5427 = vpop.permute.xlu0 %5426
    %v5430 = vsel %vm1102, %v5399, 0
    %5432 = vmatpush.msra.mxu0 0.0
    %5433 = vmatpush.msra.mxu0 0.0
    %5434 = vmatpush.msra.mxu0 0.0
    %5435 = vmatpush.msra.mxu0 0.0
    %5436 = vmatpush.msra.mxu0 0.0
    %5437 = vmatpush.msra.mxu0 0.0
    %5438 = vmatpush.msra.mxu0 0.0
    %5439 = vmatpush.msra.mxu0 0.0
    %5440 = vmatpush.msra.mxu0 0.0
    %5441 = vmatpush.msra.mxu0 0.0
    %5442 = vmatpush.msra.mxu0 0.0
    %5443 = vmatpush.msra.mxu0 0.0
    %5444 = vmatpush.msra.mxu0 0.0
    %5445 = vmatpush.msra.mxu0 0.0
    %5446 = vmatpush.msra.mxu0 0.0
    %5447 = vmatpush.msra.mxu0 %v5427
    %5448 = vmatmul.f32.gmra.mxu0 %v5430
    %v5449 = vpop.f32.mrf.mxu0
    %v5450 = vadd.f32 0.0, %v5449
    %5451 = vdwg.mxu0
    %v5453 = vsel %vm1102, %v5424, 0
    %v5456 = vsel %vm1102, %v5450, 0
    %5458 = vmatpush.msra.mxu0 0.0
    %5459 = vmatpush.msra.mxu0 0.0
    %5460 = vmatpush.msra.mxu0 0.0
    %5461 = vmatpush.msra.mxu0 0.0
    %5462 = vmatpush.msra.mxu0 0.0
    %5463 = vmatpush.msra.mxu0 0.0
    %5464 = vmatpush.msra.mxu0 0.0
    %5465 = vmatpush.msra.mxu0 0.0
    %5466 = vmatpush.msra.mxu0 0.0
    %5467 = vmatpush.msra.mxu0 0.0
    %5468 = vmatpush.msra.mxu0 0.0
    %5469 = vmatpush.msra.mxu0 0.0
    %5470 = vmatpush.msra.mxu0 0.0
    %5471 = vmatpush.msra.mxu0 0.0
    %5472 = vmatpush.msra.mxu0 0.0
    %5473 = vmatpush.msra.mxu0 %v971
    %5474 = vmatmul.f32.gmra.mxu0 %v5453
    %v5475 = vpop.f32.mrf.mxu0
    %v5476 = vadd.f32 0.0, %v5475
    %5477 = vmatmul.f32.gmra.mxu0 %v5456
    %v5478 = vpop.f32.mrf.mxu0
    %v5479 = vadd.f32 0.0, %v5478
    %5480 = vdwg.mxu0
    %v5481 = vadd.f32 %v5291, %v5476
    %v5482 = vadd.f32 %v5294, %v5479
    %5483 = vrot.lane.b32.xlu0 %v4924, 104
    %v5484 = vpop.permute.xlu0 %5483
    %5485 = vrot.lane.b32.xlu0 %v4919, 72
    %v5486 = vpop.permute.xlu0 %5485
    %v5487 = vsel %vm1102, %v5484, 0
    %v5489 = vsel %vm1102, %v5486, 0
    %5491 = vmatpush.xpose.msra.mxu0 0.0
    %5492 = vmatpush.xpose.msra.mxu0 0.0
    %5493 = vmatpush.xpose.msra.mxu0 0.0
    %5494 = vmatpush.xpose.msra.mxu0 0.0
    %5495 = vmatpush.xpose.msra.mxu0 0.0
    %5496 = vmatpush.xpose.msra.mxu0 0.0
    %5497 = vmatpush.xpose.msra.mxu0 0.0
    %5498 = vmatpush.xpose.msra.mxu0 0.0
    %5499 = vmatpush.xpose.msra.mxu0 0.0
    %5500 = vmatpush.xpose.msra.mxu0 0.0
    %5501 = vmatpush.xpose.msra.mxu0 0.0
    %5502 = vmatpush.xpose.msra.mxu0 0.0
    %5503 = vmatpush.xpose.msra.mxu0 0.0
    %5504 = vmatpush.xpose.msra.mxu0 0.0
    %5505 = vmatpush.xpose.msra.mxu0 0.0
    %5506 = vmatpush.xpose.msra.mxu0 %v5489
    %5507 = vmatmul.f32.gmra.mxu0 %v5487
    %v5508 = vpop.f32.mrf.mxu0
    %v5509 = vadd.f32 0.0, %v5508
    %5510 = vdwg.mxu0
    %5511 = vrot.lane.b32.xlu0 %v4925, 104
    %v5512 = vpop.permute.xlu0 %5511
    %5513 = vrot.lane.b32.xlu0 %v4922, 72
    %v5514 = vpop.permute.xlu0 %5513
    %v5515 = vsel %vm1102, %v5512, 0
    %v5517 = vsel %vm1102, %v5514, 0
    %5519 = vmatpush.xpose.msra.mxu0 0.0
    %5520 = vmatpush.xpose.msra.mxu0 0.0
    %5521 = vmatpush.xpose.msra.mxu0 0.0
    %5522 = vmatpush.xpose.msra.mxu0 0.0
    %5523 = vmatpush.xpose.msra.mxu0 0.0
    %5524 = vmatpush.xpose.msra.mxu0 0.0
    %5525 = vmatpush.xpose.msra.mxu0 0.0
    %5526 = vmatpush.xpose.msra.mxu0 0.0
    %5527 = vmatpush.xpose.msra.mxu0 0.0
    %5528 = vmatpush.xpose.msra.mxu0 0.0
    %5529 = vmatpush.xpose.msra.mxu0 0.0
    %5530 = vmatpush.xpose.msra.mxu0 0.0
    %5531 = vmatpush.xpose.msra.mxu0 0.0
    %5532 = vmatpush.xpose.msra.mxu0 0.0
    %5533 = vmatpush.xpose.msra.mxu0 0.0
    %5534 = vmatpush.xpose.msra.mxu0 %v5517
    %5535 = vmatmul.f32.gmra.mxu0 %v5515
    %v5536 = vpop.f32.mrf.mxu0
    %v5537 = vadd.f32 0.0, %v5536
    %5538 = vdwg.mxu0
    %v5539 = vsel %vm1102, %v5509, -inf
    %5540 = vmax.xlane.f32.xlu0 %v5539
    %v5541 = vpop.xlane.xlu0 %5540
    %v5542 = vsel %vm1102, %v5537, -inf
    %5543 = vmax.xlane.f32.xlu0 %v5542
    %v5544 = vpop.xlane.xlu0 %5543
    %v5545 = vsub.f32 %v5509, %v5541
    %v5546 = vsub.f32 %v5537, %v5544
    %v5547 = vmul.f32 %v5545, 1.442695
    %v5548 = vpow.pop %v5547
    %v5549 = vmul.f32 %v5546, 1.442695
    %v5550 = vpow.pop %v5549
    %v5551 = vsel %vm1102, %v5548, 0.0
    %5552 = vadd.xlane.f32.xlu0 %v5551
    %v5553 = vpop.xlane.xlu0 %5552
    %v5554 = vsel %vm1102, %v5550, 0.0
    %5555 = vadd.xlane.f32.xlu0 %v5554
    %v5556 = vpop.xlane.xlu0 %5555
    %v5557 = vrcp.pop %v5553
    %v5558 = vmul.f32 %v5553, %v5557
    %v5559 = vsub.f32 1.0, %v5558
    %v5560 = vmul.f32 %v5557, %v5559
    %v5561 = vadd.f32 %v5557, %v5560
    %vm5562 = vweird.f32 %v5553
    %vm5563 = vweird.f32 %v5557
    %vm5564 = vmor %vm5562, %vm5563
    %v5565 = vsel %vm5564, %v5557, %v5561
    %v5566 = vand.u32 2147483647, %v5553
    %vm5567 = vcmp.eq.f32.partialorder %v5566, 8.507059e+37
    %v5568 = vand.u32 %v5553, 2147483648
    %v5569 = vor.u32 1.1754944e-38, %v5568
    %v5570 = vsel %vm5567, %v5569, %v5565
    %v5571 = vrcp.pop %v5556
    %v5572 = vmul.f32 %v5556, %v5571
    %v5573 = vsub.f32 1.0, %v5572
    %v5574 = vmul.f32 %v5571, %v5573
    %v5575 = vadd.f32 %v5571, %v5574
    %vm5576 = vweird.f32 %v5556
    %vm5577 = vweird.f32 %v5571
    %vm5578 = vmor %vm5576, %vm5577
    %v5579 = vsel %vm5578, %v5571, %v5575
    %v5580 = vand.u32 2147483647, %v5556
    %vm5581 = vcmp.eq.f32.partialorder %v5580, 8.507059e+37
    %v5582 = vand.u32 %v5556, 2147483648
    %v5583 = vor.u32 1.1754944e-38, %v5582
    %v5584 = vsel %vm5581, %v5583, %v5579
    %v5585 = vmul.f32 %v5548, %v5570
    %v5586 = vmul.f32 %v5550, %v5584
    %5587 = vrot.lane.b32.xlu0 %v4919, 40
    %v5588 = vpop.permute.xlu0 %5587
    %v5591 = vsel %vm1102, %v5585, 0
    %5593 = vmatpush.msra.mxu0 0.0
    %5594 = vmatpush.msra.mxu0 0.0
    %5595 = vmatpush.msra.mxu0 0.0
    %5596 = vmatpush.msra.mxu0 0.0
    %5597 = vmatpush.msra.mxu0 0.0
    %5598 = vmatpush.msra.mxu0 0.0
    %5599 = vmatpush.msra.mxu0 0.0
    %5600 = vmatpush.msra.mxu0 0.0
    %5601 = vmatpush.msra.mxu0 0.0
    %5602 = vmatpush.msra.mxu0 0.0
    %5603 = vmatpush.msra.mxu0 0.0
    %5604 = vmatpush.msra.mxu0 0.0
    %5605 = vmatpush.msra.mxu0 0.0
    %5606 = vmatpush.msra.mxu0 0.0
    %5607 = vmatpush.msra.mxu0 0.0
    %5608 = vmatpush.msra.mxu0 %v5588
    %5609 = vmatmul.f32.gmra.mxu0 %v5591
    %v5610 = vpop.f32.mrf.mxu0
    %v5611 = vadd.f32 0.0, %v5610
    %5612 = vdwg.mxu0
    %5613 = vrot.lane.b32.xlu0 %v4922, 40
    %v5614 = vpop.permute.xlu0 %5613
    %v5617 = vsel %vm1102, %v5586, 0
    %5619 = vmatpush.msra.mxu0 0.0
    %5620 = vmatpush.msra.mxu0 0.0
    %5621 = vmatpush.msra.mxu0 0.0
    %5622 = vmatpush.msra.mxu0 0.0
    %5623 = vmatpush.msra.mxu0 0.0
    %5624 = vmatpush.msra.mxu0 0.0
    %5625 = vmatpush.msra.mxu0 0.0
    %5626 = vmatpush.msra.mxu0 0.0
    %5627 = vmatpush.msra.mxu0 0.0
    %5628 = vmatpush.msra.mxu0 0.0
    %5629 = vmatpush.msra.mxu0 0.0
    %5630 = vmatpush.msra.mxu0 0.0
    %5631 = vmatpush.msra.mxu0 0.0
    %5632 = vmatpush.msra.mxu0 0.0
    %5633 = vmatpush.msra.mxu0 0.0
    %5634 = vmatpush.msra.mxu0 %v5614
    %5635 = vmatmul.f32.gmra.mxu0 %v5617
    %v5636 = vpop.f32.mrf.mxu0
    %v5637 = vadd.f32 0.0, %v5636
    %5638 = vdwg.mxu0
    %v5640 = vsel %vm1102, %v5611, 0
    %v5643 = vsel %vm1102, %v5637, 0
    %5645 = vmatpush.msra.mxu0 0.0
    %5646 = vmatpush.msra.mxu0 0.0
    %5647 = vmatpush.msra.mxu0 0.0
    %5648 = vmatpush.msra.mxu0 0.0
    %5649 = vmatpush.msra.mxu0 0.0
    %5650 = vmatpush.msra.mxu0 0.0
    %5651 = vmatpush.msra.mxu0 0.0
    %5652 = vmatpush.msra.mxu0 0.0
    %5653 = vmatpush.msra.mxu0 0.0
    %5654 = vmatpush.msra.mxu0 0.0
    %5655 = vmatpush.msra.mxu0 0.0
    %5656 = vmatpush.msra.mxu0 0.0
    %5657 = vmatpush.msra.mxu0 0.0
    %5658 = vmatpush.msra.mxu0 0.0
    %5659 = vmatpush.msra.mxu0 0.0
    %5660 = vmatpush.msra.mxu0 %v972
    %5661 = vmatmul.f32.gmra.mxu0 %v5640
    %v5662 = vpop.f32.mrf.mxu0
    %v5663 = vadd.f32 0.0, %v5662
    %5664 = vmatmul.f32.gmra.mxu0 %v5643
    %v5665 = vpop.f32.mrf.mxu0
    %v5666 = vadd.f32 0.0, %v5665
    %5667 = vdwg.mxu0
    %v5668 = vadd.f32 %v5481, %v5663
    %v5669 = vadd.f32 %v5482, %v5666
    %v5671 = vperm.slane %v964, 0
    %v5673 = vadd.f32 %v5668, %v5671
    %v5674 = vadd.f32 %v5669, %v5671
    %v5675 = vadd.f32 %v4890, %v5673
    %v5676 = vadd.f32 %v4891, %v5674
    %v5677 = vsel %vm1068, %v5675, 0.0
    %5678 = vadd.xlane.f32.xlu0 %v5677
    %v5679 = vpop.xlane.xlu0 %5678
    %v5680 = vsel %vm1068, %v5676, 0.0
    %5681 = vadd.xlane.f32.xlu0 %v5680
    %v5682 = vpop.xlane.xlu0 %5681
    %v5683 = vmul.f32 %v5679, %v1863
    %v5684 = vmul.f32 %v5682, %v1863
    %v5685 = vsub.f32 %v5675, %v5683
    %v5686 = vsub.f32 %v5676, %v5684
    %v5687 = vmul.f32 %v5685, %v5685
    %v5688 = vmul.f32 %v5686, %v5686
    %v5689 = vsel %vm1068, %v5687, 0.0
    %5690 = vadd.xlane.f32.xlu0 %v5689
    %v5691 = vpop.xlane.xlu0 %5690
    %v5692 = vsel %vm1068, %v5688, 0.0
    %5693 = vadd.xlane.f32.xlu0 %v5692
    %v5694 = vpop.xlane.xlu0 %5693
    %v5695 = vmul.f32 %v5691, %v1863
    %v5696 = vmul.f32 %v5694, %v1863
    %v5697 = vadd.f32 %v5695, 1e-05
    %v5698 = vadd.f32 %v5696, 1e-05
    %v5699 = vrsqrt.pop %v5697
    %v5700 = vmul.f32 %v5699, %v5697
    %v5701 = vmul.f32 %v5700, %v5699
    %v5702 = vmul.f32 0.5, %v5701
    %v5703 = vsub.f32 1.5, %v5702
    %v5704 = vmul.f32 %v5699, %v5703
    %vm5705 = vweird.f32 %v5697
    %vm5706 = vweird.f32 %v5699
    %vm5707 = vmor %vm5705, %vm5706
    %v5708 = vsel %vm5707, %v5699, %v5704
    %v5709 = vrsqrt.pop %v5698
    %v5710 = vmul.f32 %v5709, %v5698
    %v5711 = vmul.f32 %v5710, %v5709
    %v5712 = vmul.f32 0.5, %v5711
    %v5713 = vsub.f32 1.5, %v5712
    %v5714 = vmul.f32 %v5709, %v5713
    %vm5715 = vweird.f32 %v5698
    %vm5716 = vweird.f32 %v5709
    %vm5717 = vmor %vm5715, %vm5716
    %v5718 = vsel %vm5717, %v5709, %v5714
    %v5719 = vmul.f32 %v5685, %v5708
    %v5720 = vmul.f32 %v5686, %v5718
    %v5722 = vperm.slane %v958, 0
    %v5724 = vmul.f32 %v5719, %v5722
    %v5725 = vmul.f32 %v5720, %v5722
    %v5727 = vperm.slane %v957, 0
    %v5729 = vadd.f32 %v5724, %v5727
    %v5730 = vadd.f32 %v5725, %v5727
    %v5732 = vperm.slane %v944, 0
    %v5735 = vsel %vm1068, %v5729, 0
    %v5738 = vsel %vm1068, %v5730, 0
    %5740 = vmatpush.msra.mxu0 0.0
    %5741 = vmatpush.msra.mxu0 0.0
    %5742 = vmatpush.msra.mxu0 0.0
    %5743 = vmatpush.msra.mxu0 0.0
    %5744 = vmatpush.msra.mxu0 0.0
    %5745 = vmatpush.msra.mxu0 0.0
    %5746 = vmatpush.msra.mxu0 0.0
    %5747 = vmatpush.msra.mxu0 0.0
    %5748 = vmatpush.msra.mxu0 0.0
    %5749 = vmatpush.msra.mxu0 0.0
    %5750 = vmatpush.msra.mxu0 0.0
    %5751 = vmatpush.msra.mxu0 0.0
    %5752 = vmatpush.msra.mxu0 %v956
    %5753 = vmatpush.msra.mxu0 %v955
    %5754 = vmatpush.msra.mxu0 %v954
    %5755 = vmatpush.msra.mxu0 %v953
    %5756 = vmatmul.f32.gmra.mxu0 %v5735
    %v5757 = vpop.f32.mrf.mxu0
    %v5758 = vadd.f32 %v5732, %v5757
    %5759 = vmatmul.f32.gmra.mxu0 %v5738
    %v5760 = vpop.f32.mrf.mxu0
    %v5761 = vadd.f32 %v5732, %v5760
    %5762 = vdwg.mxu0
    %v5764 = vperm.slane %v942, 0
    %5766 = vmatpush.msra.mxu0 0.0
    %5767 = vmatpush.msra.mxu0 0.0
    %5768 = vmatpush.msra.mxu0 0.0
    %5769 = vmatpush.msra.mxu0 0.0
    %5770 = vmatpush.msra.mxu0 0.0
    %5771 = vmatpush.msra.mxu0 0.0
    %5772 = vmatpush.msra.mxu0 0.0
    %5773 = vmatpush.msra.mxu0 0.0
    %5774 = vmatpush.msra.mxu0 0.0
    %5775 = vmatpush.msra.mxu0 0.0
    %5776 = vmatpush.msra.mxu0 0.0
    %5777 = vmatpush.msra.mxu0 0.0
    %5778 = vmatpush.msra.mxu0 %v948
    %5779 = vmatpush.msra.mxu0 %v947
    %5780 = vmatpush.msra.mxu0 %v946
    %5781 = vmatpush.msra.mxu0 %v945
    %5782 = vmatmul.f32.gmra.mxu0 %v3939
    %v5783 = vpop.f32.mrf.mxu0
    %v5784 = vadd.f32 %v5764, %v5783
    %5785 = vmatmul.f32.gmra.mxu0 %v3942
    %v5786 = vpop.f32.mrf.mxu0
    %v5787 = vadd.f32 %v5764, %v5786
    %5788 = vdwg.mxu0
    %v5789 = vmul.f32 %v5758, 0.35355338
    %v5790 = vmul.f32 %v5761, 0.35355338
    %v5792 = vsel %vm1102, %v5789, 0
    %v5795 = vsel %vm1102, %v5784, 0
    %5797 = vmatpush.xpose.msra.mxu0 0.0
    %5798 = vmatpush.xpose.msra.mxu0 0.0
    %5799 = vmatpush.xpose.msra.mxu0 0.0
    %5800 = vmatpush.xpose.msra.mxu0 0.0
    %5801 = vmatpush.xpose.msra.mxu0 0.0
    %5802 = vmatpush.xpose.msra.mxu0 0.0
    %5803 = vmatpush.xpose.msra.mxu0 0.0
    %5804 = vmatpush.xpose.msra.mxu0 0.0
    %5805 = vmatpush.xpose.msra.mxu0 0.0
    %5806 = vmatpush.xpose.msra.mxu0 0.0
    %5807 = vmatpush.xpose.msra.mxu0 0.0
    %5808 = vmatpush.xpose.msra.mxu0 0.0
    %5809 = vmatpush.xpose.msra.mxu0 0.0
    %5810 = vmatpush.xpose.msra.mxu0 0.0
    %5811 = vmatpush.xpose.msra.mxu0 0.0
    %5812 = vmatpush.xpose.msra.mxu0 %v5795
    %5813 = vmatmul.f32.gmra.mxu0 %v5792
    %v5814 = vpop.f32.mrf.mxu0
    %v5815 = vadd.f32 0.0, %v5814
    %5816 = vdwg.mxu0
    %v5818 = vsel %vm1102, %v5790, 0
    %v5821 = vsel %vm1102, %v5787, 0
    %5823 = vmatpush.xpose.msra.mxu0 0.0
    %5824 = vmatpush.xpose.msra.mxu0 0.0
    %5825 = vmatpush.xpose.msra.mxu0 0.0
    %5826 = vmatpush.xpose.msra.mxu0 0.0
    %5827 = vmatpush.xpose.msra.mxu0 0.0
    %5828 = vmatpush.xpose.msra.mxu0 0.0
    %5829 = vmatpush.xpose.msra.mxu0 0.0
    %5830 = vmatpush.xpose.msra.mxu0 0.0
    %5831 = vmatpush.xpose.msra.mxu0 0.0
    %5832 = vmatpush.xpose.msra.mxu0 0.0
    %5833 = vmatpush.xpose.msra.mxu0 0.0
    %5834 = vmatpush.xpose.msra.mxu0 0.0
    %5835 = vmatpush.xpose.msra.mxu0 0.0
    %5836 = vmatpush.xpose.msra.mxu0 0.0
    %5837 = vmatpush.xpose.msra.mxu0 0.0
    %5838 = vmatpush.xpose.msra.mxu0 %v5821
    %5839 = vmatmul.f32.gmra.mxu0 %v5818
    %v5840 = vpop.f32.mrf.mxu0
    %v5841 = vadd.f32 0.0, %v5840
    %5842 = vdwg.mxu0
    %v5843 = vsel %vm1102, %v5815, -inf
    %5844 = vmax.xlane.f32.xlu0 %v5843
    %v5845 = vpop.xlane.xlu0 %5844
    %v5846 = vsel %vm1102, %v5841, -inf
    %5847 = vmax.xlane.f32.xlu0 %v5846
    %v5848 = vpop.xlane.xlu0 %5847
    %v5849 = vsub.f32 %v5815, %v5845
    %v5850 = vsub.f32 %v5841, %v5848
    %v5851 = vmul.f32 %v5849, 1.442695
    %v5852 = vpow.pop %v5851
    %v5853 = vmul.f32 %v5850, 1.442695
    %v5854 = vpow.pop %v5853
    %v5855 = vsel %vm1102, %v5852, 0.0
    %5856 = vadd.xlane.f32.xlu0 %v5855
    %v5857 = vpop.xlane.xlu0 %5856
    %v5858 = vsel %vm1102, %v5854, 0.0
    %5859 = vadd.xlane.f32.xlu0 %v5858
    %v5860 = vpop.xlane.xlu0 %5859
    %v5861 = vrcp.pop %v5857
    %v5862 = vmul.f32 %v5857, %v5861
    %v5863 = vsub.f32 1.0, %v5862
    %v5864 = vmul.f32 %v5861, %v5863
    %v5865 = vadd.f32 %v5861, %v5864
    %vm5866 = vweird.f32 %v5857
    %vm5867 = vweird.f32 %v5861
    %vm5868 = vmor %vm5866, %vm5867
    %v5869 = vsel %vm5868, %v5861, %v5865
    %v5870 = vand.u32 2147483647, %v5857
    %vm5871 = vcmp.eq.f32.partialorder %v5870, 8.507059e+37
    %v5872 = vand.u32 %v5857, 2147483648
    %v5873 = vor.u32 1.1754944e-38, %v5872
    %v5874 = vsel %vm5871, %v5873, %v5869
    %v5875 = vrcp.pop %v5860
    %v5876 = vmul.f32 %v5860, %v5875
    %v5877 = vsub.f32 1.0, %v5876
    %v5878 = vmul.f32 %v5875, %v5877
    %v5879 = vadd.f32 %v5875, %v5878
    %vm5880 = vweird.f32 %v5860
    %vm5881 = vweird.f32 %v5875
    %vm5882 = vmor %vm5880, %vm5881
    %v5883 = vsel %vm5882, %v5875, %v5879
    %v5884 = vand.u32 2147483647, %v5860
    %vm5885 = vcmp.eq.f32.partialorder %v5884, 8.507059e+37
    %v5886 = vand.u32 %v5860, 2147483648
    %v5887 = vor.u32 1.1754944e-38, %v5886
    %v5888 = vsel %vm5885, %v5887, %v5883
    %v5889 = vmul.f32 %v5852, %v5874
    %v5890 = vmul.f32 %v5854, %v5888
    %5891 = vrot.lane.b32.xlu0 %v5784, 96
    %v5892 = vpop.permute.xlu0 %5891
    %v5895 = vsel %vm1102, %v5889, 0
    %5897 = vmatpush.msra.mxu0 0.0
    %5898 = vmatpush.msra.mxu0 0.0
    %5899 = vmatpush.msra.mxu0 0.0
    %5900 = vmatpush.msra.mxu0 0.0
    %5901 = vmatpush.msra.mxu0 0.0
    %5902 = vmatpush.msra.mxu0 0.0
    %5903 = vmatpush.msra.mxu0 0.0
    %5904 = vmatpush.msra.mxu0 0.0
    %5905 = vmatpush.msra.mxu0 0.0
    %5906 = vmatpush.msra.mxu0 0.0
    %5907 = vmatpush.msra.mxu0 0.0
    %5908 = vmatpush.msra.mxu0 0.0
    %5909 = vmatpush.msra.mxu0 0.0
    %5910 = vmatpush.msra.mxu0 0.0
    %5911 = vmatpush.msra.mxu0 0.0
    %5912 = vmatpush.msra.mxu0 %v5892
    %5913 = vmatmul.f32.gmra.mxu0 %v5895
    %v5914 = vpop.f32.mrf.mxu0
    %v5915 = vadd.f32 0.0, %v5914
    %5916 = vdwg.mxu0
    %5917 = vrot.lane.b32.xlu0 %v5787, 96
    %v5918 = vpop.permute.xlu0 %5917
    %v5921 = vsel %vm1102, %v5890, 0
    %5923 = vmatpush.msra.mxu0 0.0
    %5924 = vmatpush.msra.mxu0 0.0
    %5925 = vmatpush.msra.mxu0 0.0
    %5926 = vmatpush.msra.mxu0 0.0
    %5927 = vmatpush.msra.mxu0 0.0
    %5928 = vmatpush.msra.mxu0 0.0
    %5929 = vmatpush.msra.mxu0 0.0
    %5930 = vmatpush.msra.mxu0 0.0
    %5931 = vmatpush.msra.mxu0 0.0
    %5932 = vmatpush.msra.mxu0 0.0
    %5933 = vmatpush.msra.mxu0 0.0
    %5934 = vmatpush.msra.mxu0 0.0
    %5935 = vmatpush.msra.mxu0 0.0
    %5936 = vmatpush.msra.mxu0 0.0
    %5937 = vmatpush.msra.mxu0 0.0
    %5938 = vmatpush.msra.mxu0 %v5918
    %5939 = vmatmul.f32.gmra.mxu0 %v5921
    %v5940 = vpop.f32.mrf.mxu0
    %v5941 = vadd.f32 0.0, %v5940
    %5942 = vdwg.mxu0
    %5943 = vrot.lane.b32.xlu0 %v5789, 120
    %v5944 = vpop.permute.xlu0 %5943
    %5945 = vrot.lane.b32.xlu0 %v5784, 120
    %v5946 = vpop.permute.xlu0 %5945
    %v5947 = vsel %vm1102, %v5944, 0
    %v5949 = vsel %vm1102, %v5946, 0
    %5951 = vmatpush.xpose.msra.mxu0 0.0
    %5952 = vmatpush.xpose.msra.mxu0 0.0
    %5953 = vmatpush.xpose.msra.mxu0 0.0
    %5954 = vmatpush.xpose.msra.mxu0 0.0
    %5955 = vmatpush.xpose.msra.mxu0 0.0
    %5956 = vmatpush.xpose.msra.mxu0 0.0
    %5957 = vmatpush.xpose.msra.mxu0 0.0
    %5958 = vmatpush.xpose.msra.mxu0 0.0
    %5959 = vmatpush.xpose.msra.mxu0 0.0
    %5960 = vmatpush.xpose.msra.mxu0 0.0
    %5961 = vmatpush.xpose.msra.mxu0 0.0
    %5962 = vmatpush.xpose.msra.mxu0 0.0
    %5963 = vmatpush.xpose.msra.mxu0 0.0
    %5964 = vmatpush.xpose.msra.mxu0 0.0
    %5965 = vmatpush.xpose.msra.mxu0 0.0
    %5966 = vmatpush.xpose.msra.mxu0 %v5949
    %5967 = vmatmul.f32.gmra.mxu0 %v5947
    %v5968 = vpop.f32.mrf.mxu0
    %v5969 = vadd.f32 0.0, %v5968
    %5970 = vdwg.mxu0
    %5971 = vrot.lane.b32.xlu0 %v5790, 120
    %v5972 = vpop.permute.xlu0 %5971
    %5973 = vrot.lane.b32.xlu0 %v5787, 120
    %v5974 = vpop.permute.xlu0 %5973
    %v5975 = vsel %vm1102, %v5972, 0
    %v5977 = vsel %vm1102, %v5974, 0
    %5979 = vmatpush.xpose.msra.mxu0 0.0
    %5980 = vmatpush.xpose.msra.mxu0 0.0
    %5981 = vmatpush.xpose.msra.mxu0 0.0
    %5982 = vmatpush.xpose.msra.mxu0 0.0
    %5983 = vmatpush.xpose.msra.mxu0 0.0
    %5984 = vmatpush.xpose.msra.mxu0 0.0
    %5985 = vmatpush.xpose.msra.mxu0 0.0
    %5986 = vmatpush.xpose.msra.mxu0 0.0
    %5987 = vmatpush.xpose.msra.mxu0 0.0
    %5988 = vmatpush.xpose.msra.mxu0 0.0
    %5989 = vmatpush.xpose.msra.mxu0 0.0
    %5990 = vmatpush.xpose.msra.mxu0 0.0
    %5991 = vmatpush.xpose.msra.mxu0 0.0
    %5992 = vmatpush.xpose.msra.mxu0 0.0
    %5993 = vmatpush.xpose.msra.mxu0 0.0
    %5994 = vmatpush.xpose.msra.mxu0 %v5977
    %5995 = vmatmul.f32.gmra.mxu0 %v5975
    %v5996 = vpop.f32.mrf.mxu0
    %v5997 = vadd.f32 0.0, %v5996
    %5998 = vdwg.mxu0
    %v5999 = vsel %vm1102, %v5969, -inf
    %6000 = vmax.xlane.f32.xlu0 %v5999
    %v6001 = vpop.xlane.xlu0 %6000
    %v6002 = vsel %vm1102, %v5997, -inf
    %6003 = vmax.xlane.f32.xlu0 %v6002
    %v6004 = vpop.xlane.xlu0 %6003
    %v6005 = vsub.f32 %v5969, %v6001
    %v6006 = vsub.f32 %v5997, %v6004
    %v6007 = vmul.f32 %v6005, 1.442695
    %v6008 = vpow.pop %v6007
    %v6009 = vmul.f32 %v6006, 1.442695
    %v6010 = vpow.pop %v6009
    %v6011 = vsel %vm1102, %v6008, 0.0
    %6012 = vadd.xlane.f32.xlu0 %v6011
    %v6013 = vpop.xlane.xlu0 %6012
    %v6014 = vsel %vm1102, %v6010, 0.0
    %6015 = vadd.xlane.f32.xlu0 %v6014
    %v6016 = vpop.xlane.xlu0 %6015
    %v6017 = vrcp.pop %v6013
    %v6018 = vmul.f32 %v6013, %v6017
    %v6019 = vsub.f32 1.0, %v6018
    %v6020 = vmul.f32 %v6017, %v6019
    %v6021 = vadd.f32 %v6017, %v6020
    %vm6022 = vweird.f32 %v6013
    %vm6023 = vweird.f32 %v6017
    %vm6024 = vmor %vm6022, %vm6023
    %v6025 = vsel %vm6024, %v6017, %v6021
    %v6026 = vand.u32 2147483647, %v6013
    %vm6027 = vcmp.eq.f32.partialorder %v6026, 8.507059e+37
    %v6028 = vand.u32 %v6013, 2147483648
    %v6029 = vor.u32 1.1754944e-38, %v6028
    %v6030 = vsel %vm6027, %v6029, %v6025
    %v6031 = vrcp.pop %v6016
    %v6032 = vmul.f32 %v6016, %v6031
    %v6033 = vsub.f32 1.0, %v6032
    %v6034 = vmul.f32 %v6031, %v6033
    %v6035 = vadd.f32 %v6031, %v6034
    %vm6036 = vweird.f32 %v6016
    %vm6037 = vweird.f32 %v6031
    %vm6038 = vmor %vm6036, %vm6037
    %v6039 = vsel %vm6038, %v6031, %v6035
    %v6040 = vand.u32 2147483647, %v6016
    %vm6041 = vcmp.eq.f32.partialorder %v6040, 8.507059e+37
    %v6042 = vand.u32 %v6016, 2147483648
    %v6043 = vor.u32 1.1754944e-38, %v6042
    %v6044 = vsel %vm6041, %v6043, %v6039
    %v6045 = vmul.f32 %v6008, %v6030
    %v6046 = vmul.f32 %v6010, %v6044
    %6047 = vrot.lane.b32.xlu0 %v5784, 88
    %v6048 = vpop.permute.xlu0 %6047
    %v6051 = vsel %vm1102, %v6045, 0
    %6053 = vmatpush.msra.mxu0 0.0
    %6054 = vmatpush.msra.mxu0 0.0
    %6055 = vmatpush.msra.mxu0 0.0
    %6056 = vmatpush.msra.mxu0 0.0
    %6057 = vmatpush.msra.mxu0 0.0
    %6058 = vmatpush.msra.mxu0 0.0
    %6059 = vmatpush.msra.mxu0 0.0
    %6060 = vmatpush.msra.mxu0 0.0
    %6061 = vmatpush.msra.mxu0 0.0
    %6062 = vmatpush.msra.mxu0 0.0
    %6063 = vmatpush.msra.mxu0 0.0
    %6064 = vmatpush.msra.mxu0 0.0
    %6065 = vmatpush.msra.mxu0 0.0
    %6066 = vmatpush.msra.mxu0 0.0
    %6067 = vmatpush.msra.mxu0 0.0
    %6068 = vmatpush.msra.mxu0 %v6048
    %6069 = vmatmul.f32.gmra.mxu0 %v6051
    %v6070 = vpop.f32.mrf.mxu0
    %v6071 = vadd.f32 0.0, %v6070
    %6072 = vdwg.mxu0
    %6073 = vrot.lane.b32.xlu0 %v5787, 88
    %v6074 = vpop.permute.xlu0 %6073
    %v6077 = vsel %vm1102, %v6046, 0
    %6079 = vmatpush.msra.mxu0 0.0
    %6080 = vmatpush.msra.mxu0 0.0
    %6081 = vmatpush.msra.mxu0 0.0
    %6082 = vmatpush.msra.mxu0 0.0
    %6083 = vmatpush.msra.mxu0 0.0
    %6084 = vmatpush.msra.mxu0 0.0
    %6085 = vmatpush.msra.mxu0 0.0
    %6086 = vmatpush.msra.mxu0 0.0
    %6087 = vmatpush.msra.mxu0 0.0
    %6088 = vmatpush.msra.mxu0 0.0
    %6089 = vmatpush.msra.mxu0 0.0
    %6090 = vmatpush.msra.mxu0 0.0
    %6091 = vmatpush.msra.mxu0 0.0
    %6092 = vmatpush.msra.mxu0 0.0
    %6093 = vmatpush.msra.mxu0 0.0
    %6094 = vmatpush.msra.mxu0 %v6074
    %6095 = vmatmul.f32.gmra.mxu0 %v6077
    %v6096 = vpop.f32.mrf.mxu0
    %v6097 = vadd.f32 0.0, %v6096
    %6098 = vdwg.mxu0
    %v6100 = vsel %vm1102, %v6071, 0
    %v6103 = vsel %vm1102, %v6097, 0
    %6105 = vmatpush.msra.mxu0 0.0
    %6106 = vmatpush.msra.mxu0 0.0
    %6107 = vmatpush.msra.mxu0 0.0
    %6108 = vmatpush.msra.mxu0 0.0
    %6109 = vmatpush.msra.mxu0 0.0
    %6110 = vmatpush.msra.mxu0 0.0
    %6111 = vmatpush.msra.mxu0 0.0
    %6112 = vmatpush.msra.mxu0 0.0
    %6113 = vmatpush.msra.mxu0 0.0
    %6114 = vmatpush.msra.mxu0 0.0
    %6115 = vmatpush.msra.mxu0 0.0
    %6116 = vmatpush.msra.mxu0 0.0
    %6117 = vmatpush.msra.mxu0 0.0
    %6118 = vmatpush.msra.mxu0 0.0
    %6119 = vmatpush.msra.mxu0 0.0
    %6120 = vmatpush.msra.mxu0 %v950
    %6121 = vmatmul.f32.gmra.mxu0 %v6100
    %v6122 = vpop.f32.mrf.mxu0
    %v6123 = vadd.f32 0.0, %v6122
    %6124 = vmatmul.f32.gmra.mxu0 %v6103
    %v6125 = vpop.f32.mrf.mxu0
    %v6126 = vadd.f32 0.0, %v6125
    %6127 = vdwg.mxu0
    %v6129 = vsel %vm1102, %v5915, 0
    %v6132 = vsel %vm1102, %v5941, 0
    %6134 = vmatpush.msra.mxu0 0.0
    %6135 = vmatpush.msra.mxu0 0.0
    %6136 = vmatpush.msra.mxu0 0.0
    %6137 = vmatpush.msra.mxu0 0.0
    %6138 = vmatpush.msra.mxu0 0.0
    %6139 = vmatpush.msra.mxu0 0.0
    %6140 = vmatpush.msra.mxu0 0.0
    %6141 = vmatpush.msra.mxu0 0.0
    %6142 = vmatpush.msra.mxu0 0.0
    %6143 = vmatpush.msra.mxu0 0.0
    %6144 = vmatpush.msra.mxu0 0.0
    %6145 = vmatpush.msra.mxu0 0.0
    %6146 = vmatpush.msra.mxu0 0.0
    %6147 = vmatpush.msra.mxu0 0.0
    %6148 = vmatpush.msra.mxu0 0.0
    %6149 = vmatpush.msra.mxu0 %v949
    %6150 = vmatmul.f32.gmra.mxu0 %v6129
    %v6151 = vpop.f32.mrf.mxu0
    %v6152 = vadd.f32 %v6123, %v6151
    %6153 = vmatmul.f32.gmra.mxu0 %v6132
    %v6154 = vpop.f32.mrf.mxu0
    %v6155 = vadd.f32 %v6126, %v6154
    %6156 = vdwg.mxu0
    %6157 = vrot.lane.b32.xlu0 %v5789, 112
    %v6158 = vpop.permute.xlu0 %6157
    %6159 = vrot.lane.b32.xlu0 %v5784, 112
    %v6160 = vpop.permute.xlu0 %6159
    %v6161 = vsel %vm1102, %v6158, 0
    %v6163 = vsel %vm1102, %v6160, 0
    %6165 = vmatpush.xpose.msra.mxu0 0.0
    %6166 = vmatpush.xpose.msra.mxu0 0.0
    %6167 = vmatpush.xpose.msra.mxu0 0.0
    %6168 = vmatpush.xpose.msra.mxu0 0.0
    %6169 = vmatpush.xpose.msra.mxu0 0.0
    %6170 = vmatpush.xpose.msra.mxu0 0.0
    %6171 = vmatpush.xpose.msra.mxu0 0.0
    %6172 = vmatpush.xpose.msra.mxu0 0.0
    %6173 = vmatpush.xpose.msra.mxu0 0.0
    %6174 = vmatpush.xpose.msra.mxu0 0.0
    %6175 = vmatpush.xpose.msra.mxu0 0.0
    %6176 = vmatpush.xpose.msra.mxu0 0.0
    %6177 = vmatpush.xpose.msra.mxu0 0.0
    %6178 = vmatpush.xpose.msra.mxu0 0.0
    %6179 = vmatpush.xpose.msra.mxu0 0.0
    %6180 = vmatpush.xpose.msra.mxu0 %v6163
    %6181 = vmatmul.f32.gmra.mxu0 %v6161
    %v6182 = vpop.f32.mrf.mxu0
    %v6183 = vadd.f32 0.0, %v6182
    %6184 = vdwg.mxu0
    %6185 = vrot.lane.b32.xlu0 %v5790, 112
    %v6186 = vpop.permute.xlu0 %6185
    %6187 = vrot.lane.b32.xlu0 %v5787, 112
    %v6188 = vpop.permute.xlu0 %6187
    %v6189 = vsel %vm1102, %v6186, 0
    %v6191 = vsel %vm1102, %v6188, 0
    %6193 = vmatpush.xpose.msra.mxu0 0.0
    %6194 = vmatpush.xpose.msra.mxu0 0.0
    %6195 = vmatpush.xpose.msra.mxu0 0.0
    %6196 = vmatpush.xpose.msra.mxu0 0.0
    %6197 = vmatpush.xpose.msra.mxu0 0.0
    %6198 = vmatpush.xpose.msra.mxu0 0.0
    %6199 = vmatpush.xpose.msra.mxu0 0.0
    %6200 = vmatpush.xpose.msra.mxu0 0.0
    %6201 = vmatpush.xpose.msra.mxu0 0.0
    %6202 = vmatpush.xpose.msra.mxu0 0.0
    %6203 = vmatpush.xpose.msra.mxu0 0.0
    %6204 = vmatpush.xpose.msra.mxu0 0.0
    %6205 = vmatpush.xpose.msra.mxu0 0.0
    %6206 = vmatpush.xpose.msra.mxu0 0.0
    %6207 = vmatpush.xpose.msra.mxu0 0.0
    %6208 = vmatpush.xpose.msra.mxu0 %v6191
    %6209 = vmatmul.f32.gmra.mxu0 %v6189
    %v6210 = vpop.f32.mrf.mxu0
    %v6211 = vadd.f32 0.0, %v6210
    %6212 = vdwg.mxu0
    %v6213 = vsel %vm1102, %v6183, -inf
    %6214 = vmax.xlane.f32.xlu0 %v6213
    %v6215 = vpop.xlane.xlu0 %6214
    %v6216 = vsel %vm1102, %v6211, -inf
    %6217 = vmax.xlane.f32.xlu0 %v6216
    %v6218 = vpop.xlane.xlu0 %6217
    %v6219 = vsub.f32 %v6183, %v6215
    %v6220 = vsub.f32 %v6211, %v6218
    %v6221 = vmul.f32 %v6219, 1.442695
    %v6222 = vpow.pop %v6221
    %v6223 = vmul.f32 %v6220, 1.442695
    %v6224 = vpow.pop %v6223
    %v6225 = vsel %vm1102, %v6222, 0.0
    %6226 = vadd.xlane.f32.xlu0 %v6225
    %v6227 = vpop.xlane.xlu0 %6226
    %v6228 = vsel %vm1102, %v6224, 0.0
    %6229 = vadd.xlane.f32.xlu0 %v6228
    %v6230 = vpop.xlane.xlu0 %6229
    %v6231 = vrcp.pop %v6227
    %v6232 = vmul.f32 %v6227, %v6231
    %v6233 = vsub.f32 1.0, %v6232
    %v6234 = vmul.f32 %v6231, %v6233
    %v6235 = vadd.f32 %v6231, %v6234
    %vm6236 = vweird.f32 %v6227
    %vm6237 = vweird.f32 %v6231
    %vm6238 = vmor %vm6236, %vm6237
    %v6239 = vsel %vm6238, %v6231, %v6235
    %v6240 = vand.u32 2147483647, %v6227
    %vm6241 = vcmp.eq.f32.partialorder %v6240, 8.507059e+37
    %v6242 = vand.u32 %v6227, 2147483648
    %v6243 = vor.u32 1.1754944e-38, %v6242
    %v6244 = vsel %vm6241, %v6243, %v6239
    %v6245 = vrcp.pop %v6230
    %v6246 = vmul.f32 %v6230, %v6245
    %v6247 = vsub.f32 1.0, %v6246
    %v6248 = vmul.f32 %v6245, %v6247
    %v6249 = vadd.f32 %v6245, %v6248
    %vm6250 = vweird.f32 %v6230
    %vm6251 = vweird.f32 %v6245
    %vm6252 = vmor %vm6250, %vm6251
    %v6253 = vsel %vm6252, %v6245, %v6249
    %v6254 = vand.u32 2147483647, %v6230
    %vm6255 = vcmp.eq.f32.partialorder %v6254, 8.507059e+37
    %v6256 = vand.u32 %v6230, 2147483648
    %v6257 = vor.u32 1.1754944e-38, %v6256
    %v6258 = vsel %vm6255, %v6257, %v6253
    %v6259 = vmul.f32 %v6222, %v6244
    %v6260 = vmul.f32 %v6224, %v6258
    %6261 = vrot.lane.b32.xlu0 %v5784, 80
    %v6262 = vpop.permute.xlu0 %6261
    %v6265 = vsel %vm1102, %v6259, 0
    %6267 = vmatpush.msra.mxu0 0.0
    %6268 = vmatpush.msra.mxu0 0.0
    %6269 = vmatpush.msra.mxu0 0.0
    %6270 = vmatpush.msra.mxu0 0.0
    %6271 = vmatpush.msra.mxu0 0.0
    %6272 = vmatpush.msra.mxu0 0.0
    %6273 = vmatpush.msra.mxu0 0.0
    %6274 = vmatpush.msra.mxu0 0.0
    %6275 = vmatpush.msra.mxu0 0.0
    %6276 = vmatpush.msra.mxu0 0.0
    %6277 = vmatpush.msra.mxu0 0.0
    %6278 = vmatpush.msra.mxu0 0.0
    %6279 = vmatpush.msra.mxu0 0.0
    %6280 = vmatpush.msra.mxu0 0.0
    %6281 = vmatpush.msra.mxu0 0.0
    %6282 = vmatpush.msra.mxu0 %v6262
    %6283 = vmatmul.f32.gmra.mxu0 %v6265
    %v6284 = vpop.f32.mrf.mxu0
    %v6285 = vadd.f32 0.0, %v6284
    %6286 = vdwg.mxu0
    %6287 = vrot.lane.b32.xlu0 %v5787, 80
    %v6288 = vpop.permute.xlu0 %6287
    %v6291 = vsel %vm1102, %v6260, 0
    %6293 = vmatpush.msra.mxu0 0.0
    %6294 = vmatpush.msra.mxu0 0.0
    %6295 = vmatpush.msra.mxu0 0.0
    %6296 = vmatpush.msra.mxu0 0.0
    %6297 = vmatpush.msra.mxu0 0.0
    %6298 = vmatpush.msra.mxu0 0.0
    %6299 = vmatpush.msra.mxu0 0.0
    %6300 = vmatpush.msra.mxu0 0.0
    %6301 = vmatpush.msra.mxu0 0.0
    %6302 = vmatpush.msra.mxu0 0.0
    %6303 = vmatpush.msra.mxu0 0.0
    %6304 = vmatpush.msra.mxu0 0.0
    %6305 = vmatpush.msra.mxu0 0.0
    %6306 = vmatpush.msra.mxu0 0.0
    %6307 = vmatpush.msra.mxu0 0.0
    %6308 = vmatpush.msra.mxu0 %v6288
    %6309 = vmatmul.f32.gmra.mxu0 %v6291
    %v6310 = vpop.f32.mrf.mxu0
    %v6311 = vadd.f32 0.0, %v6310
    %6312 = vdwg.mxu0
    %v6314 = vsel %vm1102, %v6285, 0
    %v6317 = vsel %vm1102, %v6311, 0
    %6319 = vmatpush.msra.mxu0 0.0
    %6320 = vmatpush.msra.mxu0 0.0
    %6321 = vmatpush.msra.mxu0 0.0
    %6322 = vmatpush.msra.mxu0 0.0
    %6323 = vmatpush.msra.mxu0 0.0
    %6324 = vmatpush.msra.mxu0 0.0
    %6325 = vmatpush.msra.mxu0 0.0
    %6326 = vmatpush.msra.mxu0 0.0
    %6327 = vmatpush.msra.mxu0 0.0
    %6328 = vmatpush.msra.mxu0 0.0
    %6329 = vmatpush.msra.mxu0 0.0
    %6330 = vmatpush.msra.mxu0 0.0
    %6331 = vmatpush.msra.mxu0 0.0
    %6332 = vmatpush.msra.mxu0 0.0
    %6333 = vmatpush.msra.mxu0 0.0
    %6334 = vmatpush.msra.mxu0 %v951
    %6335 = vmatmul.f32.gmra.mxu0 %v6314
    %v6336 = vpop.f32.mrf.mxu0
    %v6337 = vadd.f32 0.0, %v6336
    %6338 = vmatmul.f32.gmra.mxu0 %v6317
    %v6339 = vpop.f32.mrf.mxu0
    %v6340 = vadd.f32 0.0, %v6339
    %6341 = vdwg.mxu0
    %v6342 = vadd.f32 %v6152, %v6337
    %v6343 = vadd.f32 %v6155, %v6340
    %6344 = vrot.lane.b32.xlu0 %v5789, 104
    %v6345 = vpop.permute.xlu0 %6344
    %6346 = vrot.lane.b32.xlu0 %v5784, 104
    %v6347 = vpop.permute.xlu0 %6346
    %v6348 = vsel %vm1102, %v6345, 0
    %v6350 = vsel %vm1102, %v6347, 0
    %6352 = vmatpush.xpose.msra.mxu0 0.0
    %6353 = vmatpush.xpose.msra.mxu0 0.0
    %6354 = vmatpush.xpose.msra.mxu0 0.0
    %6355 = vmatpush.xpose.msra.mxu0 0.0
    %6356 = vmatpush.xpose.msra.mxu0 0.0
    %6357 = vmatpush.xpose.msra.mxu0 0.0
    %6358 = vmatpush.xpose.msra.mxu0 0.0
    %6359 = vmatpush.xpose.msra.mxu0 0.0
    %6360 = vmatpush.xpose.msra.mxu0 0.0
    %6361 = vmatpush.xpose.msra.mxu0 0.0
    %6362 = vmatpush.xpose.msra.mxu0 0.0
    %6363 = vmatpush.xpose.msra.mxu0 0.0
    %6364 = vmatpush.xpose.msra.mxu0 0.0
    %6365 = vmatpush.xpose.msra.mxu0 0.0
    %6366 = vmatpush.xpose.msra.mxu0 0.0
    %6367 = vmatpush.xpose.msra.mxu0 %v6350
    %6368 = vmatmul.f32.gmra.mxu0 %v6348
    %v6369 = vpop.f32.mrf.mxu0
    %v6370 = vadd.f32 0.0, %v6369
    %6371 = vdwg.mxu0
    %6372 = vrot.lane.b32.xlu0 %v5790, 104
    %v6373 = vpop.permute.xlu0 %6372
    %6374 = vrot.lane.b32.xlu0 %v5787, 104
    %v6375 = vpop.permute.xlu0 %6374
    %v6376 = vsel %vm1102, %v6373, 0
    %v6378 = vsel %vm1102, %v6375, 0
    %6380 = vmatpush.xpose.msra.mxu0 0.0
    %6381 = vmatpush.xpose.msra.mxu0 0.0
    %6382 = vmatpush.xpose.msra.mxu0 0.0
    %6383 = vmatpush.xpose.msra.mxu0 0.0
    %6384 = vmatpush.xpose.msra.mxu0 0.0
    %6385 = vmatpush.xpose.msra.mxu0 0.0
    %6386 = vmatpush.xpose.msra.mxu0 0.0
    %6387 = vmatpush.xpose.msra.mxu0 0.0
    %6388 = vmatpush.xpose.msra.mxu0 0.0
    %6389 = vmatpush.xpose.msra.mxu0 0.0
    %6390 = vmatpush.xpose.msra.mxu0 0.0
    %6391 = vmatpush.xpose.msra.mxu0 0.0
    %6392 = vmatpush.xpose.msra.mxu0 0.0
    %6393 = vmatpush.xpose.msra.mxu0 0.0
    %6394 = vmatpush.xpose.msra.mxu0 0.0
    %6395 = vmatpush.xpose.msra.mxu0 %v6378
    %6396 = vmatmul.f32.gmra.mxu0 %v6376
    %v6397 = vpop.f32.mrf.mxu0
    %v6398 = vadd.f32 0.0, %v6397
    %6399 = vdwg.mxu0
    %v6400 = vsel %vm1102, %v6370, -inf
    %6401 = vmax.xlane.f32.xlu0 %v6400
    %v6402 = vpop.xlane.xlu0 %6401
    %v6403 = vsel %vm1102, %v6398, -inf
    %6404 = vmax.xlane.f32.xlu0 %v6403
    %v6405 = vpop.xlane.xlu0 %6404
    %v6406 = vsub.f32 %v6370, %v6402
    %v6407 = vsub.f32 %v6398, %v6405
    %v6408 = vmul.f32 %v6406, 1.442695
    %v6409 = vpow.pop %v6408
    %v6410 = vmul.f32 %v6407, 1.442695
    %v6411 = vpow.pop %v6410
    %v6412 = vsel %vm1102, %v6409, 0.0
    %6413 = vadd.xlane.f32.xlu0 %v6412
    %v6414 = vpop.xlane.xlu0 %6413
    %v6415 = vsel %vm1102, %v6411, 0.0
    %6416 = vadd.xlane.f32.xlu0 %v6415
    %v6417 = vpop.xlane.xlu0 %6416
    %v6418 = vrcp.pop %v6414
    %v6419 = vmul.f32 %v6414, %v6418
    %v6420 = vsub.f32 1.0, %v6419
    %v6421 = vmul.f32 %v6418, %v6420
    %v6422 = vadd.f32 %v6418, %v6421
    %vm6423 = vweird.f32 %v6414
    %vm6424 = vweird.f32 %v6418
    %vm6425 = vmor %vm6423, %vm6424
    %v6426 = vsel %vm6425, %v6418, %v6422
    %v6427 = vand.u32 2147483647, %v6414
    %vm6428 = vcmp.eq.f32.partialorder %v6427, 8.507059e+37
    %v6429 = vand.u32 %v6414, 2147483648
    %v6430 = vor.u32 1.1754944e-38, %v6429
    %v6431 = vsel %vm6428, %v6430, %v6426
    %v6432 = vrcp.pop %v6417
    %v6433 = vmul.f32 %v6417, %v6432
    %v6434 = vsub.f32 1.0, %v6433
    %v6435 = vmul.f32 %v6432, %v6434
    %v6436 = vadd.f32 %v6432, %v6435
    %vm6437 = vweird.f32 %v6417
    %vm6438 = vweird.f32 %v6432
    %vm6439 = vmor %vm6437, %vm6438
    %v6440 = vsel %vm6439, %v6432, %v6436
    %v6441 = vand.u32 2147483647, %v6417
    %vm6442 = vcmp.eq.f32.partialorder %v6441, 8.507059e+37
    %v6443 = vand.u32 %v6417, 2147483648
    %v6444 = vor.u32 1.1754944e-38, %v6443
    %v6445 = vsel %vm6442, %v6444, %v6440
    %v6446 = vmul.f32 %v6409, %v6431
    %v6447 = vmul.f32 %v6411, %v6445
    %6448 = vrot.lane.b32.xlu0 %v5784, 72
    %v6449 = vpop.permute.xlu0 %6448
    %v6452 = vsel %vm1102, %v6446, 0
    %6454 = vmatpush.msra.mxu0 0.0
    %6455 = vmatpush.msra.mxu0 0.0
    %6456 = vmatpush.msra.mxu0 0.0
    %6457 = vmatpush.msra.mxu0 0.0
    %6458 = vmatpush.msra.mxu0 0.0
    %6459 = vmatpush.msra.mxu0 0.0
    %6460 = vmatpush.msra.mxu0 0.0
    %6461 = vmatpush.msra.mxu0 0.0
    %6462 = vmatpush.msra.mxu0 0.0
    %6463 = vmatpush.msra.mxu0 0.0
    %6464 = vmatpush.msra.mxu0 0.0
    %6465 = vmatpush.msra.mxu0 0.0
    %6466 = vmatpush.msra.mxu0 0.0
    %6467 = vmatpush.msra.mxu0 0.0
    %6468 = vmatpush.msra.mxu0 0.0
    %6469 = vmatpush.msra.mxu0 %v6449
    %6470 = vmatmul.f32.gmra.mxu0 %v6452
    %v6471 = vpop.f32.mrf.mxu0
    %v6472 = vadd.f32 0.0, %v6471
    %6473 = vdwg.mxu0
    %6474 = vrot.lane.b32.xlu0 %v5787, 72
    %v6475 = vpop.permute.xlu0 %6474
    %v6478 = vsel %vm1102, %v6447, 0
    %6480 = vmatpush.msra.mxu0 0.0
    %6481 = vmatpush.msra.mxu0 0.0
    %6482 = vmatpush.msra.mxu0 0.0
    %6483 = vmatpush.msra.mxu0 0.0
    %6484 = vmatpush.msra.mxu0 0.0
    %6485 = vmatpush.msra.mxu0 0.0
    %6486 = vmatpush.msra.mxu0 0.0
    %6487 = vmatpush.msra.mxu0 0.0
    %6488 = vmatpush.msra.mxu0 0.0
    %6489 = vmatpush.msra.mxu0 0.0
    %6490 = vmatpush.msra.mxu0 0.0
    %6491 = vmatpush.msra.mxu0 0.0
    %6492 = vmatpush.msra.mxu0 0.0
    %6493 = vmatpush.msra.mxu0 0.0
    %6494 = vmatpush.msra.mxu0 0.0
    %6495 = vmatpush.msra.mxu0 %v6475
    %6496 = vmatmul.f32.gmra.mxu0 %v6478
    %v6497 = vpop.f32.mrf.mxu0
    %v6498 = vadd.f32 0.0, %v6497
    %6499 = vdwg.mxu0
    %v6501 = vsel %vm1102, %v6472, 0
    %v6504 = vsel %vm1102, %v6498, 0
    %6506 = vmatpush.msra.mxu0 0.0
    %6507 = vmatpush.msra.mxu0 0.0
    %6508 = vmatpush.msra.mxu0 0.0
    %6509 = vmatpush.msra.mxu0 0.0
    %6510 = vmatpush.msra.mxu0 0.0
    %6511 = vmatpush.msra.mxu0 0.0
    %6512 = vmatpush.msra.mxu0 0.0
    %6513 = vmatpush.msra.mxu0 0.0
    %6514 = vmatpush.msra.mxu0 0.0
    %6515 = vmatpush.msra.mxu0 0.0
    %6516 = vmatpush.msra.mxu0 0.0
    %6517 = vmatpush.msra.mxu0 0.0
    %6518 = vmatpush.msra.mxu0 0.0
    %6519 = vmatpush.msra.mxu0 0.0
    %6520 = vmatpush.msra.mxu0 0.0
    %6521 = vmatpush.msra.mxu0 %v952
    %6522 = vmatmul.f32.gmra.mxu0 %v6501
    %v6523 = vpop.f32.mrf.mxu0
    %v6524 = vadd.f32 0.0, %v6523
    %6525 = vmatmul.f32.gmra.mxu0 %v6504
    %v6526 = vpop.f32.mrf.mxu0
    %v6527 = vadd.f32 0.0, %v6526
    %6528 = vdwg.mxu0
    %v6529 = vadd.f32 %v6342, %v6524
    %v6530 = vadd.f32 %v6343, %v6527
    %v6532 = vperm.slane %v943, 0
    %v6534 = vadd.f32 %v6529, %v6532
    %v6535 = vadd.f32 %v6530, %v6532
    %v6536 = vadd.f32 %v5729, %v6534
    %v6537 = vadd.f32 %v5730, %v6535
    %v6538 = vsel %vm1068, %v6536, 0.0
    %6539 = vadd.xlane.f32.xlu0 %v6538
    %v6540 = vpop.xlane.xlu0 %6539
    %v6541 = vsel %vm1068, %v6537, 0.0
    %6542 = vadd.xlane.f32.xlu0 %v6541
    %v6543 = vpop.xlane.xlu0 %6542
    %v6544 = vmul.f32 %v6540, %v1863
    %v6545 = vmul.f32 %v6543, %v1863
    %v6546 = vsub.f32 %v6536, %v6544
    %v6547 = vsub.f32 %v6537, %v6545
    %v6548 = vmul.f32 %v6546, %v6546
    %v6549 = vmul.f32 %v6547, %v6547
    %v6550 = vsel %vm1068, %v6548, 0.0
    %6551 = vadd.xlane.f32.xlu0 %v6550
    %v6552 = vpop.xlane.xlu0 %6551
    %v6553 = vsel %vm1068, %v6549, 0.0
    %6554 = vadd.xlane.f32.xlu0 %v6553
    %v6555 = vpop.xlane.xlu0 %6554
    %v6556 = vmul.f32 %v6552, %v1863
    %v6557 = vmul.f32 %v6555, %v1863
    %v6558 = vadd.f32 %v6556, 1e-05
    %v6559 = vadd.f32 %v6557, 1e-05
    %v6560 = vrsqrt.pop %v6558
    %v6561 = vmul.f32 %v6560, %v6558
    %v6562 = vmul.f32 %v6561, %v6560
    %v6563 = vmul.f32 0.5, %v6562
    %v6564 = vsub.f32 1.5, %v6563
    %v6565 = vmul.f32 %v6560, %v6564
    %vm6566 = vweird.f32 %v6558
    %vm6567 = vweird.f32 %v6560
    %vm6568 = vmor %vm6566, %vm6567
    %v6569 = vsel %vm6568, %v6560, %v6565
    %v6570 = vrsqrt.pop %v6559
    %v6571 = vmul.f32 %v6570, %v6559
    %v6572 = vmul.f32 %v6571, %v6570
    %v6573 = vmul.f32 0.5, %v6572
    %v6574 = vsub.f32 1.5, %v6573
    %v6575 = vmul.f32 %v6570, %v6574
    %vm6576 = vweird.f32 %v6559
    %vm6577 = vweird.f32 %v6570
    %vm6578 = vmor %vm6576, %vm6577
    %v6579 = vsel %vm6578, %v6570, %v6575
    %v6580 = vmul.f32 %v6546, %v6569
    %v6581 = vmul.f32 %v6547, %v6579
    %v6583 = vperm.slane %v960, 0
    %v6585 = vmul.f32 %v6580, %v6583
    %v6586 = vmul.f32 %v6581, %v6583
    %v6588 = vperm.slane %v959, 0
    %v6590 = vadd.f32 %v6585, %v6588
    %v6591 = vadd.f32 %v6586, %v6588
    %v6593 = vperm.slane %v940, 0
    %v6596 = vsel %vm1068, %v6590, 0
    %v6599 = vsel %vm1068, %v6591, 0
    %6601 = vmatpush.msra.mxu0 0.0
    %6602 = vmatpush.msra.mxu0 0.0
    %6603 = vmatpush.msra.mxu0 0.0
    %6604 = vmatpush.msra.mxu0 0.0
    %6605 = vmatpush.msra.mxu0 0.0
    %6606 = vmatpush.msra.mxu0 0.0
    %6607 = vmatpush.msra.mxu0 0.0
    %6608 = vmatpush.msra.mxu0 0.0
    %6609 = vmatpush.msra.mxu0 0.0
    %6610 = vmatpush.msra.mxu0 0.0
    %6611 = vmatpush.msra.mxu0 0.0
    %6612 = vmatpush.msra.mxu0 0.0
    %6613 = vmatpush.msra.mxu0 %v976
    %6614 = vmatpush.msra.mxu0 %v975
    %6615 = vmatpush.msra.mxu0 %v974
    %6616 = vmatpush.msra.mxu0 %v973
    %6617 = vmatmul.f32.gmra.mxu0 %v6596
    %v6618 = vpop.f32.mrf.mxu0
    %v6619 = vadd.f32 %v6593, %v6618
    %6620 = vmatmul.f32.gmra.mxu0 %v6599
    %v6621 = vpop.f32.mrf.mxu0
    %v6622 = vadd.f32 %v6593, %v6621
    %6623 = vdwg.mxu0
    %v6624 = vmax.f32 %v6619, 0.0
    %v6625 = vmax.f32 %v6622, 0.0
    %v6627 = vperm.slane %v941, 0
    %v6630 = vsel %vm1949, %v6624, 0
    %v6633 = vsel %vm1949, %v6625, 0
    %6635 = vmatpush.msra.mxu0 0.0
    %6636 = vmatpush.msra.mxu0 0.0
    %6637 = vmatpush.msra.mxu0 0.0
    %6638 = vmatpush.msra.mxu0 0.0
    %6639 = vmatpush.msra.mxu0 0.0
    %6640 = vmatpush.msra.mxu0 0.0
    %6641 = vmatpush.msra.mxu0 0.0
    %6642 = vmatpush.msra.mxu0 0.0
    %6643 = vmatpush.msra.mxu0 %v984
    %6644 = vmatpush.msra.mxu0 %v983
    %6645 = vmatpush.msra.mxu0 %v982
    %6646 = vmatpush.msra.mxu0 %v981
    %6647 = vmatpush.msra.mxu0 %v980
    %6648 = vmatpush.msra.mxu0 %v979
    %6649 = vmatpush.msra.mxu0 %v978
    %6650 = vmatpush.msra.mxu0 %v977
    %6651 = vmatmul.f32.gmra.mxu0 %v6630
    %v6652 = vpop.f32.mrf.mxu0
    %v6653 = vadd.f32 %v6627, %v6652
    %6654 = vmatmul.f32.gmra.mxu0 %v6633
    %v6655 = vpop.f32.mrf.mxu0
    %v6656 = vadd.f32 %v6627, %v6655
    %6657 = vdwg.mxu0
    %v6658 = vadd.f32 %v6590, %v6653
    %v6659 = vadd.f32 %v6591, %v6656
    %v6660 = vsel %vm1068, %v6658, 0.0
    %6661 = vadd.xlane.f32.xlu0 %v6660
    %v6662 = vpop.xlane.xlu0 %6661
    %v6663 = vsel %vm1068, %v6659, 0.0
    %6664 = vadd.xlane.f32.xlu0 %v6663
    %v6665 = vpop.xlane.xlu0 %6664
    %v6666 = vmul.f32 %v6662, %v1863
    %v6667 = vmul.f32 %v6665, %v1863
    %v6668 = vsub.f32 %v6658, %v6666
    %v6669 = vsub.f32 %v6659, %v6667
    %v6670 = vmul.f32 %v6668, %v6668
    %v6671 = vmul.f32 %v6669, %v6669
    %v6672 = vsel %vm1068, %v6670, 0.0
    %6673 = vadd.xlane.f32.xlu0 %v6672
    %v6674 = vpop.xlane.xlu0 %6673
    %v6675 = vsel %vm1068, %v6671, 0.0
    %6676 = vadd.xlane.f32.xlu0 %v6675
    %v6677 = vpop.xlane.xlu0 %6676
    %v6678 = vmul.f32 %v6674, %v1863
    %v6679 = vmul.f32 %v6677, %v1863
    %v6680 = vadd.f32 %v6678, 1e-05
    %v6681 = vadd.f32 %v6679, 1e-05
    %v6682 = vrsqrt.pop %v6680
    %v6683 = vmul.f32 %v6682, %v6680
    %v6684 = vmul.f32 %v6683, %v6682
    %v6685 = vmul.f32 0.5, %v6684
    %v6686 = vsub.f32 1.5, %v6685
    %v6687 = vmul.f32 %v6682, %v6686
    %vm6688 = vweird.f32 %v6680
    %vm6689 = vweird.f32 %v6682
    %vm6690 = vmor %vm6688, %vm6689
    %v6691 = vsel %vm6690, %v6682, %v6687
    %v6692 = vrsqrt.pop %v6681
    %v6693 = vmul.f32 %v6692, %v6681
    %v6694 = vmul.f32 %v6693, %v6692
    %v6695 = vmul.f32 0.5, %v6694
    %v6696 = vsub.f32 1.5, %v6695
    %v6697 = vmul.f32 %v6692, %v6696
    %vm6698 = vweird.f32 %v6681
    %vm6699 = vweird.f32 %v6692
    %vm6700 = vmor %vm6698, %vm6699
    %v6701 = vsel %vm6700, %v6692, %v6697
    %v6702 = vmul.f32 %v6668, %v6691
    %v6703 = vmul.f32 %v6669, %v6701
    %v6705 = vperm.slane %v962, 0
    %v6707 = vmul.f32 %v6702, %v6705
    %v6708 = vmul.f32 %v6703, %v6705
    %v6710 = vperm.slane %v961, 0
    %v6712 = vadd.f32 %v6707, %v6710
    %v6713 = vadd.f32 %v6708, %v6710
    %v6714 = vsel %vm1068, %v6712, 0.0
    %6715 = vadd.xlane.f32.xlu0 %v6714
    %v6716 = vpop.xlane.xlu0 %6715
    %v6717 = vsel %vm1068, %v6713, 0.0
    %6718 = vadd.xlane.f32.xlu0 %v6717
    %v6719 = vpop.xlane.xlu0 %6718
    %v6720 = vmul.f32 %v6716, %v1863
    %v6721 = vmul.f32 %v6719, %v1863
    %v6722 = vsub.f32 %v6712, %v6720
    %v6723 = vsub.f32 %v6713, %v6721
    %v6724 = vmul.f32 %v6722, %v6722
    %v6725 = vmul.f32 %v6723, %v6723
    %v6726 = vsel %vm1068, %v6724, 0.0
    %6727 = vadd.xlane.f32.xlu0 %v6726
    %v6728 = vpop.xlane.xlu0 %6727
    %v6729 = vsel %vm1068, %v6725, 0.0
    %6730 = vadd.xlane.f32.xlu0 %v6729
    %v6731 = vpop.xlane.xlu0 %6730
    %v6732 = vmul.f32 %v6728, %v1863
    %v6733 = vmul.f32 %v6731, %v1863
    %v6734 = vadd.f32 %v6732, 1e-05
    %v6735 = vadd.f32 %v6733, 1e-05
    %v6736 = vrsqrt.pop %v6734
    %v6737 = vmul.f32 %v6736, %v6734
    %v6738 = vmul.f32 %v6737, %v6736
    %v6739 = vmul.f32 0.5, %v6738
    %v6740 = vsub.f32 1.5, %v6739
    %v6741 = vmul.f32 %v6736, %v6740
    %vm6742 = vweird.f32 %v6734
    %vm6743 = vweird.f32 %v6736
    %vm6744 = vmor %vm6742, %vm6743
    %v6745 = vsel %vm6744, %v6736, %v6741
    %v6746 = vrsqrt.pop %v6735
    %v6747 = vmul.f32 %v6746, %v6735
    %v6748 = vmul.f32 %v6747, %v6746
    %v6749 = vmul.f32 0.5, %v6748
    %v6750 = vsub.f32 1.5, %v6749
    %v6751 = vmul.f32 %v6746, %v6750
    %vm6752 = vweird.f32 %v6735
    %vm6753 = vweird.f32 %v6746
    %vm6754 = vmor %vm6752, %vm6753
    %v6755 = vsel %vm6754, %v6746, %v6751
    %v6756 = vmul.f32 %v6722, %v6745
    %v6757 = vmul.f32 %v6723, %v6755
    %v6759 = vperm.slane %v986, 0
    %v6761 = vmul.f32 %v6756, %v6759
    %v6762 = vmul.f32 %v6757, %v6759
    %v6764 = vperm.slane %v985, 0
    %v6766 = vadd.f32 %v6761, %v6764
    %v6767 = vadd.f32 %v6762, %v6764
    %v6769 = vperm.slane %v1045, 0
    %v6772 = vsel %vm1068, %v6766, 0
    %v6775 = vsel %vm1068, %v6767, 0
    %6777 = vmatpush.msra.mxu0 0.0
    %6778 = vmatpush.msra.mxu0 0.0
    %6779 = vmatpush.msra.mxu0 0.0
    %6780 = vmatpush.msra.mxu0 0.0
    %6781 = vmatpush.msra.mxu0 0.0
    %6782 = vmatpush.msra.mxu0 0.0
    %6783 = vmatpush.msra.mxu0 0.0
    %6784 = vmatpush.msra.mxu0 0.0
    %6785 = vmatpush.msra.mxu0 0.0
    %6786 = vmatpush.msra.mxu0 0.0
    %6787 = vmatpush.msra.mxu0 0.0
    %6788 = vmatpush.msra.mxu0 0.0
    %6789 = vmatpush.msra.mxu0 %v1049
    %6790 = vmatpush.msra.mxu0 %v1048
    %6791 = vmatpush.msra.mxu0 %v1047
    %6792 = vmatpush.msra.mxu0 %v1046
    %6793 = vmatmul.f32.gmra.mxu0 %v6772
    %v6794 = vpop.f32.mrf.mxu0
    %v6795 = vadd.f32 %v6769, %v6794
    %6796 = vmatmul.f32.gmra.mxu0 %v6775
    %v6797 = vpop.f32.mrf.mxu0
    %v6798 = vadd.f32 %v6769, %v6797
    %6799 = vdwg.mxu0
    %6801 = vrot.lane.b32.xlu0 %v6798, 32
    %v6802 = vpop.permute.xlu0 %6801
    %v6804 = vsel %vm1068, %v6795, %v6802
    %6805 = vst.msk [vmem:[%s147] sm:$0xff] %vm1949, %v6804
    // Predicated region
    $region470: #{traj_transformer_forward.1} parent=1 // pred_check
      _
    $region471: #{traj_transformer_forward.1} parent=1 // pred_check_branch
      %6807 = sbr.rel (0) target = $region473
    $region472: #{traj_transformer_forward.1} parent=1 // pred_region
      _
    $region473: #{traj_transformer_forward.1} parent=1 // pred_fallthru
      _
    // Predicated region
    $region474: #{traj_transformer_forward.1} parent=1 // pred_check
      _
    $region475: #{traj_transformer_forward.1} parent=1 // pred_check_branch
      %6809 = sbr.rel (0) target = $region477
    $region476: #{traj_transformer_forward.1} parent=1 // pred_region
      _
    $region477: #{traj_transformer_forward.1} parent=1 // pred_fallthru
      _
    %6810 = vsyncpa [#allocation3], 1
    %6811 = vsyncpa [#allocation5], 1
    %6812 = vsyncpa [#allocation8], 1
    %6813 = vsyncpa [#allocation11], 1
    %6814 = vsyncpa [#allocation14], 1
    %6815 = vsyncpa [#allocation17], 1
    %6816 = vsyncpa [#allocation20], 1
    %6817 = vsyncpa [#allocation23], 1
    %6818 = vsyncpa [#allocation26], 1
    %6819 = vsyncpa [#allocation29], 1
    %6820 = vsyncpa [#allocation32], 1
    %6821 = vsyncpa [#allocation35], 1
    %6822 = vsyncpa [#allocation38], 1
    %6823 = vsyncpa [#allocation41], 1
    %6824 = vsyncpa [#allocation44], 1
    %6825 = vsyncpa [#allocation47], 1
    %6826 = vsyncpa [#allocation50], 1
    %6827 = vsyncpa [#allocation53], 1
    %6828 = vsyncpa [#allocation56], 1
    %6829 = vsyncpa [#allocation59], 1
    %6830 = vsyncpa [#allocation62], 1
    %6831 = vsyncpa [#allocation65], 1
    %6832 = vsyncpa [#allocation68], 1

</llo_original>
